<compile_context>
chip_gen: v5e
topology: v5e:2x2
jax: 0.10.0
libtpu: 0.0.40
codegen_flags: <defaults>
</compile_context>

<pallas_src>
import functools

import jax
import jax.numpy as jnp
from jax import lax
from jax.experimental import pallas as pl
from jax.experimental.pallas import tpu as pltpu


def _activate(x, activation):
    """Activation used by the layer. SimpleMDNetNew instantiates it with 'silu'."""
    if activation == "relu":
        return jnp.maximum(x, 0.0)
    if activation == "silu":
        return x * (1.0 / (1.0 + jnp.exp(-x)))
    raise ValueError(f"unsupported activation: {activation}")


# ----------------------------------------------------------------------------
# Main kernel: edge-tiled message computation + segment-sum accumulation.
# Grid = (num_core_splits, tiles_per_split); leading axis is "parallel" so v7x's
# two TensorCores each process half of the edge tiles into their own partial
# edge_emb accumulator.
# ----------------------------------------------------------------------------
def _smooth_conv_edge_kernel(
    ef_ref, src_ref, dstc_ref, dstr_ref,                       # edge streams
    h_ref, wsd_ref, bsd_ref,                                   # resident node feats / fused src+dst affine
    we1_ref, be1_ref, we2_ref, be2_ref,                        # edge_affine
    wt1_ref, bt1_ref, wt2_ref, bt2_ref,                        # theta_edge
    part_ref,                                                  # output: partial edge_emb [1, N, Dn]
    acc_ref, table_ref,                                        # scratch
    *, activation, dn, hidden,
):
    f32 = jnp.float32
    cdt = h_ref.dtype                                          # compute (MXU) dtype
    k = pl.program_id(1)
    N = acc_ref.shape[0]
    ET = ef_ref.shape[0]

    # --- once per core-split: zero the accumulator and build the node table ---
    # table = [ h | src_code | dst_code ]  (src/dst affine fused into one matmul)
    @pl.when(k == 0)
    def _():
        acc_ref[...] = jnp.zeros_like(acc_ref)
        h = h_ref[...]                                                       # [N, Dn]
        codes = jnp.dot(h, wsd_ref[...], preferred_element_type=f32) + bsd_ref[...]
        table_ref[:, :dn] = h
        table_ref[:, dn:] = codes.astype(cdt)                               # [N, 2H]

    # --- in-kernel gathers from the VMEM-resident node table (MXU one-hots) ---
    # Padded edges carry sentinel index N -> all-zero one-hot row -> zero message.
    lane_ids = lax.broadcasted_iota(jnp.int32, (ET, N), 1)
    src_oh = (lane_ids == src_ref[...]).astype(cdt)                          # [ET, N]
    dst_oh = (lane_ids == dstc_ref[...]).astype(cdt)                         # [ET, N]
    g_src = jnp.dot(src_oh, table_ref[:, : dn + hidden],
                    preferred_element_type=f32)                              # [ET, Dn+H]
    hs = g_src[:, :dn]                                                       # h[src]
    sc = g_src[:, dn:]                                                       # src_code[src]
    dc = jnp.dot(dst_oh, table_ref[:, dn + hidden :],
                 preferred_element_type=f32)                                 # dst_code[dst]

    # --- edge_affine: Linear -> act -> Linear ---
    e = ef_ref[...]
    ec = _activate(jnp.dot(e, we1_ref[...], preferred_element_type=f32) + be1_ref[...],
                   activation)
    ec = jnp.dot(ec.astype(cdt), we2_ref[...], preferred_element_type=f32) + be2_ref[...]

    # --- theta_edge: act -> Linear -> act -> Linear (activation_first MLP) ---
    th = _activate(ec + sc + dc, activation)
    th = _activate(jnp.dot(th.astype(cdt), wt1_ref[...], preferred_element_type=f32)
                   + bt1_ref[...], activation)
    e_emb = jnp.dot(th.astype(cdt), wt2_ref[...], preferred_element_type=f32) + bt2_ref[...]

    # --- message m = h_src * e_emb  (fn.u_mul_e) ---
    m = (hs * e_emb).astype(cdt)                                             # [ET, Dn]

    # --- segment-sum over dst via transposed one-hot matmul (K = ET) ---
    scat_oh = (lax.broadcasted_iota(jnp.int32, (N, ET), 0) == dstr_ref[...]).astype(cdt)
    acc_ref[...] += jnp.dot(scat_oh, m, preferred_element_type=f32)          # [N, Dn]

    # --- write this core-split's partial edge_emb on its last edge tile ---
    @pl.when(k == pl.num_programs(1) - 1)
    def _():
        part_ref[0, :, :] = acc_ref[...]


# ----------------------------------------------------------------------------
# Finalize kernel: combine per-core partial edge_emb slabs and apply
#   out = phi( act( phi_dst(h) + phi_edge(edge_emb) ) )
# with phi_dst / phi_edge fused as concat([h, edge_emb]) @ [w_pd ; w_pe]  (K = 2*Dn).
# ----------------------------------------------------------------------------
def _finalize_kernel(part_ref, h_ref, wpdpe_ref, bpdpe_ref, wphi_ref, bphi_ref,
                     out_ref, *, activation):
    f32 = jnp.float32
    cdt = h_ref.dtype
    edge_emb = part_ref[0]
    for c in range(1, part_ref.shape[0]):                   # static small loop (NC)
        edge_emb = edge_emb + part_ref[c]
    zin = jnp.concatenate([h_ref[...], edge_emb.astype(cdt)], axis=1)        # [N, 2*Dn]
    z = _activate(jnp.dot(zin, wpdpe_ref[...], preferred_element_type=f32)
                  + bpdpe_ref[...], activation)
    out_ref[...] = (
        jnp.dot(z.astype(cdt), wphi_ref[...], preferred_element_type=f32) + bphi_ref[...]
    ).astype(out_ref.dtype)


# ----------------------------------------------------------------------------
# Wrapper
# ----------------------------------------------------------------------------
def smooth_conv_layer(node_feat, edge_feat, src_idx, dst_idx, params, *,
                      edge_tile=512, num_core_splits=2,
                      compute_dtype=jnp.bfloat16, activation="silu"):
    """All matmuls / activations / gathers / the scatter-sum run in Pallas kernels.
    The wrapper only pads, reshapes index vectors and concatenates weights."""
    f32 = jnp.float32
    cdt = compute_dtype
    N, Dn = node_feat.shape
    E, De = edge_feat.shape
    H = params["w_s"].shape[1]
    Dout = params["w_phi"].shape[1]

    ET = edge_tile
    NC = num_core_splits
    chunk = ET * NC
    E_pad = ((E + chunk - 1) // chunk) * chunk
    pad = E_pad - E
    TPC = E_pad // chunk                                  # edge tiles per core-split

    # --- edge streams: features (cdt) + src/dst indices (two layouts for dst:
    #     column form for the gather one-hot, row form for the scatter one-hot).
    #     Padded edges use sentinel index N -> zero one-hot rows (zero messages). ---
    ef = jnp.pad(edge_feat, ((0, pad), (0, 0))).astype(cdt)
    src_pad = jnp.pad(src_idx.astype(jnp.int32), (0, pad), constant_values=N)
    dst_pad = jnp.pad(dst_idx.astype(jnp.int32), (0, pad), constant_values=N)
    src_col = src_pad.reshape(E_pad, 1)
    dst_col = dst_pad.reshape(E_pad, 1)
    dst_row = dst_pad.reshape(1, E_pad)

    # --- resident node features + weights (weights in compute dtype, biases f32) ---
    h_c = node_feat.astype(cdt)
    w_sd = jnp.concatenate([params["w_s"], params["w_d"]], axis=1).astype(cdt)   # [Dn, 2H]
    b_sd = jnp.concatenate([params["b_s"], params["b_d"]], axis=1)               # [1, 2H]
    w_e1 = params["w_e1"].astype(cdt)
    w_e2 = params["w_e2"].astype(cdt)
    w_t1 = params["w_t1"].astype(cdt)
    w_t2 = params["w_t2"].astype(cdt)

    edge_specs = [
        pl.BlockSpec((ET, De), lambda c, k: (c * TPC + k, 0)),   # edge features
        pl.BlockSpec((ET, 1), lambda c, k: (c * TPC + k, 0)),    # src idx (column)
        pl.BlockSpec((ET, 1), lambda c, k: (c * TPC + k, 0)),    # dst idx (column)
        pl.BlockSpec((1, ET), lambda c, k: (0, c * TPC + k)),    # dst idx (row)
    ]
    residents = [h_c, w_sd, b_sd,
                 w_e1, params["b_e1"], w_e2, params["b_e2"],
                 w_t1, params["b_t1"], w_t2, params["b_t2"]]
    resident_specs = [pl.BlockSpec(a.shape, lambda c, k: (0, 0)) for a in residents]

    kern = functools.partial(_smooth_conv_edge_kernel,
                             activation=activation, dn=Dn, hidden=H)
    partial_emb = pl.pallas_call(
        kern,
        out_shape=jax.ShapeDtypeStruct((NC, N, Dn), f32),
        grid=(NC, TPC),
        in_specs=edge_specs + resident_specs,
        out_specs=pl.BlockSpec((1, N, Dn), lambda c, k: (c, 0, 0)),
        scratch_shapes=[
            pltpu.VMEM((N, Dn), f32),            # per-core edge_emb accumulator
            pltpu.VMEM((N, Dn + 2 * H), cdt),    # node table [h | src_code | dst_code]
        ],
        compiler_params=pltpu.CompilerParams(
            dimension_semantics=("parallel", "arbitrary"),   # core split x edge reduction
            vmem_limit_bytes=48 * 1024 * 1024,
        ),
    )(ef, src_col, dst_col, dst_row, *residents)

    # --- finalize: combine partials + fused phi_dst/phi_edge + phi ---
    w_pdpe = jnp.concatenate([params["w_pd"], params["w_pe"]], axis=0).astype(cdt)  # [2*Dn, H]
    b_pdpe = params["b_pd"] + params["b_pe"]                                        # [1, H]
    Dout_pad = ((Dout + 127) // 128) * 128
    w_phi_p = jnp.pad(params["w_phi"], ((0, 0), (0, Dout_pad - Dout))).astype(cdt)
    b_phi_p = jnp.pad(params["b_phi"], ((0, 0), (0, Dout_pad - Dout)))

    out_padded = pl.pallas_call(
        functools.partial(_finalize_kernel, activation=activation),
        out_shape=jax.ShapeDtypeStruct((N, Dout_pad), f32),
        grid=(1,),
        in_specs=[
            pl.BlockSpec((NC, N, Dn), lambda i: (0, 0, 0)),
            pl.BlockSpec((N, Dn), lambda i: (0, 0)),
            pl.BlockSpec((2 * Dn, H), lambda i: (0, 0)),
            pl.BlockSpec((1, H), lambda i: (0, 0)),
            pl.BlockSpec((H, Dout_pad), lambda i: (0, 0)),
            pl.BlockSpec((1, Dout_pad), lambda i: (0, 0)),
        ],
        out_specs=pl.BlockSpec((N, Dout_pad), lambda i: (0, 0)),
        compiler_params=pltpu.CompilerParams(dimension_semantics=("arbitrary",)),
    )(partial_emb, h_c, w_pdpe, b_pdpe, w_phi_p, b_phi_p)
    return out_padded[:, :Dout]


# ----------------------------------------------------------------------------
# Params + pure-JAX reference
# ----------------------------------------------------------------------------
def init_params(key, dn, de, hidden, dout):
    """Deterministic torch-Linear-style init: U(-1/sqrt(fan_in), 1/sqrt(fan_in))."""
    def linear(k, fan_in, fan_out):
        kw, kb = jax.random.split(k)
        bound = 1.0 / jnp.sqrt(float(fan_in))
        w = jax.random.uniform(kw, (fan_in, fan_out), jnp.float32, -bound, bound)
        b = jax.random.uniform(kb, (1, fan_out), jnp.float32, -bound, bound)
        return w, b

    keys = jax.random.split(key, 9)
    p = {}
    p["w_e1"], p["b_e1"] = linear(keys[0], de, hidden)      # edge_affine l0
    p["w_e2"], p["b_e2"] = linear(keys[1], hidden, hidden)  # edge_affine l1
    p["w_s"], p["b_s"] = linear(keys[2], dn, hidden)        # src_affine
    p["w_d"], p["b_d"] = linear(keys[3], dn, hidden)        # dst_affine
    p["w_t1"], p["b_t1"] = linear(keys[4], hidden, hidden)  # theta_edge l0
    p["w_t2"], p["b_t2"] = linear(keys[5], hidden, dn)      # theta_edge l1
    p["w_pd"], p["b_pd"] = linear(keys[6], dn, hidden)      # phi_dst
    p["w_pe"], p["b_pe"] = linear(keys[7], dn, hidden)      # phi_edge
    p["w_phi"], p["b_phi"] = linear(keys[8], hidden, dout)  # phi
    return p


def reference(node_feat, edge_feat, src_idx, dst_idx, p, activation="silu"):
    """Pure-JAX f32 reference of the PyTorch forward (eval mode, unfused weights)."""
    hs = node_feat[src_idx]
    hd = node_feat[dst_idx]
    ec = _activate(edge_feat @ p["w_e1"] + p["b_e1"], activation) @ p["w_e2"] + p["b_e2"]
    sc = hs @ p["w_s"] + p["b_s"]
    dc = hd @ p["w_d"] + p["b_d"]
    t = _activate(ec + sc + dc, activation)
    t = _activate(t @ p["w_t1"] + p["b_t1"], activation)
    e_emb = t @ p["w_t2"] + p["b_t2"]
    m = hs * e_emb
    edge_emb = jax.ops.segment_sum(m, dst_idx, num_segments=node_feat.shape[0])
    z = _activate(node_feat @ p["w_pd"] + p["b_pd"]
                  + edge_emb @ p["w_pe"] + p["b_pe"], activation)
    return z @ p["w_phi"] + p["b_phi"]


if __name__ == "__main__":
    # Module-default feature widths (hidden_dim = edge_emb_dim = encoding_size = 128)
    # keep every operand lane-dense.  Small node/edge counts; E is not a multiple of
    # the (edge_tile * num_core_splits) chunk so the padding path is exercised.
    N = 128           # nodes
    E = 1500          # edges
    DN = 128          # in_node_feats (encoding_size)
    DE = 128          # in_edge_feats (edge_embedding_dim)
    H = 128           # hidden_dim
    DOUT = 128        # out_node_feats
    ACT = "silu"      # SimpleMDNetNew instantiates the conv layers with silu

    key = jax.random.PRNGKey(0)
    k_nf, k_ef, k_src, k_dst, k_par = jax.random.split(key, 5)

    node_feat = jax.random.normal(k_nf, (N, DN), jnp.float32)
    edge_feat = jax.random.normal(k_ef, (E, DE), jnp.float32)
    src_idx = jax.random.randint(k_src, (E,), 0, N, jnp.int32)
    dst_idx = jax.random.randint(k_dst, (E,), 0, N, jnp.int32)
    params = init_params(k_par, DN, DE, H, DOUT)

    ref = reference(node_feat, edge_feat, src_idx, dst_idx, params, activation=ACT)

    # --- exact-structure check: f32 compute path, tight tolerance ---
    out_f32 = smooth_conv_layer(node_feat, edge_feat, src_idx, dst_idx, params,
                                edge_tile=512, num_core_splits=2,
                                compute_dtype=jnp.float32, activation=ACT)
    out_f32 = jax.block_until_ready(out_f32)
    assert out_f32.shape == (N, DOUT)
    max_diff_f32 = float(jnp.max(jnp.abs(out_f32 - ref)))
    assert jnp.allclose(out_f32, ref, atol=2e-3, rtol=2e-3), \
        f"f32 path mismatch vs JAX reference (max diff {max_diff_f32})"

    # --- production path: bf16 MXU inputs (expected precision trade-off) ---
    out_bf16 = smooth_conv_layer(node_feat, edge_feat, src_idx, dst_idx, params,
                                 edge_tile=512, num_core_splits=2,
                                 compute_dtype=jnp.bfloat16, activation=ACT)
    out_bf16 = jax.block_until_ready(out_bf16)
    assert out_bf16.shape == (N, DOUT)
    rel_err = float(jnp.linalg.norm(out_bf16 - ref) / jnp.linalg.norm(ref))
    assert rel_err < 3e-2, f"bf16 path relative error too large: {rel_err}"

    print("KERNEL_OK")
</pallas_src>

<mosaic_0001>
module attributes {stable_mosaic.version = 11 : i64} {
  func.func @_smooth_conv_edge_kernel(%arg0: i32, %arg1: i32, %arg2: memref<512x128xf32, #tpu.memory_space<vmem>>, %arg3: memref<512x1xi32, #tpu.memory_space<vmem>>, %arg4: memref<512x1xi32, #tpu.memory_space<vmem>>, %arg5: memref<1x512xi32, #tpu.memory_space<vmem>>, %arg6: memref<128x128xf32, #tpu.memory_space<vmem>>, %arg7: memref<128x256xf32, #tpu.memory_space<vmem>>, %arg8: memref<1x256xf32, #tpu.memory_space<vmem>>, %arg9: memref<128x128xf32, #tpu.memory_space<vmem>>, %arg10: memref<1x128xf32, #tpu.memory_space<vmem>>, %arg11: memref<128x128xf32, #tpu.memory_space<vmem>>, %arg12: memref<1x128xf32, #tpu.memory_space<vmem>>, %arg13: memref<128x128xf32, #tpu.memory_space<vmem>>, %arg14: memref<1x128xf32, #tpu.memory_space<vmem>>, %arg15: memref<128x128xf32, #tpu.memory_space<vmem>>, %arg16: memref<1x128xf32, #tpu.memory_space<vmem>>, %arg17: memref<1x128x128xf32, #tpu.memory_space<vmem>>, %arg18: memref<128x128xf32, #tpu.memory_space<vmem>>, %arg19: memref<128x384xf32, #tpu.memory_space<vmem>>) attributes {dimension_semantics = [#tpu.dimension_semantics<parallel>, #tpu.dimension_semantics<arbitrary>], iteration_bounds = array<i64: 2, 2>, scalar_prefetch = 0 : i64, scratch_operands = 2 : i64, tpu.core_type = #tpu.core_type<tc>, window_params = [{transform_indices = @transform_0, window_bounds = array<i64: 512, 128>}, {transform_indices = @transform_1, window_bounds = array<i64: 512, 1>}, {transform_indices = @transform_2, window_bounds = array<i64: 512, 1>}, {transform_indices = @transform_3, window_bounds = array<i64: 1, 512>}, {pipeline_mode = #tpu.pipeline_mode<synchronous>, transform_indices = @transform_4, window_bounds = array<i64: 128, 128>}, {pipeline_mode = #tpu.pipeline_mode<synchronous>, transform_indices = @transform_5, window_bounds = array<i64: 128, 256>}, {pipeline_mode = #tpu.pipeline_mode<synchronous>, transform_indices = @transform_6, window_bounds = array<i64: 1, 256>}, {pipeline_mode = #tpu.pipeline_mode<synchronous>, transform_indices = @transform_7, window_bounds = array<i64: 128, 128>}, {pipeline_mode = #tpu.pipeline_mode<synchronous>, transform_indices = @transform_8, window_bounds = array<i64: 1, 128>}, {pipeline_mode = #tpu.pipeline_mode<synchronous>, transform_indices = @transform_9, window_bounds = array<i64: 128, 128>}, {pipeline_mode = #tpu.pipeline_mode<synchronous>, transform_indices = @transform_10, window_bounds = array<i64: 1, 128>}, {pipeline_mode = #tpu.pipeline_mode<synchronous>, transform_indices = @transform_11, window_bounds = array<i64: 128, 128>}, {pipeline_mode = #tpu.pipeline_mode<synchronous>, transform_indices = @transform_12, window_bounds = array<i64: 1, 128>}, {pipeline_mode = #tpu.pipeline_mode<synchronous>, transform_indices = @transform_13, window_bounds = array<i64: 128, 128>}, {pipeline_mode = #tpu.pipeline_mode<synchronous>, transform_indices = @transform_14, window_bounds = array<i64: 1, 128>}, {transform_indices = @transform_15, window_bounds = array<i64: 1, 128, 128>}]} {
    %c0_i32 = arith.constant 0 : i32
    %0 = arith.cmpi eq, %arg1, %c0_i32 : i32
    %1 = arith.extui %0 : i1 to i32
    %c0_i32_0 = arith.constant 0 : i32
    %2 = arith.cmpi ne, %1, %c0_i32_0 : i32
    scf.if %2 {
      %cst_47 = arith.constant 0.000000e+00 : f32
      %81 = vector.broadcast %cst_47 : f32 to vector<128x128xf32>
      %c0_48 = arith.constant 0 : index
      %c0_49 = arith.constant 0 : index
      %82 = vector.load %arg18[%c0_48, %c0_49] : memref<128x128xf32, #tpu.memory_space<vmem>>, vector<128x128xf32>
      tpu.vector_store %arg18[%c0_48, %c0_49], %81 {strides = array<i32>} : memref<128x128xf32, #tpu.memory_space<vmem>>, vector<128x128xf32>,
      %c0_50 = arith.constant 0 : index
      %c0_51 = arith.constant 0 : index
      %83 = vector.load %arg6[%c0_50, %c0_51] : memref<128x128xf32, #tpu.memory_space<vmem>>, vector<128x128xf32>
      %c0_52 = arith.constant 0 : index
      %c0_53 = arith.constant 0 : index
      %84 = vector.load %arg7[%c0_52, %c0_53] : memref<128x256xf32, #tpu.memory_space<vmem>>, vector<128x256xf32>
      %cst_54 = arith.constant dense<0.000000e+00> : vector<128x256xf32>
      %85 = tpu.matmul %83, %84, %cst_54 {dimension_numbers = #tpu.dot_dimension_numbers<[1], [0], [0], [1], [0, 0, 1, 1], [], []>} : vector<128x128xf32>, vector<128x256xf32>, vector<128x256xf32> -> vector<128x256xf32>
      %c0_55 = arith.constant 0 : index
      %c0_56 = arith.constant 0 : index
      %86 = vector.load %arg8[%c0_55, %c0_56] : memref<1x256xf32, #tpu.memory_space<vmem>>, vector<1x256xf32>
      %87 = vector.broadcast %86 : vector<1x256xf32> to vector<128x256xf32>
      %88 = arith.addf %85, %87 : vector<128x256xf32>
      %c0_57 = arith.constant 0 : index
      %c0_58 = arith.constant 0 : index
      %89 = vector.load %arg19[%c0_57, %c0_58] : memref<128x384xf32, #tpu.memory_space<vmem>>, vector<128x128xf32>
      tpu.vector_store %arg19[%c0_57, %c0_58], %83 {strides = array<i32>} : memref<128x384xf32, #tpu.memory_space<vmem>>, vector<128x128xf32>,
      %c0_59 = arith.constant 0 : index
      %c128 = arith.constant 128 : index
      %90 = vector.load %arg19[%c0_59, %c128] : memref<128x384xf32, #tpu.memory_space<vmem>>, vector<128x256xf32>
      tpu.vector_store %arg19[%c0_59, %c128], %88 {strides = array<i32>} : memref<128x384xf32, #tpu.memory_space<vmem>>, vector<128x256xf32>,
    } else {
    }
    %3 = tpu.iota {dimensions = array<i32: 1>} : vector<512x128xi32>
    %c0 = arith.constant 0 : index
    %c0_1 = arith.constant 0 : index
    %4 = vector.load %arg3[%c0, %c0_1] : memref<512x1xi32, #tpu.memory_space<vmem>>, vector<512x1xi32>
    %5 = vector.broadcast %4 : vector<512x1xi32> to vector<512x128xi32>
    %6 = arith.cmpi eq, %3, %5 : vector<512x128xi32>
    %7 = arith.extui %6 : vector<512x128xi1> to vector<512x128xi32>
    %8 = arith.sitofp %7 : vector<512x128xi32> to vector<512x128xf32>
    %c0_2 = arith.constant 0 : index
    %c0_3 = arith.constant 0 : index
    %9 = vector.load %arg4[%c0_2, %c0_3] : memref<512x1xi32, #tpu.memory_space<vmem>>, vector<512x1xi32>
    %10 = vector.broadcast %9 : vector<512x1xi32> to vector<512x128xi32>
    %11 = arith.cmpi eq, %3, %10 : vector<512x128xi32>
    %12 = arith.extui %11 : vector<512x128xi1> to vector<512x128xi32>
    %13 = arith.sitofp %12 : vector<512x128xi32> to vector<512x128xf32>
    %c0_4 = arith.constant 0 : index
    %c0_5 = arith.constant 0 : index
    %14 = vector.load %arg19[%c0_4, %c0_5] : memref<128x384xf32, #tpu.memory_space<vmem>>, vector<128x256xf32>
    %cst = arith.constant dense<0.000000e+00> : vector<512x256xf32>
    %15 = tpu.matmul %8, %14, %cst {dimension_numbers = #tpu.dot_dimension_numbers<[1], [0], [0], [1], [0, 0, 1, 1], [], []>} : vector<512x128xf32>, vector<128x256xf32>, vector<512x256xf32> -> vector<512x256xf32>
    %16 = vector.extract_strided_slice %15 {offsets = [0, 0], sizes = [512, 128], strides = [1, 1]} : vector<512x256xf32> to vector<512x128xf32>
    %17 = vector.extract_strided_slice %15 {offsets = [0, 128], sizes = [512, 128], strides = [1, 1]} : vector<512x256xf32> to vector<512x128xf32>
    %c0_6 = arith.constant 0 : index
    %c256 = arith.constant 256 : index
    %18 = vector.load %arg19[%c0_6, %c256] : memref<128x384xf32, #tpu.memory_space<vmem>>, vector<128x128xf32>
    %cst_7 = arith.constant dense<0.000000e+00> : vector<512x128xf32>
    %19 = tpu.matmul %13, %18, %cst_7 {dimension_numbers = #tpu.dot_dimension_numbers<[1], [0], [0], [1], [0, 0, 1, 1], [], []>} : vector<512x128xf32>, vector<128x128xf32>, vector<512x128xf32> -> vector<512x128xf32>
    %c0_8 = arith.constant 0 : index
    %c0_9 = arith.constant 0 : index
    %20 = vector.load %arg2[%c0_8, %c0_9] : memref<512x128xf32, #tpu.memory_space<vmem>>, vector<512x128xf32>
    %c0_10 = arith.constant 0 : index
    %c0_11 = arith.constant 0 : index
    %21 = vector.load %arg9[%c0_10, %c0_11] : memref<128x128xf32, #tpu.memory_space<vmem>>, vector<128x128xf32>
    %cst_12 = arith.constant dense<0.000000e+00> : vector<512x128xf32>
    %22 = tpu.matmul %20, %21, %cst_12 {dimension_numbers = #tpu.dot_dimension_numbers<[1], [0], [0], [1], [0, 0, 1, 1], [], []>} : vector<512x128xf32>, vector<128x128xf32>, vector<512x128xf32> -> vector<512x128xf32>
    %c0_13 = arith.constant 0 : index
    %c0_14 = arith.constant 0 : index
    %23 = vector.load %arg10[%c0_13, %c0_14] : memref<1x128xf32, #tpu.memory_space<vmem>>, vector<1x128xf32>
    %24 = vector.broadcast %23 : vector<1x128xf32> to vector<512x128xf32>
    %25 = arith.addf %22, %24 : vector<512x128xf32>
    %cst_15 = arith.constant 0.000000e+00 : f32
    %26 = vector.broadcast %cst_15 : f32 to vector<512x128xf32>
    %27 = arith.subf %26, %25 : vector<512x128xf32>
    %28 = math.exp %27 : vector<512x128xf32>
    %cst_16 = arith.constant 1.000000e+00 : f32
    %29 = vector.broadcast %cst_16 : f32 to vector<512x128xf32>
    %30 = arith.addf %29, %28 : vector<512x128xf32>
    %cst_17 = arith.constant 1.000000e+00 : f32
    %31 = vector.broadcast %cst_17 : f32 to vector<512x128xf32>
    %32 = arith.divf %31, %30 : vector<512x128xf32>
    %33 = arith.mulf %25, %32 : vector<512x128xf32>
    %c0_18 = arith.constant 0 : index
    %c0_19 = arith.constant 0 : index
    %34 = vector.load %arg11[%c0_18, %c0_19] : memref<128x128xf32, #tpu.memory_space<vmem>>, vector<128x128xf32>
    %cst_20 = arith.constant dense<0.000000e+00> : vector<512x128xf32>
    %35 = tpu.matmul %33, %34, %cst_20 {dimension_numbers = #tpu.dot_dimension_numbers<[1], [0], [0], [1], [0, 0, 1, 1], [], []>} : vector<512x128xf32>, vector<128x128xf32>, vector<512x128xf32> -> vector<512x128xf32>
    %c0_21 = arith.constant 0 : index
    %c0_22 = arith.constant 0 : index
    %36 = vector.load %arg12[%c0_21, %c0_22] : memref<1x128xf32, #tpu.memory_space<vmem>>, vector<1x128xf32>
    %37 = vector.broadcast %36 : vector<1x128xf32> to vector<512x128xf32>
    %38 = arith.addf %35, %37 : vector<512x128xf32>
    %39 = arith.addf %38, %17 : vector<512x128xf32>
    %40 = arith.addf %39, %19 : vector<512x128xf32>
    %cst_23 = arith.constant 0.000000e+00 : f32
    %41 = vector.broadcast %cst_23 : f32 to vector<512x128xf32>
    %42 = arith.subf %41, %40 : vector<512x128xf32>
    %43 = math.exp %42 : vector<512x128xf32>
    %cst_24 = arith.constant 1.000000e+00 : f32
    %44 = vector.broadcast %cst_24 : f32 to vector<512x128xf32>
    %45 = arith.addf %44, %43 : vector<512x128xf32>
    %cst_25 = arith.constant 1.000000e+00 : f32
    %46 = vector.broadcast %cst_25 : f32 to vector<512x128xf32>
    %47 = arith.divf %46, %45 : vector<512x128xf32>
    %48 = arith.mulf %40, %47 : vector<512x128xf32>
    %c0_26 = arith.constant 0 : index
    %c0_27 = arith.constant 0 : index
    %49 = vector.load %arg13[%c0_26, %c0_27] : memref<128x128xf32, #tpu.memory_space<vmem>>, vector<128x128xf32>
    %cst_28 = arith.constant dense<0.000000e+00> : vector<512x128xf32>
    %50 = tpu.matmul %48, %49, %cst_28 {dimension_numbers = #tpu.dot_dimension_numbers<[1], [0], [0], [1], [0, 0, 1, 1], [], []>} : vector<512x128xf32>, vector<128x128xf32>, vector<512x128xf32> -> vector<512x128xf32>
    %c0_29 = arith.constant 0 : index
    %c0_30 = arith.constant 0 : index
    %51 = vector.load %arg14[%c0_29, %c0_30] : memref<1x128xf32, #tpu.memory_space<vmem>>, vector<1x128xf32>
    %52 = vector.broadcast %51 : vector<1x128xf32> to vector<512x128xf32>
    %53 = arith.addf %50, %52 : vector<512x128xf32>
    %cst_31 = arith.constant 0.000000e+00 : f32
    %54 = vector.broadcast %cst_31 : f32 to vector<512x128xf32>
    %55 = arith.subf %54, %53 : vector<512x128xf32>
    %56 = math.exp %55 : vector<512x128xf32>
    %cst_32 = arith.constant 1.000000e+00 : f32
    %57 = vector.broadcast %cst_32 : f32 to vector<512x128xf32>
    %58 = arith.addf %57, %56 : vector<512x128xf32>
    %cst_33 = arith.constant 1.000000e+00 : f32
    %59 = vector.broadcast %cst_33 : f32 to vector<512x128xf32>
    %60 = arith.divf %59, %58 : vector<512x128xf32>
    %61 = arith.mulf %53, %60 : vector<512x128xf32>
    %c0_34 = arith.constant 0 : index
    %c0_35 = arith.constant 0 : index
    %62 = vector.load %arg15[%c0_34, %c0_35] : memref<128x128xf32, #tpu.memory_space<vmem>>, vector<128x128xf32>
    %cst_36 = arith.constant dense<0.000000e+00> : vector<512x128xf32>
    %63 = tpu.matmul %61, %62, %cst_36 {dimension_numbers = #tpu.dot_dimension_numbers<[1], [0], [0], [1], [0, 0, 1, 1], [], []>} : vector<512x128xf32>, vector<128x128xf32>, vector<512x128xf32> -> vector<512x128xf32>
    %c0_37 = arith.constant 0 : index
    %c0_38 = arith.constant 0 : index
    %64 = vector.load %arg16[%c0_37, %c0_38] : memref<1x128xf32, #tpu.memory_space<vmem>>, vector<1x128xf32>
    %65 = vector.broadcast %64 : vector<1x128xf32> to vector<512x128xf32>
    %66 = arith.addf %63, %65 : vector<512x128xf32>
    %67 = arith.mulf %16, %66 : vector<512x128xf32>
    %68 = tpu.iota {dimensions = array<i32: 0>} : vector<128x512xi32>
    %c0_39 = arith.constant 0 : index
    %c0_40 = arith.constant 0 : index
    %69 = vector.load %arg5[%c0_39, %c0_40] : memref<1x512xi32, #tpu.memory_space<vmem>>, vector<1x512xi32>
    %70 = vector.broadcast %69 : vector<1x512xi32> to vector<128x512xi32>
    %71 = arith.cmpi eq, %68, %70 : vector<128x512xi32>
    %72 = arith.extui %71 : vector<128x512xi1> to vector<128x512xi32>
    %73 = arith.sitofp %72 : vector<128x512xi32> to vector<128x512xf32>
    %c0_41 = arith.constant 0 : index
    %c0_42 = arith.constant 0 : index
    %74 = vector.load %arg18[%c0_41, %c0_42] : memref<128x128xf32, #tpu.memory_space<vmem>>, vector<128x128xf32>
    %cst_43 = arith.constant dense<0.000000e+00> : vector<128x128xf32>
    %75 = tpu.matmul %73, %67, %cst_43 {dimension_numbers = #tpu.dot_dimension_numbers<[1], [0], [0], [1], [0, 0, 1, 1], [], []>} : vector<128x512xf32>, vector<512x128xf32>, vector<128x128xf32> -> vector<128x128xf32>
    %76 = arith.addf %74, %75 : vector<128x128xf32>
    %c0_44 = arith.constant 0 : index
    %c0_45 = arith.constant 0 : index
    %77 = vector.load %arg18[%c0_44, %c0_45] : memref<128x128xf32, #tpu.memory_space<vmem>>, vector<128x128xf32>
    tpu.vector_store %arg18[%c0_44, %c0_45], %76 {strides = array<i32>} : memref<128x128xf32, #tpu.memory_space<vmem>>, vector<128x128xf32>,
    %c1_i32 = arith.constant 1 : i32
    %78 = arith.cmpi eq, %arg1, %c1_i32 : i32
    %79 = arith.extui %78 : i1 to i32
    %c0_i32_46 = arith.constant 0 : i32
    %80 = arith.cmpi ne, %79, %c0_i32_46 : i32
    scf.if %80 {
      %c0_47 = arith.constant 0 : index
      %c0_48 = arith.constant 0 : index
      %81 = vector.load %arg18[%c0_47, %c0_48] : memref<128x128xf32, #tpu.memory_space<vmem>>, vector<128x128xf32>
      %c0_49 = arith.constant 0 : index
      %c0_50 = arith.constant 0 : index
      %c0_51 = arith.constant 0 : index
      %82 = vector.load %arg17[%c0_49, %c0_50, %c0_51] : memref<1x128x128xf32, #tpu.memory_space<vmem>>, vector<1x128x128xf32>
      %83 = vector.shape_cast %82 : vector<1x128x128xf32> to vector<128x128xf32>
      %84 = vector.shape_cast %81 : vector<128x128xf32> to vector<1x128x128xf32>
      tpu.vector_store %arg17[%c0_49, %c0_50, %c0_51], %84 {strides = array<i32>} : memref<1x128x128xf32, #tpu.memory_space<vmem>>, vector<1x128x128xf32>,
    } else {
    }
    return
  }
  func.func @transform_0(%arg0: i32, %arg1: i32) -> (i32, i32) {
    %c2_i32 = arith.constant 2 : i32
    %0 = arith.muli %arg0, %c2_i32 : i32
    %1 = arith.addi %0, %arg1 : i32
    %c0_i32 = arith.constant 0 : i32
    %c0_i32_0 = arith.constant 0 : i32
    return %1, %c0_i32 : i32, i32
  }
  func.func @transform_1(%arg0: i32, %arg1: i32) -> (i32, i32) {
    %c2_i32 = arith.constant 2 : i32
    %0 = arith.muli %arg0, %c2_i32 : i32
    %1 = arith.addi %0, %arg1 : i32
    %c0_i32 = arith.constant 0 : i32
    %c0_i32_0 = arith.constant 0 : i32
    return %1, %c0_i32 : i32, i32
  }
  func.func @transform_2(%arg0: i32, %arg1: i32) -> (i32, i32) {
    %c2_i32 = arith.constant 2 : i32
    %0 = arith.muli %arg0, %c2_i32 : i32
    %1 = arith.addi %0, %arg1 : i32
    %c0_i32 = arith.constant 0 : i32
    %c0_i32_0 = arith.constant 0 : i32
    return %1, %c0_i32 : i32, i32
  }
  func.func @transform_3(%arg0: i32, %arg1: i32) -> (i32, i32) {
    %c2_i32 = arith.constant 2 : i32
    %0 = arith.muli %arg0, %c2_i32 : i32
    %1 = arith.addi %0, %arg1 : i32
    %c0_i32 = arith.constant 0 : i32
    %c0_i32_0 = arith.constant 0 : i32
    return %c0_i32, %1 : i32, i32
  }
  func.func @transform_4(%arg0: i32, %arg1: i32) -> (i32, i32) {
    %c0_i32 = arith.constant 0 : i32
    %c0_i32_0 = arith.constant 0 : i32
    %c0_i32_1 = arith.constant 0 : i32
    return %c0_i32, %c0_i32_0 : i32, i32
  }
  func.func @transform_5(%arg0: i32, %arg1: i32) -> (i32, i32) {
    %c0_i32 = arith.constant 0 : i32
    %c0_i32_0 = arith.constant 0 : i32
    %c0_i32_1 = arith.constant 0 : i32
    return %c0_i32, %c0_i32_0 : i32, i32
  }
  func.func @transform_6(%arg0: i32, %arg1: i32) -> (i32, i32) {
    %c0_i32 = arith.constant 0 : i32
    %c0_i32_0 = arith.constant 0 : i32
    %c0_i32_1 = arith.constant 0 : i32
    return %c0_i32, %c0_i32_0 : i32, i32
  }
  func.func @transform_7(%arg0: i32, %arg1: i32) -> (i32, i32) {
    %c0_i32 = arith.constant 0 : i32
    %c0_i32_0 = arith.constant 0 : i32
    %c0_i32_1 = arith.constant 0 : i32
    return %c0_i32, %c0_i32_0 : i32, i32
  }
  func.func @transform_8(%arg0: i32, %arg1: i32) -> (i32, i32) {
    %c0_i32 = arith.constant 0 : i32
    %c0_i32_0 = arith.constant 0 : i32
    %c0_i32_1 = arith.constant 0 : i32
    return %c0_i32, %c0_i32_0 : i32, i32
  }
  func.func @transform_9(%arg0: i32, %arg1: i32) -> (i32, i32) {
    %c0_i32 = arith.constant 0 : i32
    %c0_i32_0 = arith.constant 0 : i32
    %c0_i32_1 = arith.constant 0 : i32
    return %c0_i32, %c0_i32_0 : i32, i32
  }
  func.func @transform_10(%arg0: i32, %arg1: i32) -> (i32, i32) {
    %c0_i32 = arith.constant 0 : i32
    %c0_i32_0 = arith.constant 0 : i32
    %c0_i32_1 = arith.constant 0 : i32
    return %c0_i32, %c0_i32_0 : i32, i32
  }
  func.func @transform_11(%arg0: i32, %arg1: i32) -> (i32, i32) {
    %c0_i32 = arith.constant 0 : i32
    %c0_i32_0 = arith.constant 0 : i32
    %c0_i32_1 = arith.constant 0 : i32
    return %c0_i32, %c0_i32_0 : i32, i32
  }
  func.func @transform_12(%arg0: i32, %arg1: i32) -> (i32, i32) {
    %c0_i32 = arith.constant 0 : i32
    %c0_i32_0 = arith.constant 0 : i32
    %c0_i32_1 = arith.constant 0 : i32
    return %c0_i32, %c0_i32_0 : i32, i32
  }
  func.func @transform_13(%arg0: i32, %arg1: i32) -> (i32, i32) {
    %c0_i32 = arith.constant 0 : i32
    %c0_i32_0 = arith.constant 0 : i32
    %c0_i32_1 = arith.constant 0 : i32
    return %c0_i32, %c0_i32_0 : i32, i32
  }
  func.func @transform_14(%arg0: i32, %arg1: i32) -> (i32, i32) {
    %c0_i32 = arith.constant 0 : i32
    %c0_i32_0 = arith.constant 0 : i32
    %c0_i32_1 = arith.constant 0 : i32
    return %c0_i32, %c0_i32_0 : i32, i32
  }
  func.func @transform_15(%arg0: i32, %arg1: i32) -> (i32, i32, i32) {
    %c0_i32 = arith.constant 0 : i32
    %c0_i32_0 = arith.constant 0 : i32
    %c0_i32_1 = arith.constant 0 : i32
    return %arg0, %c0_i32, %c0_i32_0 : i32, i32, i32
  }
}

</mosaic_0001>

<llo_original>
// kernel: tpu_custom_call.1
$region0: #{tpu_custom_call.1}
  #allocation0 [shape = 'u32[]', space=smem, size = 0x4, offset = 0x4, fixed_abs, tag = 'smem constant byte address 0x4 - core index']
  #allocation1 [shape = 'u32[72,128]{1,0:T(1,128)}', space=vmem, size = 0x9000, scoped, tag = 'internal scratch']
  #allocation2 [shape = 'f32[128,128]{1,0:T(8,128)}', space=vmem, size = 0x10000, scoped, tag = 'scratch operand']
  #allocation3 [shape = 'f32[128,384]{1,0:T(8,128)}', space=vmem, size = 0x30000, scoped, tag = 'scratch operand']
  %s0 = inlined_call_operand.vmem [shape: f32[2048,128], index: 0, kind: input, shape index: {}]
  %s1 = inlined_call_operand.vmem [shape: s32[2048,1], index: 1, kind: input, shape index: {}]
  %s2 = inlined_call_operand.vmem [shape: s32[2048,1], index: 2, kind: input, shape index: {}]
  %s3 = inlined_call_operand.vmem [shape: s32[1,2048], index: 3, kind: input, shape index: {}]
  %s4 = inlined_call_operand.vmem [shape: f32[128,128], index: 4, kind: input, shape index: {}]
  %s5 = inlined_call_operand.vmem [shape: f32[128,256], index: 5, kind: input, shape index: {}]
  %s6 = inlined_call_operand.vmem [shape: f32[1,256], index: 6, kind: input, shape index: {}]
  %s7 = inlined_call_operand.vmem [shape: f32[128,128], index: 7, kind: input, shape index: {}]
  %s8 = inlined_call_operand.vmem [shape: f32[1,128], index: 8, kind: input, shape index: {}]
  %s9 = inlined_call_operand.vmem [shape: f32[128,128], index: 9, kind: input, shape index: {}]
  %s10 = inlined_call_operand.vmem [shape: f32[1,128], index: 10, kind: input, shape index: {}]
  %s11 = inlined_call_operand.vmem [shape: f32[128,128], index: 11, kind: input, shape index: {}]
  %s12 = inlined_call_operand.vmem [shape: f32[1,128], index: 12, kind: input, shape index: {}]
  %s13 = inlined_call_operand.vmem [shape: f32[128,128], index: 13, kind: input, shape index: {}]
  %s14 = inlined_call_operand.vmem [shape: f32[1,128], index: 14, kind: input, shape index: {}]
  %s15 = inlined_call_operand.hbm [shape: f32[2,128,128], index: 15, kind: output, shape index: {}]
  %s16 = sld [smem:[#allocation0]]
  $region101: #{tpu_custom_call.1} parent=0
    _
  %s18 = ssub.s32 1, %s16
  %s19 = scalar_select 0, %s18, %s16
  $region1: #{tpu_custom_call.1} parent=0
    #allocation4 [shape = 'u8[131072]{0}', space=vmem, size = 0x20000, scoped, tag = 'output window, operand 0']
    #allocation5 [shape = 's32[2]{0}', space=sflag, size = 0x8, scoped, tag = 'scoped memory for tpu_custom_call.1']
    %20 = vsyncpa [#allocation5], 0
    %s21 = scalar_lea.sflag [#allocation5], 1
    %22 = vsyncpa %s21, 0
    loop: start=0, step=1, limit=6
    $region2: #{tpu_custom_call.1} parent=1 // loop_pre_header
      _
    $region3: #{tpu_custom_call.1} parent=1 // loop_header
      %s24 = sphi 0, %s28
      %p25 = scmp.ge.s32.totalorder %s24, 6
      %s31 = sphi 0, %s43
      %s32 = sphi 0, %s39
      %s33 = sphi 0, %s31
      %s34 = sphi 0, %s32
      %s35 = sphi 0, %s33
      %s36 = sphi 0, %s34
      %s50 = sphi 0, %s52
      %s53 = sphi 0, %s50
      %s54 = sphi 0, %s53
      %s70 = sphi 0, %s54
      %s80 = sphi 0, %s82
      %s83 = sphi 0, %s80
      %s84 = sphi 0, %s83
      %s100 = sphi 0, %s84
      %s110 = sphi 0, %s112
      %s113 = sphi 0, %s110
      %s114 = sphi 0, %s113
      %s130 = sphi 0, %s114
      %s140 = sphi 0, %s142
      %s143 = sphi 0, %s140
      %s144 = sphi 0, %s143
      %s160 = sphi 0, %s144
      %s164 = sphi 0, %s164
      %s166 = sphi 0, %s164
      %s167 = sphi 0, %s166
      %s181 = sphi 0, %s167
      %s185 = sphi 0, %s185
      %s187 = sphi 0, %s185
      %s188 = sphi 0, %s187
      %s202 = sphi 0, %s188
      %s206 = sphi 0, %s206
      %s208 = sphi 0, %s206
      %s209 = sphi 0, %s208
      %s223 = sphi 0, %s209
      %s227 = sphi 0, %s227
      %s229 = sphi 0, %s227
      %s230 = sphi 0, %s229
      %s244 = sphi 0, %s230
      %s248 = sphi 0, %s248
      %s250 = sphi 0, %s248
      %s251 = sphi 0, %s250
      %s265 = sphi 0, %s251
      %s269 = sphi 0, %s269
      %s271 = sphi 0, %s269
      %s272 = sphi 0, %s271
      %s286 = sphi 0, %s272
      %s290 = sphi 0, %s290
      %s292 = sphi 0, %s290
      %s293 = sphi 0, %s292
      %s307 = sphi 0, %s293
      %s311 = sphi 0, %s311
      %s313 = sphi 0, %s311
      %s314 = sphi 0, %s313
      %s328 = sphi 0, %s314
      %s332 = sphi 0, %s332
      %s334 = sphi 0, %s332
      %s335 = sphi 0, %s334
      %s349 = sphi 0, %s335
      %s353 = sphi 0, %s353
      %s355 = sphi 0, %s353
      %s356 = sphi 0, %s355
      %s370 = sphi 0, %s356
      %s374 = sphi 0, %s374
      %s376 = sphi 0, %s374
      %s377 = sphi 0, %s376
      %s391 = sphi 0, %s377
      %s397 = sphi 0, %s399
      %s400 = sphi 0, %s397
      %s401 = sphi 0, %s400
      %s417 = sphi 0, %s401
    $region4: #{tpu_custom_call.1} parent=1 // loop_header_branch
      %27 = sbr.rel (%p25) target = $region8
    $region5: #{tpu_custom_call.1} parent=1 // loop_body
      %s29 = ssub.s32 %s24, 1
      %s30 = ssub.s32 %s24, 2
      %s37 = sadd.s32 1, %s32
      %p38 = scmp.ge.s32.totalorder %s37, 2
      %s39 = scalar_select %p38, 0, %s37
      %s40 = sadd.s32 1, %s31
      %s41 = scalar_select %p38, %s40, %s31
      %p42 = scmp.ge.s32.totalorder %s41, 2
      %s43 = scalar_select %p42, 0, %s41
      %s44 = smul.u32 %s31, 2
      %s45 = sadd.s32 %s44, %s32
      %s46 = smul.u32 %s43, 2
      %s47 = sadd.s32 %s46, %s39
      %s48 = ssub.s32 %s45, %s47
      %p49 = scmp.eq.s32.totalorder %s48, 0
      %s51 = sadd.s32 %s50, 1
      %s52 = scalar_select %p49, %s50, %s51
      %p55 = pneg %p49
      %p56 = scmp.eq.s32.totalorder %s24, 3
      %p57 = por %p55, %p56
      %p58 = scmp.ne.s32.totalorder %s50, %s53
      %p59 = scmp.eq.s32.totalorder %s24, 0
      %p60 = por %p58, %p59
      %p61 = scmp.ne.s32.totalorder %s50, %s53
      %p62 = scmp.eq.s32.totalorder %s29, 3
      %p63 = por %p61, %p62
      %p64 = scmp.ne.s32.totalorder %s53, %s54
      %p65 = scmp.eq.s32.totalorder %s29, 0
      %p66 = por %p64, %p65
      %p67 = scmp.ne.s32.totalorder %s53, %s54
      %p68 = scmp.eq.s32.totalorder %s30, 3
      %p69 = por %p67, %p68
      %p71 = scmp.ne.s32.totalorder %s54, %s70
      %p72 = scmp.eq.s32.totalorder %s30, 0
      %p73 = por %p71, %p72
      %s74 = smul.u32 %s31, 2
      %s75 = sadd.s32 %s74, %s32
      %s76 = smul.u32 %s43, 2
      %s77 = sadd.s32 %s76, %s39
      %s78 = ssub.s32 %s75, %s77
      %p79 = scmp.eq.s32.totalorder %s78, 0
      %s81 = sadd.s32 %s80, 1
      %s82 = scalar_select %p79, %s80, %s81
      %p85 = pneg %p79
      %p86 = scmp.eq.s32.totalorder %s24, 3
      %p87 = por %p85, %p86
      %p88 = scmp.ne.s32.totalorder %s80, %s83
      %p89 = scmp.eq.s32.totalorder %s24, 0
      %p90 = por %p88, %p89
      %p91 = scmp.ne.s32.totalorder %s80, %s83
      %p92 = scmp.eq.s32.totalorder %s29, 3
      %p93 = por %p91, %p92
      %p94 = scmp.ne.s32.totalorder %s83, %s84
      %p95 = scmp.eq.s32.totalorder %s29, 0
      %p96 = por %p94, %p95
      %p97 = scmp.ne.s32.totalorder %s83, %s84
      %p98 = scmp.eq.s32.totalorder %s30, 3
      %p99 = por %p97, %p98
      %p101 = scmp.ne.s32.totalorder %s84, %s100
      %p102 = scmp.eq.s32.totalorder %s30, 0
      %p103 = por %p101, %p102
      %s104 = smul.u32 %s31, 2
      %s105 = sadd.s32 %s104, %s32
      %s106 = smul.u32 %s43, 2
      %s107 = sadd.s32 %s106, %s39
      %s108 = ssub.s32 %s105, %s107
      %p109 = scmp.eq.s32.totalorder %s108, 0
      %s111 = sadd.s32 %s110, 1
      %s112 = scalar_select %p109, %s110, %s111
      %p115 = pneg %p109
      %p116 = scmp.eq.s32.totalorder %s24, 3
      %p117 = por %p115, %p116
      %p118 = scmp.ne.s32.totalorder %s110, %s113
      %p119 = scmp.eq.s32.totalorder %s24, 0
      %p120 = por %p118, %p119
      %p121 = scmp.ne.s32.totalorder %s110, %s113
      %p122 = scmp.eq.s32.totalorder %s29, 3
      %p123 = por %p121, %p122
      %p124 = scmp.ne.s32.totalorder %s113, %s114
      %p125 = scmp.eq.s32.totalorder %s29, 0
      %p126 = por %p124, %p125
      %p127 = scmp.ne.s32.totalorder %s113, %s114
      %p128 = scmp.eq.s32.totalorder %s30, 3
      %p129 = por %p127, %p128
      %p131 = scmp.ne.s32.totalorder %s114, %s130
      %p132 = scmp.eq.s32.totalorder %s30, 0
      %p133 = por %p131, %p132
      %s134 = smul.u32 %s31, 2
      %s135 = sadd.s32 %s134, %s32
      %s136 = smul.u32 %s43, 2
      %s137 = sadd.s32 %s136, %s39
      %s138 = ssub.s32 %s135, %s137
      %p139 = scmp.eq.s32.totalorder %s138, 0
      %s141 = sadd.s32 %s140, 1
      %s142 = scalar_select %p139, %s140, %s141
      %p145 = pneg %p139
      %p146 = scmp.eq.s32.totalorder %s24, 3
      %p147 = por %p145, %p146
      %p148 = scmp.ne.s32.totalorder %s140, %s143
      %p149 = scmp.eq.s32.totalorder %s24, 0
      %p150 = por %p148, %p149
      %p151 = scmp.ne.s32.totalorder %s140, %s143
      %p152 = scmp.eq.s32.totalorder %s29, 3
      %p153 = por %p151, %p152
      %p154 = scmp.ne.s32.totalorder %s143, %s144
      %p155 = scmp.eq.s32.totalorder %s29, 0
      %p156 = por %p154, %p155
      %p157 = scmp.ne.s32.totalorder %s143, %s144
      %p158 = scmp.eq.s32.totalorder %s30, 3
      %p159 = por %p157, %p158
      %p161 = scmp.ne.s32.totalorder %s144, %s160
      %p162 = scmp.eq.s32.totalorder %s30, 0
      %p163 = por %p161, %p162
      %s165 = sadd.s32 %s164, 1
      %p168 = scmp.eq.s32.totalorder %s24, 3
      %p169 = scmp.ne.s32.totalorder %s164, %s166
      %p170 = scmp.eq.s32.totalorder %s24, 0
      %p171 = por %p169, %p170
      %p172 = scmp.ne.s32.totalorder %s164, %s166
      %p173 = scmp.eq.s32.totalorder %s29, 3
      %p174 = por %p172, %p173
      %p175 = scmp.ne.s32.totalorder %s166, %s167
      %p176 = scmp.eq.s32.totalorder %s29, 0
      %p177 = por %p175, %p176
      %p178 = scmp.ne.s32.totalorder %s166, %s167
      %p179 = scmp.eq.s32.totalorder %s30, 3
      %p180 = por %p178, %p179
      %p182 = scmp.ne.s32.totalorder %s167, %s181
      %p183 = scmp.eq.s32.totalorder %s30, 0
      %p184 = por %p182, %p183
      %s186 = sadd.s32 %s185, 1
      %p189 = scmp.eq.s32.totalorder %s24, 3
      %p190 = scmp.ne.s32.totalorder %s185, %s187
      %p191 = scmp.eq.s32.totalorder %s24, 0
      %p192 = por %p190, %p191
      %p193 = scmp.ne.s32.totalorder %s185, %s187
      %p194 = scmp.eq.s32.totalorder %s29, 3
      %p195 = por %p193, %p194
      %p196 = scmp.ne.s32.totalorder %s187, %s188
      %p197 = scmp.eq.s32.totalorder %s29, 0
      %p198 = por %p196, %p197
      %p199 = scmp.ne.s32.totalorder %s187, %s188
      %p200 = scmp.eq.s32.totalorder %s30, 3
      %p201 = por %p199, %p200
      %p203 = scmp.ne.s32.totalorder %s188, %s202
      %p204 = scmp.eq.s32.totalorder %s30, 0
      %p205 = por %p203, %p204
      %s207 = sadd.s32 %s206, 1
      %p210 = scmp.eq.s32.totalorder %s24, 3
      %p211 = scmp.ne.s32.totalorder %s206, %s208
      %p212 = scmp.eq.s32.totalorder %s24, 0
      %p213 = por %p211, %p212
      %p214 = scmp.ne.s32.totalorder %s206, %s208
      %p215 = scmp.eq.s32.totalorder %s29, 3
      %p216 = por %p214, %p215
      %p217 = scmp.ne.s32.totalorder %s208, %s209
      %p218 = scmp.eq.s32.totalorder %s29, 0
      %p219 = por %p217, %p218
      %p220 = scmp.ne.s32.totalorder %s208, %s209
      %p221 = scmp.eq.s32.totalorder %s30, 3
      %p222 = por %p220, %p221
      %p224 = scmp.ne.s32.totalorder %s209, %s223
      %p225 = scmp.eq.s32.totalorder %s30, 0
      %p226 = por %p224, %p225
      %s228 = sadd.s32 %s227, 1
      %p231 = scmp.eq.s32.totalorder %s24, 3
      %p232 = scmp.ne.s32.totalorder %s227, %s229
      %p233 = scmp.eq.s32.totalorder %s24, 0
      %p234 = por %p232, %p233
      %p235 = scmp.ne.s32.totalorder %s227, %s229
      %p236 = scmp.eq.s32.totalorder %s29, 3
      %p237 = por %p235, %p236
      %p238 = scmp.ne.s32.totalorder %s229, %s230
      %p239 = scmp.eq.s32.totalorder %s29, 0
      %p240 = por %p238, %p239
      %p241 = scmp.ne.s32.totalorder %s229, %s230
      %p242 = scmp.eq.s32.totalorder %s30, 3
      %p243 = por %p241, %p242
      %p245 = scmp.ne.s32.totalorder %s230, %s244
      %p246 = scmp.eq.s32.totalorder %s30, 0
      %p247 = por %p245, %p246
      %s249 = sadd.s32 %s248, 1
      %p252 = scmp.eq.s32.totalorder %s24, 3
      %p253 = scmp.ne.s32.totalorder %s248, %s250
      %p254 = scmp.eq.s32.totalorder %s24, 0
      %p255 = por %p253, %p254
      %p256 = scmp.ne.s32.totalorder %s248, %s250
      %p257 = scmp.eq.s32.totalorder %s29, 3
      %p258 = por %p256, %p257
      %p259 = scmp.ne.s32.totalorder %s250, %s251
      %p260 = scmp.eq.s32.totalorder %s29, 0
      %p261 = por %p259, %p260
      %p262 = scmp.ne.s32.totalorder %s250, %s251
      %p263 = scmp.eq.s32.totalorder %s30, 3
      %p264 = por %p262, %p263
      %p266 = scmp.ne.s32.totalorder %s251, %s265
      %p267 = scmp.eq.s32.totalorder %s30, 0
      %p268 = por %p266, %p267
      %s270 = sadd.s32 %s269, 1
      %p273 = scmp.eq.s32.totalorder %s24, 3
      %p274 = scmp.ne.s32.totalorder %s269, %s271
      %p275 = scmp.eq.s32.totalorder %s24, 0
      %p276 = por %p274, %p275
      %p277 = scmp.ne.s32.totalorder %s269, %s271
      %p278 = scmp.eq.s32.totalorder %s29, 3
      %p279 = por %p277, %p278
      %p280 = scmp.ne.s32.totalorder %s271, %s272
      %p281 = scmp.eq.s32.totalorder %s29, 0
      %p282 = por %p280, %p281
      %p283 = scmp.ne.s32.totalorder %s271, %s272
      %p284 = scmp.eq.s32.totalorder %s30, 3
      %p285 = por %p283, %p284
      %p287 = scmp.ne.s32.totalorder %s272, %s286
      %p288 = scmp.eq.s32.totalorder %s30, 0
      %p289 = por %p287, %p288
      %s291 = sadd.s32 %s290, 1
      %p294 = scmp.eq.s32.totalorder %s24, 3
      %p295 = scmp.ne.s32.totalorder %s290, %s292
      %p296 = scmp.eq.s32.totalorder %s24, 0
      %p297 = por %p295, %p296
      %p298 = scmp.ne.s32.totalorder %s290, %s292
      %p299 = scmp.eq.s32.totalorder %s29, 3
      %p300 = por %p298, %p299
      %p301 = scmp.ne.s32.totalorder %s292, %s293
      %p302 = scmp.eq.s32.totalorder %s29, 0
      %p303 = por %p301, %p302
      %p304 = scmp.ne.s32.totalorder %s292, %s293
      %p305 = scmp.eq.s32.totalorder %s30, 3
      %p306 = por %p304, %p305
      %p308 = scmp.ne.s32.totalorder %s293, %s307
      %p309 = scmp.eq.s32.totalorder %s30, 0
      %p310 = por %p308, %p309
      %s312 = sadd.s32 %s311, 1
      %p315 = scmp.eq.s32.totalorder %s24, 3
      %p316 = scmp.ne.s32.totalorder %s311, %s313
      %p317 = scmp.eq.s32.totalorder %s24, 0
      %p318 = por %p316, %p317
      %p319 = scmp.ne.s32.totalorder %s311, %s313
      %p320 = scmp.eq.s32.totalorder %s29, 3
      %p321 = por %p319, %p320
      %p322 = scmp.ne.s32.totalorder %s313, %s314
      %p323 = scmp.eq.s32.totalorder %s29, 0
      %p324 = por %p322, %p323
      %p325 = scmp.ne.s32.totalorder %s313, %s314
      %p326 = scmp.eq.s32.totalorder %s30, 3
      %p327 = por %p325, %p326
      %p329 = scmp.ne.s32.totalorder %s314, %s328
      %p330 = scmp.eq.s32.totalorder %s30, 0
      %p331 = por %p329, %p330
      %s333 = sadd.s32 %s332, 1
      %p336 = scmp.eq.s32.totalorder %s24, 3
      %p337 = scmp.ne.s32.totalorder %s332, %s334
      %p338 = scmp.eq.s32.totalorder %s24, 0
      %p339 = por %p337, %p338
      %p340 = scmp.ne.s32.totalorder %s332, %s334
      %p341 = scmp.eq.s32.totalorder %s29, 3
      %p342 = por %p340, %p341
      %p343 = scmp.ne.s32.totalorder %s334, %s335
      %p344 = scmp.eq.s32.totalorder %s29, 0
      %p345 = por %p343, %p344
      %p346 = scmp.ne.s32.totalorder %s334, %s335
      %p347 = scmp.eq.s32.totalorder %s30, 3
      %p348 = por %p346, %p347
      %p350 = scmp.ne.s32.totalorder %s335, %s349
      %p351 = scmp.eq.s32.totalorder %s30, 0
      %p352 = por %p350, %p351
      %s354 = sadd.s32 %s353, 1
      %p357 = scmp.eq.s32.totalorder %s24, 3
      %p358 = scmp.ne.s32.totalorder %s353, %s355
      %p359 = scmp.eq.s32.totalorder %s24, 0
      %p360 = por %p358, %p359
      %p361 = scmp.ne.s32.totalorder %s353, %s355
      %p362 = scmp.eq.s32.totalorder %s29, 3
      %p363 = por %p361, %p362
      %p364 = scmp.ne.s32.totalorder %s355, %s356
      %p365 = scmp.eq.s32.totalorder %s29, 0
      %p366 = por %p364, %p365
      %p367 = scmp.ne.s32.totalorder %s355, %s356
      %p368 = scmp.eq.s32.totalorder %s30, 3
      %p369 = por %p367, %p368
      %p371 = scmp.ne.s32.totalorder %s356, %s370
      %p372 = scmp.eq.s32.totalorder %s30, 0
      %p373 = por %p371, %p372
      %s375 = sadd.s32 %s374, 1
      %p378 = scmp.eq.s32.totalorder %s24, 3
      %p379 = scmp.ne.s32.totalorder %s374, %s376
      %p380 = scmp.eq.s32.totalorder %s24, 0
      %p381 = por %p379, %p380
      %p382 = scmp.ne.s32.totalorder %s374, %s376
      %p383 = scmp.eq.s32.totalorder %s29, 3
      %p384 = por %p382, %p383
      %p385 = scmp.ne.s32.totalorder %s376, %s377
      %p386 = scmp.eq.s32.totalorder %s29, 0
      %p387 = por %p385, %p386
      %p388 = scmp.ne.s32.totalorder %s376, %s377
      %p389 = scmp.eq.s32.totalorder %s30, 3
      %p390 = por %p388, %p389
      %p392 = scmp.ne.s32.totalorder %s377, %s391
      %p393 = scmp.eq.s32.totalorder %s30, 0
      %p394 = por %p392, %p393
      %s395 = ssub.s32 %s31, %s43
      %p396 = scmp.eq.s32.totalorder %s395, 0
      %s398 = sadd.s32 %s397, 1
      %s399 = scalar_select %p396, %s397, %s398
      %p402 = pneg %p396
      %p403 = scmp.eq.s32.totalorder %s24, 3
      %p404 = por %p402, %p403
      %p405 = scmp.ne.s32.totalorder %s397, %s400
      %p406 = scmp.eq.s32.totalorder %s24, 0
      %p407 = por %p405, %p406
      %p408 = scmp.ne.s32.totalorder %s397, %s400
      %p409 = scmp.eq.s32.totalorder %s29, 3
      %p410 = por %p408, %p409
      %p411 = scmp.ne.s32.totalorder %s400, %s401
      %p412 = scmp.eq.s32.totalorder %s29, 0
      %p413 = por %p411, %p412
      %p414 = scmp.ne.s32.totalorder %s400, %s401
      %p415 = scmp.eq.s32.totalorder %s30, 3
      %p416 = por %p414, %p415
      %p418 = scmp.ne.s32.totalorder %s401, %s417
      %p419 = scmp.eq.s32.totalorder %s30, 0
      %p420 = por %p418, %p419
      %p421 = scmp.le.s32.totalorder 1, %s24
      %p422 = scmp.lt.s32.totalorder %s24, 5
      %p423 = pnand %p421, %p422
      %p424 = pneg %p423
      // Predicated region
      $region9: #{tpu_custom_call.1} parent=5 // pred_check
        _
      $region10: #{tpu_custom_call.1} parent=5 // pred_check_branch
        %426 = sbr.rel (%p423) target = $region12
      $region11: #{tpu_custom_call.1} parent=5 // pred_region
        %s427 = ssub.s32 %s24, 1
        // Predicated region
        $region13: #{tpu_custom_call.1} parent=11 // pred_check
          %p428 = pneg %p177
        $region14: #{tpu_custom_call.1} parent=11 // pred_check_branch
          %430 = sbr.rel (%p428) target = $region16
        $region15: #{tpu_custom_call.1} parent=11 // pred_region
          _
        $region16: #{tpu_custom_call.1} parent=11 // pred_fallthru
          _
        // Predicated region
        $region17: #{tpu_custom_call.1} parent=11 // pred_check
          %p431 = pneg %p198
        $region18: #{tpu_custom_call.1} parent=11 // pred_check_branch
          %433 = sbr.rel (%p431) target = $region20
        $region19: #{tpu_custom_call.1} parent=11 // pred_region
          _
        $region20: #{tpu_custom_call.1} parent=11 // pred_fallthru
          _
        // Predicated region
        $region21: #{tpu_custom_call.1} parent=11 // pred_check
          %p434 = pneg %p219
        $region22: #{tpu_custom_call.1} parent=11 // pred_check_branch
          %436 = sbr.rel (%p434) target = $region24
        $region23: #{tpu_custom_call.1} parent=11 // pred_region
          _
        $region24: #{tpu_custom_call.1} parent=11 // pred_fallthru
          _
        // Predicated region
        $region25: #{tpu_custom_call.1} parent=11 // pred_check
          %p437 = pneg %p240
        $region26: #{tpu_custom_call.1} parent=11 // pred_check_branch
          %439 = sbr.rel (%p437) target = $region28
        $region27: #{tpu_custom_call.1} parent=11 // pred_region
          _
        $region28: #{tpu_custom_call.1} parent=11 // pred_fallthru
          _
        // Predicated region
        $region29: #{tpu_custom_call.1} parent=11 // pred_check
          %p440 = pneg %p261
        $region30: #{tpu_custom_call.1} parent=11 // pred_check_branch
          %442 = sbr.rel (%p440) target = $region32
        $region31: #{tpu_custom_call.1} parent=11 // pred_region
          _
        $region32: #{tpu_custom_call.1} parent=11 // pred_fallthru
          _
        // Predicated region
        $region33: #{tpu_custom_call.1} parent=11 // pred_check
          %p443 = pneg %p282
        $region34: #{tpu_custom_call.1} parent=11 // pred_check_branch
          %445 = sbr.rel (%p443) target = $region36
        $region35: #{tpu_custom_call.1} parent=11 // pred_region
          _
        $region36: #{tpu_custom_call.1} parent=11 // pred_fallthru
          _
        // Predicated region
        $region37: #{tpu_custom_call.1} parent=11 // pred_check
          %p446 = pneg %p303
        $region38: #{tpu_custom_call.1} parent=11 // pred_check_branch
          %448 = sbr.rel (%p446) target = $region40
        $region39: #{tpu_custom_call.1} parent=11 // pred_region
          _
        $region40: #{tpu_custom_call.1} parent=11 // pred_fallthru
          _
        // Predicated region
        $region41: #{tpu_custom_call.1} parent=11 // pred_check
          %p449 = pneg %p324
        $region42: #{tpu_custom_call.1} parent=11 // pred_check_branch
          %451 = sbr.rel (%p449) target = $region44
        $region43: #{tpu_custom_call.1} parent=11 // pred_region
          _
        $region44: #{tpu_custom_call.1} parent=11 // pred_fallthru
          _
        // Predicated region
        $region45: #{tpu_custom_call.1} parent=11 // pred_check
          %p452 = pneg %p345
        $region46: #{tpu_custom_call.1} parent=11 // pred_check_branch
          %454 = sbr.rel (%p452) target = $region48
        $region47: #{tpu_custom_call.1} parent=11 // pred_region
          _
        $region48: #{tpu_custom_call.1} parent=11 // pred_fallthru
          _
        // Predicated region
        $region49: #{tpu_custom_call.1} parent=11 // pred_check
          %p455 = pneg %p366
        $region50: #{tpu_custom_call.1} parent=11 // pred_check_branch
          %457 = sbr.rel (%p455) target = $region52
        $region51: #{tpu_custom_call.1} parent=11 // pred_region
          _
        $region52: #{tpu_custom_call.1} parent=11 // pred_fallthru
          _
        // Predicated region
        $region53: #{tpu_custom_call.1} parent=11 // pred_check
          %p458 = pneg %p387
        $region54: #{tpu_custom_call.1} parent=11 // pred_check_branch
          %460 = sbr.rel (%p458) target = $region56
        $region55: #{tpu_custom_call.1} parent=11 // pred_region
          _
        $region56: #{tpu_custom_call.1} parent=11 // pred_fallthru
          _
      $region12: #{tpu_custom_call.1} parent=5 // pred_fallthru
        _
      %p461 = scmp.lt.s32.totalorder %s24, 4
      // Predicated region
      $region57: #{tpu_custom_call.1} parent=5 // pred_check
        %p462 = pneg %p461
      $region58: #{tpu_custom_call.1} parent=5 // pred_check_branch
        %464 = sbr.rel (%p462) target = $region60
      $region59: #{tpu_custom_call.1} parent=5 // pred_region
        // Predicated region
        $region61: #{tpu_custom_call.1} parent=59 // pred_check
          %p465 = pneg %p60
        $region62: #{tpu_custom_call.1} parent=59 // pred_check_branch
          %467 = sbr.rel (%p465) target = $region64
        $region63: #{tpu_custom_call.1} parent=59 // pred_region
          %s468 = smul.u32 %s31, 2
          %s469 = sadd.s32 %s468, %s32
          %s470 = smul.u32 64, %s469
          %p471 = scmp.lt.s32.totalorder %s470, 255
          %s472 = scalar_select %p471, %s470, 255
          %s473 = smul.addr %s472, 8
          %s474 = scalar_lea.vmem %s0, %s473
          %s475 = smul.u32 %s31, 2
          %s476 = sadd.s32 %s475, %s32
          %s477 = smul.u32 64, %s476
        $region64: #{tpu_custom_call.1} parent=59 // pred_fallthru
          _
        // Predicated region
        $region65: #{tpu_custom_call.1} parent=59 // pred_check
          %p478 = pneg %p90
        $region66: #{tpu_custom_call.1} parent=59 // pred_check_branch
          %480 = sbr.rel (%p478) target = $region68
        $region67: #{tpu_custom_call.1} parent=59 // pred_region
          %s481 = smul.u32 %s31, 2
          %s482 = sadd.s32 %s481, %s32
          %s483 = smul.u32 64, %s482
          %p484 = scmp.lt.s32.totalorder %s483, 255
          %s485 = scalar_select %p484, %s483, 255
          %s486 = smul.addr %s485, 8
          %s487 = scalar_lea.vmem %s1, %s486
          %s488 = smul.u32 %s31, 2
          %s489 = sadd.s32 %s488, %s32
          %s490 = smul.u32 64, %s489
        $region68: #{tpu_custom_call.1} parent=59 // pred_fallthru
          _
        // Predicated region
        $region69: #{tpu_custom_call.1} parent=59 // pred_check
          %p491 = pneg %p120
        $region70: #{tpu_custom_call.1} parent=59 // pred_check_branch
          %493 = sbr.rel (%p491) target = $region72
        $region71: #{tpu_custom_call.1} parent=59 // pred_region
          %s494 = smul.u32 %s31, 2
          %s495 = sadd.s32 %s494, %s32
          %s496 = smul.u32 64, %s495
          %p497 = scmp.lt.s32.totalorder %s496, 255
          %s498 = scalar_select %p497, %s496, 255
          %s499 = smul.addr %s498, 8
          %s500 = scalar_lea.vmem %s2, %s499
          %s501 = smul.u32 %s31, 2
          %s502 = sadd.s32 %s501, %s32
          %s503 = smul.u32 64, %s502
        $region72: #{tpu_custom_call.1} parent=59 // pred_fallthru
          _
        // Predicated region
        $region73: #{tpu_custom_call.1} parent=59 // pred_check
          %p504 = pneg %p150
        $region74: #{tpu_custom_call.1} parent=59 // pred_check_branch
          %506 = sbr.rel (%p504) target = $region76
        $region75: #{tpu_custom_call.1} parent=59 // pred_region
          %s507 = smul.u32 %s31, 2
          %s508 = sadd.s32 %s507, %s32
          %s509 = smul.u32 4, %s508
          %p510 = scmp.lt.s32.totalorder %s509, 15
          %s511 = scalar_select %p510, %s509, 15
          %s512 = scalar_lea.vmem %s3, %s511
          %s513 = smul.u32 %s31, 2
          %s514 = sadd.s32 %s513, %s32
          %s515 = smul.u32 4, %s514
        $region76: #{tpu_custom_call.1} parent=59 // pred_fallthru
          _
      $region60: #{tpu_custom_call.1} parent=5 // pred_fallthru
        _
      %p516 = scmp.le.s32.totalorder 1, %s24
      %p517 = scmp.lt.s32.totalorder %s24, 5
      %p518 = pnand %p516, %p517
      %p519 = pneg %p518
      // Predicated region
      $region77: #{tpu_custom_call.1} parent=5 // pred_check
        _
      $region78: #{tpu_custom_call.1} parent=5 // pred_check_branch
        %521 = sbr.rel (%p518) target = $region80
      $region79: #{tpu_custom_call.1} parent=5 // pred_region
        %s522 = ssub.s32 %s24, 1
        %s523 = smul.u32 %s33, 2
        %s524 = sadd.s32 %s523, %s34
        %s525 = smul.u32 64, %s524
        %p526 = scmp.lt.s32.totalorder %s525, 255
        %s527 = scalar_select %p526, %s525, 255
        %s528 = smul.addr %s527, 8
        %s529 = scalar_lea.vmem %s0, %s528
        %p530 = pneg %p66
        %p531 = pneg %p63
        %s532 = smul.u32 %s33, 2
        %s533 = sadd.s32 %s532, %s34
        %s534 = smul.u32 64, %s533
        %p535 = scmp.lt.s32.totalorder %s534, 255
        %s536 = scalar_select %p535, %s534, 255
        %s537 = smul.addr %s536, 8
        %s538 = scalar_lea.vmem %s1, %s537
        %p539 = pneg %p96
        %p540 = pneg %p93
        %s541 = smul.u32 %s33, 2
        %s542 = sadd.s32 %s541, %s34
        %s543 = smul.u32 64, %s542
        %p544 = scmp.lt.s32.totalorder %s543, 255
        %s545 = scalar_select %p544, %s543, 255
        %s546 = smul.addr %s545, 8
        %s547 = scalar_lea.vmem %s2, %s546
        %p548 = pneg %p126
        %p549 = pneg %p123
        %s550 = smul.u32 %s33, 2
        %s551 = sadd.s32 %s550, %s34
        %s552 = smul.u32 4, %s551
        %p553 = scmp.lt.s32.totalorder %s552, 15
        %s554 = scalar_select %p553, %s552, 15
        %s555 = scalar_lea.vmem %s3, %s554
        %p556 = pneg %p156
        %p557 = pneg %p153
        %p558 = pneg %p177
        %p559 = pneg %p174
        %p560 = pneg %p198
        %p561 = pneg %p195
        %p562 = pneg %p219
        %p563 = pneg %p216
        %p564 = pneg %p240
        %p565 = pneg %p237
        %p566 = pneg %p261
        %p567 = pneg %p258
        %p568 = pneg %p282
        %p569 = pneg %p279
        %p570 = pneg %p303
        %p571 = pneg %p300
        %p572 = pneg %p324
        %p573 = pneg %p321
        %p574 = pneg %p345
        %p575 = pneg %p342
        %p576 = pneg %p366
        %p577 = pneg %p363
        %p578 = pneg %p387
        %p579 = pneg %p384
        %p580 = pneg %p413
        %p581 = pneg %p410
        %s582 = sand.u32 %s400, 1
        %s583 = scalar_lea.sflag [#allocation5], %s582
        %s584 = sand.u32 %s400, 1
        %s585 = smul.addr %s584, 128
        %s586 = scalar_lea.vmem [#allocation4], %s585
        %s587 = smul.u32 %s33, 2
        %s588 = sadd.s32 %s587, %s34
        %s589 = smul.u32 64, %s588
        %p590 = scmp.lt.s32.totalorder %s589, 255
        %s591 = scalar_select %p590, %s589, 255
        %s592 = smul.addr %s591, 8
        %s593 = scalar_lea.vmem %s0, %s592
        %s594 = smul.u32 %s33, 2
        %s595 = sadd.s32 %s594, %s34
        %s596 = smul.u32 64, %s595
        %s597 = smul.u32 %s33, 2
        %s598 = sadd.s32 %s597, %s34
        %s599 = smul.u32 64, %s598
        %p600 = scmp.lt.s32.totalorder %s599, 255
        %s601 = scalar_select %p600, %s599, 255
        %s602 = smul.addr %s601, 8
        %s603 = scalar_lea.vmem %s1, %s602
        %s604 = smul.u32 %s33, 2
        %s605 = sadd.s32 %s604, %s34
        %s606 = smul.u32 64, %s605
        %s607 = smul.u32 %s33, 2
        %s608 = sadd.s32 %s607, %s34
        %s609 = smul.u32 64, %s608
        %p610 = scmp.lt.s32.totalorder %s609, 255
        %s611 = scalar_select %p610, %s609, 255
        %s612 = smul.addr %s611, 8
        %s613 = scalar_lea.vmem %s2, %s612
        %s614 = smul.u32 %s33, 2
        %s615 = sadd.s32 %s614, %s34
        %s616 = smul.u32 64, %s615
        %s617 = smul.u32 %s33, 2
        %s618 = sadd.s32 %s617, %s34
        %s619 = smul.u32 4, %s618
        %p620 = scmp.lt.s32.totalorder %s619, 15
        %s621 = scalar_select %p620, %s619, 15
        %s622 = scalar_lea.vmem %s3, %s621
        %s623 = smul.u32 %s33, 2
        %s624 = sadd.s32 %s623, %s34
        %s625 = smul.u32 4, %s624
        %p626 = scmp.eq.s32.totalorder %s34, 0
        // Predicated region
        $region81: #{tpu_custom_call.1} parent=79 // pred_check
          %p627 = pneg %p626
        $region82: #{tpu_custom_call.1} parent=79 // pred_check_branch
          %629 = sbr.rel (%p627) target = $region84
        $region83: #{tpu_custom_call.1} parent=79 // pred_region
          %630 = vst [vmem:[#allocation2] sm:$0xff] 0.0
          %631 = vst [vmem:[#allocation2 + $0x8] sm:$0xff] 0.0
          %632 = vst [vmem:[#allocation2 + $0x10] sm:$0xff] 0.0
          %633 = vst [vmem:[#allocation2 + $0x18] sm:$0xff] 0.0
          %634 = vst [vmem:[#allocation2 + $0x20] sm:$0xff] 0.0
          %635 = vst [vmem:[#allocation2 + $0x28] sm:$0xff] 0.0
          %636 = vst [vmem:[#allocation2 + $0x30] sm:$0xff] 0.0
          %637 = vst [vmem:[#allocation2 + $0x38] sm:$0xff] 0.0
          %638 = vst [vmem:[#allocation2 + $0x40] sm:$0xff] 0.0
          %639 = vst [vmem:[#allocation2 + $0x48] sm:$0xff] 0.0
          %640 = vst [vmem:[#allocation2 + $0x50] sm:$0xff] 0.0
          %641 = vst [vmem:[#allocation2 + $0x58] sm:$0xff] 0.0
          %642 = vst [vmem:[#allocation2 + $0x60] sm:$0xff] 0.0
          %643 = vst [vmem:[#allocation2 + $0x68] sm:$0xff] 0.0
          %644 = vst [vmem:[#allocation2 + $0x70] sm:$0xff] 0.0
          %645 = vst [vmem:[#allocation2 + $0x78] sm:$0xff] 0.0
          %v646 = vld [vmem:[%s4] sm:$0xff]
          %v647 = vld [vmem:[%s4 + $0x8] sm:$0xff]
          %v648 = vld [vmem:[%s4 + $0x10] sm:$0xff]
          %v649 = vld [vmem:[%s4 + $0x18] sm:$0xff]
          %v650 = vld [vmem:[%s4 + $0x20] sm:$0xff]
          %v651 = vld [vmem:[%s4 + $0x28] sm:$0xff]
          %v652 = vld [vmem:[%s4 + $0x30] sm:$0xff]
          %v653 = vld [vmem:[%s4 + $0x38] sm:$0xff]
          %v654 = vld [vmem:[%s4 + $0x40] sm:$0xff]
          %v655 = vld [vmem:[%s4 + $0x48] sm:$0xff]
          %v656 = vld [vmem:[%s4 + $0x50] sm:$0xff]
          %v657 = vld [vmem:[%s4 + $0x58] sm:$0xff]
          %v658 = vld [vmem:[%s4 + $0x60] sm:$0xff]
          %v659 = vld [vmem:[%s4 + $0x68] sm:$0xff]
          %v660 = vld [vmem:[%s4 + $0x70] sm:$0xff]
          %v661 = vld [vmem:[%s4 + $0x78] sm:$0xff]
          %v662 = vld [vmem:[%s5] sm:$0xff]
          %v663 = vld [vmem:[%s5 + $0x8] sm:$0xff]
          %v664 = vld [vmem:[%s5 + $0x10] sm:$0xff]
          %v665 = vld [vmem:[%s5 + $0x18] sm:$0xff]
          %v666 = vld [vmem:[%s5 + $0x20] sm:$0xff]
          %v667 = vld [vmem:[%s5 + $0x28] sm:$0xff]
          %v668 = vld [vmem:[%s5 + $0x30] sm:$0xff]
          %v669 = vld [vmem:[%s5 + $0x38] sm:$0xff]
          %v670 = vld [vmem:[%s5 + $0x40] sm:$0xff]
          %v671 = vld [vmem:[%s5 + $0x48] sm:$0xff]
          %v672 = vld [vmem:[%s5 + $0x50] sm:$0xff]
          %v673 = vld [vmem:[%s5 + $0x58] sm:$0xff]
          %v674 = vld [vmem:[%s5 + $0x60] sm:$0xff]
          %v675 = vld [vmem:[%s5 + $0x68] sm:$0xff]
          %v676 = vld [vmem:[%s5 + $0x70] sm:$0xff]
          %v677 = vld [vmem:[%s5 + $0x78] sm:$0xff]
          %v678 = vld [vmem:[%s5 + $0x80] sm:$0xff]
          %v679 = vld [vmem:[%s5 + $0x88] sm:$0xff]
          %v680 = vld [vmem:[%s5 + $0x90] sm:$0xff]
          %v681 = vld [vmem:[%s5 + $0x98] sm:$0xff]
          %v682 = vld [vmem:[%s5 + $0xa0] sm:$0xff]
          %v683 = vld [vmem:[%s5 + $0xa8] sm:$0xff]
          %v684 = vld [vmem:[%s5 + $0xb0] sm:$0xff]
          %v685 = vld [vmem:[%s5 + $0xb8] sm:$0xff]
          %v686 = vld [vmem:[%s5 + $0xc0] sm:$0xff]
          %v687 = vld [vmem:[%s5 + $0xc8] sm:$0xff]
          %v688 = vld [vmem:[%s5 + $0xd0] sm:$0xff]
          %v689 = vld [vmem:[%s5 + $0xd8] sm:$0xff]
          %v690 = vld [vmem:[%s5 + $0xe0] sm:$0xff]
          %v691 = vld [vmem:[%s5 + $0xe8] sm:$0xff]
          %v692 = vld [vmem:[%s5 + $0xf0] sm:$0xff]
          %v693 = vld [vmem:[%s5 + $0xf8] sm:$0xff]
          %v694 = vld [vmem:[%s6] sm:$0x3]
          %v696 = vperm.slane %v694, 0
          %v697 = vperm.slane %v694, 1
          %700 = vmatpush.msra.mxu0 %v692
          %701 = vmatpush.msra.mxu0 %v690
          %702 = vmatpush.msra.mxu0 %v688
          %703 = vmatpush.msra.mxu0 %v686
          %704 = vmatpush.msra.mxu0 %v684
          %705 = vmatpush.msra.mxu0 %v682
          %706 = vmatpush.msra.mxu0 %v680
          %707 = vmatpush.msra.mxu0 %v678
          %708 = vmatpush.msra.mxu0 %v676
          %709 = vmatpush.msra.mxu0 %v674
          %710 = vmatpush.msra.mxu0 %v672
          %711 = vmatpush.msra.mxu0 %v670
          %712 = vmatpush.msra.mxu0 %v668
          %713 = vmatpush.msra.mxu0 %v666
          %714 = vmatpush.msra.mxu0 %v664
          %715 = vmatpush.msra.mxu0 %v662
          %716 = vmatmul.f32.gmra.mxu0 %v646
          %v717 = vpop.f32.mrf.mxu0
          %v718 = vadd.f32 %v696, %v717
          %719 = vmatmul.f32.gmra.mxu0 %v647
          %v720 = vpop.f32.mrf.mxu0
          %v721 = vadd.f32 %v696, %v720
          %722 = vmatmul.f32.gmra.mxu0 %v648
          %v723 = vpop.f32.mrf.mxu0
          %v724 = vadd.f32 %v696, %v723
          %725 = vmatmul.f32.gmra.mxu0 %v649
          %v726 = vpop.f32.mrf.mxu0
          %v727 = vadd.f32 %v696, %v726
          %728 = vmatmul.f32.gmra.mxu0 %v650
          %v729 = vpop.f32.mrf.mxu0
          %v730 = vadd.f32 %v696, %v729
          %731 = vmatmul.f32.gmra.mxu0 %v651
          %v732 = vpop.f32.mrf.mxu0
          %v733 = vadd.f32 %v696, %v732
          %734 = vmatmul.f32.gmra.mxu0 %v652
          %v735 = vpop.f32.mrf.mxu0
          %v736 = vadd.f32 %v696, %v735
          %737 = vmatmul.f32.gmra.mxu0 %v653
          %v738 = vpop.f32.mrf.mxu0
          %v739 = vadd.f32 %v696, %v738
          %740 = vmatmul.f32.gmra.mxu0 %v654
          %v741 = vpop.f32.mrf.mxu0
          %v742 = vadd.f32 %v696, %v741
          %743 = vmatmul.f32.gmra.mxu0 %v655
          %v744 = vpop.f32.mrf.mxu0
          %v745 = vadd.f32 %v696, %v744
          %746 = vmatmul.f32.gmra.mxu0 %v656
          %v747 = vpop.f32.mrf.mxu0
          %v748 = vadd.f32 %v696, %v747
          %749 = vmatmul.f32.gmra.mxu0 %v657
          %v750 = vpop.f32.mrf.mxu0
          %v751 = vadd.f32 %v696, %v750
          %752 = vmatmul.f32.gmra.mxu0 %v658
          %v753 = vpop.f32.mrf.mxu0
          %v754 = vadd.f32 %v696, %v753
          %755 = vmatmul.f32.gmra.mxu0 %v659
          %v756 = vpop.f32.mrf.mxu0
          %v757 = vadd.f32 %v696, %v756
          %758 = vmatmul.f32.gmra.mxu0 %v660
          %v759 = vpop.f32.mrf.mxu0
          %v760 = vadd.f32 %v696, %v759
          %761 = vmatmul.f32.gmra.mxu0 %v661
          %v762 = vpop.f32.mrf.mxu0
          %v763 = vadd.f32 %v696, %v762
          %764 = vdwg.mxu0
          %765 = vmatpush.msra.mxu0 %v693
          %766 = vmatpush.msra.mxu0 %v691
          %767 = vmatpush.msra.mxu0 %v689
          %768 = vmatpush.msra.mxu0 %v687
          %769 = vmatpush.msra.mxu0 %v685
          %770 = vmatpush.msra.mxu0 %v683
          %771 = vmatpush.msra.mxu0 %v681
          %772 = vmatpush.msra.mxu0 %v679
          %773 = vmatpush.msra.mxu0 %v677
          %774 = vmatpush.msra.mxu0 %v675
          %775 = vmatpush.msra.mxu0 %v673
          %776 = vmatpush.msra.mxu0 %v671
          %777 = vmatpush.msra.mxu0 %v669
          %778 = vmatpush.msra.mxu0 %v667
          %779 = vmatpush.msra.mxu0 %v665
          %780 = vmatpush.msra.mxu0 %v663
          %781 = vmatmul.f32.gmra.mxu0 %v646
          %v782 = vpop.f32.mrf.mxu0
          %v783 = vadd.f32 %v697, %v782
          %784 = vmatmul.f32.gmra.mxu0 %v647
          %v785 = vpop.f32.mrf.mxu0
          %v786 = vadd.f32 %v697, %v785
          %787 = vmatmul.f32.gmra.mxu0 %v648
          %v788 = vpop.f32.mrf.mxu0
          %v789 = vadd.f32 %v697, %v788
          %790 = vmatmul.f32.gmra.mxu0 %v649
          %v791 = vpop.f32.mrf.mxu0
          %v792 = vadd.f32 %v697, %v791
          %793 = vmatmul.f32.gmra.mxu0 %v650
          %v794 = vpop.f32.mrf.mxu0
          %v795 = vadd.f32 %v697, %v794
          %796 = vmatmul.f32.gmra.mxu0 %v651
          %v797 = vpop.f32.mrf.mxu0
          %v798 = vadd.f32 %v697, %v797
          %799 = vmatmul.f32.gmra.mxu0 %v652
          %v800 = vpop.f32.mrf.mxu0
          %v801 = vadd.f32 %v697, %v800
          %802 = vmatmul.f32.gmra.mxu0 %v653
          %v803 = vpop.f32.mrf.mxu0
          %v804 = vadd.f32 %v697, %v803
          %805 = vmatmul.f32.gmra.mxu0 %v654
          %v806 = vpop.f32.mrf.mxu0
          %v807 = vadd.f32 %v697, %v806
          %808 = vmatmul.f32.gmra.mxu0 %v655
          %v809 = vpop.f32.mrf.mxu0
          %v810 = vadd.f32 %v697, %v809
          %811 = vmatmul.f32.gmra.mxu0 %v656
          %v812 = vpop.f32.mrf.mxu0
          %v813 = vadd.f32 %v697, %v812
          %814 = vmatmul.f32.gmra.mxu0 %v657
          %v815 = vpop.f32.mrf.mxu0
          %v816 = vadd.f32 %v697, %v815
          %817 = vmatmul.f32.gmra.mxu0 %v658
          %v818 = vpop.f32.mrf.mxu0
          %v819 = vadd.f32 %v697, %v818
          %820 = vmatmul.f32.gmra.mxu0 %v659
          %v821 = vpop.f32.mrf.mxu0
          %v822 = vadd.f32 %v697, %v821
          %823 = vmatmul.f32.gmra.mxu0 %v660
          %v824 = vpop.f32.mrf.mxu0
          %v825 = vadd.f32 %v697, %v824
          %826 = vmatmul.f32.gmra.mxu0 %v661
          %v827 = vpop.f32.mrf.mxu0
          %v828 = vadd.f32 %v697, %v827
          %829 = vdwg.mxu0
          %830 = vst [vmem:[#allocation3] sm:$0xff] %v646
          %831 = vst [vmem:[#allocation3 + $0x18] sm:$0xff] %v647
          %832 = vst [vmem:[#allocation3 + $0x30] sm:$0xff] %v648
          %833 = vst [vmem:[#allocation3 + $0x48] sm:$0xff] %v649
          %834 = vst [vmem:[#allocation3 + $0x60] sm:$0xff] %v650
          %835 = vst [vmem:[#allocation3 + $0x78] sm:$0xff] %v651
          %836 = vst [vmem:[#allocation3 + $0x90] sm:$0xff] %v652
          %837 = vst [vmem:[#allocation3 + $0xa8] sm:$0xff] %v653
          %838 = vst [vmem:[#allocation3 + $0xc0] sm:$0xff] %v654
          %839 = vst [vmem:[#allocation3 + $0xd8] sm:$0xff] %v655
          %840 = vst [vmem:[#allocation3 + $0xf0] sm:$0xff] %v656
          %841 = vst [vmem:[#allocation3 + $0x108] sm:$0xff] %v657
          %842 = vst [vmem:[#allocation3 + $0x120] sm:$0xff] %v658
          %843 = vst [vmem:[#allocation3 + $0x138] sm:$0xff] %v659
          %844 = vst [vmem:[#allocation3 + $0x150] sm:$0xff] %v660
          %845 = vst [vmem:[#allocation3 + $0x168] sm:$0xff] %v661
          %846 = vst [vmem:[#allocation3 + $0x8] sm:$0xff] %v718
          %847 = vst [vmem:[#allocation3 + $0x10] sm:$0xff] %v783
          %848 = vst [vmem:[#allocation3 + $0x20] sm:$0xff] %v721
          %849 = vst [vmem:[#allocation3 + $0x28] sm:$0xff] %v786
          %850 = vst [vmem:[#allocation3 + $0x38] sm:$0xff] %v724
          %851 = vst [vmem:[#allocation3 + $0x40] sm:$0xff] %v789
          %852 = vst [vmem:[#allocation3 + $0x50] sm:$0xff] %v727
          %853 = vst [vmem:[#allocation3 + $0x58] sm:$0xff] %v792
          %854 = vst [vmem:[#allocation3 + $0x68] sm:$0xff] %v730
          %855 = vst [vmem:[#allocation3 + $0x70] sm:$0xff] %v795
          %856 = vst [vmem:[#allocation3 + $0x80] sm:$0xff] %v733
          %857 = vst [vmem:[#allocation3 + $0x88] sm:$0xff] %v798
          %858 = vst [vmem:[#allocation3 + $0x98] sm:$0xff] %v736
          %859 = vst [vmem:[#allocation3 + $0xa0] sm:$0xff] %v801
          %860 = vst [vmem:[#allocation3 + $0xb0] sm:$0xff] %v739
          %861 = vst [vmem:[#allocation3 + $0xb8] sm:$0xff] %v804
          %862 = vst [vmem:[#allocation3 + $0xc8] sm:$0xff] %v742
          %863 = vst [vmem:[#allocation3 + $0xd0] sm:$0xff] %v807
          %864 = vst [vmem:[#allocation3 + $0xe0] sm:$0xff] %v745
          %865 = vst [vmem:[#allocation3 + $0xe8] sm:$0xff] %v810
          %866 = vst [vmem:[#allocation3 + $0xf8] sm:$0xff] %v748
          %867 = vst [vmem:[#allocation3 + $0x100] sm:$0xff] %v813
          %868 = vst [vmem:[#allocation3 + $0x110] sm:$0xff] %v751
          %869 = vst [vmem:[#allocation3 + $0x118] sm:$0xff] %v816
          %870 = vst [vmem:[#allocation3 + $0x128] sm:$0xff] %v754
          %871 = vst [vmem:[#allocation3 + $0x130] sm:$0xff] %v819
          %872 = vst [vmem:[#allocation3 + $0x140] sm:$0xff] %v757
          %873 = vst [vmem:[#allocation3 + $0x148] sm:$0xff] %v822
          %874 = vst [vmem:[#allocation3 + $0x158] sm:$0xff] %v760
          %875 = vst [vmem:[#allocation3 + $0x160] sm:$0xff] %v825
          %876 = vst [vmem:[#allocation3 + $0x170] sm:$0xff] %v763
          %877 = vst [vmem:[#allocation3 + $0x178] sm:$0xff] %v828
        $region84: #{tpu_custom_call.1} parent=79 // pred_fallthru
          _
        %v878 = vlaneseq
        %v879 = vand.u32 %v878, 127
        %v880 = vld [vmem:[%s603] sm:$0xff]
        %v881 = vld [vmem:[%s603 + $0x8] sm:$0xff]
        %v882 = vld [vmem:[%s603 + $0x10] sm:$0xff]
        %v883 = vld [vmem:[%s603 + $0x18] sm:$0xff]
        %v884 = vld [vmem:[%s603 + $0x20] sm:$0xff]
        %v885 = vld [vmem:[%s603 + $0x28] sm:$0xff]
        %v886 = vld [vmem:[%s603 + $0x30] sm:$0xff]
        %v887 = vld [vmem:[%s603 + $0x38] sm:$0xff]
        %v888 = vld [vmem:[%s603 + $0x40] sm:$0xff]
        %v889 = vld [vmem:[%s603 + $0x48] sm:$0xff]
        %v890 = vld [vmem:[%s603 + $0x50] sm:$0xff]
        %v891 = vld [vmem:[%s603 + $0x58] sm:$0xff]
        %v892 = vld [vmem:[%s603 + $0x60] sm:$0xff]
        %v893 = vld [vmem:[%s603 + $0x68] sm:$0xff]
        %v894 = vld [vmem:[%s603 + $0x70] sm:$0xff]
        %v895 = vld [vmem:[%s603 + $0x78] sm:$0xff]
        %v896 = vld [vmem:[%s603 + $0x80] sm:$0xff]
        %v897 = vld [vmem:[%s603 + $0x88] sm:$0xff]
        %v898 = vld [vmem:[%s603 + $0x90] sm:$0xff]
        %v899 = vld [vmem:[%s603 + $0x98] sm:$0xff]
        %v900 = vld [vmem:[%s603 + $0xa0] sm:$0xff]
        %v901 = vld [vmem:[%s603 + $0xa8] sm:$0xff]
        %v902 = vld [vmem:[%s603 + $0xb0] sm:$0xff]
        %v903 = vld [vmem:[%s603 + $0xb8] sm:$0xff]
        %v904 = vld [vmem:[%s603 + $0xc0] sm:$0xff]
        %v905 = vld [vmem:[%s603 + $0xc8] sm:$0xff]
        %v906 = vld [vmem:[%s603 + $0xd0] sm:$0xff]
        %v907 = vld [vmem:[%s603 + $0xd8] sm:$0xff]
        %v908 = vld [vmem:[%s603 + $0xe0] sm:$0xff]
        %v909 = vld [vmem:[%s603 + $0xe8] sm:$0xff]
        %v910 = vld [vmem:[%s603 + $0xf0] sm:$0xff]
        %v911 = vld [vmem:[%s603 + $0xf8] sm:$0xff]
        %v912 = vld [vmem:[%s603 + $0x100] sm:$0xff]
        %v913 = vld [vmem:[%s603 + $0x108] sm:$0xff]
        %v914 = vld [vmem:[%s603 + $0x110] sm:$0xff]
        %v915 = vld [vmem:[%s603 + $0x118] sm:$0xff]
        %v916 = vld [vmem:[%s603 + $0x120] sm:$0xff]
        %v917 = vld [vmem:[%s603 + $0x128] sm:$0xff]
        %v918 = vld [vmem:[%s603 + $0x130] sm:$0xff]
        %v919 = vld [vmem:[%s603 + $0x138] sm:$0xff]
        %v920 = vld [vmem:[%s603 + $0x140] sm:$0xff]
        %v921 = vld [vmem:[%s603 + $0x148] sm:$0xff]
        %v922 = vld [vmem:[%s603 + $0x150] sm:$0xff]
        %v923 = vld [vmem:[%s603 + $0x158] sm:$0xff]
        %v924 = vld [vmem:[%s603 + $0x160] sm:$0xff]
        %v925 = vld [vmem:[%s603 + $0x168] sm:$0xff]
        %v926 = vld [vmem:[%s603 + $0x170] sm:$0xff]
        %v927 = vld [vmem:[%s603 + $0x178] sm:$0xff]
        %v928 = vld [vmem:[%s603 + $0x180] sm:$0xff]
        %v929 = vld [vmem:[%s603 + $0x188] sm:$0xff]
        %v930 = vld [vmem:[%s603 + $0x190] sm:$0xff]
        %v931 = vld [vmem:[%s603 + $0x198] sm:$0xff]
        %v932 = vld [vmem:[%s603 + $0x1a0] sm:$0xff]
        %v933 = vld [vmem:[%s603 + $0x1a8] sm:$0xff]
        %v934 = vld [vmem:[%s603 + $0x1b0] sm:$0xff]
        %v935 = vld [vmem:[%s603 + $0x1b8] sm:$0xff]
        %v936 = vld [vmem:[%s603 + $0x1c0] sm:$0xff]
        %v937 = vld [vmem:[%s603 + $0x1c8] sm:$0xff]
        %v938 = vld [vmem:[%s603 + $0x1d0] sm:$0xff]
        %v939 = vld [vmem:[%s603 + $0x1d8] sm:$0xff]
        %v940 = vld [vmem:[%s603 + $0x1e0] sm:$0xff]
        %v941 = vld [vmem:[%s603 + $0x1e8] sm:$0xff]
        %v942 = vld [vmem:[%s603 + $0x1f0] sm:$0xff]
        %v943 = vld [vmem:[%s603 + $0x1f8] sm:$0xff]
        %944 = vset.pattern.permute.xlu0 0
        %945 = vperm.xlu0 %944, %v880
        %v946 = vpop.permute.xlu0 %945
        %947 = vset.pattern.permute.xlu0 0
        %948 = vperm.xlu0 %947, %v881
        %v949 = vpop.permute.xlu0 %948
        %950 = vset.pattern.permute.xlu0 0
        %951 = vperm.xlu0 %950, %v882
        %v952 = vpop.permute.xlu0 %951
        %953 = vset.pattern.permute.xlu0 0
        %954 = vperm.xlu0 %953, %v883
        %v955 = vpop.permute.xlu0 %954
        %956 = vset.pattern.permute.xlu0 0
        %957 = vperm.xlu0 %956, %v884
        %v958 = vpop.permute.xlu0 %957
        %959 = vset.pattern.permute.xlu0 0
        %960 = vperm.xlu0 %959, %v885
        %v961 = vpop.permute.xlu0 %960
        %962 = vset.pattern.permute.xlu0 0
        %963 = vperm.xlu0 %962, %v886
        %v964 = vpop.permute.xlu0 %963
        %965 = vset.pattern.permute.xlu0 0
        %966 = vperm.xlu0 %965, %v887
        %v967 = vpop.permute.xlu0 %966
        %968 = vset.pattern.permute.xlu0 0
        %969 = vperm.xlu0 %968, %v888
        %v970 = vpop.permute.xlu0 %969
        %971 = vset.pattern.permute.xlu0 0
        %972 = vperm.xlu0 %971, %v889
        %v973 = vpop.permute.xlu0 %972
        %974 = vset.pattern.permute.xlu0 0
        %975 = vperm.xlu0 %974, %v890
        %v976 = vpop.permute.xlu0 %975
        %977 = vset.pattern.permute.xlu0 0
        %978 = vperm.xlu0 %977, %v891
        %v979 = vpop.permute.xlu0 %978
        %980 = vset.pattern.permute.xlu0 0
        %981 = vperm.xlu0 %980, %v892
        %v982 = vpop.permute.xlu0 %981
        %983 = vset.pattern.permute.xlu0 0
        %984 = vperm.xlu0 %983, %v893
        %v985 = vpop.permute.xlu0 %984
        %986 = vset.pattern.permute.xlu0 0
        %987 = vperm.xlu0 %986, %v894
        %v988 = vpop.permute.xlu0 %987
        %989 = vset.pattern.permute.xlu0 0
        %990 = vperm.xlu0 %989, %v895
        %v991 = vpop.permute.xlu0 %990
        %992 = vset.pattern.permute.xlu0 0
        %993 = vperm.xlu0 %992, %v896
        %v994 = vpop.permute.xlu0 %993
        %995 = vset.pattern.permute.xlu0 0
        %996 = vperm.xlu0 %995, %v897
        %v997 = vpop.permute.xlu0 %996
        %998 = vset.pattern.permute.xlu0 0
        %999 = vperm.xlu0 %998, %v898
        %v1000 = vpop.permute.xlu0 %999
        %1001 = vset.pattern.permute.xlu0 0
        %1002 = vperm.xlu0 %1001, %v899
        %v1003 = vpop.permute.xlu0 %1002
        %1004 = vset.pattern.permute.xlu0 0
        %1005 = vperm.xlu0 %1004, %v900
        %v1006 = vpop.permute.xlu0 %1005
        %1007 = vset.pattern.permute.xlu0 0
        %1008 = vperm.xlu0 %1007, %v901
        %v1009 = vpop.permute.xlu0 %1008
        %1010 = vset.pattern.permute.xlu0 0
        %1011 = vperm.xlu0 %1010, %v902
        %v1012 = vpop.permute.xlu0 %1011
        %1013 = vset.pattern.permute.xlu0 0
        %1014 = vperm.xlu0 %1013, %v903
        %v1015 = vpop.permute.xlu0 %1014
        %1016 = vset.pattern.permute.xlu0 0
        %1017 = vperm.xlu0 %1016, %v904
        %v1018 = vpop.permute.xlu0 %1017
        %1019 = vset.pattern.permute.xlu0 0
        %1020 = vperm.xlu0 %1019, %v905
        %v1021 = vpop.permute.xlu0 %1020
        %1022 = vset.pattern.permute.xlu0 0
        %1023 = vperm.xlu0 %1022, %v906
        %v1024 = vpop.permute.xlu0 %1023
        %1025 = vset.pattern.permute.xlu0 0
        %1026 = vperm.xlu0 %1025, %v907
        %v1027 = vpop.permute.xlu0 %1026
        %1028 = vset.pattern.permute.xlu0 0
        %1029 = vperm.xlu0 %1028, %v908
        %v1030 = vpop.permute.xlu0 %1029
        %1031 = vset.pattern.permute.xlu0 0
        %1032 = vperm.xlu0 %1031, %v909
        %v1033 = vpop.permute.xlu0 %1032
        %1034 = vset.pattern.permute.xlu0 0
        %1035 = vperm.xlu0 %1034, %v910
        %v1036 = vpop.permute.xlu0 %1035
        %1037 = vset.pattern.permute.xlu0 0
        %1038 = vperm.xlu0 %1037, %v911
        %v1039 = vpop.permute.xlu0 %1038
        %1040 = vset.pattern.permute.xlu0 0
        %1041 = vperm.xlu0 %1040, %v912
        %v1042 = vpop.permute.xlu0 %1041
        %1043 = vset.pattern.permute.xlu0 0
        %1044 = vperm.xlu0 %1043, %v913
        %v1045 = vpop.permute.xlu0 %1044
        %1046 = vset.pattern.permute.xlu0 0
        %1047 = vperm.xlu0 %1046, %v914
        %v1048 = vpop.permute.xlu0 %1047
        %1049 = vset.pattern.permute.xlu0 0
        %1050 = vperm.xlu0 %1049, %v915
        %v1051 = vpop.permute.xlu0 %1050
        %1052 = vset.pattern.permute.xlu0 0
        %1053 = vperm.xlu0 %1052, %v916
        %v1054 = vpop.permute.xlu0 %1053
        %1055 = vset.pattern.permute.xlu0 0
        %1056 = vperm.xlu0 %1055, %v917
        %v1057 = vpop.permute.xlu0 %1056
        %1058 = vset.pattern.permute.xlu0 0
        %1059 = vperm.xlu0 %1058, %v918
        %v1060 = vpop.permute.xlu0 %1059
        %1061 = vset.pattern.permute.xlu0 0
        %1062 = vperm.xlu0 %1061, %v919
        %v1063 = vpop.permute.xlu0 %1062
        %1064 = vset.pattern.permute.xlu0 0
        %1065 = vperm.xlu0 %1064, %v920
        %v1066 = vpop.permute.xlu0 %1065
        %1067 = vset.pattern.permute.xlu0 0
        %1068 = vperm.xlu0 %1067, %v921
        %v1069 = vpop.permute.xlu0 %1068
        %1070 = vset.pattern.permute.xlu0 0
        %1071 = vperm.xlu0 %1070, %v922
        %v1072 = vpop.permute.xlu0 %1071
        %1073 = vset.pattern.permute.xlu0 0
        %1074 = vperm.xlu0 %1073, %v923
        %v1075 = vpop.permute.xlu0 %1074
        %1076 = vset.pattern.permute.xlu0 0
        %1077 = vperm.xlu0 %1076, %v924
        %v1078 = vpop.permute.xlu0 %1077
        %1079 = vset.pattern.permute.xlu0 0
        %1080 = vperm.xlu0 %1079, %v925
        %v1081 = vpop.permute.xlu0 %1080
        %1082 = vset.pattern.permute.xlu0 0
        %1083 = vperm.xlu0 %1082, %v926
        %v1084 = vpop.permute.xlu0 %1083
        %1085 = vset.pattern.permute.xlu0 0
        %1086 = vperm.xlu0 %1085, %v927
        %v1087 = vpop.permute.xlu0 %1086
        %1088 = vset.pattern.permute.xlu0 0
        %1089 = vperm.xlu0 %1088, %v928
        %v1090 = vpop.permute.xlu0 %1089
        %1091 = vset.pattern.permute.xlu0 0
        %1092 = vperm.xlu0 %1091, %v929
        %v1093 = vpop.permute.xlu0 %1092
        %1094 = vset.pattern.permute.xlu0 0
        %1095 = vperm.xlu0 %1094, %v930
        %v1096 = vpop.permute.xlu0 %1095
        %1097 = vset.pattern.permute.xlu0 0
        %1098 = vperm.xlu0 %1097, %v931
        %v1099 = vpop.permute.xlu0 %1098
        %1100 = vset.pattern.permute.xlu0 0
        %1101 = vperm.xlu0 %1100, %v932
        %v1102 = vpop.permute.xlu0 %1101
        %1103 = vset.pattern.permute.xlu0 0
        %1104 = vperm.xlu0 %1103, %v933
        %v1105 = vpop.permute.xlu0 %1104
        %1106 = vset.pattern.permute.xlu0 0
        %1107 = vperm.xlu0 %1106, %v934
        %v1108 = vpop.permute.xlu0 %1107
        %1109 = vset.pattern.permute.xlu0 0
        %1110 = vperm.xlu0 %1109, %v935
        %v1111 = vpop.permute.xlu0 %1110
        %1112 = vset.pattern.permute.xlu0 0
        %1113 = vperm.xlu0 %1112, %v936
        %v1114 = vpop.permute.xlu0 %1113
        %1115 = vset.pattern.permute.xlu0 0
        %1116 = vperm.xlu0 %1115, %v937
        %v1117 = vpop.permute.xlu0 %1116
        %1118 = vset.pattern.permute.xlu0 0
        %1119 = vperm.xlu0 %1118, %v938
        %v1120 = vpop.permute.xlu0 %1119
        %1121 = vset.pattern.permute.xlu0 0
        %1122 = vperm.xlu0 %1121, %v939
        %v1123 = vpop.permute.xlu0 %1122
        %1124 = vset.pattern.permute.xlu0 0
        %1125 = vperm.xlu0 %1124, %v940
        %v1126 = vpop.permute.xlu0 %1125
        %1127 = vset.pattern.permute.xlu0 0
        %1128 = vperm.xlu0 %1127, %v941
        %v1129 = vpop.permute.xlu0 %1128
        %1130 = vset.pattern.permute.xlu0 0
        %1131 = vperm.xlu0 %1130, %v942
        %v1132 = vpop.permute.xlu0 %1131
        %1133 = vset.pattern.permute.xlu0 0
        %1134 = vperm.xlu0 %1133, %v943
        %v1135 = vpop.permute.xlu0 %1134
        %vm1136 = vcmp.eq.s32.totalorder %v879, %v946
        %vm1137 = vcmp.eq.s32.totalorder %v879, %v949
        %vm1138 = vcmp.eq.s32.totalorder %v879, %v952
        %vm1139 = vcmp.eq.s32.totalorder %v879, %v955
        %vm1140 = vcmp.eq.s32.totalorder %v879, %v958
        %vm1141 = vcmp.eq.s32.totalorder %v879, %v961
        %vm1142 = vcmp.eq.s32.totalorder %v879, %v964
        %vm1143 = vcmp.eq.s32.totalorder %v879, %v967
        %vm1144 = vcmp.eq.s32.totalorder %v879, %v970
        %vm1145 = vcmp.eq.s32.totalorder %v879, %v973
        %vm1146 = vcmp.eq.s32.totalorder %v879, %v976
        %vm1147 = vcmp.eq.s32.totalorder %v879, %v979
        %vm1148 = vcmp.eq.s32.totalorder %v879, %v982
        %vm1149 = vcmp.eq.s32.totalorder %v879, %v985
        %vm1150 = vcmp.eq.s32.totalorder %v879, %v988
        %vm1151 = vcmp.eq.s32.totalorder %v879, %v991
        %vm1152 = vcmp.eq.s32.totalorder %v879, %v994
        %vm1153 = vcmp.eq.s32.totalorder %v879, %v997
        %vm1154 = vcmp.eq.s32.totalorder %v879, %v1000
        %vm1155 = vcmp.eq.s32.totalorder %v879, %v1003
        %vm1156 = vcmp.eq.s32.totalorder %v879, %v1006
        %vm1157 = vcmp.eq.s32.totalorder %v879, %v1009
        %vm1158 = vcmp.eq.s32.totalorder %v879, %v1012
        %vm1159 = vcmp.eq.s32.totalorder %v879, %v1015
        %vm1160 = vcmp.eq.s32.totalorder %v879, %v1018
        %vm1161 = vcmp.eq.s32.totalorder %v879, %v1021
        %vm1162 = vcmp.eq.s32.totalorder %v879, %v1024
        %vm1163 = vcmp.eq.s32.totalorder %v879, %v1027
        %vm1164 = vcmp.eq.s32.totalorder %v879, %v1030
        %vm1165 = vcmp.eq.s32.totalorder %v879, %v1033
        %vm1166 = vcmp.eq.s32.totalorder %v879, %v1036
        %vm1167 = vcmp.eq.s32.totalorder %v879, %v1039
        %vm1168 = vcmp.eq.s32.totalorder %v879, %v1042
        %vm1169 = vcmp.eq.s32.totalorder %v879, %v1045
        %vm1170 = vcmp.eq.s32.totalorder %v879, %v1048
        %vm1171 = vcmp.eq.s32.totalorder %v879, %v1051
        %vm1172 = vcmp.eq.s32.totalorder %v879, %v1054
        %vm1173 = vcmp.eq.s32.totalorder %v879, %v1057
        %vm1174 = vcmp.eq.s32.totalorder %v879, %v1060
        %vm1175 = vcmp.eq.s32.totalorder %v879, %v1063
        %vm1176 = vcmp.eq.s32.totalorder %v879, %v1066
        %vm1177 = vcmp.eq.s32.totalorder %v879, %v1069
        %vm1178 = vcmp.eq.s32.totalorder %v879, %v1072
        %vm1179 = vcmp.eq.s32.totalorder %v879, %v1075
        %vm1180 = vcmp.eq.s32.totalorder %v879, %v1078
        %vm1181 = vcmp.eq.s32.totalorder %v879, %v1081
        %vm1182 = vcmp.eq.s32.totalorder %v879, %v1084
        %vm1183 = vcmp.eq.s32.totalorder %v879, %v1087
        %vm1184 = vcmp.eq.s32.totalorder %v879, %v1090
        %vm1185 = vcmp.eq.s32.totalorder %v879, %v1093
        %vm1186 = vcmp.eq.s32.totalorder %v879, %v1096
        %vm1187 = vcmp.eq.s32.totalorder %v879, %v1099
        %vm1188 = vcmp.eq.s32.totalorder %v879, %v1102
        %vm1189 = vcmp.eq.s32.totalorder %v879, %v1105
        %vm1190 = vcmp.eq.s32.totalorder %v879, %v1108
        %vm1191 = vcmp.eq.s32.totalorder %v879, %v1111
        %vm1192 = vcmp.eq.s32.totalorder %v879, %v1114
        %vm1193 = vcmp.eq.s32.totalorder %v879, %v1117
        %vm1194 = vcmp.eq.s32.totalorder %v879, %v1120
        %vm1195 = vcmp.eq.s32.totalorder %v879, %v1123
        %vm1196 = vcmp.eq.s32.totalorder %v879, %v1126
        %vm1197 = vcmp.eq.s32.totalorder %v879, %v1129
        %vm1198 = vcmp.eq.s32.totalorder %v879, %v1132
        %vm1199 = vcmp.eq.s32.totalorder %v879, %v1135
        %v1200 = vsel %vm1136, 1, 0
        %v1201 = vsel %vm1137, 1, 0
        %v1202 = vsel %vm1138, 1, 0
        %v1203 = vsel %vm1139, 1, 0
        %v1204 = vsel %vm1140, 1, 0
        %v1205 = vsel %vm1141, 1, 0
        %v1206 = vsel %vm1142, 1, 0
        %v1207 = vsel %vm1143, 1, 0
        %v1208 = vsel %vm1144, 1, 0
        %v1209 = vsel %vm1145, 1, 0
        %v1210 = vsel %vm1146, 1, 0
        %v1211 = vsel %vm1147, 1, 0
        %v1212 = vsel %vm1148, 1, 0
        %v1213 = vsel %vm1149, 1, 0
        %v1214 = vsel %vm1150, 1, 0
        %v1215 = vsel %vm1151, 1, 0
        %v1216 = vsel %vm1152, 1, 0
        %v1217 = vsel %vm1153, 1, 0
        %v1218 = vsel %vm1154, 1, 0
        %v1219 = vsel %vm1155, 1, 0
        %v1220 = vsel %vm1156, 1, 0
        %v1221 = vsel %vm1157, 1, 0
        %v1222 = vsel %vm1158, 1, 0
        %v1223 = vsel %vm1159, 1, 0
        %v1224 = vsel %vm1160, 1, 0
        %v1225 = vsel %vm1161, 1, 0
        %v1226 = vsel %vm1162, 1, 0
        %v1227 = vsel %vm1163, 1, 0
        %v1228 = vsel %vm1164, 1, 0
        %v1229 = vsel %vm1165, 1, 0
        %v1230 = vsel %vm1166, 1, 0
        %v1231 = vsel %vm1167, 1, 0
        %v1232 = vsel %vm1168, 1, 0
        %v1233 = vsel %vm1169, 1, 0
        %v1234 = vsel %vm1170, 1, 0
        %v1235 = vsel %vm1171, 1, 0
        %v1236 = vsel %vm1172, 1, 0
        %v1237 = vsel %vm1173, 1, 0
        %v1238 = vsel %vm1174, 1, 0
        %v1239 = vsel %vm1175, 1, 0
        %v1240 = vsel %vm1176, 1, 0
        %v1241 = vsel %vm1177, 1, 0
        %v1242 = vsel %vm1178, 1, 0
        %v1243 = vsel %vm1179, 1, 0
        %v1244 = vsel %vm1180, 1, 0
        %v1245 = vsel %vm1181, 1, 0
        %v1246 = vsel %vm1182, 1, 0
        %v1247 = vsel %vm1183, 1, 0
        %v1248 = vsel %vm1184, 1, 0
        %v1249 = vsel %vm1185, 1, 0
        %v1250 = vsel %vm1186, 1, 0
        %v1251 = vsel %vm1187, 1, 0
        %v1252 = vsel %vm1188, 1, 0
        %v1253 = vsel %vm1189, 1, 0
        %v1254 = vsel %vm1190, 1, 0
        %v1255 = vsel %vm1191, 1, 0
        %v1256 = vsel %vm1192, 1, 0
        %v1257 = vsel %vm1193, 1, 0
        %v1258 = vsel %vm1194, 1, 0
        %v1259 = vsel %vm1195, 1, 0
        %v1260 = vsel %vm1196, 1, 0
        %v1261 = vsel %vm1197, 1, 0
        %v1262 = vsel %vm1198, 1, 0
        %v1263 = vsel %vm1199, 1, 0
        %v1264 = vcvt.s32.f32 %v1200
        %v1265 = vcvt.s32.f32 %v1201
        %v1266 = vcvt.s32.f32 %v1202
        %v1267 = vcvt.s32.f32 %v1203
        %v1268 = vcvt.s32.f32 %v1204
        %v1269 = vcvt.s32.f32 %v1205
        %v1270 = vcvt.s32.f32 %v1206
        %v1271 = vcvt.s32.f32 %v1207
        %v1272 = vcvt.s32.f32 %v1208
        %v1273 = vcvt.s32.f32 %v1209
        %v1274 = vcvt.s32.f32 %v1210
        %v1275 = vcvt.s32.f32 %v1211
        %v1276 = vcvt.s32.f32 %v1212
        %v1277 = vcvt.s32.f32 %v1213
        %v1278 = vcvt.s32.f32 %v1214
        %v1279 = vcvt.s32.f32 %v1215
        %v1280 = vcvt.s32.f32 %v1216
        %v1281 = vcvt.s32.f32 %v1217
        %v1282 = vcvt.s32.f32 %v1218
        %v1283 = vcvt.s32.f32 %v1219
        %v1284 = vcvt.s32.f32 %v1220
        %v1285 = vcvt.s32.f32 %v1221
        %v1286 = vcvt.s32.f32 %v1222
        %v1287 = vcvt.s32.f32 %v1223
        %v1288 = vcvt.s32.f32 %v1224
        %v1289 = vcvt.s32.f32 %v1225
        %v1290 = vcvt.s32.f32 %v1226
        %v1291 = vcvt.s32.f32 %v1227
        %v1292 = vcvt.s32.f32 %v1228
        %v1293 = vcvt.s32.f32 %v1229
        %v1294 = vcvt.s32.f32 %v1230
        %v1295 = vcvt.s32.f32 %v1231
        %v1296 = vcvt.s32.f32 %v1232
        %v1297 = vcvt.s32.f32 %v1233
        %v1298 = vcvt.s32.f32 %v1234
        %v1299 = vcvt.s32.f32 %v1235
        %v1300 = vcvt.s32.f32 %v1236
        %v1301 = vcvt.s32.f32 %v1237
        %v1302 = vcvt.s32.f32 %v1238
        %v1303 = vcvt.s32.f32 %v1239
        %v1304 = vcvt.s32.f32 %v1240
        %v1305 = vcvt.s32.f32 %v1241
        %v1306 = vcvt.s32.f32 %v1242
        %v1307 = vcvt.s32.f32 %v1243
        %v1308 = vcvt.s32.f32 %v1244
        %v1309 = vcvt.s32.f32 %v1245
        %v1310 = vcvt.s32.f32 %v1246
        %v1311 = vcvt.s32.f32 %v1247
        %v1312 = vcvt.s32.f32 %v1248
        %v1313 = vcvt.s32.f32 %v1249
        %v1314 = vcvt.s32.f32 %v1250
        %v1315 = vcvt.s32.f32 %v1251
        %v1316 = vcvt.s32.f32 %v1252
        %v1317 = vcvt.s32.f32 %v1253
        %v1318 = vcvt.s32.f32 %v1254
        %v1319 = vcvt.s32.f32 %v1255
        %v1320 = vcvt.s32.f32 %v1256
        %v1321 = vcvt.s32.f32 %v1257
        %v1322 = vcvt.s32.f32 %v1258
        %v1323 = vcvt.s32.f32 %v1259
        %v1324 = vcvt.s32.f32 %v1260
        %v1325 = vcvt.s32.f32 %v1261
        %v1326 = vcvt.s32.f32 %v1262
        %v1327 = vcvt.s32.f32 %v1263
        %v1328 = vld [vmem:[%s613] sm:$0xff]
        %v1329 = vld [vmem:[%s613 + $0x8] sm:$0xff]
        %v1330 = vld [vmem:[%s613 + $0x10] sm:$0xff]
        %v1331 = vld [vmem:[%s613 + $0x18] sm:$0xff]
        %v1332 = vld [vmem:[%s613 + $0x20] sm:$0xff]
        %v1333 = vld [vmem:[%s613 + $0x28] sm:$0xff]
        %v1334 = vld [vmem:[%s613 + $0x30] sm:$0xff]
        %v1335 = vld [vmem:[%s613 + $0x38] sm:$0xff]
        %v1336 = vld [vmem:[%s613 + $0x40] sm:$0xff]
        %v1337 = vld [vmem:[%s613 + $0x48] sm:$0xff]
        %v1338 = vld [vmem:[%s613 + $0x50] sm:$0xff]
        %v1339 = vld [vmem:[%s613 + $0x58] sm:$0xff]
        %v1340 = vld [vmem:[%s613 + $0x60] sm:$0xff]
        %v1341 = vld [vmem:[%s613 + $0x68] sm:$0xff]
        %v1342 = vld [vmem:[%s613 + $0x70] sm:$0xff]
        %v1343 = vld [vmem:[%s613 + $0x78] sm:$0xff]
        %v1344 = vld [vmem:[%s613 + $0x80] sm:$0xff]
        %v1345 = vld [vmem:[%s613 + $0x88] sm:$0xff]
        %v1346 = vld [vmem:[%s613 + $0x90] sm:$0xff]
        %v1347 = vld [vmem:[%s613 + $0x98] sm:$0xff]
        %v1348 = vld [vmem:[%s613 + $0xa0] sm:$0xff]
        %v1349 = vld [vmem:[%s613 + $0xa8] sm:$0xff]
        %v1350 = vld [vmem:[%s613 + $0xb0] sm:$0xff]
        %v1351 = vld [vmem:[%s613 + $0xb8] sm:$0xff]
        %v1352 = vld [vmem:[%s613 + $0xc0] sm:$0xff]
        %v1353 = vld [vmem:[%s613 + $0xc8] sm:$0xff]
        %v1354 = vld [vmem:[%s613 + $0xd0] sm:$0xff]
        %v1355 = vld [vmem:[%s613 + $0xd8] sm:$0xff]
        %v1356 = vld [vmem:[%s613 + $0xe0] sm:$0xff]
        %v1357 = vld [vmem:[%s613 + $0xe8] sm:$0xff]
        %v1358 = vld [vmem:[%s613 + $0xf0] sm:$0xff]
        %v1359 = vld [vmem:[%s613 + $0xf8] sm:$0xff]
        %v1360 = vld [vmem:[%s613 + $0x100] sm:$0xff]
        %v1361 = vld [vmem:[%s613 + $0x108] sm:$0xff]
        %v1362 = vld [vmem:[%s613 + $0x110] sm:$0xff]
        %v1363 = vld [vmem:[%s613 + $0x118] sm:$0xff]
        %v1364 = vld [vmem:[%s613 + $0x120] sm:$0xff]
        %v1365 = vld [vmem:[%s613 + $0x128] sm:$0xff]
        %v1366 = vld [vmem:[%s613 + $0x130] sm:$0xff]
        %v1367 = vld [vmem:[%s613 + $0x138] sm:$0xff]
        %v1368 = vld [vmem:[%s613 + $0x140] sm:$0xff]
        %v1369 = vld [vmem:[%s613 + $0x148] sm:$0xff]
        %v1370 = vld [vmem:[%s613 + $0x150] sm:$0xff]
        %v1371 = vld [vmem:[%s613 + $0x158] sm:$0xff]
        %v1372 = vld [vmem:[%s613 + $0x160] sm:$0xff]
        %v1373 = vld [vmem:[%s613 + $0x168] sm:$0xff]
        %v1374 = vld [vmem:[%s613 + $0x170] sm:$0xff]
        %v1375 = vld [vmem:[%s613 + $0x178] sm:$0xff]
        %v1376 = vld [vmem:[%s613 + $0x180] sm:$0xff]
        %v1377 = vld [vmem:[%s613 + $0x188] sm:$0xff]
        %v1378 = vld [vmem:[%s613 + $0x190] sm:$0xff]
        %v1379 = vld [vmem:[%s613 + $0x198] sm:$0xff]
        %v1380 = vld [vmem:[%s613 + $0x1a0] sm:$0xff]
        %v1381 = vld [vmem:[%s613 + $0x1a8] sm:$0xff]
        %v1382 = vld [vmem:[%s613 + $0x1b0] sm:$0xff]
        %v1383 = vld [vmem:[%s613 + $0x1b8] sm:$0xff]
        %v1384 = vld [vmem:[%s613 + $0x1c0] sm:$0xff]
        %v1385 = vld [vmem:[%s613 + $0x1c8] sm:$0xff]
        %v1386 = vld [vmem:[%s613 + $0x1d0] sm:$0xff]
        %v1387 = vld [vmem:[%s613 + $0x1d8] sm:$0xff]
        %v1388 = vld [vmem:[%s613 + $0x1e0] sm:$0xff]
        %v1389 = vld [vmem:[%s613 + $0x1e8] sm:$0xff]
        %v1390 = vld [vmem:[%s613 + $0x1f0] sm:$0xff]
        %v1391 = vld [vmem:[%s613 + $0x1f8] sm:$0xff]
        %1392 = vset.pattern.permute.xlu0 0
        %1393 = vperm.xlu0 %1392, %v1328
        %v1394 = vpop.permute.xlu0 %1393
        %1395 = vset.pattern.permute.xlu0 0
        %1396 = vperm.xlu0 %1395, %v1329
        %v1397 = vpop.permute.xlu0 %1396
        %1398 = vset.pattern.permute.xlu0 0
        %1399 = vperm.xlu0 %1398, %v1330
        %v1400 = vpop.permute.xlu0 %1399
        %1401 = vset.pattern.permute.xlu0 0
        %1402 = vperm.xlu0 %1401, %v1331
        %v1403 = vpop.permute.xlu0 %1402
        %1404 = vset.pattern.permute.xlu0 0
        %1405 = vperm.xlu0 %1404, %v1332
        %v1406 = vpop.permute.xlu0 %1405
        %1407 = vset.pattern.permute.xlu0 0
        %1408 = vperm.xlu0 %1407, %v1333
        %v1409 = vpop.permute.xlu0 %1408
        %1410 = vset.pattern.permute.xlu0 0
        %1411 = vperm.xlu0 %1410, %v1334
        %v1412 = vpop.permute.xlu0 %1411
        %1413 = vset.pattern.permute.xlu0 0
        %1414 = vperm.xlu0 %1413, %v1335
        %v1415 = vpop.permute.xlu0 %1414
        %1416 = vset.pattern.permute.xlu0 0
        %1417 = vperm.xlu0 %1416, %v1336
        %v1418 = vpop.permute.xlu0 %1417
        %1419 = vset.pattern.permute.xlu0 0
        %1420 = vperm.xlu0 %1419, %v1337
        %v1421 = vpop.permute.xlu0 %1420
        %1422 = vset.pattern.permute.xlu0 0
        %1423 = vperm.xlu0 %1422, %v1338
        %v1424 = vpop.permute.xlu0 %1423
        %1425 = vset.pattern.permute.xlu0 0
        %1426 = vperm.xlu0 %1425, %v1339
        %v1427 = vpop.permute.xlu0 %1426
        %1428 = vset.pattern.permute.xlu0 0
        %1429 = vperm.xlu0 %1428, %v1340
        %v1430 = vpop.permute.xlu0 %1429
        %1431 = vset.pattern.permute.xlu0 0
        %1432 = vperm.xlu0 %1431, %v1341
        %v1433 = vpop.permute.xlu0 %1432
        %1434 = vset.pattern.permute.xlu0 0
        %1435 = vperm.xlu0 %1434, %v1342
        %v1436 = vpop.permute.xlu0 %1435
        %1437 = vset.pattern.permute.xlu0 0
        %1438 = vperm.xlu0 %1437, %v1343
        %v1439 = vpop.permute.xlu0 %1438
        %1440 = vset.pattern.permute.xlu0 0
        %1441 = vperm.xlu0 %1440, %v1344
        %v1442 = vpop.permute.xlu0 %1441
        %1443 = vset.pattern.permute.xlu0 0
        %1444 = vperm.xlu0 %1443, %v1345
        %v1445 = vpop.permute.xlu0 %1444
        %1446 = vset.pattern.permute.xlu0 0
        %1447 = vperm.xlu0 %1446, %v1346
        %v1448 = vpop.permute.xlu0 %1447
        %1449 = vset.pattern.permute.xlu0 0
        %1450 = vperm.xlu0 %1449, %v1347
        %v1451 = vpop.permute.xlu0 %1450
        %1452 = vset.pattern.permute.xlu0 0
        %1453 = vperm.xlu0 %1452, %v1348
        %v1454 = vpop.permute.xlu0 %1453
        %1455 = vset.pattern.permute.xlu0 0
        %1456 = vperm.xlu0 %1455, %v1349
        %v1457 = vpop.permute.xlu0 %1456
        %1458 = vset.pattern.permute.xlu0 0
        %1459 = vperm.xlu0 %1458, %v1350
        %v1460 = vpop.permute.xlu0 %1459
        %1461 = vset.pattern.permute.xlu0 0
        %1462 = vperm.xlu0 %1461, %v1351
        %v1463 = vpop.permute.xlu0 %1462
        %1464 = vset.pattern.permute.xlu0 0
        %1465 = vperm.xlu0 %1464, %v1352
        %v1466 = vpop.permute.xlu0 %1465
        %1467 = vset.pattern.permute.xlu0 0
        %1468 = vperm.xlu0 %1467, %v1353
        %v1469 = vpop.permute.xlu0 %1468
        %1470 = vset.pattern.permute.xlu0 0
        %1471 = vperm.xlu0 %1470, %v1354
        %v1472 = vpop.permute.xlu0 %1471
        %1473 = vset.pattern.permute.xlu0 0
        %1474 = vperm.xlu0 %1473, %v1355
        %v1475 = vpop.permute.xlu0 %1474
        %1476 = vset.pattern.permute.xlu0 0
        %1477 = vperm.xlu0 %1476, %v1356
        %v1478 = vpop.permute.xlu0 %1477
        %1479 = vset.pattern.permute.xlu0 0
        %1480 = vperm.xlu0 %1479, %v1357
        %v1481 = vpop.permute.xlu0 %1480
        %1482 = vset.pattern.permute.xlu0 0
        %1483 = vperm.xlu0 %1482, %v1358
        %v1484 = vpop.permute.xlu0 %1483
        %1485 = vset.pattern.permute.xlu0 0
        %1486 = vperm.xlu0 %1485, %v1359
        %v1487 = vpop.permute.xlu0 %1486
        %1488 = vset.pattern.permute.xlu0 0
        %1489 = vperm.xlu0 %1488, %v1360
        %v1490 = vpop.permute.xlu0 %1489
        %1491 = vset.pattern.permute.xlu0 0
        %1492 = vperm.xlu0 %1491, %v1361
        %v1493 = vpop.permute.xlu0 %1492
        %1494 = vset.pattern.permute.xlu0 0
        %1495 = vperm.xlu0 %1494, %v1362
        %v1496 = vpop.permute.xlu0 %1495
        %1497 = vset.pattern.permute.xlu0 0
        %1498 = vperm.xlu0 %1497, %v1363
        %v1499 = vpop.permute.xlu0 %1498
        %1500 = vset.pattern.permute.xlu0 0
        %1501 = vperm.xlu0 %1500, %v1364
        %v1502 = vpop.permute.xlu0 %1501
        %1503 = vset.pattern.permute.xlu0 0
        %1504 = vperm.xlu0 %1503, %v1365
        %v1505 = vpop.permute.xlu0 %1504
        %1506 = vset.pattern.permute.xlu0 0
        %1507 = vperm.xlu0 %1506, %v1366
        %v1508 = vpop.permute.xlu0 %1507
        %1509 = vset.pattern.permute.xlu0 0
        %1510 = vperm.xlu0 %1509, %v1367
        %v1511 = vpop.permute.xlu0 %1510
        %1512 = vset.pattern.permute.xlu0 0
        %1513 = vperm.xlu0 %1512, %v1368
        %v1514 = vpop.permute.xlu0 %1513
        %1515 = vset.pattern.permute.xlu0 0
        %1516 = vperm.xlu0 %1515, %v1369
        %v1517 = vpop.permute.xlu0 %1516
        %1518 = vset.pattern.permute.xlu0 0
        %1519 = vperm.xlu0 %1518, %v1370
        %v1520 = vpop.permute.xlu0 %1519
        %1521 = vset.pattern.permute.xlu0 0
        %1522 = vperm.xlu0 %1521, %v1371
        %v1523 = vpop.permute.xlu0 %1522
        %1524 = vset.pattern.permute.xlu0 0
        %1525 = vperm.xlu0 %1524, %v1372
        %v1526 = vpop.permute.xlu0 %1525
        %1527 = vset.pattern.permute.xlu0 0
        %1528 = vperm.xlu0 %1527, %v1373
        %v1529 = vpop.permute.xlu0 %1528
        %1530 = vset.pattern.permute.xlu0 0
        %1531 = vperm.xlu0 %1530, %v1374
        %v1532 = vpop.permute.xlu0 %1531
        %1533 = vset.pattern.permute.xlu0 0
        %1534 = vperm.xlu0 %1533, %v1375
        %v1535 = vpop.permute.xlu0 %1534
        %1536 = vset.pattern.permute.xlu0 0
        %1537 = vperm.xlu0 %1536, %v1376
        %v1538 = vpop.permute.xlu0 %1537
        %1539 = vset.pattern.permute.xlu0 0
        %1540 = vperm.xlu0 %1539, %v1377
        %v1541 = vpop.permute.xlu0 %1540
        %1542 = vset.pattern.permute.xlu0 0
        %1543 = vperm.xlu0 %1542, %v1378
        %v1544 = vpop.permute.xlu0 %1543
        %1545 = vset.pattern.permute.xlu0 0
        %1546 = vperm.xlu0 %1545, %v1379
        %v1547 = vpop.permute.xlu0 %1546
        %1548 = vset.pattern.permute.xlu0 0
        %1549 = vperm.xlu0 %1548, %v1380
        %v1550 = vpop.permute.xlu0 %1549
        %1551 = vset.pattern.permute.xlu0 0
        %1552 = vperm.xlu0 %1551, %v1381
        %v1553 = vpop.permute.xlu0 %1552
        %1554 = vset.pattern.permute.xlu0 0
        %1555 = vperm.xlu0 %1554, %v1382
        %v1556 = vpop.permute.xlu0 %1555
        %1557 = vset.pattern.permute.xlu0 0
        %1558 = vperm.xlu0 %1557, %v1383
        %v1559 = vpop.permute.xlu0 %1558
        %1560 = vset.pattern.permute.xlu0 0
        %1561 = vperm.xlu0 %1560, %v1384
        %v1562 = vpop.permute.xlu0 %1561
        %1563 = vset.pattern.permute.xlu0 0
        %1564 = vperm.xlu0 %1563, %v1385
        %v1565 = vpop.permute.xlu0 %1564
        %1566 = vset.pattern.permute.xlu0 0
        %1567 = vperm.xlu0 %1566, %v1386
        %v1568 = vpop.permute.xlu0 %1567
        %1569 = vset.pattern.permute.xlu0 0
        %1570 = vperm.xlu0 %1569, %v1387
        %v1571 = vpop.permute.xlu0 %1570
        %1572 = vset.pattern.permute.xlu0 0
        %1573 = vperm.xlu0 %1572, %v1388
        %v1574 = vpop.permute.xlu0 %1573
        %1575 = vset.pattern.permute.xlu0 0
        %1576 = vperm.xlu0 %1575, %v1389
        %v1577 = vpop.permute.xlu0 %1576
        %1578 = vset.pattern.permute.xlu0 0
        %1579 = vperm.xlu0 %1578, %v1390
        %v1580 = vpop.permute.xlu0 %1579
        %1581 = vset.pattern.permute.xlu0 0
        %1582 = vperm.xlu0 %1581, %v1391
        %v1583 = vpop.permute.xlu0 %1582
        %vm1584 = vcmp.eq.s32.totalorder %v879, %v1394
        %vm1585 = vcmp.eq.s32.totalorder %v879, %v1397
        %vm1586 = vcmp.eq.s32.totalorder %v879, %v1400
        %vm1587 = vcmp.eq.s32.totalorder %v879, %v1403
        %vm1588 = vcmp.eq.s32.totalorder %v879, %v1406
        %vm1589 = vcmp.eq.s32.totalorder %v879, %v1409
        %vm1590 = vcmp.eq.s32.totalorder %v879, %v1412
        %vm1591 = vcmp.eq.s32.totalorder %v879, %v1415
        %vm1592 = vcmp.eq.s32.totalorder %v879, %v1418
        %vm1593 = vcmp.eq.s32.totalorder %v879, %v1421
        %vm1594 = vcmp.eq.s32.totalorder %v879, %v1424
        %vm1595 = vcmp.eq.s32.totalorder %v879, %v1427
        %vm1596 = vcmp.eq.s32.totalorder %v879, %v1430
        %vm1597 = vcmp.eq.s32.totalorder %v879, %v1433
        %vm1598 = vcmp.eq.s32.totalorder %v879, %v1436
        %vm1599 = vcmp.eq.s32.totalorder %v879, %v1439
        %vm1600 = vcmp.eq.s32.totalorder %v879, %v1442
        %vm1601 = vcmp.eq.s32.totalorder %v879, %v1445
        %vm1602 = vcmp.eq.s32.totalorder %v879, %v1448
        %vm1603 = vcmp.eq.s32.totalorder %v879, %v1451
        %vm1604 = vcmp.eq.s32.totalorder %v879, %v1454
        %vm1605 = vcmp.eq.s32.totalorder %v879, %v1457
        %vm1606 = vcmp.eq.s32.totalorder %v879, %v1460
        %vm1607 = vcmp.eq.s32.totalorder %v879, %v1463
        %vm1608 = vcmp.eq.s32.totalorder %v879, %v1466
        %vm1609 = vcmp.eq.s32.totalorder %v879, %v1469
        %vm1610 = vcmp.eq.s32.totalorder %v879, %v1472
        %vm1611 = vcmp.eq.s32.totalorder %v879, %v1475
        %vm1612 = vcmp.eq.s32.totalorder %v879, %v1478
        %vm1613 = vcmp.eq.s32.totalorder %v879, %v1481
        %vm1614 = vcmp.eq.s32.totalorder %v879, %v1484
        %vm1615 = vcmp.eq.s32.totalorder %v879, %v1487
        %vm1616 = vcmp.eq.s32.totalorder %v879, %v1490
        %vm1617 = vcmp.eq.s32.totalorder %v879, %v1493
        %vm1618 = vcmp.eq.s32.totalorder %v879, %v1496
        %vm1619 = vcmp.eq.s32.totalorder %v879, %v1499
        %vm1620 = vcmp.eq.s32.totalorder %v879, %v1502
        %vm1621 = vcmp.eq.s32.totalorder %v879, %v1505
        %vm1622 = vcmp.eq.s32.totalorder %v879, %v1508
        %vm1623 = vcmp.eq.s32.totalorder %v879, %v1511
        %vm1624 = vcmp.eq.s32.totalorder %v879, %v1514
        %vm1625 = vcmp.eq.s32.totalorder %v879, %v1517
        %vm1626 = vcmp.eq.s32.totalorder %v879, %v1520
        %vm1627 = vcmp.eq.s32.totalorder %v879, %v1523
        %vm1628 = vcmp.eq.s32.totalorder %v879, %v1526
        %vm1629 = vcmp.eq.s32.totalorder %v879, %v1529
        %vm1630 = vcmp.eq.s32.totalorder %v879, %v1532
        %vm1631 = vcmp.eq.s32.totalorder %v879, %v1535
        %vm1632 = vcmp.eq.s32.totalorder %v879, %v1538
        %vm1633 = vcmp.eq.s32.totalorder %v879, %v1541
        %vm1634 = vcmp.eq.s32.totalorder %v879, %v1544
        %vm1635 = vcmp.eq.s32.totalorder %v879, %v1547
        %vm1636 = vcmp.eq.s32.totalorder %v879, %v1550
        %vm1637 = vcmp.eq.s32.totalorder %v879, %v1553
        %vm1638 = vcmp.eq.s32.totalorder %v879, %v1556
        %vm1639 = vcmp.eq.s32.totalorder %v879, %v1559
        %vm1640 = vcmp.eq.s32.totalorder %v879, %v1562
        %vm1641 = vcmp.eq.s32.totalorder %v879, %v1565
        %vm1642 = vcmp.eq.s32.totalorder %v879, %v1568
        %vm1643 = vcmp.eq.s32.totalorder %v879, %v1571
        %vm1644 = vcmp.eq.s32.totalorder %v879, %v1574
        %vm1645 = vcmp.eq.s32.totalorder %v879, %v1577
        %vm1646 = vcmp.eq.s32.totalorder %v879, %v1580
        %vm1647 = vcmp.eq.s32.totalorder %v879, %v1583
        %v1648 = vsel %vm1584, 1, 0
        %v1649 = vsel %vm1585, 1, 0
        %v1650 = vsel %vm1586, 1, 0
        %v1651 = vsel %vm1587, 1, 0
        %v1652 = vsel %vm1588, 1, 0
        %v1653 = vsel %vm1589, 1, 0
        %v1654 = vsel %vm1590, 1, 0
        %v1655 = vsel %vm1591, 1, 0
        %v1656 = vsel %vm1592, 1, 0
        %v1657 = vsel %vm1593, 1, 0
        %v1658 = vsel %vm1594, 1, 0
        %v1659 = vsel %vm1595, 1, 0
        %v1660 = vsel %vm1596, 1, 0
        %v1661 = vsel %vm1597, 1, 0
        %v1662 = vsel %vm1598, 1, 0
        %v1663 = vsel %vm1599, 1, 0
        %v1664 = vsel %vm1600, 1, 0
        %v1665 = vsel %vm1601, 1, 0
        %v1666 = vsel %vm1602, 1, 0
        %v1667 = vsel %vm1603, 1, 0
        %v1668 = vsel %vm1604, 1, 0
        %v1669 = vsel %vm1605, 1, 0
        %v1670 = vsel %vm1606, 1, 0
        %v1671 = vsel %vm1607, 1, 0
        %v1672 = vsel %vm1608, 1, 0
        %v1673 = vsel %vm1609, 1, 0
        %v1674 = vsel %vm1610, 1, 0
        %v1675 = vsel %vm1611, 1, 0
        %v1676 = vsel %vm1612, 1, 0
        %v1677 = vsel %vm1613, 1, 0
        %v1678 = vsel %vm1614, 1, 0
        %v1679 = vsel %vm1615, 1, 0
        %v1680 = vsel %vm1616, 1, 0
        %v1681 = vsel %vm1617, 1, 0
        %v1682 = vsel %vm1618, 1, 0
        %v1683 = vsel %vm1619, 1, 0
        %v1684 = vsel %vm1620, 1, 0
        %v1685 = vsel %vm1621, 1, 0
        %v1686 = vsel %vm1622, 1, 0
        %v1687 = vsel %vm1623, 1, 0
        %v1688 = vsel %vm1624, 1, 0
        %v1689 = vsel %vm1625, 1, 0
        %v1690 = vsel %vm1626, 1, 0
        %v1691 = vsel %vm1627, 1, 0
        %v1692 = vsel %vm1628, 1, 0
        %v1693 = vsel %vm1629, 1, 0
        %v1694 = vsel %vm1630, 1, 0
        %v1695 = vsel %vm1631, 1, 0
        %v1696 = vsel %vm1632, 1, 0
        %v1697 = vsel %vm1633, 1, 0
        %v1698 = vsel %vm1634, 1, 0
        %v1699 = vsel %vm1635, 1, 0
        %v1700 = vsel %vm1636, 1, 0
        %v1701 = vsel %vm1637, 1, 0
        %v1702 = vsel %vm1638, 1, 0
        %v1703 = vsel %vm1639, 1, 0
        %v1704 = vsel %vm1640, 1, 0
        %v1705 = vsel %vm1641, 1, 0
        %v1706 = vsel %vm1642, 1, 0
        %v1707 = vsel %vm1643, 1, 0
        %v1708 = vsel %vm1644, 1, 0
        %v1709 = vsel %vm1645, 1, 0
        %v1710 = vsel %vm1646, 1, 0
        %v1711 = vsel %vm1647, 1, 0
        %v1712 = vcvt.s32.f32 %v1648
        %v1713 = vcvt.s32.f32 %v1649
        %v1714 = vcvt.s32.f32 %v1650
        %v1715 = vcvt.s32.f32 %v1651
        %v1716 = vcvt.s32.f32 %v1652
        %v1717 = vcvt.s32.f32 %v1653
        %v1718 = vcvt.s32.f32 %v1654
        %v1719 = vcvt.s32.f32 %v1655
        %v1720 = vcvt.s32.f32 %v1656
        %v1721 = vcvt.s32.f32 %v1657
        %v1722 = vcvt.s32.f32 %v1658
        %v1723 = vcvt.s32.f32 %v1659
        %v1724 = vcvt.s32.f32 %v1660
        %v1725 = vcvt.s32.f32 %v1661
        %v1726 = vcvt.s32.f32 %v1662
        %v1727 = vcvt.s32.f32 %v1663
        %v1728 = vcvt.s32.f32 %v1664
        %v1729 = vcvt.s32.f32 %v1665
        %v1730 = vcvt.s32.f32 %v1666
        %v1731 = vcvt.s32.f32 %v1667
        %v1732 = vcvt.s32.f32 %v1668
        %v1733 = vcvt.s32.f32 %v1669
        %v1734 = vcvt.s32.f32 %v1670
        %v1735 = vcvt.s32.f32 %v1671
        %v1736 = vcvt.s32.f32 %v1672
        %v1737 = vcvt.s32.f32 %v1673
        %v1738 = vcvt.s32.f32 %v1674
        %v1739 = vcvt.s32.f32 %v1675
        %v1740 = vcvt.s32.f32 %v1676
        %v1741 = vcvt.s32.f32 %v1677
        %v1742 = vcvt.s32.f32 %v1678
        %v1743 = vcvt.s32.f32 %v1679
        %v1744 = vcvt.s32.f32 %v1680
        %v1745 = vcvt.s32.f32 %v1681
        %v1746 = vcvt.s32.f32 %v1682
        %v1747 = vcvt.s32.f32 %v1683
        %v1748 = vcvt.s32.f32 %v1684
        %v1749 = vcvt.s32.f32 %v1685
        %v1750 = vcvt.s32.f32 %v1686
        %v1751 = vcvt.s32.f32 %v1687
        %v1752 = vcvt.s32.f32 %v1688
        %v1753 = vcvt.s32.f32 %v1689
        %v1754 = vcvt.s32.f32 %v1690
        %v1755 = vcvt.s32.f32 %v1691
        %v1756 = vcvt.s32.f32 %v1692
        %v1757 = vcvt.s32.f32 %v1693
        %v1758 = vcvt.s32.f32 %v1694
        %v1759 = vcvt.s32.f32 %v1695
        %v1760 = vcvt.s32.f32 %v1696
        %v1761 = vcvt.s32.f32 %v1697
        %v1762 = vcvt.s32.f32 %v1698
        %v1763 = vcvt.s32.f32 %v1699
        %v1764 = vcvt.s32.f32 %v1700
        %v1765 = vcvt.s32.f32 %v1701
        %v1766 = vcvt.s32.f32 %v1702
        %v1767 = vcvt.s32.f32 %v1703
        %v1768 = vcvt.s32.f32 %v1704
        %v1769 = vcvt.s32.f32 %v1705
        %v1770 = vcvt.s32.f32 %v1706
        %v1771 = vcvt.s32.f32 %v1707
        %v1772 = vcvt.s32.f32 %v1708
        %v1773 = vcvt.s32.f32 %v1709
        %v1774 = vcvt.s32.f32 %v1710
        %v1775 = vcvt.s32.f32 %v1711
        %v1776 = vld [vmem:[#allocation3] sm:$0xff]
        %v1777 = vld [vmem:[#allocation3 + $0x8] sm:$0xff]
        %v1778 = vld [vmem:[#allocation3 + $0x18] sm:$0xff]
        %v1779 = vld [vmem:[#allocation3 + $0x20] sm:$0xff]
        %v1780 = vld [vmem:[#allocation3 + $0x30] sm:$0xff]
        %v1781 = vld [vmem:[#allocation3 + $0x38] sm:$0xff]
        %v1782 = vld [vmem:[#allocation3 + $0x48] sm:$0xff]
        %v1783 = vld [vmem:[#allocation3 + $0x50] sm:$0xff]
        %v1784 = vld [vmem:[#allocation3 + $0x60] sm:$0xff]
        %v1785 = vld [vmem:[#allocation3 + $0x68] sm:$0xff]
        %v1786 = vld [vmem:[#allocation3 + $0x78] sm:$0xff]
        %v1787 = vld [vmem:[#allocation3 + $0x80] sm:$0xff]
        %v1788 = vld [vmem:[#allocation3 + $0x90] sm:$0xff]
        %v1789 = vld [vmem:[#allocation3 + $0x98] sm:$0xff]
        %v1790 = vld [vmem:[#allocation3 + $0xa8] sm:$0xff]
        %v1791 = vld [vmem:[#allocation3 + $0xb0] sm:$0xff]
        %v1792 = vld [vmem:[#allocation3 + $0xc0] sm:$0xff]
        %v1793 = vld [vmem:[#allocation3 + $0xc8] sm:$0xff]
        %v1794 = vld [vmem:[#allocation3 + $0xd8] sm:$0xff]
        %v1795 = vld [vmem:[#allocation3 + $0xe0] sm:$0xff]
        %v1796 = vld [vmem:[#allocation3 + $0xf0] sm:$0xff]
        %v1797 = vld [vmem:[#allocation3 + $0xf8] sm:$0xff]
        %v1798 = vld [vmem:[#allocation3 + $0x108] sm:$0xff]
        %v1799 = vld [vmem:[#allocation3 + $0x110] sm:$0xff]
        %v1800 = vld [vmem:[#allocation3 + $0x120] sm:$0xff]
        %v1801 = vld [vmem:[#allocation3 + $0x128] sm:$0xff]
        %v1802 = vld [vmem:[#allocation3 + $0x138] sm:$0xff]
        %v1803 = vld [vmem:[#allocation3 + $0x140] sm:$0xff]
        %v1804 = vld [vmem:[#allocation3 + $0x150] sm:$0xff]
        %v1805 = vld [vmem:[#allocation3 + $0x158] sm:$0xff]
        %v1806 = vld [vmem:[#allocation3 + $0x168] sm:$0xff]
        %v1807 = vld [vmem:[#allocation3 + $0x170] sm:$0xff]
        %1808 = vmatpush.msra.mxu0 %v1806
        %1809 = vmatpush.msra.mxu0 %v1804
        %1810 = vmatpush.msra.mxu0 %v1802
        %1811 = vmatpush.msra.mxu0 %v1800
        %1812 = vmatpush.msra.mxu0 %v1798
        %1813 = vmatpush.msra.mxu0 %v1796
        %1814 = vmatpush.msra.mxu0 %v1794
        %1815 = vmatpush.msra.mxu0 %v1792
        %1816 = vmatpush.msra.mxu0 %v1790
        %1817 = vmatpush.msra.mxu0 %v1788
        %1818 = vmatpush.msra.mxu0 %v1786
        %1819 = vmatpush.msra.mxu0 %v1784
        %1820 = vmatpush.msra.mxu0 %v1782
        %1821 = vmatpush.msra.mxu0 %v1780
        %1822 = vmatpush.msra.mxu0 %v1778
        %1823 = vmatpush.msra.mxu0 %v1776
        %1824 = vmatmul.f32.gmra.mxu0 %v1264
        %v1825 = vpop.f32.mrf.mxu0
        %v1826 = vadd.f32 0.0, %v1825
        %1827 = vmatmul.f32.gmra.mxu0 %v1265
        %v1828 = vpop.f32.mrf.mxu0
        %v1829 = vadd.f32 0.0, %v1828
        %1830 = vmatmul.f32.gmra.mxu0 %v1266
        %v1831 = vpop.f32.mrf.mxu0
        %v1832 = vadd.f32 0.0, %v1831
        %1833 = vmatmul.f32.gmra.mxu0 %v1267
        %v1834 = vpop.f32.mrf.mxu0
        %v1835 = vadd.f32 0.0, %v1834
        %1836 = vmatmul.f32.gmra.mxu0 %v1268
        %v1837 = vpop.f32.mrf.mxu0
        %v1838 = vadd.f32 0.0, %v1837
        %1839 = vmatmul.f32.gmra.mxu0 %v1269
        %v1840 = vpop.f32.mrf.mxu0
        %v1841 = vadd.f32 0.0, %v1840
        %1842 = vmatmul.f32.gmra.mxu0 %v1270
        %v1843 = vpop.f32.mrf.mxu0
        %v1844 = vadd.f32 0.0, %v1843
        %1845 = vmatmul.f32.gmra.mxu0 %v1271
        %v1846 = vpop.f32.mrf.mxu0
        %v1847 = vadd.f32 0.0, %v1846
        %1848 = vmatmul.f32.gmra.mxu0 %v1272
        %v1849 = vpop.f32.mrf.mxu0
        %v1850 = vadd.f32 0.0, %v1849
        %1851 = vmatmul.f32.gmra.mxu0 %v1273
        %v1852 = vpop.f32.mrf.mxu0
        %v1853 = vadd.f32 0.0, %v1852
        %1854 = vmatmul.f32.gmra.mxu0 %v1274
        %v1855 = vpop.f32.mrf.mxu0
        %v1856 = vadd.f32 0.0, %v1855
        %1857 = vmatmul.f32.gmra.mxu0 %v1275
        %v1858 = vpop.f32.mrf.mxu0
        %v1859 = vadd.f32 0.0, %v1858
        %1860 = vmatmul.f32.gmra.mxu0 %v1276
        %v1861 = vpop.f32.mrf.mxu0
        %v1862 = vadd.f32 0.0, %v1861
        %1863 = vmatmul.f32.gmra.mxu0 %v1277
        %v1864 = vpop.f32.mrf.mxu0
        %v1865 = vadd.f32 0.0, %v1864
        %1866 = vmatmul.f32.gmra.mxu0 %v1278
        %v1867 = vpop.f32.mrf.mxu0
        %v1868 = vadd.f32 0.0, %v1867
        %1869 = vmatmul.f32.gmra.mxu0 %v1279
        %v1870 = vpop.f32.mrf.mxu0
        %v1871 = vadd.f32 0.0, %v1870
        %1872 = vmatmul.f32.gmra.mxu0 %v1280
        %v1873 = vpop.f32.mrf.mxu0
        %v1874 = vadd.f32 0.0, %v1873
        %1875 = vmatmul.f32.gmra.mxu0 %v1281
        %v1876 = vpop.f32.mrf.mxu0
        %v1877 = vadd.f32 0.0, %v1876
        %1878 = vmatmul.f32.gmra.mxu0 %v1282
        %v1879 = vpop.f32.mrf.mxu0
        %v1880 = vadd.f32 0.0, %v1879
        %1881 = vmatmul.f32.gmra.mxu0 %v1283
        %v1882 = vpop.f32.mrf.mxu0
        %v1883 = vadd.f32 0.0, %v1882
        %1884 = vmatmul.f32.gmra.mxu0 %v1284
        %v1885 = vpop.f32.mrf.mxu0
        %v1886 = vadd.f32 0.0, %v1885
        %1887 = vmatmul.f32.gmra.mxu0 %v1285
        %v1888 = vpop.f32.mrf.mxu0
        %v1889 = vadd.f32 0.0, %v1888
        %1890 = vmatmul.f32.gmra.mxu0 %v1286
        %v1891 = vpop.f32.mrf.mxu0
        %v1892 = vadd.f32 0.0, %v1891
        %1893 = vmatmul.f32.gmra.mxu0 %v1287
        %v1894 = vpop.f32.mrf.mxu0
        %v1895 = vadd.f32 0.0, %v1894
        %1896 = vmatmul.f32.gmra.mxu0 %v1288
        %v1897 = vpop.f32.mrf.mxu0
        %v1898 = vadd.f32 0.0, %v1897
        %1899 = vmatmul.f32.gmra.mxu0 %v1289
        %v1900 = vpop.f32.mrf.mxu0
        %v1901 = vadd.f32 0.0, %v1900
        %1902 = vmatmul.f32.gmra.mxu0 %v1290
        %v1903 = vpop.f32.mrf.mxu0
        %v1904 = vadd.f32 0.0, %v1903
        %1905 = vmatmul.f32.gmra.mxu0 %v1291
        %v1906 = vpop.f32.mrf.mxu0
        %v1907 = vadd.f32 0.0, %v1906
        %1908 = vmatmul.f32.gmra.mxu0 %v1292
        %v1909 = vpop.f32.mrf.mxu0
        %v1910 = vadd.f32 0.0, %v1909
        %1911 = vmatmul.f32.gmra.mxu0 %v1293
        %v1912 = vpop.f32.mrf.mxu0
        %v1913 = vadd.f32 0.0, %v1912
        %1914 = vmatmul.f32.gmra.mxu0 %v1294
        %v1915 = vpop.f32.mrf.mxu0
        %v1916 = vadd.f32 0.0, %v1915
        %1917 = vmatmul.f32.gmra.mxu0 %v1295
        %v1918 = vpop.f32.mrf.mxu0
        %v1919 = vadd.f32 0.0, %v1918
        %1920 = vmatmul.f32.gmra.mxu0 %v1296
        %v1921 = vpop.f32.mrf.mxu0
        %v1922 = vadd.f32 0.0, %v1921
        %1923 = vmatmul.f32.gmra.mxu0 %v1297
        %v1924 = vpop.f32.mrf.mxu0
        %v1925 = vadd.f32 0.0, %v1924
        %1926 = vmatmul.f32.gmra.mxu0 %v1298
        %v1927 = vpop.f32.mrf.mxu0
        %v1928 = vadd.f32 0.0, %v1927
        %1929 = vmatmul.f32.gmra.mxu0 %v1299
        %v1930 = vpop.f32.mrf.mxu0
        %v1931 = vadd.f32 0.0, %v1930
        %1932 = vmatmul.f32.gmra.mxu0 %v1300
        %v1933 = vpop.f32.mrf.mxu0
        %v1934 = vadd.f32 0.0, %v1933
        %1935 = vmatmul.f32.gmra.mxu0 %v1301
        %v1936 = vpop.f32.mrf.mxu0
        %v1937 = vadd.f32 0.0, %v1936
        %1938 = vmatmul.f32.gmra.mxu0 %v1302
        %v1939 = vpop.f32.mrf.mxu0
        %v1940 = vadd.f32 0.0, %v1939
        %1941 = vmatmul.f32.gmra.mxu0 %v1303
        %v1942 = vpop.f32.mrf.mxu0
        %v1943 = vadd.f32 0.0, %v1942
        %1944 = vmatmul.f32.gmra.mxu0 %v1304
        %v1945 = vpop.f32.mrf.mxu0
        %v1946 = vadd.f32 0.0, %v1945
        %1947 = vmatmul.f32.gmra.mxu0 %v1305
        %v1948 = vpop.f32.mrf.mxu0
        %v1949 = vadd.f32 0.0, %v1948
        %1950 = vmatmul.f32.gmra.mxu0 %v1306
        %v1951 = vpop.f32.mrf.mxu0
        %v1952 = vadd.f32 0.0, %v1951
        %1953 = vmatmul.f32.gmra.mxu0 %v1307
        %v1954 = vpop.f32.mrf.mxu0
        %v1955 = vadd.f32 0.0, %v1954
        %1956 = vmatmul.f32.gmra.mxu0 %v1308
        %v1957 = vpop.f32.mrf.mxu0
        %v1958 = vadd.f32 0.0, %v1957
        %1959 = vmatmul.f32.gmra.mxu0 %v1309
        %v1960 = vpop.f32.mrf.mxu0
        %v1961 = vadd.f32 0.0, %v1960
        %1962 = vmatmul.f32.gmra.mxu0 %v1310
        %v1963 = vpop.f32.mrf.mxu0
        %v1964 = vadd.f32 0.0, %v1963
        %1965 = vmatmul.f32.gmra.mxu0 %v1311
        %v1966 = vpop.f32.mrf.mxu0
        %v1967 = vadd.f32 0.0, %v1966
        %1968 = vmatmul.f32.gmra.mxu0 %v1312
        %v1969 = vpop.f32.mrf.mxu0
        %v1970 = vadd.f32 0.0, %v1969
        %1971 = vmatmul.f32.gmra.mxu0 %v1313
        %v1972 = vpop.f32.mrf.mxu0
        %v1973 = vadd.f32 0.0, %v1972
        %1974 = vmatmul.f32.gmra.mxu0 %v1314
        %v1975 = vpop.f32.mrf.mxu0
        %v1976 = vadd.f32 0.0, %v1975
        %1977 = vmatmul.f32.gmra.mxu0 %v1315
        %v1978 = vpop.f32.mrf.mxu0
        %v1979 = vadd.f32 0.0, %v1978
        %1980 = vmatmul.f32.gmra.mxu0 %v1316
        %v1981 = vpop.f32.mrf.mxu0
        %v1982 = vadd.f32 0.0, %v1981
        %1983 = vmatmul.f32.gmra.mxu0 %v1317
        %v1984 = vpop.f32.mrf.mxu0
        %v1985 = vadd.f32 0.0, %v1984
        %1986 = vmatmul.f32.gmra.mxu0 %v1318
        %v1987 = vpop.f32.mrf.mxu0
        %v1988 = vadd.f32 0.0, %v1987
        %1989 = vmatmul.f32.gmra.mxu0 %v1319
        %v1990 = vpop.f32.mrf.mxu0
        %v1991 = vadd.f32 0.0, %v1990
        %1992 = vmatmul.f32.gmra.mxu0 %v1320
        %v1993 = vpop.f32.mrf.mxu0
        %v1994 = vadd.f32 0.0, %v1993
        %1995 = vmatmul.f32.gmra.mxu0 %v1321
        %v1996 = vpop.f32.mrf.mxu0
        %v1997 = vadd.f32 0.0, %v1996
        %1998 = vmatmul.f32.gmra.mxu0 %v1322
        %v1999 = vpop.f32.mrf.mxu0
        %v2000 = vadd.f32 0.0, %v1999
        %2001 = vmatmul.f32.gmra.mxu0 %v1323
        %v2002 = vpop.f32.mrf.mxu0
        %v2003 = vadd.f32 0.0, %v2002
        %2004 = vmatmul.f32.gmra.mxu0 %v1324
        %v2005 = vpop.f32.mrf.mxu0
        %v2006 = vadd.f32 0.0, %v2005
        %2007 = vmatmul.f32.gmra.mxu0 %v1325
        %v2008 = vpop.f32.mrf.mxu0
        %v2009 = vadd.f32 0.0, %v2008
        %2010 = vmatmul.f32.gmra.mxu0 %v1326
        %v2011 = vpop.f32.mrf.mxu0
        %v2012 = vadd.f32 0.0, %v2011
        %2013 = vmatmul.f32.gmra.mxu0 %v1327
        %v2014 = vpop.f32.mrf.mxu0
        %v2015 = vadd.f32 0.0, %v2014
        %2016 = vdwg.mxu0
        %2017 = vmatpush.msra.mxu0 %v1807
        %2018 = vmatpush.msra.mxu0 %v1805
        %2019 = vmatpush.msra.mxu0 %v1803
        %2020 = vmatpush.msra.mxu0 %v1801
        %2021 = vmatpush.msra.mxu0 %v1799
        %2022 = vmatpush.msra.mxu0 %v1797
        %2023 = vmatpush.msra.mxu0 %v1795
        %2024 = vmatpush.msra.mxu0 %v1793
        %2025 = vmatpush.msra.mxu0 %v1791
        %2026 = vmatpush.msra.mxu0 %v1789
        %2027 = vmatpush.msra.mxu0 %v1787
        %2028 = vmatpush.msra.mxu0 %v1785
        %2029 = vmatpush.msra.mxu0 %v1783
        %2030 = vmatpush.msra.mxu0 %v1781
        %2031 = vmatpush.msra.mxu0 %v1779
        %2032 = vmatpush.msra.mxu0 %v1777
        %2033 = vmatmul.f32.gmra.mxu0 %v1264
        %v2034 = vpop.f32.mrf.mxu0
        %v2035 = vadd.f32 0.0, %v2034
        %2036 = vmatmul.f32.gmra.mxu0 %v1265
        %v2037 = vpop.f32.mrf.mxu0
        %v2038 = vadd.f32 0.0, %v2037
        %2039 = vmatmul.f32.gmra.mxu0 %v1266
        %v2040 = vpop.f32.mrf.mxu0
        %v2041 = vadd.f32 0.0, %v2040
        %2042 = vmatmul.f32.gmra.mxu0 %v1267
        %v2043 = vpop.f32.mrf.mxu0
        %v2044 = vadd.f32 0.0, %v2043
        %2045 = vmatmul.f32.gmra.mxu0 %v1268
        %v2046 = vpop.f32.mrf.mxu0
        %v2047 = vadd.f32 0.0, %v2046
        %2048 = vmatmul.f32.gmra.mxu0 %v1269
        %v2049 = vpop.f32.mrf.mxu0
        %v2050 = vadd.f32 0.0, %v2049
        %2051 = vmatmul.f32.gmra.mxu0 %v1270
        %v2052 = vpop.f32.mrf.mxu0
        %v2053 = vadd.f32 0.0, %v2052
        %2054 = vmatmul.f32.gmra.mxu0 %v1271
        %v2055 = vpop.f32.mrf.mxu0
        %v2056 = vadd.f32 0.0, %v2055
        %2057 = vmatmul.f32.gmra.mxu0 %v1272
        %v2058 = vpop.f32.mrf.mxu0
        %v2059 = vadd.f32 0.0, %v2058
        %2060 = vmatmul.f32.gmra.mxu0 %v1273
        %v2061 = vpop.f32.mrf.mxu0
        %v2062 = vadd.f32 0.0, %v2061
        %2063 = vmatmul.f32.gmra.mxu0 %v1274
        %v2064 = vpop.f32.mrf.mxu0
        %v2065 = vadd.f32 0.0, %v2064
        %2066 = vmatmul.f32.gmra.mxu0 %v1275
        %v2067 = vpop.f32.mrf.mxu0
        %v2068 = vadd.f32 0.0, %v2067
        %2069 = vmatmul.f32.gmra.mxu0 %v1276
        %v2070 = vpop.f32.mrf.mxu0
        %v2071 = vadd.f32 0.0, %v2070
        %2072 = vmatmul.f32.gmra.mxu0 %v1277
        %v2073 = vpop.f32.mrf.mxu0
        %v2074 = vadd.f32 0.0, %v2073
        %2075 = vmatmul.f32.gmra.mxu0 %v1278
        %v2076 = vpop.f32.mrf.mxu0
        %v2077 = vadd.f32 0.0, %v2076
        %2078 = vmatmul.f32.gmra.mxu0 %v1279
        %v2079 = vpop.f32.mrf.mxu0
        %v2080 = vadd.f32 0.0, %v2079
        %2081 = vmatmul.f32.gmra.mxu0 %v1280
        %v2082 = vpop.f32.mrf.mxu0
        %v2083 = vadd.f32 0.0, %v2082
        %2084 = vmatmul.f32.gmra.mxu0 %v1281
        %v2085 = vpop.f32.mrf.mxu0
        %v2086 = vadd.f32 0.0, %v2085
        %2087 = vmatmul.f32.gmra.mxu0 %v1282
        %v2088 = vpop.f32.mrf.mxu0
        %v2089 = vadd.f32 0.0, %v2088
        %2090 = vmatmul.f32.gmra.mxu0 %v1283
        %v2091 = vpop.f32.mrf.mxu0
        %v2092 = vadd.f32 0.0, %v2091
        %2093 = vmatmul.f32.gmra.mxu0 %v1284
        %v2094 = vpop.f32.mrf.mxu0
        %v2095 = vadd.f32 0.0, %v2094
        %2096 = vmatmul.f32.gmra.mxu0 %v1285
        %v2097 = vpop.f32.mrf.mxu0
        %v2098 = vadd.f32 0.0, %v2097
        %2099 = vmatmul.f32.gmra.mxu0 %v1286
        %v2100 = vpop.f32.mrf.mxu0
        %v2101 = vadd.f32 0.0, %v2100
        %2102 = vmatmul.f32.gmra.mxu0 %v1287
        %v2103 = vpop.f32.mrf.mxu0
        %v2104 = vadd.f32 0.0, %v2103
        %2105 = vmatmul.f32.gmra.mxu0 %v1288
        %v2106 = vpop.f32.mrf.mxu0
        %v2107 = vadd.f32 0.0, %v2106
        %2108 = vmatmul.f32.gmra.mxu0 %v1289
        %v2109 = vpop.f32.mrf.mxu0
        %v2110 = vadd.f32 0.0, %v2109
        %2111 = vmatmul.f32.gmra.mxu0 %v1290
        %v2112 = vpop.f32.mrf.mxu0
        %v2113 = vadd.f32 0.0, %v2112
        %2114 = vmatmul.f32.gmra.mxu0 %v1291
        %v2115 = vpop.f32.mrf.mxu0
        %v2116 = vadd.f32 0.0, %v2115
        %2117 = vmatmul.f32.gmra.mxu0 %v1292
        %v2118 = vpop.f32.mrf.mxu0
        %v2119 = vadd.f32 0.0, %v2118
        %2120 = vmatmul.f32.gmra.mxu0 %v1293
        %v2121 = vpop.f32.mrf.mxu0
        %v2122 = vadd.f32 0.0, %v2121
        %2123 = vmatmul.f32.gmra.mxu0 %v1294
        %v2124 = vpop.f32.mrf.mxu0
        %v2125 = vadd.f32 0.0, %v2124
        %2126 = vmatmul.f32.gmra.mxu0 %v1295
        %v2127 = vpop.f32.mrf.mxu0
        %v2128 = vadd.f32 0.0, %v2127
        %2129 = vmatmul.f32.gmra.mxu0 %v1296
        %v2130 = vpop.f32.mrf.mxu0
        %v2131 = vadd.f32 0.0, %v2130
        %2132 = vmatmul.f32.gmra.mxu0 %v1297
        %v2133 = vpop.f32.mrf.mxu0
        %v2134 = vadd.f32 0.0, %v2133
        %2135 = vmatmul.f32.gmra.mxu0 %v1298
        %v2136 = vpop.f32.mrf.mxu0
        %v2137 = vadd.f32 0.0, %v2136
        %2138 = vmatmul.f32.gmra.mxu0 %v1299
        %v2139 = vpop.f32.mrf.mxu0
        %v2140 = vadd.f32 0.0, %v2139
        %2141 = vmatmul.f32.gmra.mxu0 %v1300
        %v2142 = vpop.f32.mrf.mxu0
        %v2143 = vadd.f32 0.0, %v2142
        %2144 = vmatmul.f32.gmra.mxu0 %v1301
        %v2145 = vpop.f32.mrf.mxu0
        %v2146 = vadd.f32 0.0, %v2145
        %2147 = vmatmul.f32.gmra.mxu0 %v1302
        %v2148 = vpop.f32.mrf.mxu0
        %v2149 = vadd.f32 0.0, %v2148
        %2150 = vmatmul.f32.gmra.mxu0 %v1303
        %v2151 = vpop.f32.mrf.mxu0
        %v2152 = vadd.f32 0.0, %v2151
        %2153 = vmatmul.f32.gmra.mxu0 %v1304
        %v2154 = vpop.f32.mrf.mxu0
        %v2155 = vadd.f32 0.0, %v2154
        %2156 = vmatmul.f32.gmra.mxu0 %v1305
        %v2157 = vpop.f32.mrf.mxu0
        %v2158 = vadd.f32 0.0, %v2157
        %2159 = vmatmul.f32.gmra.mxu0 %v1306
        %v2160 = vpop.f32.mrf.mxu0
        %v2161 = vadd.f32 0.0, %v2160
        %2162 = vmatmul.f32.gmra.mxu0 %v1307
        %v2163 = vpop.f32.mrf.mxu0
        %v2164 = vadd.f32 0.0, %v2163
        %2165 = vmatmul.f32.gmra.mxu0 %v1308
        %v2166 = vpop.f32.mrf.mxu0
        %v2167 = vadd.f32 0.0, %v2166
        %2168 = vmatmul.f32.gmra.mxu0 %v1309
        %v2169 = vpop.f32.mrf.mxu0
        %v2170 = vadd.f32 0.0, %v2169
        %2171 = vmatmul.f32.gmra.mxu0 %v1310
        %v2172 = vpop.f32.mrf.mxu0
        %v2173 = vadd.f32 0.0, %v2172
        %2174 = vmatmul.f32.gmra.mxu0 %v1311
        %v2175 = vpop.f32.mrf.mxu0
        %v2176 = vadd.f32 0.0, %v2175
        %2177 = vmatmul.f32.gmra.mxu0 %v1312
        %v2178 = vpop.f32.mrf.mxu0
        %v2179 = vadd.f32 0.0, %v2178
        %2180 = vmatmul.f32.gmra.mxu0 %v1313
        %v2181 = vpop.f32.mrf.mxu0
        %v2182 = vadd.f32 0.0, %v2181
        %2183 = vmatmul.f32.gmra.mxu0 %v1314
        %v2184 = vpop.f32.mrf.mxu0
        %v2185 = vadd.f32 0.0, %v2184
        %2186 = vmatmul.f32.gmra.mxu0 %v1315
        %v2187 = vpop.f32.mrf.mxu0
        %v2188 = vadd.f32 0.0, %v2187
        %2189 = vmatmul.f32.gmra.mxu0 %v1316
        %v2190 = vpop.f32.mrf.mxu0
        %v2191 = vadd.f32 0.0, %v2190
        %2192 = vmatmul.f32.gmra.mxu0 %v1317
        %v2193 = vpop.f32.mrf.mxu0
        %v2194 = vadd.f32 0.0, %v2193
        %2195 = vmatmul.f32.gmra.mxu0 %v1318
        %v2196 = vpop.f32.mrf.mxu0
        %v2197 = vadd.f32 0.0, %v2196
        %2198 = vmatmul.f32.gmra.mxu0 %v1319
        %v2199 = vpop.f32.mrf.mxu0
        %v2200 = vadd.f32 0.0, %v2199
        %2201 = vmatmul.f32.gmra.mxu0 %v1320
        %v2202 = vpop.f32.mrf.mxu0
        %v2203 = vadd.f32 0.0, %v2202
        %2204 = vmatmul.f32.gmra.mxu0 %v1321
        %v2205 = vpop.f32.mrf.mxu0
        %v2206 = vadd.f32 0.0, %v2205
        %2207 = vmatmul.f32.gmra.mxu0 %v1322
        %v2208 = vpop.f32.mrf.mxu0
        %v2209 = vadd.f32 0.0, %v2208
        %2210 = vmatmul.f32.gmra.mxu0 %v1323
        %v2211 = vpop.f32.mrf.mxu0
        %v2212 = vadd.f32 0.0, %v2211
        %2213 = vmatmul.f32.gmra.mxu0 %v1324
        %v2214 = vpop.f32.mrf.mxu0
        %v2215 = vadd.f32 0.0, %v2214
        %2216 = vmatmul.f32.gmra.mxu0 %v1325
        %v2217 = vpop.f32.mrf.mxu0
        %v2218 = vadd.f32 0.0, %v2217
        %2219 = vmatmul.f32.gmra.mxu0 %v1326
        %v2220 = vpop.f32.mrf.mxu0
        %v2221 = vadd.f32 0.0, %v2220
        %2222 = vmatmul.f32.gmra.mxu0 %v1327
        %v2223 = vpop.f32.mrf.mxu0
        %v2224 = vadd.f32 0.0, %v2223
        %2225 = vdwg.mxu0
        %v2226 = vld [vmem:[#allocation3 + $0x10] sm:$0xff]
        %v2227 = vld [vmem:[#allocation3 + $0x28] sm:$0xff]
        %v2228 = vld [vmem:[#allocation3 + $0x40] sm:$0xff]
        %v2229 = vld [vmem:[#allocation3 + $0x58] sm:$0xff]
        %v2230 = vld [vmem:[#allocation3 + $0x70] sm:$0xff]
        %v2231 = vld [vmem:[#allocation3 + $0x88] sm:$0xff]
        %v2232 = vld [vmem:[#allocation3 + $0xa0] sm:$0xff]
        %v2233 = vld [vmem:[#allocation3 + $0xb8] sm:$0xff]
        %v2234 = vld [vmem:[#allocation3 + $0xd0] sm:$0xff]
        %v2235 = vld [vmem:[#allocation3 + $0xe8] sm:$0xff]
        %v2236 = vld [vmem:[#allocation3 + $0x100] sm:$0xff]
        %v2237 = vld [vmem:[#allocation3 + $0x118] sm:$0xff]
        %v2238 = vld [vmem:[#allocation3 + $0x130] sm:$0xff]
        %v2239 = vld [vmem:[#allocation3 + $0x148] sm:$0xff]
        %v2240 = vld [vmem:[#allocation3 + $0x160] sm:$0xff]
        %v2241 = vld [vmem:[#allocation3 + $0x178] sm:$0xff]
        %2242 = vmatpush.msra.mxu0 %v2241
        %2243 = vmatpush.msra.mxu0 %v2240
        %2244 = vmatpush.msra.mxu0 %v2239
        %2245 = vmatpush.msra.mxu0 %v2238
        %2246 = vmatpush.msra.mxu0 %v2237
        %2247 = vmatpush.msra.mxu0 %v2236
        %2248 = vmatpush.msra.mxu0 %v2235
        %2249 = vmatpush.msra.mxu0 %v2234
        %2250 = vmatpush.msra.mxu0 %v2233
        %2251 = vmatpush.msra.mxu0 %v2232
        %2252 = vmatpush.msra.mxu0 %v2231
        %2253 = vmatpush.msra.mxu0 %v2230
        %2254 = vmatpush.msra.mxu0 %v2229
        %2255 = vmatpush.msra.mxu0 %v2228
        %2256 = vmatpush.msra.mxu0 %v2227
        %2257 = vmatpush.msra.mxu0 %v2226
        %2258 = vmatmul.f32.gmra.mxu0 %v1712
        %v2259 = vpop.f32.mrf.mxu0
        %v2260 = vadd.f32 0.0, %v2259
        %2261 = vmatmul.f32.gmra.mxu0 %v1713
        %v2262 = vpop.f32.mrf.mxu0
        %v2263 = vadd.f32 0.0, %v2262
        %2264 = vmatmul.f32.gmra.mxu0 %v1714
        %v2265 = vpop.f32.mrf.mxu0
        %v2266 = vadd.f32 0.0, %v2265
        %2267 = vmatmul.f32.gmra.mxu0 %v1715
        %v2268 = vpop.f32.mrf.mxu0
        %v2269 = vadd.f32 0.0, %v2268
        %2270 = vmatmul.f32.gmra.mxu0 %v1716
        %v2271 = vpop.f32.mrf.mxu0
        %v2272 = vadd.f32 0.0, %v2271
        %2273 = vmatmul.f32.gmra.mxu0 %v1717
        %v2274 = vpop.f32.mrf.mxu0
        %v2275 = vadd.f32 0.0, %v2274
        %2276 = vmatmul.f32.gmra.mxu0 %v1718
        %v2277 = vpop.f32.mrf.mxu0
        %v2278 = vadd.f32 0.0, %v2277
        %2279 = vmatmul.f32.gmra.mxu0 %v1719
        %v2280 = vpop.f32.mrf.mxu0
        %v2281 = vadd.f32 0.0, %v2280
        %2282 = vmatmul.f32.gmra.mxu0 %v1720
        %v2283 = vpop.f32.mrf.mxu0
        %v2284 = vadd.f32 0.0, %v2283
        %2285 = vmatmul.f32.gmra.mxu0 %v1721
        %v2286 = vpop.f32.mrf.mxu0
        %v2287 = vadd.f32 0.0, %v2286
        %2288 = vmatmul.f32.gmra.mxu0 %v1722
        %v2289 = vpop.f32.mrf.mxu0
        %v2290 = vadd.f32 0.0, %v2289
        %2291 = vmatmul.f32.gmra.mxu0 %v1723
        %v2292 = vpop.f32.mrf.mxu0
        %v2293 = vadd.f32 0.0, %v2292
        %2294 = vmatmul.f32.gmra.mxu0 %v1724
        %v2295 = vpop.f32.mrf.mxu0
        %v2296 = vadd.f32 0.0, %v2295
        %2297 = vmatmul.f32.gmra.mxu0 %v1725
        %v2298 = vpop.f32.mrf.mxu0
        %v2299 = vadd.f32 0.0, %v2298
        %2300 = vmatmul.f32.gmra.mxu0 %v1726
        %v2301 = vpop.f32.mrf.mxu0
        %v2302 = vadd.f32 0.0, %v2301
        %2303 = vmatmul.f32.gmra.mxu0 %v1727
        %v2304 = vpop.f32.mrf.mxu0
        %v2305 = vadd.f32 0.0, %v2304
        %2306 = vmatmul.f32.gmra.mxu0 %v1728
        %v2307 = vpop.f32.mrf.mxu0
        %v2308 = vadd.f32 0.0, %v2307
        %2309 = vmatmul.f32.gmra.mxu0 %v1729
        %v2310 = vpop.f32.mrf.mxu0
        %v2311 = vadd.f32 0.0, %v2310
        %2312 = vmatmul.f32.gmra.mxu0 %v1730
        %v2313 = vpop.f32.mrf.mxu0
        %v2314 = vadd.f32 0.0, %v2313
        %2315 = vmatmul.f32.gmra.mxu0 %v1731
        %v2316 = vpop.f32.mrf.mxu0
        %v2317 = vadd.f32 0.0, %v2316
        %2318 = vmatmul.f32.gmra.mxu0 %v1732
        %v2319 = vpop.f32.mrf.mxu0
        %v2320 = vadd.f32 0.0, %v2319
        %2321 = vmatmul.f32.gmra.mxu0 %v1733
        %v2322 = vpop.f32.mrf.mxu0
        %v2323 = vadd.f32 0.0, %v2322
        %2324 = vmatmul.f32.gmra.mxu0 %v1734
        %v2325 = vpop.f32.mrf.mxu0
        %v2326 = vadd.f32 0.0, %v2325
        %2327 = vmatmul.f32.gmra.mxu0 %v1735
        %v2328 = vpop.f32.mrf.mxu0
        %v2329 = vadd.f32 0.0, %v2328
        %2330 = vmatmul.f32.gmra.mxu0 %v1736
        %v2331 = vpop.f32.mrf.mxu0
        %v2332 = vadd.f32 0.0, %v2331
        %2333 = vmatmul.f32.gmra.mxu0 %v1737
        %v2334 = vpop.f32.mrf.mxu0
        %v2335 = vadd.f32 0.0, %v2334
        %2336 = vmatmul.f32.gmra.mxu0 %v1738
        %v2337 = vpop.f32.mrf.mxu0
        %v2338 = vadd.f32 0.0, %v2337
        %2339 = vmatmul.f32.gmra.mxu0 %v1739
        %v2340 = vpop.f32.mrf.mxu0
        %v2341 = vadd.f32 0.0, %v2340
        %2342 = vmatmul.f32.gmra.mxu0 %v1740
        %v2343 = vpop.f32.mrf.mxu0
        %v2344 = vadd.f32 0.0, %v2343
        %2345 = vmatmul.f32.gmra.mxu0 %v1741
        %v2346 = vpop.f32.mrf.mxu0
        %v2347 = vadd.f32 0.0, %v2346
        %2348 = vmatmul.f32.gmra.mxu0 %v1742
        %v2349 = vpop.f32.mrf.mxu0
        %v2350 = vadd.f32 0.0, %v2349
        %2351 = vmatmul.f32.gmra.mxu0 %v1743
        %v2352 = vpop.f32.mrf.mxu0
        %v2353 = vadd.f32 0.0, %v2352
        %2354 = vmatmul.f32.gmra.mxu0 %v1744
        %v2355 = vpop.f32.mrf.mxu0
        %v2356 = vadd.f32 0.0, %v2355
        %2357 = vmatmul.f32.gmra.mxu0 %v1745
        %v2358 = vpop.f32.mrf.mxu0
        %v2359 = vadd.f32 0.0, %v2358
        %2360 = vmatmul.f32.gmra.mxu0 %v1746
        %v2361 = vpop.f32.mrf.mxu0
        %v2362 = vadd.f32 0.0, %v2361
        %2363 = vmatmul.f32.gmra.mxu0 %v1747
        %v2364 = vpop.f32.mrf.mxu0
        %v2365 = vadd.f32 0.0, %v2364
        %2366 = vmatmul.f32.gmra.mxu0 %v1748
        %v2367 = vpop.f32.mrf.mxu0
        %v2368 = vadd.f32 0.0, %v2367
        %2369 = vmatmul.f32.gmra.mxu0 %v1749
        %v2370 = vpop.f32.mrf.mxu0
        %v2371 = vadd.f32 0.0, %v2370
        %2372 = vmatmul.f32.gmra.mxu0 %v1750
        %v2373 = vpop.f32.mrf.mxu0
        %v2374 = vadd.f32 0.0, %v2373
        %2375 = vmatmul.f32.gmra.mxu0 %v1751
        %v2376 = vpop.f32.mrf.mxu0
        %v2377 = vadd.f32 0.0, %v2376
        %2378 = vmatmul.f32.gmra.mxu0 %v1752
        %v2379 = vpop.f32.mrf.mxu0
        %v2380 = vadd.f32 0.0, %v2379
        %2381 = vmatmul.f32.gmra.mxu0 %v1753
        %v2382 = vpop.f32.mrf.mxu0
        %v2383 = vadd.f32 0.0, %v2382
        %2384 = vmatmul.f32.gmra.mxu0 %v1754
        %v2385 = vpop.f32.mrf.mxu0
        %v2386 = vadd.f32 0.0, %v2385
        %2387 = vmatmul.f32.gmra.mxu0 %v1755
        %v2388 = vpop.f32.mrf.mxu0
        %v2389 = vadd.f32 0.0, %v2388
        %2390 = vmatmul.f32.gmra.mxu0 %v1756
        %v2391 = vpop.f32.mrf.mxu0
        %v2392 = vadd.f32 0.0, %v2391
        %2393 = vmatmul.f32.gmra.mxu0 %v1757
        %v2394 = vpop.f32.mrf.mxu0
        %v2395 = vadd.f32 0.0, %v2394
        %2396 = vmatmul.f32.gmra.mxu0 %v1758
        %v2397 = vpop.f32.mrf.mxu0
        %v2398 = vadd.f32 0.0, %v2397
        %2399 = vmatmul.f32.gmra.mxu0 %v1759
        %v2400 = vpop.f32.mrf.mxu0
        %v2401 = vadd.f32 0.0, %v2400
        %2402 = vmatmul.f32.gmra.mxu0 %v1760
        %v2403 = vpop.f32.mrf.mxu0
        %v2404 = vadd.f32 0.0, %v2403
        %2405 = vmatmul.f32.gmra.mxu0 %v1761
        %v2406 = vpop.f32.mrf.mxu0
        %v2407 = vadd.f32 0.0, %v2406
        %2408 = vmatmul.f32.gmra.mxu0 %v1762
        %v2409 = vpop.f32.mrf.mxu0
        %v2410 = vadd.f32 0.0, %v2409
        %2411 = vmatmul.f32.gmra.mxu0 %v1763
        %v2412 = vpop.f32.mrf.mxu0
        %v2413 = vadd.f32 0.0, %v2412
        %2414 = vmatmul.f32.gmra.mxu0 %v1764
        %v2415 = vpop.f32.mrf.mxu0
        %v2416 = vadd.f32 0.0, %v2415
        %2417 = vmatmul.f32.gmra.mxu0 %v1765
        %v2418 = vpop.f32.mrf.mxu0
        %v2419 = vadd.f32 0.0, %v2418
        %2420 = vmatmul.f32.gmra.mxu0 %v1766
        %v2421 = vpop.f32.mrf.mxu0
        %v2422 = vadd.f32 0.0, %v2421
        %2423 = vmatmul.f32.gmra.mxu0 %v1767
        %v2424 = vpop.f32.mrf.mxu0
        %v2425 = vadd.f32 0.0, %v2424
        %2426 = vmatmul.f32.gmra.mxu0 %v1768
        %v2427 = vpop.f32.mrf.mxu0
        %v2428 = vadd.f32 0.0, %v2427
        %2429 = vmatmul.f32.gmra.mxu0 %v1769
        %v2430 = vpop.f32.mrf.mxu0
        %v2431 = vadd.f32 0.0, %v2430
        %2432 = vmatmul.f32.gmra.mxu0 %v1770
        %v2433 = vpop.f32.mrf.mxu0
        %v2434 = vadd.f32 0.0, %v2433
        %2435 = vmatmul.f32.gmra.mxu0 %v1771
        %v2436 = vpop.f32.mrf.mxu0
        %v2437 = vadd.f32 0.0, %v2436
        %2438 = vmatmul.f32.gmra.mxu0 %v1772
        %v2439 = vpop.f32.mrf.mxu0
        %v2440 = vadd.f32 0.0, %v2439
        %2441 = vmatmul.f32.gmra.mxu0 %v1773
        %v2442 = vpop.f32.mrf.mxu0
        %v2443 = vadd.f32 0.0, %v2442
        %2444 = vmatmul.f32.gmra.mxu0 %v1774
        %v2445 = vpop.f32.mrf.mxu0
        %v2446 = vadd.f32 0.0, %v2445
        %2447 = vmatmul.f32.gmra.mxu0 %v1775
        %v2448 = vpop.f32.mrf.mxu0
        %v2449 = vadd.f32 0.0, %v2448
        %2450 = vdwg.mxu0
        %v2451 = vld [vmem:[%s593] sm:$0xff]
        %v2452 = vld [vmem:[%s593 + $0x8] sm:$0xff]
        %v2453 = vld [vmem:[%s593 + $0x10] sm:$0xff]
        %v2454 = vld [vmem:[%s593 + $0x18] sm:$0xff]
        %v2455 = vld [vmem:[%s593 + $0x20] sm:$0xff]
        %v2456 = vld [vmem:[%s593 + $0x28] sm:$0xff]
        %v2457 = vld [vmem:[%s593 + $0x30] sm:$0xff]
        %v2458 = vld [vmem:[%s593 + $0x38] sm:$0xff]
        %v2459 = vld [vmem:[%s593 + $0x40] sm:$0xff]
        %v2460 = vld [vmem:[%s593 + $0x48] sm:$0xff]
        %v2461 = vld [vmem:[%s593 + $0x50] sm:$0xff]
        %v2462 = vld [vmem:[%s593 + $0x58] sm:$0xff]
        %v2463 = vld [vmem:[%s593 + $0x60] sm:$0xff]
        %v2464 = vld [vmem:[%s593 + $0x68] sm:$0xff]
        %v2465 = vld [vmem:[%s593 + $0x70] sm:$0xff]
        %v2466 = vld [vmem:[%s593 + $0x78] sm:$0xff]
        %v2467 = vld [vmem:[%s593 + $0x80] sm:$0xff]
        %v2468 = vld [vmem:[%s593 + $0x88] sm:$0xff]
        %v2469 = vld [vmem:[%s593 + $0x90] sm:$0xff]
        %v2470 = vld [vmem:[%s593 + $0x98] sm:$0xff]
        %v2471 = vld [vmem:[%s593 + $0xa0] sm:$0xff]
        %v2472 = vld [vmem:[%s593 + $0xa8] sm:$0xff]
        %v2473 = vld [vmem:[%s593 + $0xb0] sm:$0xff]
        %v2474 = vld [vmem:[%s593 + $0xb8] sm:$0xff]
        %v2475 = vld [vmem:[%s593 + $0xc0] sm:$0xff]
        %v2476 = vld [vmem:[%s593 + $0xc8] sm:$0xff]
        %v2477 = vld [vmem:[%s593 + $0xd0] sm:$0xff]
        %v2478 = vld [vmem:[%s593 + $0xd8] sm:$0xff]
        %v2479 = vld [vmem:[%s593 + $0xe0] sm:$0xff]
        %v2480 = vld [vmem:[%s593 + $0xe8] sm:$0xff]
        %v2481 = vld [vmem:[%s593 + $0xf0] sm:$0xff]
        %v2482 = vld [vmem:[%s593 + $0xf8] sm:$0xff]
        %v2483 = vld [vmem:[%s593 + $0x100] sm:$0xff]
        %v2484 = vld [vmem:[%s593 + $0x108] sm:$0xff]
        %v2485 = vld [vmem:[%s593 + $0x110] sm:$0xff]
        %v2486 = vld [vmem:[%s593 + $0x118] sm:$0xff]
        %v2487 = vld [vmem:[%s593 + $0x120] sm:$0xff]
        %v2488 = vld [vmem:[%s593 + $0x128] sm:$0xff]
        %v2489 = vld [vmem:[%s593 + $0x130] sm:$0xff]
        %v2490 = vld [vmem:[%s593 + $0x138] sm:$0xff]
        %v2491 = vld [vmem:[%s593 + $0x140] sm:$0xff]
        %v2492 = vld [vmem:[%s593 + $0x148] sm:$0xff]
        %v2493 = vld [vmem:[%s593 + $0x150] sm:$0xff]
        %v2494 = vld [vmem:[%s593 + $0x158] sm:$0xff]
        %v2495 = vld [vmem:[%s593 + $0x160] sm:$0xff]
        %v2496 = vld [vmem:[%s593 + $0x168] sm:$0xff]
        %v2497 = vld [vmem:[%s593 + $0x170] sm:$0xff]
        %v2498 = vld [vmem:[%s593 + $0x178] sm:$0xff]
        %v2499 = vld [vmem:[%s593 + $0x180] sm:$0xff]
        %v2500 = vld [vmem:[%s593 + $0x188] sm:$0xff]
        %v2501 = vld [vmem:[%s593 + $0x190] sm:$0xff]
        %v2502 = vld [vmem:[%s593 + $0x198] sm:$0xff]
        %v2503 = vld [vmem:[%s593 + $0x1a0] sm:$0xff]
        %v2504 = vld [vmem:[%s593 + $0x1a8] sm:$0xff]
        %v2505 = vld [vmem:[%s593 + $0x1b0] sm:$0xff]
        %v2506 = vld [vmem:[%s593 + $0x1b8] sm:$0xff]
        %v2507 = vld [vmem:[%s593 + $0x1c0] sm:$0xff]
        %v2508 = vld [vmem:[%s593 + $0x1c8] sm:$0xff]
        %v2509 = vld [vmem:[%s593 + $0x1d0] sm:$0xff]
        %v2510 = vld [vmem:[%s593 + $0x1d8] sm:$0xff]
        %v2511 = vld [vmem:[%s593 + $0x1e0] sm:$0xff]
        %v2512 = vld [vmem:[%s593 + $0x1e8] sm:$0xff]
        %v2513 = vld [vmem:[%s593 + $0x1f0] sm:$0xff]
        %v2514 = vld [vmem:[%s593 + $0x1f8] sm:$0xff]
        %v2515 = vld [vmem:[%s7] sm:$0xff]
        %v2516 = vld [vmem:[%s7 + $0x8] sm:$0xff]
        %v2517 = vld [vmem:[%s7 + $0x10] sm:$0xff]
        %v2518 = vld [vmem:[%s7 + $0x18] sm:$0xff]
        %v2519 = vld [vmem:[%s7 + $0x20] sm:$0xff]
        %v2520 = vld [vmem:[%s7 + $0x28] sm:$0xff]
        %v2521 = vld [vmem:[%s7 + $0x30] sm:$0xff]
        %v2522 = vld [vmem:[%s7 + $0x38] sm:$0xff]
        %v2523 = vld [vmem:[%s7 + $0x40] sm:$0xff]
        %v2524 = vld [vmem:[%s7 + $0x48] sm:$0xff]
        %v2525 = vld [vmem:[%s7 + $0x50] sm:$0xff]
        %v2526 = vld [vmem:[%s7 + $0x58] sm:$0xff]
        %v2527 = vld [vmem:[%s7 + $0x60] sm:$0xff]
        %v2528 = vld [vmem:[%s7 + $0x68] sm:$0xff]
        %v2529 = vld [vmem:[%s7 + $0x70] sm:$0xff]
        %v2530 = vld [vmem:[%s7 + $0x78] sm:$0xff]
        %v2531 = vld [vmem:[%s8] sm:$0x1]
        %v2533 = vperm.slane %v2531, 0
        %2535 = vmatpush.msra.mxu0 %v2530
        %2536 = vmatpush.msra.mxu0 %v2529
        %2537 = vmatpush.msra.mxu0 %v2528
        %2538 = vmatpush.msra.mxu0 %v2527
        %2539 = vmatpush.msra.mxu0 %v2526
        %2540 = vmatpush.msra.mxu0 %v2525
        %2541 = vmatpush.msra.mxu0 %v2524
        %2542 = vmatpush.msra.mxu0 %v2523
        %2543 = vmatpush.msra.mxu0 %v2522
        %2544 = vmatpush.msra.mxu0 %v2521
        %2545 = vmatpush.msra.mxu0 %v2520
        %2546 = vmatpush.msra.mxu0 %v2519
        %2547 = vmatpush.msra.mxu0 %v2518
        %2548 = vmatpush.msra.mxu0 %v2517
        %2549 = vmatpush.msra.mxu0 %v2516
        %2550 = vmatpush.msra.mxu0 %v2515
        %2551 = vmatmul.f32.gmra.mxu0 %v2451
        %v2552 = vpop.f32.mrf.mxu0
        %v2553 = vadd.f32 %v2533, %v2552
        %2554 = vmatmul.f32.gmra.mxu0 %v2452
        %v2555 = vpop.f32.mrf.mxu0
        %v2556 = vadd.f32 %v2533, %v2555
        %2557 = vmatmul.f32.gmra.mxu0 %v2453
        %v2558 = vpop.f32.mrf.mxu0
        %v2559 = vadd.f32 %v2533, %v2558
        %2560 = vmatmul.f32.gmra.mxu0 %v2454
        %v2561 = vpop.f32.mrf.mxu0
        %v2562 = vadd.f32 %v2533, %v2561
        %2563 = vmatmul.f32.gmra.mxu0 %v2455
        %v2564 = vpop.f32.mrf.mxu0
        %v2565 = vadd.f32 %v2533, %v2564
        %2566 = vmatmul.f32.gmra.mxu0 %v2456
        %v2567 = vpop.f32.mrf.mxu0
        %v2568 = vadd.f32 %v2533, %v2567
        %2569 = vmatmul.f32.gmra.mxu0 %v2457
        %v2570 = vpop.f32.mrf.mxu0
        %v2571 = vadd.f32 %v2533, %v2570
        %2572 = vmatmul.f32.gmra.mxu0 %v2458
        %v2573 = vpop.f32.mrf.mxu0
        %v2574 = vadd.f32 %v2533, %v2573
        %2575 = vmatmul.f32.gmra.mxu0 %v2459
        %v2576 = vpop.f32.mrf.mxu0
        %v2577 = vadd.f32 %v2533, %v2576
        %2578 = vmatmul.f32.gmra.mxu0 %v2460
        %v2579 = vpop.f32.mrf.mxu0
        %v2580 = vadd.f32 %v2533, %v2579
        %2581 = vmatmul.f32.gmra.mxu0 %v2461
        %v2582 = vpop.f32.mrf.mxu0
        %v2583 = vadd.f32 %v2533, %v2582
        %2584 = vmatmul.f32.gmra.mxu0 %v2462
        %v2585 = vpop.f32.mrf.mxu0
        %v2586 = vadd.f32 %v2533, %v2585
        %2587 = vmatmul.f32.gmra.mxu0 %v2463
        %v2588 = vpop.f32.mrf.mxu0
        %v2589 = vadd.f32 %v2533, %v2588
        %2590 = vmatmul.f32.gmra.mxu0 %v2464
        %v2591 = vpop.f32.mrf.mxu0
        %v2592 = vadd.f32 %v2533, %v2591
        %2593 = vmatmul.f32.gmra.mxu0 %v2465
        %v2594 = vpop.f32.mrf.mxu0
        %v2595 = vadd.f32 %v2533, %v2594
        %2596 = vmatmul.f32.gmra.mxu0 %v2466
        %v2597 = vpop.f32.mrf.mxu0
        %v2598 = vadd.f32 %v2533, %v2597
        %2599 = vmatmul.f32.gmra.mxu0 %v2467
        %v2600 = vpop.f32.mrf.mxu0
        %v2601 = vadd.f32 %v2533, %v2600
        %2602 = vmatmul.f32.gmra.mxu0 %v2468
        %v2603 = vpop.f32.mrf.mxu0
        %v2604 = vadd.f32 %v2533, %v2603
        %2605 = vmatmul.f32.gmra.mxu0 %v2469
        %v2606 = vpop.f32.mrf.mxu0
        %v2607 = vadd.f32 %v2533, %v2606
        %2608 = vmatmul.f32.gmra.mxu0 %v2470
        %v2609 = vpop.f32.mrf.mxu0
        %v2610 = vadd.f32 %v2533, %v2609
        %2611 = vmatmul.f32.gmra.mxu0 %v2471
        %v2612 = vpop.f32.mrf.mxu0
        %v2613 = vadd.f32 %v2533, %v2612
        %2614 = vmatmul.f32.gmra.mxu0 %v2472
        %v2615 = vpop.f32.mrf.mxu0
        %v2616 = vadd.f32 %v2533, %v2615
        %2617 = vmatmul.f32.gmra.mxu0 %v2473
        %v2618 = vpop.f32.mrf.mxu0
        %v2619 = vadd.f32 %v2533, %v2618
        %2620 = vmatmul.f32.gmra.mxu0 %v2474
        %v2621 = vpop.f32.mrf.mxu0
        %v2622 = vadd.f32 %v2533, %v2621
        %2623 = vmatmul.f32.gmra.mxu0 %v2475
        %v2624 = vpop.f32.mrf.mxu0
        %v2625 = vadd.f32 %v2533, %v2624
        %2626 = vmatmul.f32.gmra.mxu0 %v2476
        %v2627 = vpop.f32.mrf.mxu0
        %v2628 = vadd.f32 %v2533, %v2627
        %2629 = vmatmul.f32.gmra.mxu0 %v2477
        %v2630 = vpop.f32.mrf.mxu0
        %v2631 = vadd.f32 %v2533, %v2630
        %2632 = vmatmul.f32.gmra.mxu0 %v2478
        %v2633 = vpop.f32.mrf.mxu0
        %v2634 = vadd.f32 %v2533, %v2633
        %2635 = vmatmul.f32.gmra.mxu0 %v2479
        %v2636 = vpop.f32.mrf.mxu0
        %v2637 = vadd.f32 %v2533, %v2636
        %2638 = vmatmul.f32.gmra.mxu0 %v2480
        %v2639 = vpop.f32.mrf.mxu0
        %v2640 = vadd.f32 %v2533, %v2639
        %2641 = vmatmul.f32.gmra.mxu0 %v2481
        %v2642 = vpop.f32.mrf.mxu0
        %v2643 = vadd.f32 %v2533, %v2642
        %2644 = vmatmul.f32.gmra.mxu0 %v2482
        %v2645 = vpop.f32.mrf.mxu0
        %v2646 = vadd.f32 %v2533, %v2645
        %2647 = vmatmul.f32.gmra.mxu0 %v2483
        %v2648 = vpop.f32.mrf.mxu0
        %v2649 = vadd.f32 %v2533, %v2648
        %2650 = vmatmul.f32.gmra.mxu0 %v2484
        %v2651 = vpop.f32.mrf.mxu0
        %v2652 = vadd.f32 %v2533, %v2651
        %2653 = vmatmul.f32.gmra.mxu0 %v2485
        %v2654 = vpop.f32.mrf.mxu0
        %v2655 = vadd.f32 %v2533, %v2654
        %2656 = vmatmul.f32.gmra.mxu0 %v2486
        %v2657 = vpop.f32.mrf.mxu0
        %v2658 = vadd.f32 %v2533, %v2657
        %2659 = vmatmul.f32.gmra.mxu0 %v2487
        %v2660 = vpop.f32.mrf.mxu0
        %v2661 = vadd.f32 %v2533, %v2660
        %2662 = vmatmul.f32.gmra.mxu0 %v2488
        %v2663 = vpop.f32.mrf.mxu0
        %v2664 = vadd.f32 %v2533, %v2663
        %2665 = vmatmul.f32.gmra.mxu0 %v2489
        %v2666 = vpop.f32.mrf.mxu0
        %v2667 = vadd.f32 %v2533, %v2666
        %2668 = vmatmul.f32.gmra.mxu0 %v2490
        %v2669 = vpop.f32.mrf.mxu0
        %v2670 = vadd.f32 %v2533, %v2669
        %2671 = vmatmul.f32.gmra.mxu0 %v2491
        %v2672 = vpop.f32.mrf.mxu0
        %v2673 = vadd.f32 %v2533, %v2672
        %2674 = vmatmul.f32.gmra.mxu0 %v2492
        %v2675 = vpop.f32.mrf.mxu0
        %v2676 = vadd.f32 %v2533, %v2675
        %2677 = vmatmul.f32.gmra.mxu0 %v2493
        %v2678 = vpop.f32.mrf.mxu0
        %v2679 = vadd.f32 %v2533, %v2678
        %2680 = vmatmul.f32.gmra.mxu0 %v2494
        %v2681 = vpop.f32.mrf.mxu0
        %v2682 = vadd.f32 %v2533, %v2681
        %2683 = vmatmul.f32.gmra.mxu0 %v2495
        %v2684 = vpop.f32.mrf.mxu0
        %v2685 = vadd.f32 %v2533, %v2684
        %2686 = vmatmul.f32.gmra.mxu0 %v2496
        %v2687 = vpop.f32.mrf.mxu0
        %v2688 = vadd.f32 %v2533, %v2687
        %2689 = vmatmul.f32.gmra.mxu0 %v2497
        %v2690 = vpop.f32.mrf.mxu0
        %v2691 = vadd.f32 %v2533, %v2690
        %2692 = vmatmul.f32.gmra.mxu0 %v2498
        %v2693 = vpop.f32.mrf.mxu0
        %v2694 = vadd.f32 %v2533, %v2693
        %2695 = vmatmul.f32.gmra.mxu0 %v2499
        %v2696 = vpop.f32.mrf.mxu0
        %v2697 = vadd.f32 %v2533, %v2696
        %2698 = vmatmul.f32.gmra.mxu0 %v2500
        %v2699 = vpop.f32.mrf.mxu0
        %v2700 = vadd.f32 %v2533, %v2699
        %2701 = vmatmul.f32.gmra.mxu0 %v2501
        %v2702 = vpop.f32.mrf.mxu0
        %v2703 = vadd.f32 %v2533, %v2702
        %2704 = vmatmul.f32.gmra.mxu0 %v2502
        %v2705 = vpop.f32.mrf.mxu0
        %v2706 = vadd.f32 %v2533, %v2705
        %2707 = vmatmul.f32.gmra.mxu0 %v2503
        %v2708 = vpop.f32.mrf.mxu0
        %v2709 = vadd.f32 %v2533, %v2708
        %2710 = vmatmul.f32.gmra.mxu0 %v2504
        %v2711 = vpop.f32.mrf.mxu0
        %v2712 = vadd.f32 %v2533, %v2711
        %2713 = vmatmul.f32.gmra.mxu0 %v2505
        %v2714 = vpop.f32.mrf.mxu0
        %v2715 = vadd.f32 %v2533, %v2714
        %2716 = vmatmul.f32.gmra.mxu0 %v2506
        %v2717 = vpop.f32.mrf.mxu0
        %v2718 = vadd.f32 %v2533, %v2717
        %2719 = vmatmul.f32.gmra.mxu0 %v2507
        %v2720 = vpop.f32.mrf.mxu0
        %v2721 = vadd.f32 %v2533, %v2720
        %2722 = vmatmul.f32.gmra.mxu0 %v2508
        %v2723 = vpop.f32.mrf.mxu0
        %v2724 = vadd.f32 %v2533, %v2723
        %2725 = vmatmul.f32.gmra.mxu0 %v2509
        %v2726 = vpop.f32.mrf.mxu0
        %v2727 = vadd.f32 %v2533, %v2726
        %2728 = vmatmul.f32.gmra.mxu0 %v2510
        %v2729 = vpop.f32.mrf.mxu0
        %v2730 = vadd.f32 %v2533, %v2729
        %2731 = vmatmul.f32.gmra.mxu0 %v2511
        %v2732 = vpop.f32.mrf.mxu0
        %v2733 = vadd.f32 %v2533, %v2732
        %2734 = vmatmul.f32.gmra.mxu0 %v2512
        %v2735 = vpop.f32.mrf.mxu0
        %v2736 = vadd.f32 %v2533, %v2735
        %2737 = vmatmul.f32.gmra.mxu0 %v2513
        %v2738 = vpop.f32.mrf.mxu0
        %v2739 = vadd.f32 %v2533, %v2738
        %2740 = vmatmul.f32.gmra.mxu0 %v2514
        %v2741 = vpop.f32.mrf.mxu0
        %v2742 = vadd.f32 %v2533, %v2741
        %2743 = vdwg.mxu0
        %v2744 = vsub.f32 0.0, %v2553
        %v2745 = vsub.f32 0.0, %v2556
        %v2746 = vsub.f32 0.0, %v2559
        %v2747 = vsub.f32 0.0, %v2562
        %v2748 = vsub.f32 0.0, %v2565
        %v2749 = vsub.f32 0.0, %v2568
        %v2750 = vsub.f32 0.0, %v2571
        %v2751 = vsub.f32 0.0, %v2574
        %v2752 = vsub.f32 0.0, %v2577
        %v2753 = vsub.f32 0.0, %v2580
        %v2754 = vsub.f32 0.0, %v2583
        %v2755 = vsub.f32 0.0, %v2586
        %v2756 = vsub.f32 0.0, %v2589
        %v2757 = vsub.f32 0.0, %v2592
        %v2758 = vsub.f32 0.0, %v2595
        %v2759 = vsub.f32 0.0, %v2598
        %v2760 = vsub.f32 0.0, %v2601
        %v2761 = vsub.f32 0.0, %v2604
        %v2762 = vsub.f32 0.0, %v2607
        %v2763 = vsub.f32 0.0, %v2610
        %v2764 = vsub.f32 0.0, %v2613
        %v2765 = vsub.f32 0.0, %v2616
        %v2766 = vsub.f32 0.0, %v2619
        %v2767 = vsub.f32 0.0, %v2622
        %v2768 = vsub.f32 0.0, %v2625
        %v2769 = vsub.f32 0.0, %v2628
        %v2770 = vsub.f32 0.0, %v2631
        %v2771 = vsub.f32 0.0, %v2634
        %v2772 = vsub.f32 0.0, %v2637
        %v2773 = vsub.f32 0.0, %v2640
        %v2774 = vsub.f32 0.0, %v2643
        %v2775 = vsub.f32 0.0, %v2646
        %v2776 = vsub.f32 0.0, %v2649
        %v2777 = vsub.f32 0.0, %v2652
        %v2778 = vsub.f32 0.0, %v2655
        %v2779 = vsub.f32 0.0, %v2658
        %v2780 = vsub.f32 0.0, %v2661
        %v2781 = vsub.f32 0.0, %v2664
        %v2782 = vsub.f32 0.0, %v2667
        %v2783 = vsub.f32 0.0, %v2670
        %v2784 = vsub.f32 0.0, %v2673
        %v2785 = vsub.f32 0.0, %v2676
        %v2786 = vsub.f32 0.0, %v2679
        %v2787 = vsub.f32 0.0, %v2682
        %v2788 = vsub.f32 0.0, %v2685
        %v2789 = vsub.f32 0.0, %v2688
        %v2790 = vsub.f32 0.0, %v2691
        %v2791 = vsub.f32 0.0, %v2694
        %v2792 = vsub.f32 0.0, %v2697
        %v2793 = vsub.f32 0.0, %v2700
        %v2794 = vsub.f32 0.0, %v2703
        %v2795 = vsub.f32 0.0, %v2706
        %v2796 = vsub.f32 0.0, %v2709
        %v2797 = vsub.f32 0.0, %v2712
        %v2798 = vsub.f32 0.0, %v2715
        %v2799 = vsub.f32 0.0, %v2718
        %v2800 = vsub.f32 0.0, %v2721
        %v2801 = vsub.f32 0.0, %v2724
        %v2802 = vsub.f32 0.0, %v2727
        %v2803 = vsub.f32 0.0, %v2730
        %v2804 = vsub.f32 0.0, %v2733
        %v2805 = vsub.f32 0.0, %v2736
        %v2806 = vsub.f32 0.0, %v2739
        %v2807 = vsub.f32 0.0, %v2742
        %v2808 = vmul.f32 %v2744, 1.442695
        %v2809 = vpow.pop %v2808
        %v2810 = vmul.f32 %v2745, 1.442695
        %v2811 = vpow.pop %v2810
        %v2812 = vmul.f32 %v2746, 1.442695
        %v2813 = vpow.pop %v2812
        %v2814 = vmul.f32 %v2747, 1.442695
        %v2815 = vpow.pop %v2814
        %v2816 = vmul.f32 %v2748, 1.442695
        %v2817 = vpow.pop %v2816
        %v2818 = vmul.f32 %v2749, 1.442695
        %v2819 = vpow.pop %v2818
        %v2820 = vmul.f32 %v2750, 1.442695
        %v2821 = vpow.pop %v2820
        %v2822 = vmul.f32 %v2751, 1.442695
        %v2823 = vpow.pop %v2822
        %v2824 = vmul.f32 %v2752, 1.442695
        %v2825 = vpow.pop %v2824
        %v2826 = vmul.f32 %v2753, 1.442695
        %v2827 = vpow.pop %v2826
        %v2828 = vmul.f32 %v2754, 1.442695
        %v2829 = vpow.pop %v2828
        %v2830 = vmul.f32 %v2755, 1.442695
        %v2831 = vpow.pop %v2830
        %v2832 = vmul.f32 %v2756, 1.442695
        %v2833 = vpow.pop %v2832
        %v2834 = vmul.f32 %v2757, 1.442695
        %v2835 = vpow.pop %v2834
        %v2836 = vmul.f32 %v2758, 1.442695
        %v2837 = vpow.pop %v2836
        %v2838 = vmul.f32 %v2759, 1.442695
        %v2839 = vpow.pop %v2838
        %v2840 = vmul.f32 %v2760, 1.442695
        %v2841 = vpow.pop %v2840
        %v2842 = vmul.f32 %v2761, 1.442695
        %v2843 = vpow.pop %v2842
        %v2844 = vmul.f32 %v2762, 1.442695
        %v2845 = vpow.pop %v2844
        %v2846 = vmul.f32 %v2763, 1.442695
        %v2847 = vpow.pop %v2846
        %v2848 = vmul.f32 %v2764, 1.442695
        %v2849 = vpow.pop %v2848
        %v2850 = vmul.f32 %v2765, 1.442695
        %v2851 = vpow.pop %v2850
        %v2852 = vmul.f32 %v2766, 1.442695
        %v2853 = vpow.pop %v2852
        %v2854 = vmul.f32 %v2767, 1.442695
        %v2855 = vpow.pop %v2854
        %v2856 = vmul.f32 %v2768, 1.442695
        %v2857 = vpow.pop %v2856
        %v2858 = vmul.f32 %v2769, 1.442695
        %v2859 = vpow.pop %v2858
        %v2860 = vmul.f32 %v2770, 1.442695
        %v2861 = vpow.pop %v2860
        %v2862 = vmul.f32 %v2771, 1.442695
        %v2863 = vpow.pop %v2862
        %v2864 = vmul.f32 %v2772, 1.442695
        %v2865 = vpow.pop %v2864
        %v2866 = vmul.f32 %v2773, 1.442695
        %v2867 = vpow.pop %v2866
        %v2868 = vmul.f32 %v2774, 1.442695
        %v2869 = vpow.pop %v2868
        %v2870 = vmul.f32 %v2775, 1.442695
        %v2871 = vpow.pop %v2870
        %v2872 = vmul.f32 %v2776, 1.442695
        %v2873 = vpow.pop %v2872
        %v2874 = vmul.f32 %v2777, 1.442695
        %v2875 = vpow.pop %v2874
        %v2876 = vmul.f32 %v2778, 1.442695
        %v2877 = vpow.pop %v2876
        %v2878 = vmul.f32 %v2779, 1.442695
        %v2879 = vpow.pop %v2878
        %v2880 = vmul.f32 %v2780, 1.442695
        %v2881 = vpow.pop %v2880
        %v2882 = vmul.f32 %v2781, 1.442695
        %v2883 = vpow.pop %v2882
        %v2884 = vmul.f32 %v2782, 1.442695
        %v2885 = vpow.pop %v2884
        %v2886 = vmul.f32 %v2783, 1.442695
        %v2887 = vpow.pop %v2886
        %v2888 = vmul.f32 %v2784, 1.442695
        %v2889 = vpow.pop %v2888
        %v2890 = vmul.f32 %v2785, 1.442695
        %v2891 = vpow.pop %v2890
        %v2892 = vmul.f32 %v2786, 1.442695
        %v2893 = vpow.pop %v2892
        %v2894 = vmul.f32 %v2787, 1.442695
        %v2895 = vpow.pop %v2894
        %v2896 = vmul.f32 %v2788, 1.442695
        %v2897 = vpow.pop %v2896
        %v2898 = vmul.f32 %v2789, 1.442695
        %v2899 = vpow.pop %v2898
        %v2900 = vmul.f32 %v2790, 1.442695
        %v2901 = vpow.pop %v2900
        %v2902 = vmul.f32 %v2791, 1.442695
        %v2903 = vpow.pop %v2902
        %v2904 = vmul.f32 %v2792, 1.442695
        %v2905 = vpow.pop %v2904
        %v2906 = vmul.f32 %v2793, 1.442695
        %v2907 = vpow.pop %v2906
        %v2908 = vmul.f32 %v2794, 1.442695
        %v2909 = vpow.pop %v2908
        %v2910 = vmul.f32 %v2795, 1.442695
        %v2911 = vpow.pop %v2910
        %v2912 = vmul.f32 %v2796, 1.442695
        %v2913 = vpow.pop %v2912
        %v2914 = vmul.f32 %v2797, 1.442695
        %v2915 = vpow.pop %v2914
        %v2916 = vmul.f32 %v2798, 1.442695
        %v2917 = vpow.pop %v2916
        %v2918 = vmul.f32 %v2799, 1.442695
        %v2919 = vpow.pop %v2918
        %v2920 = vmul.f32 %v2800, 1.442695
        %v2921 = vpow.pop %v2920
        %v2922 = vmul.f32 %v2801, 1.442695
        %v2923 = vpow.pop %v2922
        %v2924 = vmul.f32 %v2802, 1.442695
        %v2925 = vpow.pop %v2924
        %v2926 = vmul.f32 %v2803, 1.442695
        %v2927 = vpow.pop %v2926
        %v2928 = vmul.f32 %v2804, 1.442695
        %v2929 = vpow.pop %v2928
        %v2930 = vmul.f32 %v2805, 1.442695
        %v2931 = vpow.pop %v2930
        %v2932 = vmul.f32 %v2806, 1.442695
        %v2933 = vpow.pop %v2932
        %v2934 = vmul.f32 %v2807, 1.442695
        %v2935 = vpow.pop %v2934
        %v2936 = vadd.f32 %v2809, 1.0
        %v2937 = vadd.f32 %v2811, 1.0
        %v2938 = vadd.f32 %v2813, 1.0
        %v2939 = vadd.f32 %v2815, 1.0
        %v2940 = vadd.f32 %v2817, 1.0
        %v2941 = vadd.f32 %v2819, 1.0
        %v2942 = vadd.f32 %v2821, 1.0
        %v2943 = vadd.f32 %v2823, 1.0
        %v2944 = vadd.f32 %v2825, 1.0
        %v2945 = vadd.f32 %v2827, 1.0
        %v2946 = vadd.f32 %v2829, 1.0
        %v2947 = vadd.f32 %v2831, 1.0
        %v2948 = vadd.f32 %v2833, 1.0
        %v2949 = vadd.f32 %v2835, 1.0
        %v2950 = vadd.f32 %v2837, 1.0
        %v2951 = vadd.f32 %v2839, 1.0
        %v2952 = vadd.f32 %v2841, 1.0
        %v2953 = vadd.f32 %v2843, 1.0
        %v2954 = vadd.f32 %v2845, 1.0
        %v2955 = vadd.f32 %v2847, 1.0
        %v2956 = vadd.f32 %v2849, 1.0
        %v2957 = vadd.f32 %v2851, 1.0
        %v2958 = vadd.f32 %v2853, 1.0
        %v2959 = vadd.f32 %v2855, 1.0
        %v2960 = vadd.f32 %v2857, 1.0
        %v2961 = vadd.f32 %v2859, 1.0
        %v2962 = vadd.f32 %v2861, 1.0
        %v2963 = vadd.f32 %v2863, 1.0
        %v2964 = vadd.f32 %v2865, 1.0
        %v2965 = vadd.f32 %v2867, 1.0
        %v2966 = vadd.f32 %v2869, 1.0
        %v2967 = vadd.f32 %v2871, 1.0
        %v2968 = vadd.f32 %v2873, 1.0
        %v2969 = vadd.f32 %v2875, 1.0
        %v2970 = vadd.f32 %v2877, 1.0
        %v2971 = vadd.f32 %v2879, 1.0
        %v2972 = vadd.f32 %v2881, 1.0
        %v2973 = vadd.f32 %v2883, 1.0
        %v2974 = vadd.f32 %v2885, 1.0
        %v2975 = vadd.f32 %v2887, 1.0
        %v2976 = vadd.f32 %v2889, 1.0
        %v2977 = vadd.f32 %v2891, 1.0
        %v2978 = vadd.f32 %v2893, 1.0
        %v2979 = vadd.f32 %v2895, 1.0
        %v2980 = vadd.f32 %v2897, 1.0
        %v2981 = vadd.f32 %v2899, 1.0
        %v2982 = vadd.f32 %v2901, 1.0
        %v2983 = vadd.f32 %v2903, 1.0
        %v2984 = vadd.f32 %v2905, 1.0
        %v2985 = vadd.f32 %v2907, 1.0
        %v2986 = vadd.f32 %v2909, 1.0
        %v2987 = vadd.f32 %v2911, 1.0
        %v2988 = vadd.f32 %v2913, 1.0
        %v2989 = vadd.f32 %v2915, 1.0
        %v2990 = vadd.f32 %v2917, 1.0
        %v2991 = vadd.f32 %v2919, 1.0
        %v2992 = vadd.f32 %v2921, 1.0
        %v2993 = vadd.f32 %v2923, 1.0
        %v2994 = vadd.f32 %v2925, 1.0
        %v2995 = vadd.f32 %v2927, 1.0
        %v2996 = vadd.f32 %v2929, 1.0
        %v2997 = vadd.f32 %v2931, 1.0
        %v2998 = vadd.f32 %v2933, 1.0
        %v2999 = vadd.f32 %v2935, 1.0
        %v3000 = vrcp.pop %v2936
        %v3001 = vmul.f32 %v2936, %v3000
        %v3002 = vsub.f32 1.0, %v3001
        %v3003 = vmul.f32 %v3000, %v3002
        %v3004 = vadd.f32 %v3000, %v3003
        %vm3005 = vweird.f32 %v2936
        %vm3006 = vweird.f32 %v3000
        %vm3007 = vmor %vm3005, %vm3006
        %v3008 = vsel %vm3007, %v3000, %v3004
        %v3009 = vand.u32 2147483647, %v2936
        %vm3010 = vcmp.eq.f32.partialorder %v3009, 8.507059e+37
        %v3011 = vand.u32 %v2936, 2147483648
        %v3012 = vor.u32 1.1754944e-38, %v3011
        %v3013 = vsel %vm3010, %v3012, %v3008
        %v3014 = vmul.f32 1.0, %v3013
        %v3015 = vrcp.pop %v2937
        %v3016 = vmul.f32 %v2937, %v3015
        %v3017 = vsub.f32 1.0, %v3016
        %v3018 = vmul.f32 %v3015, %v3017
        %v3019 = vadd.f32 %v3015, %v3018
        %vm3020 = vweird.f32 %v2937
        %vm3021 = vweird.f32 %v3015
        %vm3022 = vmor %vm3020, %vm3021
        %v3023 = vsel %vm3022, %v3015, %v3019
        %v3024 = vand.u32 2147483647, %v2937
        %vm3025 = vcmp.eq.f32.partialorder %v3024, 8.507059e+37
        %v3026 = vand.u32 %v2937, 2147483648
        %v3027 = vor.u32 1.1754944e-38, %v3026
        %v3028 = vsel %vm3025, %v3027, %v3023
        %v3029 = vmul.f32 1.0, %v3028
        %v3030 = vrcp.pop %v2938
        %v3031 = vmul.f32 %v2938, %v3030
        %v3032 = vsub.f32 1.0, %v3031
        %v3033 = vmul.f32 %v3030, %v3032
        %v3034 = vadd.f32 %v3030, %v3033
        %vm3035 = vweird.f32 %v2938
        %vm3036 = vweird.f32 %v3030
        %vm3037 = vmor %vm3035, %vm3036
        %v3038 = vsel %vm3037, %v3030, %v3034
        %v3039 = vand.u32 2147483647, %v2938
        %vm3040 = vcmp.eq.f32.partialorder %v3039, 8.507059e+37
        %v3041 = vand.u32 %v2938, 2147483648
        %v3042 = vor.u32 1.1754944e-38, %v3041
        %v3043 = vsel %vm3040, %v3042, %v3038
        %v3044 = vmul.f32 1.0, %v3043
        %v3045 = vrcp.pop %v2939
        %v3046 = vmul.f32 %v2939, %v3045
        %v3047 = vsub.f32 1.0, %v3046
        %v3048 = vmul.f32 %v3045, %v3047
        %v3049 = vadd.f32 %v3045, %v3048
        %vm3050 = vweird.f32 %v2939
        %vm3051 = vweird.f32 %v3045
        %vm3052 = vmor %vm3050, %vm3051
        %v3053 = vsel %vm3052, %v3045, %v3049
        %v3054 = vand.u32 2147483647, %v2939
        %vm3055 = vcmp.eq.f32.partialorder %v3054, 8.507059e+37
        %v3056 = vand.u32 %v2939, 2147483648
        %v3057 = vor.u32 1.1754944e-38, %v3056
        %v3058 = vsel %vm3055, %v3057, %v3053
        %v3059 = vmul.f32 1.0, %v3058
        %v3060 = vrcp.pop %v2940
        %v3061 = vmul.f32 %v2940, %v3060
        %v3062 = vsub.f32 1.0, %v3061
        %v3063 = vmul.f32 %v3060, %v3062
        %v3064 = vadd.f32 %v3060, %v3063
        %vm3065 = vweird.f32 %v2940
        %vm3066 = vweird.f32 %v3060
        %vm3067 = vmor %vm3065, %vm3066
        %v3068 = vsel %vm3067, %v3060, %v3064
        %v3069 = vand.u32 2147483647, %v2940
        %vm3070 = vcmp.eq.f32.partialorder %v3069, 8.507059e+37
        %v3071 = vand.u32 %v2940, 2147483648
        %v3072 = vor.u32 1.1754944e-38, %v3071
        %v3073 = vsel %vm3070, %v3072, %v3068
        %v3074 = vmul.f32 1.0, %v3073
        %v3075 = vrcp.pop %v2941
        %v3076 = vmul.f32 %v2941, %v3075
        %v3077 = vsub.f32 1.0, %v3076
        %v3078 = vmul.f32 %v3075, %v3077
        %v3079 = vadd.f32 %v3075, %v3078
        %vm3080 = vweird.f32 %v2941
        %vm3081 = vweird.f32 %v3075
        %vm3082 = vmor %vm3080, %vm3081
        %v3083 = vsel %vm3082, %v3075, %v3079
        %v3084 = vand.u32 2147483647, %v2941
        %vm3085 = vcmp.eq.f32.partialorder %v3084, 8.507059e+37
        %v3086 = vand.u32 %v2941, 2147483648
        %v3087 = vor.u32 1.1754944e-38, %v3086
        %v3088 = vsel %vm3085, %v3087, %v3083
        %v3089 = vmul.f32 1.0, %v3088
        %v3090 = vrcp.pop %v2942
        %v3091 = vmul.f32 %v2942, %v3090
        %v3092 = vsub.f32 1.0, %v3091
        %v3093 = vmul.f32 %v3090, %v3092
        %v3094 = vadd.f32 %v3090, %v3093
        %vm3095 = vweird.f32 %v2942
        %vm3096 = vweird.f32 %v3090
        %vm3097 = vmor %vm3095, %vm3096
        %v3098 = vsel %vm3097, %v3090, %v3094
        %v3099 = vand.u32 2147483647, %v2942
        %vm3100 = vcmp.eq.f32.partialorder %v3099, 8.507059e+37
        %v3101 = vand.u32 %v2942, 2147483648
        %v3102 = vor.u32 1.1754944e-38, %v3101
        %v3103 = vsel %vm3100, %v3102, %v3098
        %v3104 = vmul.f32 1.0, %v3103
        %v3105 = vrcp.pop %v2943
        %v3106 = vmul.f32 %v2943, %v3105
        %v3107 = vsub.f32 1.0, %v3106
        %v3108 = vmul.f32 %v3105, %v3107
        %v3109 = vadd.f32 %v3105, %v3108
        %vm3110 = vweird.f32 %v2943
        %vm3111 = vweird.f32 %v3105
        %vm3112 = vmor %vm3110, %vm3111
        %v3113 = vsel %vm3112, %v3105, %v3109
        %v3114 = vand.u32 2147483647, %v2943
        %vm3115 = vcmp.eq.f32.partialorder %v3114, 8.507059e+37
        %v3116 = vand.u32 %v2943, 2147483648
        %v3117 = vor.u32 1.1754944e-38, %v3116
        %v3118 = vsel %vm3115, %v3117, %v3113
        %v3119 = vmul.f32 1.0, %v3118
        %v3120 = vrcp.pop %v2944
        %v3121 = vmul.f32 %v2944, %v3120
        %v3122 = vsub.f32 1.0, %v3121
        %v3123 = vmul.f32 %v3120, %v3122
        %v3124 = vadd.f32 %v3120, %v3123
        %vm3125 = vweird.f32 %v2944
        %vm3126 = vweird.f32 %v3120
        %vm3127 = vmor %vm3125, %vm3126
        %v3128 = vsel %vm3127, %v3120, %v3124
        %v3129 = vand.u32 2147483647, %v2944
        %vm3130 = vcmp.eq.f32.partialorder %v3129, 8.507059e+37
        %v3131 = vand.u32 %v2944, 2147483648
        %v3132 = vor.u32 1.1754944e-38, %v3131
        %v3133 = vsel %vm3130, %v3132, %v3128
        %v3134 = vmul.f32 1.0, %v3133
        %v3135 = vrcp.pop %v2945
        %v3136 = vmul.f32 %v2945, %v3135
        %v3137 = vsub.f32 1.0, %v3136
        %v3138 = vmul.f32 %v3135, %v3137
        %v3139 = vadd.f32 %v3135, %v3138
        %vm3140 = vweird.f32 %v2945
        %vm3141 = vweird.f32 %v3135
        %vm3142 = vmor %vm3140, %vm3141
        %v3143 = vsel %vm3142, %v3135, %v3139
        %v3144 = vand.u32 2147483647, %v2945
        %vm3145 = vcmp.eq.f32.partialorder %v3144, 8.507059e+37
        %v3146 = vand.u32 %v2945, 2147483648
        %v3147 = vor.u32 1.1754944e-38, %v3146
        %v3148 = vsel %vm3145, %v3147, %v3143
        %v3149 = vmul.f32 1.0, %v3148
        %v3150 = vrcp.pop %v2946
        %v3151 = vmul.f32 %v2946, %v3150
        %v3152 = vsub.f32 1.0, %v3151
        %v3153 = vmul.f32 %v3150, %v3152
        %v3154 = vadd.f32 %v3150, %v3153
        %vm3155 = vweird.f32 %v2946
        %vm3156 = vweird.f32 %v3150
        %vm3157 = vmor %vm3155, %vm3156
        %v3158 = vsel %vm3157, %v3150, %v3154
        %v3159 = vand.u32 2147483647, %v2946
        %vm3160 = vcmp.eq.f32.partialorder %v3159, 8.507059e+37
        %v3161 = vand.u32 %v2946, 2147483648
        %v3162 = vor.u32 1.1754944e-38, %v3161
        %v3163 = vsel %vm3160, %v3162, %v3158
        %v3164 = vmul.f32 1.0, %v3163
        %v3165 = vrcp.pop %v2947
        %v3166 = vmul.f32 %v2947, %v3165
        %v3167 = vsub.f32 1.0, %v3166
        %v3168 = vmul.f32 %v3165, %v3167
        %v3169 = vadd.f32 %v3165, %v3168
        %vm3170 = vweird.f32 %v2947
        %vm3171 = vweird.f32 %v3165
        %vm3172 = vmor %vm3170, %vm3171
        %v3173 = vsel %vm3172, %v3165, %v3169
        %v3174 = vand.u32 2147483647, %v2947
        %vm3175 = vcmp.eq.f32.partialorder %v3174, 8.507059e+37
        %v3176 = vand.u32 %v2947, 2147483648
        %v3177 = vor.u32 1.1754944e-38, %v3176
        %v3178 = vsel %vm3175, %v3177, %v3173
        %v3179 = vmul.f32 1.0, %v3178
        %v3180 = vrcp.pop %v2948
        %v3181 = vmul.f32 %v2948, %v3180
        %v3182 = vsub.f32 1.0, %v3181
        %v3183 = vmul.f32 %v3180, %v3182
        %v3184 = vadd.f32 %v3180, %v3183
        %vm3185 = vweird.f32 %v2948
        %vm3186 = vweird.f32 %v3180
        %vm3187 = vmor %vm3185, %vm3186
        %v3188 = vsel %vm3187, %v3180, %v3184
        %v3189 = vand.u32 2147483647, %v2948
        %vm3190 = vcmp.eq.f32.partialorder %v3189, 8.507059e+37
        %v3191 = vand.u32 %v2948, 2147483648
        %v3192 = vor.u32 1.1754944e-38, %v3191
        %v3193 = vsel %vm3190, %v3192, %v3188
        %v3194 = vmul.f32 1.0, %v3193
        %v3195 = vrcp.pop %v2949
        %v3196 = vmul.f32 %v2949, %v3195
        %v3197 = vsub.f32 1.0, %v3196
        %v3198 = vmul.f32 %v3195, %v3197
        %v3199 = vadd.f32 %v3195, %v3198
        %vm3200 = vweird.f32 %v2949
        %vm3201 = vweird.f32 %v3195
        %vm3202 = vmor %vm3200, %vm3201
        %v3203 = vsel %vm3202, %v3195, %v3199
        %v3204 = vand.u32 2147483647, %v2949
        %vm3205 = vcmp.eq.f32.partialorder %v3204, 8.507059e+37
        %v3206 = vand.u32 %v2949, 2147483648
        %v3207 = vor.u32 1.1754944e-38, %v3206
        %v3208 = vsel %vm3205, %v3207, %v3203
        %v3209 = vmul.f32 1.0, %v3208
        %v3210 = vrcp.pop %v2950
        %v3211 = vmul.f32 %v2950, %v3210
        %v3212 = vsub.f32 1.0, %v3211
        %v3213 = vmul.f32 %v3210, %v3212
        %v3214 = vadd.f32 %v3210, %v3213
        %vm3215 = vweird.f32 %v2950
        %vm3216 = vweird.f32 %v3210
        %vm3217 = vmor %vm3215, %vm3216
        %v3218 = vsel %vm3217, %v3210, %v3214
        %v3219 = vand.u32 2147483647, %v2950
        %vm3220 = vcmp.eq.f32.partialorder %v3219, 8.507059e+37
        %v3221 = vand.u32 %v2950, 2147483648
        %v3222 = vor.u32 1.1754944e-38, %v3221
        %v3223 = vsel %vm3220, %v3222, %v3218
        %v3224 = vmul.f32 1.0, %v3223
        %v3225 = vrcp.pop %v2951
        %v3226 = vmul.f32 %v2951, %v3225
        %v3227 = vsub.f32 1.0, %v3226
        %v3228 = vmul.f32 %v3225, %v3227
        %v3229 = vadd.f32 %v3225, %v3228
        %vm3230 = vweird.f32 %v2951
        %vm3231 = vweird.f32 %v3225
        %vm3232 = vmor %vm3230, %vm3231
        %v3233 = vsel %vm3232, %v3225, %v3229
        %v3234 = vand.u32 2147483647, %v2951
        %vm3235 = vcmp.eq.f32.partialorder %v3234, 8.507059e+37
        %v3236 = vand.u32 %v2951, 2147483648
        %v3237 = vor.u32 1.1754944e-38, %v3236
        %v3238 = vsel %vm3235, %v3237, %v3233
        %v3239 = vmul.f32 1.0, %v3238
        %v3240 = vrcp.pop %v2952
        %v3241 = vmul.f32 %v2952, %v3240
        %v3242 = vsub.f32 1.0, %v3241
        %v3243 = vmul.f32 %v3240, %v3242
        %v3244 = vadd.f32 %v3240, %v3243
        %vm3245 = vweird.f32 %v2952
        %vm3246 = vweird.f32 %v3240
        %vm3247 = vmor %vm3245, %vm3246
        %v3248 = vsel %vm3247, %v3240, %v3244
        %v3249 = vand.u32 2147483647, %v2952
        %vm3250 = vcmp.eq.f32.partialorder %v3249, 8.507059e+37
        %v3251 = vand.u32 %v2952, 2147483648
        %v3252 = vor.u32 1.1754944e-38, %v3251
        %v3253 = vsel %vm3250, %v3252, %v3248
        %v3254 = vmul.f32 1.0, %v3253
        %v3255 = vrcp.pop %v2953
        %v3256 = vmul.f32 %v2953, %v3255
        %v3257 = vsub.f32 1.0, %v3256
        %v3258 = vmul.f32 %v3255, %v3257
        %v3259 = vadd.f32 %v3255, %v3258
        %vm3260 = vweird.f32 %v2953
        %vm3261 = vweird.f32 %v3255
        %vm3262 = vmor %vm3260, %vm3261
        %v3263 = vsel %vm3262, %v3255, %v3259
        %v3264 = vand.u32 2147483647, %v2953
        %vm3265 = vcmp.eq.f32.partialorder %v3264, 8.507059e+37
        %v3266 = vand.u32 %v2953, 2147483648
        %v3267 = vor.u32 1.1754944e-38, %v3266
        %v3268 = vsel %vm3265, %v3267, %v3263
        %v3269 = vmul.f32 1.0, %v3268
        %v3270 = vrcp.pop %v2954
        %v3271 = vmul.f32 %v2954, %v3270
        %v3272 = vsub.f32 1.0, %v3271
        %v3273 = vmul.f32 %v3270, %v3272
        %v3274 = vadd.f32 %v3270, %v3273
        %vm3275 = vweird.f32 %v2954
        %vm3276 = vweird.f32 %v3270
        %vm3277 = vmor %vm3275, %vm3276
        %v3278 = vsel %vm3277, %v3270, %v3274
        %v3279 = vand.u32 2147483647, %v2954
        %vm3280 = vcmp.eq.f32.partialorder %v3279, 8.507059e+37
        %v3281 = vand.u32 %v2954, 2147483648
        %v3282 = vor.u32 1.1754944e-38, %v3281
        %v3283 = vsel %vm3280, %v3282, %v3278
        %v3284 = vmul.f32 1.0, %v3283
        %v3285 = vrcp.pop %v2955
        %v3286 = vmul.f32 %v2955, %v3285
        %v3287 = vsub.f32 1.0, %v3286
        %v3288 = vmul.f32 %v3285, %v3287
        %v3289 = vadd.f32 %v3285, %v3288
        %vm3290 = vweird.f32 %v2955
        %vm3291 = vweird.f32 %v3285
        %vm3292 = vmor %vm3290, %vm3291
        %v3293 = vsel %vm3292, %v3285, %v3289
        %v3294 = vand.u32 2147483647, %v2955
        %vm3295 = vcmp.eq.f32.partialorder %v3294, 8.507059e+37
        %v3296 = vand.u32 %v2955, 2147483648
        %v3297 = vor.u32 1.1754944e-38, %v3296
        %v3298 = vsel %vm3295, %v3297, %v3293
        %v3299 = vmul.f32 1.0, %v3298
        %v3300 = vrcp.pop %v2956
        %v3301 = vmul.f32 %v2956, %v3300
        %v3302 = vsub.f32 1.0, %v3301
        %v3303 = vmul.f32 %v3300, %v3302
        %v3304 = vadd.f32 %v3300, %v3303
        %vm3305 = vweird.f32 %v2956
        %vm3306 = vweird.f32 %v3300
        %vm3307 = vmor %vm3305, %vm3306
        %v3308 = vsel %vm3307, %v3300, %v3304
        %v3309 = vand.u32 2147483647, %v2956
        %vm3310 = vcmp.eq.f32.partialorder %v3309, 8.507059e+37
        %v3311 = vand.u32 %v2956, 2147483648
        %v3312 = vor.u32 1.1754944e-38, %v3311
        %v3313 = vsel %vm3310, %v3312, %v3308
        %v3314 = vmul.f32 1.0, %v3313
        %v3315 = vrcp.pop %v2957
        %v3316 = vmul.f32 %v2957, %v3315
        %v3317 = vsub.f32 1.0, %v3316
        %v3318 = vmul.f32 %v3315, %v3317
        %v3319 = vadd.f32 %v3315, %v3318
        %vm3320 = vweird.f32 %v2957
        %vm3321 = vweird.f32 %v3315
        %vm3322 = vmor %vm3320, %vm3321
        %v3323 = vsel %vm3322, %v3315, %v3319
        %v3324 = vand.u32 2147483647, %v2957
        %vm3325 = vcmp.eq.f32.partialorder %v3324, 8.507059e+37
        %v3326 = vand.u32 %v2957, 2147483648
        %v3327 = vor.u32 1.1754944e-38, %v3326
        %v3328 = vsel %vm3325, %v3327, %v3323
        %v3329 = vmul.f32 1.0, %v3328
        %v3330 = vrcp.pop %v2958
        %v3331 = vmul.f32 %v2958, %v3330
        %v3332 = vsub.f32 1.0, %v3331
        %v3333 = vmul.f32 %v3330, %v3332
        %v3334 = vadd.f32 %v3330, %v3333
        %vm3335 = vweird.f32 %v2958
        %vm3336 = vweird.f32 %v3330
        %vm3337 = vmor %vm3335, %vm3336
        %v3338 = vsel %vm3337, %v3330, %v3334
        %v3339 = vand.u32 2147483647, %v2958
        %vm3340 = vcmp.eq.f32.partialorder %v3339, 8.507059e+37
        %v3341 = vand.u32 %v2958, 2147483648
        %v3342 = vor.u32 1.1754944e-38, %v3341
        %v3343 = vsel %vm3340, %v3342, %v3338
        %v3344 = vmul.f32 1.0, %v3343
        %v3345 = vrcp.pop %v2959
        %v3346 = vmul.f32 %v2959, %v3345
        %v3347 = vsub.f32 1.0, %v3346
        %v3348 = vmul.f32 %v3345, %v3347
        %v3349 = vadd.f32 %v3345, %v3348
        %vm3350 = vweird.f32 %v2959
        %vm3351 = vweird.f32 %v3345
        %vm3352 = vmor %vm3350, %vm3351
        %v3353 = vsel %vm3352, %v3345, %v3349
        %v3354 = vand.u32 2147483647, %v2959
        %vm3355 = vcmp.eq.f32.partialorder %v3354, 8.507059e+37
        %v3356 = vand.u32 %v2959, 2147483648
        %v3357 = vor.u32 1.1754944e-38, %v3356
        %v3358 = vsel %vm3355, %v3357, %v3353
        %v3359 = vmul.f32 1.0, %v3358
        %v3360 = vrcp.pop %v2960
        %v3361 = vmul.f32 %v2960, %v3360
        %v3362 = vsub.f32 1.0, %v3361
        %v3363 = vmul.f32 %v3360, %v3362
        %v3364 = vadd.f32 %v3360, %v3363
        %vm3365 = vweird.f32 %v2960
        %vm3366 = vweird.f32 %v3360
        %vm3367 = vmor %vm3365, %vm3366
        %v3368 = vsel %vm3367, %v3360, %v3364
        %v3369 = vand.u32 2147483647, %v2960
        %vm3370 = vcmp.eq.f32.partialorder %v3369, 8.507059e+37
        %v3371 = vand.u32 %v2960, 2147483648
        %v3372 = vor.u32 1.1754944e-38, %v3371
        %v3373 = vsel %vm3370, %v3372, %v3368
        %v3374 = vmul.f32 1.0, %v3373
        %v3375 = vrcp.pop %v2961
        %v3376 = vmul.f32 %v2961, %v3375
        %v3377 = vsub.f32 1.0, %v3376
        %v3378 = vmul.f32 %v3375, %v3377
        %v3379 = vadd.f32 %v3375, %v3378
        %vm3380 = vweird.f32 %v2961
        %vm3381 = vweird.f32 %v3375
        %vm3382 = vmor %vm3380, %vm3381
        %v3383 = vsel %vm3382, %v3375, %v3379
        %v3384 = vand.u32 2147483647, %v2961
        %vm3385 = vcmp.eq.f32.partialorder %v3384, 8.507059e+37
        %v3386 = vand.u32 %v2961, 2147483648
        %v3387 = vor.u32 1.1754944e-38, %v3386
        %v3388 = vsel %vm3385, %v3387, %v3383
        %v3389 = vmul.f32 1.0, %v3388
        %v3390 = vrcp.pop %v2962
        %v3391 = vmul.f32 %v2962, %v3390
        %v3392 = vsub.f32 1.0, %v3391
        %v3393 = vmul.f32 %v3390, %v3392
        %v3394 = vadd.f32 %v3390, %v3393
        %vm3395 = vweird.f32 %v2962
        %vm3396 = vweird.f32 %v3390
        %vm3397 = vmor %vm3395, %vm3396
        %v3398 = vsel %vm3397, %v3390, %v3394
        %v3399 = vand.u32 2147483647, %v2962
        %vm3400 = vcmp.eq.f32.partialorder %v3399, 8.507059e+37
        %v3401 = vand.u32 %v2962, 2147483648
        %v3402 = vor.u32 1.1754944e-38, %v3401
        %v3403 = vsel %vm3400, %v3402, %v3398
        %v3404 = vmul.f32 1.0, %v3403
        %v3405 = vrcp.pop %v2963
        %v3406 = vmul.f32 %v2963, %v3405
        %v3407 = vsub.f32 1.0, %v3406
        %v3408 = vmul.f32 %v3405, %v3407
        %v3409 = vadd.f32 %v3405, %v3408
        %vm3410 = vweird.f32 %v2963
        %vm3411 = vweird.f32 %v3405
        %vm3412 = vmor %vm3410, %vm3411
        %v3413 = vsel %vm3412, %v3405, %v3409
        %v3414 = vand.u32 2147483647, %v2963
        %vm3415 = vcmp.eq.f32.partialorder %v3414, 8.507059e+37
        %v3416 = vand.u32 %v2963, 2147483648
        %v3417 = vor.u32 1.1754944e-38, %v3416
        %v3418 = vsel %vm3415, %v3417, %v3413
        %v3419 = vmul.f32 1.0, %v3418
        %v3420 = vrcp.pop %v2964
        %v3421 = vmul.f32 %v2964, %v3420
        %v3422 = vsub.f32 1.0, %v3421
        %v3423 = vmul.f32 %v3420, %v3422
        %v3424 = vadd.f32 %v3420, %v3423
        %vm3425 = vweird.f32 %v2964
        %vm3426 = vweird.f32 %v3420
        %vm3427 = vmor %vm3425, %vm3426
        %v3428 = vsel %vm3427, %v3420, %v3424
        %v3429 = vand.u32 2147483647, %v2964
        %vm3430 = vcmp.eq.f32.partialorder %v3429, 8.507059e+37
        %v3431 = vand.u32 %v2964, 2147483648
        %v3432 = vor.u32 1.1754944e-38, %v3431
        %v3433 = vsel %vm3430, %v3432, %v3428
        %v3434 = vmul.f32 1.0, %v3433
        %v3435 = vrcp.pop %v2965
        %v3436 = vmul.f32 %v2965, %v3435
        %v3437 = vsub.f32 1.0, %v3436
        %v3438 = vmul.f32 %v3435, %v3437
        %v3439 = vadd.f32 %v3435, %v3438
        %vm3440 = vweird.f32 %v2965
        %vm3441 = vweird.f32 %v3435
        %vm3442 = vmor %vm3440, %vm3441
        %v3443 = vsel %vm3442, %v3435, %v3439
        %v3444 = vand.u32 2147483647, %v2965
        %vm3445 = vcmp.eq.f32.partialorder %v3444, 8.507059e+37
        %v3446 = vand.u32 %v2965, 2147483648
        %v3447 = vor.u32 1.1754944e-38, %v3446
        %v3448 = vsel %vm3445, %v3447, %v3443
        %v3449 = vmul.f32 1.0, %v3448
        %v3450 = vrcp.pop %v2966
        %v3451 = vmul.f32 %v2966, %v3450
        %v3452 = vsub.f32 1.0, %v3451
        %v3453 = vmul.f32 %v3450, %v3452
        %v3454 = vadd.f32 %v3450, %v3453
        %vm3455 = vweird.f32 %v2966
        %vm3456 = vweird.f32 %v3450
        %vm3457 = vmor %vm3455, %vm3456
        %v3458 = vsel %vm3457, %v3450, %v3454
        %v3459 = vand.u32 2147483647, %v2966
        %vm3460 = vcmp.eq.f32.partialorder %v3459, 8.507059e+37
        %v3461 = vand.u32 %v2966, 2147483648
        %v3462 = vor.u32 1.1754944e-38, %v3461
        %v3463 = vsel %vm3460, %v3462, %v3458
        %v3464 = vmul.f32 1.0, %v3463
        %v3465 = vrcp.pop %v2967
        %v3466 = vmul.f32 %v2967, %v3465
        %v3467 = vsub.f32 1.0, %v3466
        %v3468 = vmul.f32 %v3465, %v3467
        %v3469 = vadd.f32 %v3465, %v3468
        %vm3470 = vweird.f32 %v2967
        %vm3471 = vweird.f32 %v3465
        %vm3472 = vmor %vm3470, %vm3471
        %v3473 = vsel %vm3472, %v3465, %v3469
        %v3474 = vand.u32 2147483647, %v2967
        %vm3475 = vcmp.eq.f32.partialorder %v3474, 8.507059e+37
        %v3476 = vand.u32 %v2967, 2147483648
        %v3477 = vor.u32 1.1754944e-38, %v3476
        %v3478 = vsel %vm3475, %v3477, %v3473
        %v3479 = vmul.f32 1.0, %v3478
        %v3480 = vrcp.pop %v2968
        %v3481 = vmul.f32 %v2968, %v3480
        %v3482 = vsub.f32 1.0, %v3481
        %v3483 = vmul.f32 %v3480, %v3482
        %v3484 = vadd.f32 %v3480, %v3483
        %vm3485 = vweird.f32 %v2968
        %vm3486 = vweird.f32 %v3480
        %vm3487 = vmor %vm3485, %vm3486
        %v3488 = vsel %vm3487, %v3480, %v3484
        %v3489 = vand.u32 2147483647, %v2968
        %vm3490 = vcmp.eq.f32.partialorder %v3489, 8.507059e+37
        %v3491 = vand.u32 %v2968, 2147483648
        %v3492 = vor.u32 1.1754944e-38, %v3491
        %v3493 = vsel %vm3490, %v3492, %v3488
        %v3494 = vmul.f32 1.0, %v3493
        %v3495 = vrcp.pop %v2969
        %v3496 = vmul.f32 %v2969, %v3495
        %v3497 = vsub.f32 1.0, %v3496
        %v3498 = vmul.f32 %v3495, %v3497
        %v3499 = vadd.f32 %v3495, %v3498
        %vm3500 = vweird.f32 %v2969
        %vm3501 = vweird.f32 %v3495
        %vm3502 = vmor %vm3500, %vm3501
        %v3503 = vsel %vm3502, %v3495, %v3499
        %v3504 = vand.u32 2147483647, %v2969
        %vm3505 = vcmp.eq.f32.partialorder %v3504, 8.507059e+37
        %v3506 = vand.u32 %v2969, 2147483648
        %v3507 = vor.u32 1.1754944e-38, %v3506
        %v3508 = vsel %vm3505, %v3507, %v3503
        %v3509 = vmul.f32 1.0, %v3508
        %v3510 = vrcp.pop %v2970
        %v3511 = vmul.f32 %v2970, %v3510
        %v3512 = vsub.f32 1.0, %v3511
        %v3513 = vmul.f32 %v3510, %v3512
        %v3514 = vadd.f32 %v3510, %v3513
        %vm3515 = vweird.f32 %v2970
        %vm3516 = vweird.f32 %v3510
        %vm3517 = vmor %vm3515, %vm3516
        %v3518 = vsel %vm3517, %v3510, %v3514
        %v3519 = vand.u32 2147483647, %v2970
        %vm3520 = vcmp.eq.f32.partialorder %v3519, 8.507059e+37
        %v3521 = vand.u32 %v2970, 2147483648
        %v3522 = vor.u32 1.1754944e-38, %v3521
        %v3523 = vsel %vm3520, %v3522, %v3518
        %v3524 = vmul.f32 1.0, %v3523
        %v3525 = vrcp.pop %v2971
        %v3526 = vmul.f32 %v2971, %v3525
        %v3527 = vsub.f32 1.0, %v3526
        %v3528 = vmul.f32 %v3525, %v3527
        %v3529 = vadd.f32 %v3525, %v3528
        %vm3530 = vweird.f32 %v2971
        %vm3531 = vweird.f32 %v3525
        %vm3532 = vmor %vm3530, %vm3531
        %v3533 = vsel %vm3532, %v3525, %v3529
        %v3534 = vand.u32 2147483647, %v2971
        %vm3535 = vcmp.eq.f32.partialorder %v3534, 8.507059e+37
        %v3536 = vand.u32 %v2971, 2147483648
        %v3537 = vor.u32 1.1754944e-38, %v3536
        %v3538 = vsel %vm3535, %v3537, %v3533
        %v3539 = vmul.f32 1.0, %v3538
        %v3540 = vrcp.pop %v2972
        %v3541 = vmul.f32 %v2972, %v3540
        %v3542 = vsub.f32 1.0, %v3541
        %v3543 = vmul.f32 %v3540, %v3542
        %v3544 = vadd.f32 %v3540, %v3543
        %vm3545 = vweird.f32 %v2972
        %vm3546 = vweird.f32 %v3540
        %vm3547 = vmor %vm3545, %vm3546
        %v3548 = vsel %vm3547, %v3540, %v3544
        %v3549 = vand.u32 2147483647, %v2972
        %vm3550 = vcmp.eq.f32.partialorder %v3549, 8.507059e+37
        %v3551 = vand.u32 %v2972, 2147483648
        %v3552 = vor.u32 1.1754944e-38, %v3551
        %v3553 = vsel %vm3550, %v3552, %v3548
        %v3554 = vmul.f32 1.0, %v3553
        %v3555 = vrcp.pop %v2973
        %v3556 = vmul.f32 %v2973, %v3555
        %v3557 = vsub.f32 1.0, %v3556
        %v3558 = vmul.f32 %v3555, %v3557
        %v3559 = vadd.f32 %v3555, %v3558
        %vm3560 = vweird.f32 %v2973
        %vm3561 = vweird.f32 %v3555
        %vm3562 = vmor %vm3560, %vm3561
        %v3563 = vsel %vm3562, %v3555, %v3559
        %v3564 = vand.u32 2147483647, %v2973
        %vm3565 = vcmp.eq.f32.partialorder %v3564, 8.507059e+37
        %v3566 = vand.u32 %v2973, 2147483648
        %v3567 = vor.u32 1.1754944e-38, %v3566
        %v3568 = vsel %vm3565, %v3567, %v3563
        %v3569 = vmul.f32 1.0, %v3568
        %v3570 = vrcp.pop %v2974
        %v3571 = vmul.f32 %v2974, %v3570
        %v3572 = vsub.f32 1.0, %v3571
        %v3573 = vmul.f32 %v3570, %v3572
        %v3574 = vadd.f32 %v3570, %v3573
        %vm3575 = vweird.f32 %v2974
        %vm3576 = vweird.f32 %v3570
        %vm3577 = vmor %vm3575, %vm3576
        %v3578 = vsel %vm3577, %v3570, %v3574
        %v3579 = vand.u32 2147483647, %v2974
        %vm3580 = vcmp.eq.f32.partialorder %v3579, 8.507059e+37
        %v3581 = vand.u32 %v2974, 2147483648
        %v3582 = vor.u32 1.1754944e-38, %v3581
        %v3583 = vsel %vm3580, %v3582, %v3578
        %v3584 = vmul.f32 1.0, %v3583
        %v3585 = vrcp.pop %v2975
        %v3586 = vmul.f32 %v2975, %v3585
        %v3587 = vsub.f32 1.0, %v3586
        %v3588 = vmul.f32 %v3585, %v3587
        %v3589 = vadd.f32 %v3585, %v3588
        %vm3590 = vweird.f32 %v2975
        %vm3591 = vweird.f32 %v3585
        %vm3592 = vmor %vm3590, %vm3591
        %v3593 = vsel %vm3592, %v3585, %v3589
        %v3594 = vand.u32 2147483647, %v2975
        %vm3595 = vcmp.eq.f32.partialorder %v3594, 8.507059e+37
        %v3596 = vand.u32 %v2975, 2147483648
        %v3597 = vor.u32 1.1754944e-38, %v3596
        %v3598 = vsel %vm3595, %v3597, %v3593
        %v3599 = vmul.f32 1.0, %v3598
        %v3600 = vrcp.pop %v2976
        %v3601 = vmul.f32 %v2976, %v3600
        %v3602 = vsub.f32 1.0, %v3601
        %v3603 = vmul.f32 %v3600, %v3602
        %v3604 = vadd.f32 %v3600, %v3603
        %vm3605 = vweird.f32 %v2976
        %vm3606 = vweird.f32 %v3600
        %vm3607 = vmor %vm3605, %vm3606
        %v3608 = vsel %vm3607, %v3600, %v3604
        %v3609 = vand.u32 2147483647, %v2976
        %vm3610 = vcmp.eq.f32.partialorder %v3609, 8.507059e+37
        %v3611 = vand.u32 %v2976, 2147483648
        %v3612 = vor.u32 1.1754944e-38, %v3611
        %v3613 = vsel %vm3610, %v3612, %v3608
        %v3614 = vmul.f32 1.0, %v3613
        %v3615 = vrcp.pop %v2977
        %v3616 = vmul.f32 %v2977, %v3615
        %v3617 = vsub.f32 1.0, %v3616
        %v3618 = vmul.f32 %v3615, %v3617
        %v3619 = vadd.f32 %v3615, %v3618
        %vm3620 = vweird.f32 %v2977
        %vm3621 = vweird.f32 %v3615
        %vm3622 = vmor %vm3620, %vm3621
        %v3623 = vsel %vm3622, %v3615, %v3619
        %v3624 = vand.u32 2147483647, %v2977
        %vm3625 = vcmp.eq.f32.partialorder %v3624, 8.507059e+37
        %v3626 = vand.u32 %v2977, 2147483648
        %v3627 = vor.u32 1.1754944e-38, %v3626
        %v3628 = vsel %vm3625, %v3627, %v3623
        %v3629 = vmul.f32 1.0, %v3628
        %v3630 = vrcp.pop %v2978
        %v3631 = vmul.f32 %v2978, %v3630
        %v3632 = vsub.f32 1.0, %v3631
        %v3633 = vmul.f32 %v3630, %v3632
        %v3634 = vadd.f32 %v3630, %v3633
        %vm3635 = vweird.f32 %v2978
        %vm3636 = vweird.f32 %v3630
        %vm3637 = vmor %vm3635, %vm3636
        %v3638 = vsel %vm3637, %v3630, %v3634
        %v3639 = vand.u32 2147483647, %v2978
        %vm3640 = vcmp.eq.f32.partialorder %v3639, 8.507059e+37
        %v3641 = vand.u32 %v2978, 2147483648
        %v3642 = vor.u32 1.1754944e-38, %v3641
        %v3643 = vsel %vm3640, %v3642, %v3638
        %v3644 = vmul.f32 1.0, %v3643
        %v3645 = vrcp.pop %v2979
        %v3646 = vmul.f32 %v2979, %v3645
        %v3647 = vsub.f32 1.0, %v3646
        %v3648 = vmul.f32 %v3645, %v3647
        %v3649 = vadd.f32 %v3645, %v3648
        %vm3650 = vweird.f32 %v2979
        %vm3651 = vweird.f32 %v3645
        %vm3652 = vmor %vm3650, %vm3651
        %v3653 = vsel %vm3652, %v3645, %v3649
        %v3654 = vand.u32 2147483647, %v2979
        %vm3655 = vcmp.eq.f32.partialorder %v3654, 8.507059e+37
        %v3656 = vand.u32 %v2979, 2147483648
        %v3657 = vor.u32 1.1754944e-38, %v3656
        %v3658 = vsel %vm3655, %v3657, %v3653
        %v3659 = vmul.f32 1.0, %v3658
        %v3660 = vrcp.pop %v2980
        %v3661 = vmul.f32 %v2980, %v3660
        %v3662 = vsub.f32 1.0, %v3661
        %v3663 = vmul.f32 %v3660, %v3662
        %v3664 = vadd.f32 %v3660, %v3663
        %vm3665 = vweird.f32 %v2980
        %vm3666 = vweird.f32 %v3660
        %vm3667 = vmor %vm3665, %vm3666
        %v3668 = vsel %vm3667, %v3660, %v3664
        %v3669 = vand.u32 2147483647, %v2980
        %vm3670 = vcmp.eq.f32.partialorder %v3669, 8.507059e+37
        %v3671 = vand.u32 %v2980, 2147483648
        %v3672 = vor.u32 1.1754944e-38, %v3671
        %v3673 = vsel %vm3670, %v3672, %v3668
        %v3674 = vmul.f32 1.0, %v3673
        %v3675 = vrcp.pop %v2981
        %v3676 = vmul.f32 %v2981, %v3675
        %v3677 = vsub.f32 1.0, %v3676
        %v3678 = vmul.f32 %v3675, %v3677
        %v3679 = vadd.f32 %v3675, %v3678
        %vm3680 = vweird.f32 %v2981
        %vm3681 = vweird.f32 %v3675
        %vm3682 = vmor %vm3680, %vm3681
        %v3683 = vsel %vm3682, %v3675, %v3679
        %v3684 = vand.u32 2147483647, %v2981
        %vm3685 = vcmp.eq.f32.partialorder %v3684, 8.507059e+37
        %v3686 = vand.u32 %v2981, 2147483648
        %v3687 = vor.u32 1.1754944e-38, %v3686
        %v3688 = vsel %vm3685, %v3687, %v3683
        %v3689 = vmul.f32 1.0, %v3688
        %v3690 = vrcp.pop %v2982
        %v3691 = vmul.f32 %v2982, %v3690
        %v3692 = vsub.f32 1.0, %v3691
        %v3693 = vmul.f32 %v3690, %v3692
        %v3694 = vadd.f32 %v3690, %v3693
        %vm3695 = vweird.f32 %v2982
        %vm3696 = vweird.f32 %v3690
        %vm3697 = vmor %vm3695, %vm3696
        %v3698 = vsel %vm3697, %v3690, %v3694
        %v3699 = vand.u32 2147483647, %v2982
        %vm3700 = vcmp.eq.f32.partialorder %v3699, 8.507059e+37
        %v3701 = vand.u32 %v2982, 2147483648
        %v3702 = vor.u32 1.1754944e-38, %v3701
        %v3703 = vsel %vm3700, %v3702, %v3698
        %v3704 = vmul.f32 1.0, %v3703
        %v3705 = vrcp.pop %v2983
        %v3706 = vmul.f32 %v2983, %v3705
        %v3707 = vsub.f32 1.0, %v3706
        %v3708 = vmul.f32 %v3705, %v3707
        %v3709 = vadd.f32 %v3705, %v3708
        %vm3710 = vweird.f32 %v2983
        %vm3711 = vweird.f32 %v3705
        %vm3712 = vmor %vm3710, %vm3711
        %v3713 = vsel %vm3712, %v3705, %v3709
        %v3714 = vand.u32 2147483647, %v2983
        %vm3715 = vcmp.eq.f32.partialorder %v3714, 8.507059e+37
        %v3716 = vand.u32 %v2983, 2147483648
        %v3717 = vor.u32 1.1754944e-38, %v3716
        %v3718 = vsel %vm3715, %v3717, %v3713
        %v3719 = vmul.f32 1.0, %v3718
        %v3720 = vrcp.pop %v2984
        %v3721 = vmul.f32 %v2984, %v3720
        %v3722 = vsub.f32 1.0, %v3721
        %v3723 = vmul.f32 %v3720, %v3722
        %v3724 = vadd.f32 %v3720, %v3723
        %vm3725 = vweird.f32 %v2984
        %vm3726 = vweird.f32 %v3720
        %vm3727 = vmor %vm3725, %vm3726
        %v3728 = vsel %vm3727, %v3720, %v3724
        %v3729 = vand.u32 2147483647, %v2984
        %vm3730 = vcmp.eq.f32.partialorder %v3729, 8.507059e+37
        %v3731 = vand.u32 %v2984, 2147483648
        %v3732 = vor.u32 1.1754944e-38, %v3731
        %v3733 = vsel %vm3730, %v3732, %v3728
        %v3734 = vmul.f32 1.0, %v3733
        %v3735 = vrcp.pop %v2985
        %v3736 = vmul.f32 %v2985, %v3735
        %v3737 = vsub.f32 1.0, %v3736
        %v3738 = vmul.f32 %v3735, %v3737
        %v3739 = vadd.f32 %v3735, %v3738
        %vm3740 = vweird.f32 %v2985
        %vm3741 = vweird.f32 %v3735
        %vm3742 = vmor %vm3740, %vm3741
        %v3743 = vsel %vm3742, %v3735, %v3739
        %v3744 = vand.u32 2147483647, %v2985
        %vm3745 = vcmp.eq.f32.partialorder %v3744, 8.507059e+37
        %v3746 = vand.u32 %v2985, 2147483648
        %v3747 = vor.u32 1.1754944e-38, %v3746
        %v3748 = vsel %vm3745, %v3747, %v3743
        %v3749 = vmul.f32 1.0, %v3748
        %v3750 = vrcp.pop %v2986
        %v3751 = vmul.f32 %v2986, %v3750
        %v3752 = vsub.f32 1.0, %v3751
        %v3753 = vmul.f32 %v3750, %v3752
        %v3754 = vadd.f32 %v3750, %v3753
        %vm3755 = vweird.f32 %v2986
        %vm3756 = vweird.f32 %v3750
        %vm3757 = vmor %vm3755, %vm3756
        %v3758 = vsel %vm3757, %v3750, %v3754
        %v3759 = vand.u32 2147483647, %v2986
        %vm3760 = vcmp.eq.f32.partialorder %v3759, 8.507059e+37
        %v3761 = vand.u32 %v2986, 2147483648
        %v3762 = vor.u32 1.1754944e-38, %v3761
        %v3763 = vsel %vm3760, %v3762, %v3758
        %v3764 = vmul.f32 1.0, %v3763
        %v3765 = vrcp.pop %v2987
        %v3766 = vmul.f32 %v2987, %v3765
        %v3767 = vsub.f32 1.0, %v3766
        %v3768 = vmul.f32 %v3765, %v3767
        %v3769 = vadd.f32 %v3765, %v3768
        %vm3770 = vweird.f32 %v2987
        %vm3771 = vweird.f32 %v3765
        %vm3772 = vmor %vm3770, %vm3771
        %v3773 = vsel %vm3772, %v3765, %v3769
        %v3774 = vand.u32 2147483647, %v2987
        %vm3775 = vcmp.eq.f32.partialorder %v3774, 8.507059e+37
        %v3776 = vand.u32 %v2987, 2147483648
        %v3777 = vor.u32 1.1754944e-38, %v3776
        %v3778 = vsel %vm3775, %v3777, %v3773
        %v3779 = vmul.f32 1.0, %v3778
        %v3780 = vrcp.pop %v2988
        %v3781 = vmul.f32 %v2988, %v3780
        %v3782 = vsub.f32 1.0, %v3781
        %v3783 = vmul.f32 %v3780, %v3782
        %v3784 = vadd.f32 %v3780, %v3783
        %vm3785 = vweird.f32 %v2988
        %vm3786 = vweird.f32 %v3780
        %vm3787 = vmor %vm3785, %vm3786
        %v3788 = vsel %vm3787, %v3780, %v3784
        %v3789 = vand.u32 2147483647, %v2988
        %vm3790 = vcmp.eq.f32.partialorder %v3789, 8.507059e+37
        %v3791 = vand.u32 %v2988, 2147483648
        %v3792 = vor.u32 1.1754944e-38, %v3791
        %v3793 = vsel %vm3790, %v3792, %v3788
        %v3794 = vmul.f32 1.0, %v3793
        %v3795 = vrcp.pop %v2989
        %v3796 = vmul.f32 %v2989, %v3795
        %v3797 = vsub.f32 1.0, %v3796
        %v3798 = vmul.f32 %v3795, %v3797
        %v3799 = vadd.f32 %v3795, %v3798
        %vm3800 = vweird.f32 %v2989
        %vm3801 = vweird.f32 %v3795
        %vm3802 = vmor %vm3800, %vm3801
        %v3803 = vsel %vm3802, %v3795, %v3799
        %v3804 = vand.u32 2147483647, %v2989
        %vm3805 = vcmp.eq.f32.partialorder %v3804, 8.507059e+37
        %v3806 = vand.u32 %v2989, 2147483648
        %v3807 = vor.u32 1.1754944e-38, %v3806
        %v3808 = vsel %vm3805, %v3807, %v3803
        %v3809 = vmul.f32 1.0, %v3808
        %v3810 = vrcp.pop %v2990
        %v3811 = vmul.f32 %v2990, %v3810
        %v3812 = vsub.f32 1.0, %v3811
        %v3813 = vmul.f32 %v3810, %v3812
        %v3814 = vadd.f32 %v3810, %v3813
        %vm3815 = vweird.f32 %v2990
        %vm3816 = vweird.f32 %v3810
        %vm3817 = vmor %vm3815, %vm3816
        %v3818 = vsel %vm3817, %v3810, %v3814
        %v3819 = vand.u32 2147483647, %v2990
        %vm3820 = vcmp.eq.f32.partialorder %v3819, 8.507059e+37
        %v3821 = vand.u32 %v2990, 2147483648
        %v3822 = vor.u32 1.1754944e-38, %v3821
        %v3823 = vsel %vm3820, %v3822, %v3818
        %v3824 = vmul.f32 1.0, %v3823
        %v3825 = vrcp.pop %v2991
        %v3826 = vmul.f32 %v2991, %v3825
        %v3827 = vsub.f32 1.0, %v3826
        %v3828 = vmul.f32 %v3825, %v3827
        %v3829 = vadd.f32 %v3825, %v3828
        %vm3830 = vweird.f32 %v2991
        %vm3831 = vweird.f32 %v3825
        %vm3832 = vmor %vm3830, %vm3831
        %v3833 = vsel %vm3832, %v3825, %v3829
        %v3834 = vand.u32 2147483647, %v2991
        %vm3835 = vcmp.eq.f32.partialorder %v3834, 8.507059e+37
        %v3836 = vand.u32 %v2991, 2147483648
        %v3837 = vor.u32 1.1754944e-38, %v3836
        %v3838 = vsel %vm3835, %v3837, %v3833
        %v3839 = vmul.f32 1.0, %v3838
        %v3840 = vrcp.pop %v2992
        %v3841 = vmul.f32 %v2992, %v3840
        %v3842 = vsub.f32 1.0, %v3841
        %v3843 = vmul.f32 %v3840, %v3842
        %v3844 = vadd.f32 %v3840, %v3843
        %vm3845 = vweird.f32 %v2992
        %vm3846 = vweird.f32 %v3840
        %vm3847 = vmor %vm3845, %vm3846
        %v3848 = vsel %vm3847, %v3840, %v3844
        %v3849 = vand.u32 2147483647, %v2992
        %vm3850 = vcmp.eq.f32.partialorder %v3849, 8.507059e+37
        %v3851 = vand.u32 %v2992, 2147483648
        %v3852 = vor.u32 1.1754944e-38, %v3851
        %v3853 = vsel %vm3850, %v3852, %v3848
        %v3854 = vmul.f32 1.0, %v3853
        %v3855 = vrcp.pop %v2993
        %v3856 = vmul.f32 %v2993, %v3855
        %v3857 = vsub.f32 1.0, %v3856
        %v3858 = vmul.f32 %v3855, %v3857
        %v3859 = vadd.f32 %v3855, %v3858
        %vm3860 = vweird.f32 %v2993
        %vm3861 = vweird.f32 %v3855
        %vm3862 = vmor %vm3860, %vm3861
        %v3863 = vsel %vm3862, %v3855, %v3859
        %v3864 = vand.u32 2147483647, %v2993
        %vm3865 = vcmp.eq.f32.partialorder %v3864, 8.507059e+37
        %v3866 = vand.u32 %v2993, 2147483648
        %v3867 = vor.u32 1.1754944e-38, %v3866
        %v3868 = vsel %vm3865, %v3867, %v3863
        %v3869 = vmul.f32 1.0, %v3868
        %v3870 = vrcp.pop %v2994
        %v3871 = vmul.f32 %v2994, %v3870
        %v3872 = vsub.f32 1.0, %v3871
        %v3873 = vmul.f32 %v3870, %v3872
        %v3874 = vadd.f32 %v3870, %v3873
        %vm3875 = vweird.f32 %v2994
        %vm3876 = vweird.f32 %v3870
        %vm3877 = vmor %vm3875, %vm3876
        %v3878 = vsel %vm3877, %v3870, %v3874
        %v3879 = vand.u32 2147483647, %v2994
        %vm3880 = vcmp.eq.f32.partialorder %v3879, 8.507059e+37
        %v3881 = vand.u32 %v2994, 2147483648
        %v3882 = vor.u32 1.1754944e-38, %v3881
        %v3883 = vsel %vm3880, %v3882, %v3878
        %v3884 = vmul.f32 1.0, %v3883
        %v3885 = vrcp.pop %v2995
        %v3886 = vmul.f32 %v2995, %v3885
        %v3887 = vsub.f32 1.0, %v3886
        %v3888 = vmul.f32 %v3885, %v3887
        %v3889 = vadd.f32 %v3885, %v3888
        %vm3890 = vweird.f32 %v2995
        %vm3891 = vweird.f32 %v3885
        %vm3892 = vmor %vm3890, %vm3891
        %v3893 = vsel %vm3892, %v3885, %v3889
        %v3894 = vand.u32 2147483647, %v2995
        %vm3895 = vcmp.eq.f32.partialorder %v3894, 8.507059e+37
        %v3896 = vand.u32 %v2995, 2147483648
        %v3897 = vor.u32 1.1754944e-38, %v3896
        %v3898 = vsel %vm3895, %v3897, %v3893
        %v3899 = vmul.f32 1.0, %v3898
        %v3900 = vrcp.pop %v2996
        %v3901 = vmul.f32 %v2996, %v3900
        %v3902 = vsub.f32 1.0, %v3901
        %v3903 = vmul.f32 %v3900, %v3902
        %v3904 = vadd.f32 %v3900, %v3903
        %vm3905 = vweird.f32 %v2996
        %vm3906 = vweird.f32 %v3900
        %vm3907 = vmor %vm3905, %vm3906
        %v3908 = vsel %vm3907, %v3900, %v3904
        %v3909 = vand.u32 2147483647, %v2996
        %vm3910 = vcmp.eq.f32.partialorder %v3909, 8.507059e+37
        %v3911 = vand.u32 %v2996, 2147483648
        %v3912 = vor.u32 1.1754944e-38, %v3911
        %v3913 = vsel %vm3910, %v3912, %v3908
        %v3914 = vmul.f32 1.0, %v3913
        %v3915 = vrcp.pop %v2997
        %v3916 = vmul.f32 %v2997, %v3915
        %v3917 = vsub.f32 1.0, %v3916
        %v3918 = vmul.f32 %v3915, %v3917
        %v3919 = vadd.f32 %v3915, %v3918
        %vm3920 = vweird.f32 %v2997
        %vm3921 = vweird.f32 %v3915
        %vm3922 = vmor %vm3920, %vm3921
        %v3923 = vsel %vm3922, %v3915, %v3919
        %v3924 = vand.u32 2147483647, %v2997
        %vm3925 = vcmp.eq.f32.partialorder %v3924, 8.507059e+37
        %v3926 = vand.u32 %v2997, 2147483648
        %v3927 = vor.u32 1.1754944e-38, %v3926
        %v3928 = vsel %vm3925, %v3927, %v3923
        %v3929 = vmul.f32 1.0, %v3928
        %v3930 = vrcp.pop %v2998
        %v3931 = vmul.f32 %v2998, %v3930
        %v3932 = vsub.f32 1.0, %v3931
        %v3933 = vmul.f32 %v3930, %v3932
        %v3934 = vadd.f32 %v3930, %v3933
        %vm3935 = vweird.f32 %v2998
        %vm3936 = vweird.f32 %v3930
        %vm3937 = vmor %vm3935, %vm3936
        %v3938 = vsel %vm3937, %v3930, %v3934
        %v3939 = vand.u32 2147483647, %v2998
        %vm3940 = vcmp.eq.f32.partialorder %v3939, 8.507059e+37
        %v3941 = vand.u32 %v2998, 2147483648
        %v3942 = vor.u32 1.1754944e-38, %v3941
        %v3943 = vsel %vm3940, %v3942, %v3938
        %v3944 = vmul.f32 1.0, %v3943
        %v3945 = vrcp.pop %v2999
        %v3946 = vmul.f32 %v2999, %v3945
        %v3947 = vsub.f32 1.0, %v3946
        %v3948 = vmul.f32 %v3945, %v3947
        %v3949 = vadd.f32 %v3945, %v3948
        %vm3950 = vweird.f32 %v2999
        %vm3951 = vweird.f32 %v3945
        %vm3952 = vmor %vm3950, %vm3951
        %v3953 = vsel %vm3952, %v3945, %v3949
        %v3954 = vand.u32 2147483647, %v2999
        %vm3955 = vcmp.eq.f32.partialorder %v3954, 8.507059e+37
        %v3956 = vand.u32 %v2999, 2147483648
        %v3957 = vor.u32 1.1754944e-38, %v3956
        %v3958 = vsel %vm3955, %v3957, %v3953
        %v3959 = vmul.f32 1.0, %v3958
        %v3960 = vmul.f32 %v2553, %v3014
        %v3961 = vmul.f32 %v2556, %v3029
        %v3962 = vmul.f32 %v2559, %v3044
        %v3963 = vmul.f32 %v2562, %v3059
        %v3964 = vmul.f32 %v2565, %v3074
        %v3965 = vmul.f32 %v2568, %v3089
        %v3966 = vmul.f32 %v2571, %v3104
        %v3967 = vmul.f32 %v2574, %v3119
        %v3968 = vmul.f32 %v2577, %v3134
        %v3969 = vmul.f32 %v2580, %v3149
        %v3970 = vmul.f32 %v2583, %v3164
        %v3971 = vmul.f32 %v2586, %v3179
        %v3972 = vmul.f32 %v2589, %v3194
        %v3973 = vmul.f32 %v2592, %v3209
        %v3974 = vmul.f32 %v2595, %v3224
        %v3975 = vmul.f32 %v2598, %v3239
        %v3976 = vmul.f32 %v2601, %v3254
        %v3977 = vmul.f32 %v2604, %v3269
        %v3978 = vmul.f32 %v2607, %v3284
        %v3979 = vmul.f32 %v2610, %v3299
        %v3980 = vmul.f32 %v2613, %v3314
        %v3981 = vmul.f32 %v2616, %v3329
        %v3982 = vmul.f32 %v2619, %v3344
        %v3983 = vmul.f32 %v2622, %v3359
        %v3984 = vmul.f32 %v2625, %v3374
        %v3985 = vmul.f32 %v2628, %v3389
        %v3986 = vmul.f32 %v2631, %v3404
        %v3987 = vmul.f32 %v2634, %v3419
        %v3988 = vmul.f32 %v2637, %v3434
        %v3989 = vmul.f32 %v2640, %v3449
        %v3990 = vmul.f32 %v2643, %v3464
        %v3991 = vmul.f32 %v2646, %v3479
        %v3992 = vmul.f32 %v2649, %v3494
        %v3993 = vmul.f32 %v2652, %v3509
        %v3994 = vmul.f32 %v2655, %v3524
        %v3995 = vmul.f32 %v2658, %v3539
        %v3996 = vmul.f32 %v2661, %v3554
        %v3997 = vmul.f32 %v2664, %v3569
        %v3998 = vmul.f32 %v2667, %v3584
        %v3999 = vmul.f32 %v2670, %v3599
        %v4000 = vmul.f32 %v2673, %v3614
        %v4001 = vmul.f32 %v2676, %v3629
        %v4002 = vmul.f32 %v2679, %v3644
        %v4003 = vmul.f32 %v2682, %v3659
        %v4004 = vmul.f32 %v2685, %v3674
        %v4005 = vmul.f32 %v2688, %v3689
        %v4006 = vmul.f32 %v2691, %v3704
        %v4007 = vmul.f32 %v2694, %v3719
        %v4008 = vmul.f32 %v2697, %v3734
        %v4009 = vmul.f32 %v2700, %v3749
        %v4010 = vmul.f32 %v2703, %v3764
        %v4011 = vmul.f32 %v2706, %v3779
        %v4012 = vmul.f32 %v2709, %v3794
        %v4013 = vmul.f32 %v2712, %v3809
        %v4014 = vmul.f32 %v2715, %v3824
        %v4015 = vmul.f32 %v2718, %v3839
        %v4016 = vmul.f32 %v2721, %v3854
        %v4017 = vmul.f32 %v2724, %v3869
        %v4018 = vmul.f32 %v2727, %v3884
        %v4019 = vmul.f32 %v2730, %v3899
        %v4020 = vmul.f32 %v2733, %v3914
        %v4021 = vmul.f32 %v2736, %v3929
        %v4022 = vmul.f32 %v2739, %v3944
        %v4023 = vmul.f32 %v2742, %v3959
        %v4024 = vld [vmem:[%s9] sm:$0xff]
        %v4025 = vld [vmem:[%s9 + $0x8] sm:$0xff]
        %v4026 = vld [vmem:[%s9 + $0x10] sm:$0xff]
        %v4027 = vld [vmem:[%s9 + $0x18] sm:$0xff]
        %v4028 = vld [vmem:[%s9 + $0x20] sm:$0xff]
        %v4029 = vld [vmem:[%s9 + $0x28] sm:$0xff]
        %v4030 = vld [vmem:[%s9 + $0x30] sm:$0xff]
        %v4031 = vld [vmem:[%s9 + $0x38] sm:$0xff]
        %v4032 = vld [vmem:[%s9 + $0x40] sm:$0xff]
        %v4033 = vld [vmem:[%s9 + $0x48] sm:$0xff]
        %v4034 = vld [vmem:[%s9 + $0x50] sm:$0xff]
        %v4035 = vld [vmem:[%s9 + $0x58] sm:$0xff]
        %v4036 = vld [vmem:[%s9 + $0x60] sm:$0xff]
        %v4037 = vld [vmem:[%s9 + $0x68] sm:$0xff]
        %v4038 = vld [vmem:[%s9 + $0x70] sm:$0xff]
        %v4039 = vld [vmem:[%s9 + $0x78] sm:$0xff]
        %v4040 = vld [vmem:[%s10] sm:$0x1]
        %v4042 = vperm.slane %v4040, 0
        %4044 = vmatpush.msra.mxu0 %v4039
        %4045 = vmatpush.msra.mxu0 %v4038
        %4046 = vmatpush.msra.mxu0 %v4037
        %4047 = vmatpush.msra.mxu0 %v4036
        %4048 = vmatpush.msra.mxu0 %v4035
        %4049 = vmatpush.msra.mxu0 %v4034
        %4050 = vmatpush.msra.mxu0 %v4033
        %4051 = vmatpush.msra.mxu0 %v4032
        %4052 = vmatpush.msra.mxu0 %v4031
        %4053 = vmatpush.msra.mxu0 %v4030
        %4054 = vmatpush.msra.mxu0 %v4029
        %4055 = vmatpush.msra.mxu0 %v4028
        %4056 = vmatpush.msra.mxu0 %v4027
        %4057 = vmatpush.msra.mxu0 %v4026
        %4058 = vmatpush.msra.mxu0 %v4025
        %4059 = vmatpush.msra.mxu0 %v4024
        %4060 = vmatmul.f32.gmra.mxu0 %v3960
        %v4061 = vpop.f32.mrf.mxu0
        %v4062 = vadd.f32 %v4042, %v4061
        %4063 = vmatmul.f32.gmra.mxu0 %v3961
        %v4064 = vpop.f32.mrf.mxu0
        %v4065 = vadd.f32 %v4042, %v4064
        %4066 = vmatmul.f32.gmra.mxu0 %v3962
        %v4067 = vpop.f32.mrf.mxu0
        %v4068 = vadd.f32 %v4042, %v4067
        %4069 = vmatmul.f32.gmra.mxu0 %v3963
        %v4070 = vpop.f32.mrf.mxu0
        %v4071 = vadd.f32 %v4042, %v4070
        %4072 = vmatmul.f32.gmra.mxu0 %v3964
        %v4073 = vpop.f32.mrf.mxu0
        %v4074 = vadd.f32 %v4042, %v4073
        %4075 = vmatmul.f32.gmra.mxu0 %v3965
        %v4076 = vpop.f32.mrf.mxu0
        %v4077 = vadd.f32 %v4042, %v4076
        %4078 = vmatmul.f32.gmra.mxu0 %v3966
        %v4079 = vpop.f32.mrf.mxu0
        %v4080 = vadd.f32 %v4042, %v4079
        %4081 = vmatmul.f32.gmra.mxu0 %v3967
        %v4082 = vpop.f32.mrf.mxu0
        %v4083 = vadd.f32 %v4042, %v4082
        %4084 = vmatmul.f32.gmra.mxu0 %v3968
        %v4085 = vpop.f32.mrf.mxu0
        %v4086 = vadd.f32 %v4042, %v4085
        %4087 = vmatmul.f32.gmra.mxu0 %v3969
        %v4088 = vpop.f32.mrf.mxu0
        %v4089 = vadd.f32 %v4042, %v4088
        %4090 = vmatmul.f32.gmra.mxu0 %v3970
        %v4091 = vpop.f32.mrf.mxu0
        %v4092 = vadd.f32 %v4042, %v4091
        %4093 = vmatmul.f32.gmra.mxu0 %v3971
        %v4094 = vpop.f32.mrf.mxu0
        %v4095 = vadd.f32 %v4042, %v4094
        %4096 = vmatmul.f32.gmra.mxu0 %v3972
        %v4097 = vpop.f32.mrf.mxu0
        %v4098 = vadd.f32 %v4042, %v4097
        %4099 = vmatmul.f32.gmra.mxu0 %v3973
        %v4100 = vpop.f32.mrf.mxu0
        %v4101 = vadd.f32 %v4042, %v4100
        %4102 = vmatmul.f32.gmra.mxu0 %v3974
        %v4103 = vpop.f32.mrf.mxu0
        %v4104 = vadd.f32 %v4042, %v4103
        %4105 = vmatmul.f32.gmra.mxu0 %v3975
        %v4106 = vpop.f32.mrf.mxu0
        %v4107 = vadd.f32 %v4042, %v4106
        %4108 = vmatmul.f32.gmra.mxu0 %v3976
        %v4109 = vpop.f32.mrf.mxu0
        %v4110 = vadd.f32 %v4042, %v4109
        %4111 = vmatmul.f32.gmra.mxu0 %v3977
        %v4112 = vpop.f32.mrf.mxu0
        %v4113 = vadd.f32 %v4042, %v4112
        %4114 = vmatmul.f32.gmra.mxu0 %v3978
        %v4115 = vpop.f32.mrf.mxu0
        %v4116 = vadd.f32 %v4042, %v4115
        %4117 = vmatmul.f32.gmra.mxu0 %v3979
        %v4118 = vpop.f32.mrf.mxu0
        %v4119 = vadd.f32 %v4042, %v4118
        %4120 = vmatmul.f32.gmra.mxu0 %v3980
        %v4121 = vpop.f32.mrf.mxu0
        %v4122 = vadd.f32 %v4042, %v4121
        %4123 = vmatmul.f32.gmra.mxu0 %v3981
        %v4124 = vpop.f32.mrf.mxu0
        %v4125 = vadd.f32 %v4042, %v4124
        %4126 = vmatmul.f32.gmra.mxu0 %v3982
        %v4127 = vpop.f32.mrf.mxu0
        %v4128 = vadd.f32 %v4042, %v4127
        %4129 = vmatmul.f32.gmra.mxu0 %v3983
        %v4130 = vpop.f32.mrf.mxu0
        %v4131 = vadd.f32 %v4042, %v4130
        %4132 = vmatmul.f32.gmra.mxu0 %v3984
        %v4133 = vpop.f32.mrf.mxu0
        %v4134 = vadd.f32 %v4042, %v4133
        %4135 = vmatmul.f32.gmra.mxu0 %v3985
        %v4136 = vpop.f32.mrf.mxu0
        %v4137 = vadd.f32 %v4042, %v4136
        %4138 = vmatmul.f32.gmra.mxu0 %v3986
        %v4139 = vpop.f32.mrf.mxu0
        %v4140 = vadd.f32 %v4042, %v4139
        %4141 = vmatmul.f32.gmra.mxu0 %v3987
        %v4142 = vpop.f32.mrf.mxu0
        %v4143 = vadd.f32 %v4042, %v4142
        %4144 = vmatmul.f32.gmra.mxu0 %v3988
        %v4145 = vpop.f32.mrf.mxu0
        %v4146 = vadd.f32 %v4042, %v4145
        %4147 = vmatmul.f32.gmra.mxu0 %v3989
        %v4148 = vpop.f32.mrf.mxu0
        %v4149 = vadd.f32 %v4042, %v4148
        %4150 = vmatmul.f32.gmra.mxu0 %v3990
        %v4151 = vpop.f32.mrf.mxu0
        %v4152 = vadd.f32 %v4042, %v4151
        %4153 = vmatmul.f32.gmra.mxu0 %v3991
        %v4154 = vpop.f32.mrf.mxu0
        %v4155 = vadd.f32 %v4042, %v4154
        %4156 = vmatmul.f32.gmra.mxu0 %v3992
        %v4157 = vpop.f32.mrf.mxu0
        %v4158 = vadd.f32 %v4042, %v4157
        %4159 = vmatmul.f32.gmra.mxu0 %v3993
        %v4160 = vpop.f32.mrf.mxu0
        %v4161 = vadd.f32 %v4042, %v4160
        %4162 = vmatmul.f32.gmra.mxu0 %v3994
        %v4163 = vpop.f32.mrf.mxu0
        %v4164 = vadd.f32 %v4042, %v4163
        %4165 = vmatmul.f32.gmra.mxu0 %v3995
        %v4166 = vpop.f32.mrf.mxu0
        %v4167 = vadd.f32 %v4042, %v4166
        %4168 = vmatmul.f32.gmra.mxu0 %v3996
        %v4169 = vpop.f32.mrf.mxu0
        %v4170 = vadd.f32 %v4042, %v4169
        %4171 = vmatmul.f32.gmra.mxu0 %v3997
        %v4172 = vpop.f32.mrf.mxu0
        %v4173 = vadd.f32 %v4042, %v4172
        %4174 = vmatmul.f32.gmra.mxu0 %v3998
        %v4175 = vpop.f32.mrf.mxu0
        %v4176 = vadd.f32 %v4042, %v4175
        %4177 = vmatmul.f32.gmra.mxu0 %v3999
        %v4178 = vpop.f32.mrf.mxu0
        %v4179 = vadd.f32 %v4042, %v4178
        %4180 = vmatmul.f32.gmra.mxu0 %v4000
        %v4181 = vpop.f32.mrf.mxu0
        %v4182 = vadd.f32 %v4042, %v4181
        %4183 = vmatmul.f32.gmra.mxu0 %v4001
        %v4184 = vpop.f32.mrf.mxu0
        %v4185 = vadd.f32 %v4042, %v4184
        %4186 = vmatmul.f32.gmra.mxu0 %v4002
        %v4187 = vpop.f32.mrf.mxu0
        %v4188 = vadd.f32 %v4042, %v4187
        %4189 = vmatmul.f32.gmra.mxu0 %v4003
        %v4190 = vpop.f32.mrf.mxu0
        %v4191 = vadd.f32 %v4042, %v4190
        %4192 = vmatmul.f32.gmra.mxu0 %v4004
        %v4193 = vpop.f32.mrf.mxu0
        %v4194 = vadd.f32 %v4042, %v4193
        %4195 = vmatmul.f32.gmra.mxu0 %v4005
        %v4196 = vpop.f32.mrf.mxu0
        %v4197 = vadd.f32 %v4042, %v4196
        %4198 = vmatmul.f32.gmra.mxu0 %v4006
        %v4199 = vpop.f32.mrf.mxu0
        %v4200 = vadd.f32 %v4042, %v4199
        %4201 = vmatmul.f32.gmra.mxu0 %v4007
        %v4202 = vpop.f32.mrf.mxu0
        %v4203 = vadd.f32 %v4042, %v4202
        %4204 = vmatmul.f32.gmra.mxu0 %v4008
        %v4205 = vpop.f32.mrf.mxu0
        %v4206 = vadd.f32 %v4042, %v4205
        %4207 = vmatmul.f32.gmra.mxu0 %v4009
        %v4208 = vpop.f32.mrf.mxu0
        %v4209 = vadd.f32 %v4042, %v4208
        %4210 = vmatmul.f32.gmra.mxu0 %v4010
        %v4211 = vpop.f32.mrf.mxu0
        %v4212 = vadd.f32 %v4042, %v4211
        %4213 = vmatmul.f32.gmra.mxu0 %v4011
        %v4214 = vpop.f32.mrf.mxu0
        %v4215 = vadd.f32 %v4042, %v4214
        %4216 = vmatmul.f32.gmra.mxu0 %v4012
        %v4217 = vpop.f32.mrf.mxu0
        %v4218 = vadd.f32 %v4042, %v4217
        %4219 = vmatmul.f32.gmra.mxu0 %v4013
        %v4220 = vpop.f32.mrf.mxu0
        %v4221 = vadd.f32 %v4042, %v4220
        %4222 = vmatmul.f32.gmra.mxu0 %v4014
        %v4223 = vpop.f32.mrf.mxu0
        %v4224 = vadd.f32 %v4042, %v4223
        %4225 = vmatmul.f32.gmra.mxu0 %v4015
        %v4226 = vpop.f32.mrf.mxu0
        %v4227 = vadd.f32 %v4042, %v4226
        %4228 = vmatmul.f32.gmra.mxu0 %v4016
        %v4229 = vpop.f32.mrf.mxu0
        %v4230 = vadd.f32 %v4042, %v4229
        %4231 = vmatmul.f32.gmra.mxu0 %v4017
        %v4232 = vpop.f32.mrf.mxu0
        %v4233 = vadd.f32 %v4042, %v4232
        %4234 = vmatmul.f32.gmra.mxu0 %v4018
        %v4235 = vpop.f32.mrf.mxu0
        %v4236 = vadd.f32 %v4042, %v4235
        %4237 = vmatmul.f32.gmra.mxu0 %v4019
        %v4238 = vpop.f32.mrf.mxu0
        %v4239 = vadd.f32 %v4042, %v4238
        %4240 = vmatmul.f32.gmra.mxu0 %v4020
        %v4241 = vpop.f32.mrf.mxu0
        %v4242 = vadd.f32 %v4042, %v4241
        %4243 = vmatmul.f32.gmra.mxu0 %v4021
        %v4244 = vpop.f32.mrf.mxu0
        %v4245 = vadd.f32 %v4042, %v4244
        %4246 = vmatmul.f32.gmra.mxu0 %v4022
        %v4247 = vpop.f32.mrf.mxu0
        %v4248 = vadd.f32 %v4042, %v4247
        %4249 = vmatmul.f32.gmra.mxu0 %v4023
        %v4250 = vpop.f32.mrf.mxu0
        %v4251 = vadd.f32 %v4042, %v4250
        %4252 = vdwg.mxu0
        %v4253 = vadd.f32 %v4062, %v2035
        %v4254 = vadd.f32 %v4065, %v2038
        %v4255 = vadd.f32 %v4068, %v2041
        %v4256 = vadd.f32 %v4071, %v2044
        %v4257 = vadd.f32 %v4074, %v2047
        %v4258 = vadd.f32 %v4077, %v2050
        %v4259 = vadd.f32 %v4080, %v2053
        %v4260 = vadd.f32 %v4083, %v2056
        %v4261 = vadd.f32 %v4086, %v2059
        %v4262 = vadd.f32 %v4089, %v2062
        %v4263 = vadd.f32 %v4092, %v2065
        %v4264 = vadd.f32 %v4095, %v2068
        %v4265 = vadd.f32 %v4098, %v2071
        %v4266 = vadd.f32 %v4101, %v2074
        %v4267 = vadd.f32 %v4104, %v2077
        %v4268 = vadd.f32 %v4107, %v2080
        %v4269 = vadd.f32 %v4110, %v2083
        %v4270 = vadd.f32 %v4113, %v2086
        %v4271 = vadd.f32 %v4116, %v2089
        %v4272 = vadd.f32 %v4119, %v2092
        %v4273 = vadd.f32 %v4122, %v2095
        %v4274 = vadd.f32 %v4125, %v2098
        %v4275 = vadd.f32 %v4128, %v2101
        %v4276 = vadd.f32 %v4131, %v2104
        %v4277 = vadd.f32 %v4134, %v2107
        %v4278 = vadd.f32 %v4137, %v2110
        %v4279 = vadd.f32 %v4140, %v2113
        %v4280 = vadd.f32 %v4143, %v2116
        %v4281 = vadd.f32 %v4146, %v2119
        %v4282 = vadd.f32 %v4149, %v2122
        %v4283 = vadd.f32 %v4152, %v2125
        %v4284 = vadd.f32 %v4155, %v2128
        %v4285 = vadd.f32 %v4158, %v2131
        %v4286 = vadd.f32 %v4161, %v2134
        %v4287 = vadd.f32 %v4164, %v2137
        %v4288 = vadd.f32 %v4167, %v2140
        %v4289 = vadd.f32 %v4170, %v2143
        %v4290 = vadd.f32 %v4173, %v2146
        %v4291 = vadd.f32 %v4176, %v2149
        %v4292 = vadd.f32 %v4179, %v2152
        %v4293 = vadd.f32 %v4182, %v2155
        %v4294 = vadd.f32 %v4185, %v2158
        %v4295 = vadd.f32 %v4188, %v2161
        %v4296 = vadd.f32 %v4191, %v2164
        %v4297 = vadd.f32 %v4194, %v2167
        %v4298 = vadd.f32 %v4197, %v2170
        %v4299 = vadd.f32 %v4200, %v2173
        %v4300 = vadd.f32 %v4203, %v2176
        %v4301 = vadd.f32 %v4206, %v2179
        %v4302 = vadd.f32 %v4209, %v2182
        %v4303 = vadd.f32 %v4212, %v2185
        %v4304 = vadd.f32 %v4215, %v2188
        %v4305 = vadd.f32 %v4218, %v2191
        %v4306 = vadd.f32 %v4221, %v2194
        %v4307 = vadd.f32 %v4224, %v2197
        %v4308 = vadd.f32 %v4227, %v2200
        %v4309 = vadd.f32 %v4230, %v2203
        %v4310 = vadd.f32 %v4233, %v2206
        %v4311 = vadd.f32 %v4236, %v2209
        %v4312 = vadd.f32 %v4239, %v2212
        %v4313 = vadd.f32 %v4242, %v2215
        %v4314 = vadd.f32 %v4245, %v2218
        %v4315 = vadd.f32 %v4248, %v2221
        %v4316 = vadd.f32 %v4251, %v2224
        %v4317 = vadd.f32 %v4253, %v2260
        %v4318 = vadd.f32 %v4254, %v2263
        %v4319 = vadd.f32 %v4255, %v2266
        %v4320 = vadd.f32 %v4256, %v2269
        %v4321 = vadd.f32 %v4257, %v2272
        %v4322 = vadd.f32 %v4258, %v2275
        %v4323 = vadd.f32 %v4259, %v2278
        %v4324 = vadd.f32 %v4260, %v2281
        %v4325 = vadd.f32 %v4261, %v2284
        %v4326 = vadd.f32 %v4262, %v2287
        %v4327 = vadd.f32 %v4263, %v2290
        %v4328 = vadd.f32 %v4264, %v2293
        %v4329 = vadd.f32 %v4265, %v2296
        %v4330 = vadd.f32 %v4266, %v2299
        %v4331 = vadd.f32 %v4267, %v2302
        %v4332 = vadd.f32 %v4268, %v2305
        %v4333 = vadd.f32 %v4269, %v2308
        %v4334 = vadd.f32 %v4270, %v2311
        %v4335 = vadd.f32 %v4271, %v2314
        %v4336 = vadd.f32 %v4272, %v2317
        %v4337 = vadd.f32 %v4273, %v2320
        %v4338 = vadd.f32 %v4274, %v2323
        %v4339 = vadd.f32 %v4275, %v2326
        %v4340 = vadd.f32 %v4276, %v2329
        %v4341 = vadd.f32 %v4277, %v2332
        %v4342 = vadd.f32 %v4278, %v2335
        %v4343 = vadd.f32 %v4279, %v2338
        %v4344 = vadd.f32 %v4280, %v2341
        %v4345 = vadd.f32 %v4281, %v2344
        %v4346 = vadd.f32 %v4282, %v2347
        %v4347 = vadd.f32 %v4283, %v2350
        %v4348 = vadd.f32 %v4284, %v2353
        %v4349 = vadd.f32 %v4285, %v2356
        %v4350 = vadd.f32 %v4286, %v2359
        %v4351 = vadd.f32 %v4287, %v2362
        %v4352 = vadd.f32 %v4288, %v2365
        %v4353 = vadd.f32 %v4289, %v2368
        %v4354 = vadd.f32 %v4290, %v2371
        %v4355 = vadd.f32 %v4291, %v2374
        %v4356 = vadd.f32 %v4292, %v2377
        %v4357 = vadd.f32 %v4293, %v2380
        %v4358 = vadd.f32 %v4294, %v2383
        %v4359 = vadd.f32 %v4295, %v2386
        %v4360 = vadd.f32 %v4296, %v2389
        %v4361 = vadd.f32 %v4297, %v2392
        %v4362 = vadd.f32 %v4298, %v2395
        %v4363 = vadd.f32 %v4299, %v2398
        %v4364 = vadd.f32 %v4300, %v2401
        %v4365 = vadd.f32 %v4301, %v2404
        %v4366 = vadd.f32 %v4302, %v2407
        %v4367 = vadd.f32 %v4303, %v2410
        %v4368 = vadd.f32 %v4304, %v2413
        %v4369 = vadd.f32 %v4305, %v2416
        %v4370 = vadd.f32 %v4306, %v2419
        %v4371 = vadd.f32 %v4307, %v2422
        %v4372 = vadd.f32 %v4308, %v2425
        %v4373 = vadd.f32 %v4309, %v2428
        %v4374 = vadd.f32 %v4310, %v2431
        %v4375 = vadd.f32 %v4311, %v2434
        %v4376 = vadd.f32 %v4312, %v2437
        %v4377 = vadd.f32 %v4313, %v2440
        %v4378 = vadd.f32 %v4314, %v2443
        %v4379 = vadd.f32 %v4315, %v2446
        %v4380 = vadd.f32 %v4316, %v2449
        %v4381 = vsub.f32 0.0, %v4317
        %v4382 = vsub.f32 0.0, %v4318
        %v4383 = vsub.f32 0.0, %v4319
        %v4384 = vsub.f32 0.0, %v4320
        %v4385 = vsub.f32 0.0, %v4321
        %v4386 = vsub.f32 0.0, %v4322
        %v4387 = vsub.f32 0.0, %v4323
        %v4388 = vsub.f32 0.0, %v4324
        %v4389 = vsub.f32 0.0, %v4325
        %v4390 = vsub.f32 0.0, %v4326
        %v4391 = vsub.f32 0.0, %v4327
        %v4392 = vsub.f32 0.0, %v4328
        %v4393 = vsub.f32 0.0, %v4329
        %v4394 = vsub.f32 0.0, %v4330
        %v4395 = vsub.f32 0.0, %v4331
        %v4396 = vsub.f32 0.0, %v4332
        %v4397 = vsub.f32 0.0, %v4333
        %v4398 = vsub.f32 0.0, %v4334
        %v4399 = vsub.f32 0.0, %v4335
        %v4400 = vsub.f32 0.0, %v4336
        %v4401 = vsub.f32 0.0, %v4337
        %v4402 = vsub.f32 0.0, %v4338
        %v4403 = vsub.f32 0.0, %v4339
        %v4404 = vsub.f32 0.0, %v4340
        %v4405 = vsub.f32 0.0, %v4341
        %v4406 = vsub.f32 0.0, %v4342
        %v4407 = vsub.f32 0.0, %v4343
        %v4408 = vsub.f32 0.0, %v4344
        %v4409 = vsub.f32 0.0, %v4345
        %v4410 = vsub.f32 0.0, %v4346
        %v4411 = vsub.f32 0.0, %v4347
        %v4412 = vsub.f32 0.0, %v4348
        %v4413 = vsub.f32 0.0, %v4349
        %v4414 = vsub.f32 0.0, %v4350
        %v4415 = vsub.f32 0.0, %v4351
        %v4416 = vsub.f32 0.0, %v4352
        %v4417 = vsub.f32 0.0, %v4353
        %v4418 = vsub.f32 0.0, %v4354
        %v4419 = vsub.f32 0.0, %v4355
        %v4420 = vsub.f32 0.0, %v4356
        %v4421 = vsub.f32 0.0, %v4357
        %v4422 = vsub.f32 0.0, %v4358
        %v4423 = vsub.f32 0.0, %v4359
        %v4424 = vsub.f32 0.0, %v4360
        %v4425 = vsub.f32 0.0, %v4361
        %v4426 = vsub.f32 0.0, %v4362
        %v4427 = vsub.f32 0.0, %v4363
        %v4428 = vsub.f32 0.0, %v4364
        %v4429 = vsub.f32 0.0, %v4365
        %v4430 = vsub.f32 0.0, %v4366
        %v4431 = vsub.f32 0.0, %v4367
        %v4432 = vsub.f32 0.0, %v4368
        %v4433 = vsub.f32 0.0, %v4369
        %v4434 = vsub.f32 0.0, %v4370
        %v4435 = vsub.f32 0.0, %v4371
        %v4436 = vsub.f32 0.0, %v4372
        %v4437 = vsub.f32 0.0, %v4373
        %v4438 = vsub.f32 0.0, %v4374
        %v4439 = vsub.f32 0.0, %v4375
        %v4440 = vsub.f32 0.0, %v4376
        %v4441 = vsub.f32 0.0, %v4377
        %v4442 = vsub.f32 0.0, %v4378
        %v4443 = vsub.f32 0.0, %v4379
        %v4444 = vsub.f32 0.0, %v4380
        %v4445 = vmul.f32 %v4381, 1.442695
        %v4446 = vpow.pop %v4445
        %v4447 = vmul.f32 %v4382, 1.442695
        %v4448 = vpow.pop %v4447
        %v4449 = vmul.f32 %v4383, 1.442695
        %v4450 = vpow.pop %v4449
        %v4451 = vmul.f32 %v4384, 1.442695
        %v4452 = vpow.pop %v4451
        %v4453 = vmul.f32 %v4385, 1.442695
        %v4454 = vpow.pop %v4453
        %v4455 = vmul.f32 %v4386, 1.442695
        %v4456 = vpow.pop %v4455
        %v4457 = vmul.f32 %v4387, 1.442695
        %v4458 = vpow.pop %v4457
        %v4459 = vmul.f32 %v4388, 1.442695
        %v4460 = vpow.pop %v4459
        %v4461 = vmul.f32 %v4389, 1.442695
        %v4462 = vpow.pop %v4461
        %v4463 = vmul.f32 %v4390, 1.442695
        %v4464 = vpow.pop %v4463
        %v4465 = vmul.f32 %v4391, 1.442695
        %v4466 = vpow.pop %v4465
        %v4467 = vmul.f32 %v4392, 1.442695
        %v4468 = vpow.pop %v4467
        %v4469 = vmul.f32 %v4393, 1.442695
        %v4470 = vpow.pop %v4469
        %v4471 = vmul.f32 %v4394, 1.442695
        %v4472 = vpow.pop %v4471
        %v4473 = vmul.f32 %v4395, 1.442695
        %v4474 = vpow.pop %v4473
        %v4475 = vmul.f32 %v4396, 1.442695
        %v4476 = vpow.pop %v4475
        %v4477 = vmul.f32 %v4397, 1.442695
        %v4478 = vpow.pop %v4477
        %v4479 = vmul.f32 %v4398, 1.442695
        %v4480 = vpow.pop %v4479
        %v4481 = vmul.f32 %v4399, 1.442695
        %v4482 = vpow.pop %v4481
        %v4483 = vmul.f32 %v4400, 1.442695
        %v4484 = vpow.pop %v4483
        %v4485 = vmul.f32 %v4401, 1.442695
        %v4486 = vpow.pop %v4485
        %v4487 = vmul.f32 %v4402, 1.442695
        %v4488 = vpow.pop %v4487
        %v4489 = vmul.f32 %v4403, 1.442695
        %v4490 = vpow.pop %v4489
        %v4491 = vmul.f32 %v4404, 1.442695
        %v4492 = vpow.pop %v4491
        %v4493 = vmul.f32 %v4405, 1.442695
        %v4494 = vpow.pop %v4493
        %v4495 = vmul.f32 %v4406, 1.442695
        %v4496 = vpow.pop %v4495
        %v4497 = vmul.f32 %v4407, 1.442695
        %v4498 = vpow.pop %v4497
        %v4499 = vmul.f32 %v4408, 1.442695
        %v4500 = vpow.pop %v4499
        %v4501 = vmul.f32 %v4409, 1.442695
        %v4502 = vpow.pop %v4501
        %v4503 = vmul.f32 %v4410, 1.442695
        %v4504 = vpow.pop %v4503
        %v4505 = vmul.f32 %v4411, 1.442695
        %v4506 = vpow.pop %v4505
        %v4507 = vmul.f32 %v4412, 1.442695
        %v4508 = vpow.pop %v4507
        %v4509 = vmul.f32 %v4413, 1.442695
        %v4510 = vpow.pop %v4509
        %v4511 = vmul.f32 %v4414, 1.442695
        %v4512 = vpow.pop %v4511
        %v4513 = vmul.f32 %v4415, 1.442695
        %v4514 = vpow.pop %v4513
        %v4515 = vmul.f32 %v4416, 1.442695
        %v4516 = vpow.pop %v4515
        %v4517 = vmul.f32 %v4417, 1.442695
        %v4518 = vpow.pop %v4517
        %v4519 = vmul.f32 %v4418, 1.442695
        %v4520 = vpow.pop %v4519
        %v4521 = vmul.f32 %v4419, 1.442695
        %v4522 = vpow.pop %v4521
        %v4523 = vmul.f32 %v4420, 1.442695
        %v4524 = vpow.pop %v4523
        %v4525 = vmul.f32 %v4421, 1.442695
        %v4526 = vpow.pop %v4525
        %v4527 = vmul.f32 %v4422, 1.442695
        %v4528 = vpow.pop %v4527
        %v4529 = vmul.f32 %v4423, 1.442695
        %v4530 = vpow.pop %v4529
        %v4531 = vmul.f32 %v4424, 1.442695
        %v4532 = vpow.pop %v4531
        %v4533 = vmul.f32 %v4425, 1.442695
        %v4534 = vpow.pop %v4533
        %v4535 = vmul.f32 %v4426, 1.442695
        %v4536 = vpow.pop %v4535
        %v4537 = vmul.f32 %v4427, 1.442695
        %v4538 = vpow.pop %v4537
        %v4539 = vmul.f32 %v4428, 1.442695
        %v4540 = vpow.pop %v4539
        %v4541 = vmul.f32 %v4429, 1.442695
        %v4542 = vpow.pop %v4541
        %v4543 = vmul.f32 %v4430, 1.442695
        %v4544 = vpow.pop %v4543
        %v4545 = vmul.f32 %v4431, 1.442695
        %v4546 = vpow.pop %v4545
        %v4547 = vmul.f32 %v4432, 1.442695
        %v4548 = vpow.pop %v4547
        %v4549 = vmul.f32 %v4433, 1.442695
        %v4550 = vpow.pop %v4549
        %v4551 = vmul.f32 %v4434, 1.442695
        %v4552 = vpow.pop %v4551
        %v4553 = vmul.f32 %v4435, 1.442695
        %v4554 = vpow.pop %v4553
        %v4555 = vmul.f32 %v4436, 1.442695
        %v4556 = vpow.pop %v4555
        %v4557 = vmul.f32 %v4437, 1.442695
        %v4558 = vpow.pop %v4557
        %v4559 = vmul.f32 %v4438, 1.442695
        %v4560 = vpow.pop %v4559
        %v4561 = vmul.f32 %v4439, 1.442695
        %v4562 = vpow.pop %v4561
        %v4563 = vmul.f32 %v4440, 1.442695
        %v4564 = vpow.pop %v4563
        %v4565 = vmul.f32 %v4441, 1.442695
        %v4566 = vpow.pop %v4565
        %v4567 = vmul.f32 %v4442, 1.442695
        %v4568 = vpow.pop %v4567
        %v4569 = vmul.f32 %v4443, 1.442695
        %v4570 = vpow.pop %v4569
        %v4571 = vmul.f32 %v4444, 1.442695
        %v4572 = vpow.pop %v4571
        %v4573 = vadd.f32 %v4446, 1.0
        %v4574 = vadd.f32 %v4448, 1.0
        %v4575 = vadd.f32 %v4450, 1.0
        %v4576 = vadd.f32 %v4452, 1.0
        %v4577 = vadd.f32 %v4454, 1.0
        %v4578 = vadd.f32 %v4456, 1.0
        %v4579 = vadd.f32 %v4458, 1.0
        %v4580 = vadd.f32 %v4460, 1.0
        %v4581 = vadd.f32 %v4462, 1.0
        %v4582 = vadd.f32 %v4464, 1.0
        %v4583 = vadd.f32 %v4466, 1.0
        %v4584 = vadd.f32 %v4468, 1.0
        %v4585 = vadd.f32 %v4470, 1.0
        %v4586 = vadd.f32 %v4472, 1.0
        %v4587 = vadd.f32 %v4474, 1.0
        %v4588 = vadd.f32 %v4476, 1.0
        %v4589 = vadd.f32 %v4478, 1.0
        %v4590 = vadd.f32 %v4480, 1.0
        %v4591 = vadd.f32 %v4482, 1.0
        %v4592 = vadd.f32 %v4484, 1.0
        %v4593 = vadd.f32 %v4486, 1.0
        %v4594 = vadd.f32 %v4488, 1.0
        %v4595 = vadd.f32 %v4490, 1.0
        %v4596 = vadd.f32 %v4492, 1.0
        %v4597 = vadd.f32 %v4494, 1.0
        %v4598 = vadd.f32 %v4496, 1.0
        %v4599 = vadd.f32 %v4498, 1.0
        %v4600 = vadd.f32 %v4500, 1.0
        %v4601 = vadd.f32 %v4502, 1.0
        %v4602 = vadd.f32 %v4504, 1.0
        %v4603 = vadd.f32 %v4506, 1.0
        %v4604 = vadd.f32 %v4508, 1.0
        %v4605 = vadd.f32 %v4510, 1.0
        %v4606 = vadd.f32 %v4512, 1.0
        %v4607 = vadd.f32 %v4514, 1.0
        %v4608 = vadd.f32 %v4516, 1.0
        %v4609 = vadd.f32 %v4518, 1.0
        %v4610 = vadd.f32 %v4520, 1.0
        %v4611 = vadd.f32 %v4522, 1.0
        %v4612 = vadd.f32 %v4524, 1.0
        %v4613 = vadd.f32 %v4526, 1.0
        %v4614 = vadd.f32 %v4528, 1.0
        %v4615 = vadd.f32 %v4530, 1.0
        %v4616 = vadd.f32 %v4532, 1.0
        %v4617 = vadd.f32 %v4534, 1.0
        %v4618 = vadd.f32 %v4536, 1.0
        %v4619 = vadd.f32 %v4538, 1.0
        %v4620 = vadd.f32 %v4540, 1.0
        %v4621 = vadd.f32 %v4542, 1.0
        %v4622 = vadd.f32 %v4544, 1.0
        %v4623 = vadd.f32 %v4546, 1.0
        %v4624 = vadd.f32 %v4548, 1.0
        %v4625 = vadd.f32 %v4550, 1.0
        %v4626 = vadd.f32 %v4552, 1.0
        %v4627 = vadd.f32 %v4554, 1.0
        %v4628 = vadd.f32 %v4556, 1.0
        %v4629 = vadd.f32 %v4558, 1.0
        %v4630 = vadd.f32 %v4560, 1.0
        %v4631 = vadd.f32 %v4562, 1.0
        %v4632 = vadd.f32 %v4564, 1.0
        %v4633 = vadd.f32 %v4566, 1.0
        %v4634 = vadd.f32 %v4568, 1.0
        %v4635 = vadd.f32 %v4570, 1.0
        %v4636 = vadd.f32 %v4572, 1.0
        %v4637 = vrcp.pop %v4573
        %v4638 = vmul.f32 %v4573, %v4637
        %v4639 = vsub.f32 1.0, %v4638
        %v4640 = vmul.f32 %v4637, %v4639
        %v4641 = vadd.f32 %v4637, %v4640
        %vm4642 = vweird.f32 %v4573
        %vm4643 = vweird.f32 %v4637
        %vm4644 = vmor %vm4642, %vm4643
        %v4645 = vsel %vm4644, %v4637, %v4641
        %v4646 = vand.u32 2147483647, %v4573
        %vm4647 = vcmp.eq.f32.partialorder %v4646, 8.507059e+37
        %v4648 = vand.u32 %v4573, 2147483648
        %v4649 = vor.u32 1.1754944e-38, %v4648
        %v4650 = vsel %vm4647, %v4649, %v4645
        %v4651 = vmul.f32 1.0, %v4650
        %v4652 = vrcp.pop %v4574
        %v4653 = vmul.f32 %v4574, %v4652
        %v4654 = vsub.f32 1.0, %v4653
        %v4655 = vmul.f32 %v4652, %v4654
        %v4656 = vadd.f32 %v4652, %v4655
        %vm4657 = vweird.f32 %v4574
        %vm4658 = vweird.f32 %v4652
        %vm4659 = vmor %vm4657, %vm4658
        %v4660 = vsel %vm4659, %v4652, %v4656
        %v4661 = vand.u32 2147483647, %v4574
        %vm4662 = vcmp.eq.f32.partialorder %v4661, 8.507059e+37
        %v4663 = vand.u32 %v4574, 2147483648
        %v4664 = vor.u32 1.1754944e-38, %v4663
        %v4665 = vsel %vm4662, %v4664, %v4660
        %v4666 = vmul.f32 1.0, %v4665
        %v4667 = vrcp.pop %v4575
        %v4668 = vmul.f32 %v4575, %v4667
        %v4669 = vsub.f32 1.0, %v4668
        %v4670 = vmul.f32 %v4667, %v4669
        %v4671 = vadd.f32 %v4667, %v4670
        %vm4672 = vweird.f32 %v4575
        %vm4673 = vweird.f32 %v4667
        %vm4674 = vmor %vm4672, %vm4673
        %v4675 = vsel %vm4674, %v4667, %v4671
        %v4676 = vand.u32 2147483647, %v4575
        %vm4677 = vcmp.eq.f32.partialorder %v4676, 8.507059e+37
        %v4678 = vand.u32 %v4575, 2147483648
        %v4679 = vor.u32 1.1754944e-38, %v4678
        %v4680 = vsel %vm4677, %v4679, %v4675
        %v4681 = vmul.f32 1.0, %v4680
        %v4682 = vrcp.pop %v4576
        %v4683 = vmul.f32 %v4576, %v4682
        %v4684 = vsub.f32 1.0, %v4683
        %v4685 = vmul.f32 %v4682, %v4684
        %v4686 = vadd.f32 %v4682, %v4685
        %vm4687 = vweird.f32 %v4576
        %vm4688 = vweird.f32 %v4682
        %vm4689 = vmor %vm4687, %vm4688
        %v4690 = vsel %vm4689, %v4682, %v4686
        %v4691 = vand.u32 2147483647, %v4576
        %vm4692 = vcmp.eq.f32.partialorder %v4691, 8.507059e+37
        %v4693 = vand.u32 %v4576, 2147483648
        %v4694 = vor.u32 1.1754944e-38, %v4693
        %v4695 = vsel %vm4692, %v4694, %v4690
        %v4696 = vmul.f32 1.0, %v4695
        %v4697 = vrcp.pop %v4577
        %v4698 = vmul.f32 %v4577, %v4697
        %v4699 = vsub.f32 1.0, %v4698
        %v4700 = vmul.f32 %v4697, %v4699
        %v4701 = vadd.f32 %v4697, %v4700
        %vm4702 = vweird.f32 %v4577
        %vm4703 = vweird.f32 %v4697
        %vm4704 = vmor %vm4702, %vm4703
        %v4705 = vsel %vm4704, %v4697, %v4701
        %v4706 = vand.u32 2147483647, %v4577
        %vm4707 = vcmp.eq.f32.partialorder %v4706, 8.507059e+37
        %v4708 = vand.u32 %v4577, 2147483648
        %v4709 = vor.u32 1.1754944e-38, %v4708
        %v4710 = vsel %vm4707, %v4709, %v4705
        %v4711 = vmul.f32 1.0, %v4710
        %v4712 = vrcp.pop %v4578
        %v4713 = vmul.f32 %v4578, %v4712
        %v4714 = vsub.f32 1.0, %v4713
        %v4715 = vmul.f32 %v4712, %v4714
        %v4716 = vadd.f32 %v4712, %v4715
        %vm4717 = vweird.f32 %v4578
        %vm4718 = vweird.f32 %v4712
        %vm4719 = vmor %vm4717, %vm4718
        %v4720 = vsel %vm4719, %v4712, %v4716
        %v4721 = vand.u32 2147483647, %v4578
        %vm4722 = vcmp.eq.f32.partialorder %v4721, 8.507059e+37
        %v4723 = vand.u32 %v4578, 2147483648
        %v4724 = vor.u32 1.1754944e-38, %v4723
        %v4725 = vsel %vm4722, %v4724, %v4720
        %v4726 = vmul.f32 1.0, %v4725
        %v4727 = vrcp.pop %v4579
        %v4728 = vmul.f32 %v4579, %v4727
        %v4729 = vsub.f32 1.0, %v4728
        %v4730 = vmul.f32 %v4727, %v4729
        %v4731 = vadd.f32 %v4727, %v4730
        %vm4732 = vweird.f32 %v4579
        %vm4733 = vweird.f32 %v4727
        %vm4734 = vmor %vm4732, %vm4733
        %v4735 = vsel %vm4734, %v4727, %v4731
        %v4736 = vand.u32 2147483647, %v4579
        %vm4737 = vcmp.eq.f32.partialorder %v4736, 8.507059e+37
        %v4738 = vand.u32 %v4579, 2147483648
        %v4739 = vor.u32 1.1754944e-38, %v4738
        %v4740 = vsel %vm4737, %v4739, %v4735
        %v4741 = vmul.f32 1.0, %v4740
        %v4742 = vrcp.pop %v4580
        %v4743 = vmul.f32 %v4580, %v4742
        %v4744 = vsub.f32 1.0, %v4743
        %v4745 = vmul.f32 %v4742, %v4744
        %v4746 = vadd.f32 %v4742, %v4745
        %vm4747 = vweird.f32 %v4580
        %vm4748 = vweird.f32 %v4742
        %vm4749 = vmor %vm4747, %vm4748
        %v4750 = vsel %vm4749, %v4742, %v4746
        %v4751 = vand.u32 2147483647, %v4580
        %vm4752 = vcmp.eq.f32.partialorder %v4751, 8.507059e+37
        %v4753 = vand.u32 %v4580, 2147483648
        %v4754 = vor.u32 1.1754944e-38, %v4753
        %v4755 = vsel %vm4752, %v4754, %v4750
        %v4756 = vmul.f32 1.0, %v4755
        %v4757 = vrcp.pop %v4581
        %v4758 = vmul.f32 %v4581, %v4757
        %v4759 = vsub.f32 1.0, %v4758
        %v4760 = vmul.f32 %v4757, %v4759
        %v4761 = vadd.f32 %v4757, %v4760
        %vm4762 = vweird.f32 %v4581
        %vm4763 = vweird.f32 %v4757
        %vm4764 = vmor %vm4762, %vm4763
        %v4765 = vsel %vm4764, %v4757, %v4761
        %v4766 = vand.u32 2147483647, %v4581
        %vm4767 = vcmp.eq.f32.partialorder %v4766, 8.507059e+37
        %v4768 = vand.u32 %v4581, 2147483648
        %v4769 = vor.u32 1.1754944e-38, %v4768
        %v4770 = vsel %vm4767, %v4769, %v4765
        %v4771 = vmul.f32 1.0, %v4770
        %v4772 = vrcp.pop %v4582
        %v4773 = vmul.f32 %v4582, %v4772
        %v4774 = vsub.f32 1.0, %v4773
        %v4775 = vmul.f32 %v4772, %v4774
        %v4776 = vadd.f32 %v4772, %v4775
        %vm4777 = vweird.f32 %v4582
        %vm4778 = vweird.f32 %v4772
        %vm4779 = vmor %vm4777, %vm4778
        %v4780 = vsel %vm4779, %v4772, %v4776
        %v4781 = vand.u32 2147483647, %v4582
        %vm4782 = vcmp.eq.f32.partialorder %v4781, 8.507059e+37
        %v4783 = vand.u32 %v4582, 2147483648
        %v4784 = vor.u32 1.1754944e-38, %v4783
        %v4785 = vsel %vm4782, %v4784, %v4780
        %v4786 = vmul.f32 1.0, %v4785
        %v4787 = vrcp.pop %v4583
        %v4788 = vmul.f32 %v4583, %v4787
        %v4789 = vsub.f32 1.0, %v4788
        %v4790 = vmul.f32 %v4787, %v4789
        %v4791 = vadd.f32 %v4787, %v4790
        %vm4792 = vweird.f32 %v4583
        %vm4793 = vweird.f32 %v4787
        %vm4794 = vmor %vm4792, %vm4793
        %v4795 = vsel %vm4794, %v4787, %v4791
        %v4796 = vand.u32 2147483647, %v4583
        %vm4797 = vcmp.eq.f32.partialorder %v4796, 8.507059e+37
        %v4798 = vand.u32 %v4583, 2147483648
        %v4799 = vor.u32 1.1754944e-38, %v4798
        %v4800 = vsel %vm4797, %v4799, %v4795
        %v4801 = vmul.f32 1.0, %v4800
        %v4802 = vrcp.pop %v4584
        %v4803 = vmul.f32 %v4584, %v4802
        %v4804 = vsub.f32 1.0, %v4803
        %v4805 = vmul.f32 %v4802, %v4804
        %v4806 = vadd.f32 %v4802, %v4805
        %vm4807 = vweird.f32 %v4584
        %vm4808 = vweird.f32 %v4802
        %vm4809 = vmor %vm4807, %vm4808
        %v4810 = vsel %vm4809, %v4802, %v4806
        %v4811 = vand.u32 2147483647, %v4584
        %vm4812 = vcmp.eq.f32.partialorder %v4811, 8.507059e+37
        %v4813 = vand.u32 %v4584, 2147483648
        %v4814 = vor.u32 1.1754944e-38, %v4813
        %v4815 = vsel %vm4812, %v4814, %v4810
        %v4816 = vmul.f32 1.0, %v4815
        %v4817 = vrcp.pop %v4585
        %v4818 = vmul.f32 %v4585, %v4817
        %v4819 = vsub.f32 1.0, %v4818
        %v4820 = vmul.f32 %v4817, %v4819
        %v4821 = vadd.f32 %v4817, %v4820
        %vm4822 = vweird.f32 %v4585
        %vm4823 = vweird.f32 %v4817
        %vm4824 = vmor %vm4822, %vm4823
        %v4825 = vsel %vm4824, %v4817, %v4821
        %v4826 = vand.u32 2147483647, %v4585
        %vm4827 = vcmp.eq.f32.partialorder %v4826, 8.507059e+37
        %v4828 = vand.u32 %v4585, 2147483648
        %v4829 = vor.u32 1.1754944e-38, %v4828
        %v4830 = vsel %vm4827, %v4829, %v4825
        %v4831 = vmul.f32 1.0, %v4830
        %v4832 = vrcp.pop %v4586
        %v4833 = vmul.f32 %v4586, %v4832
        %v4834 = vsub.f32 1.0, %v4833
        %v4835 = vmul.f32 %v4832, %v4834
        %v4836 = vadd.f32 %v4832, %v4835
        %vm4837 = vweird.f32 %v4586
        %vm4838 = vweird.f32 %v4832
        %vm4839 = vmor %vm4837, %vm4838
        %v4840 = vsel %vm4839, %v4832, %v4836
        %v4841 = vand.u32 2147483647, %v4586
        %vm4842 = vcmp.eq.f32.partialorder %v4841, 8.507059e+37
        %v4843 = vand.u32 %v4586, 2147483648
        %v4844 = vor.u32 1.1754944e-38, %v4843
        %v4845 = vsel %vm4842, %v4844, %v4840
        %v4846 = vmul.f32 1.0, %v4845
        %v4847 = vrcp.pop %v4587
        %v4848 = vmul.f32 %v4587, %v4847
        %v4849 = vsub.f32 1.0, %v4848
        %v4850 = vmul.f32 %v4847, %v4849
        %v4851 = vadd.f32 %v4847, %v4850
        %vm4852 = vweird.f32 %v4587
        %vm4853 = vweird.f32 %v4847
        %vm4854 = vmor %vm4852, %vm4853
        %v4855 = vsel %vm4854, %v4847, %v4851
        %v4856 = vand.u32 2147483647, %v4587
        %vm4857 = vcmp.eq.f32.partialorder %v4856, 8.507059e+37
        %v4858 = vand.u32 %v4587, 2147483648
        %v4859 = vor.u32 1.1754944e-38, %v4858
        %v4860 = vsel %vm4857, %v4859, %v4855
        %v4861 = vmul.f32 1.0, %v4860
        %v4862 = vrcp.pop %v4588
        %v4863 = vmul.f32 %v4588, %v4862
        %v4864 = vsub.f32 1.0, %v4863
        %v4865 = vmul.f32 %v4862, %v4864
        %v4866 = vadd.f32 %v4862, %v4865
        %vm4867 = vweird.f32 %v4588
        %vm4868 = vweird.f32 %v4862
        %vm4869 = vmor %vm4867, %vm4868
        %v4870 = vsel %vm4869, %v4862, %v4866
        %v4871 = vand.u32 2147483647, %v4588
        %vm4872 = vcmp.eq.f32.partialorder %v4871, 8.507059e+37
        %v4873 = vand.u32 %v4588, 2147483648
        %v4874 = vor.u32 1.1754944e-38, %v4873
        %v4875 = vsel %vm4872, %v4874, %v4870
        %v4876 = vmul.f32 1.0, %v4875
        %v4877 = vrcp.pop %v4589
        %v4878 = vmul.f32 %v4589, %v4877
        %v4879 = vsub.f32 1.0, %v4878
        %v4880 = vmul.f32 %v4877, %v4879
        %v4881 = vadd.f32 %v4877, %v4880
        %vm4882 = vweird.f32 %v4589
        %vm4883 = vweird.f32 %v4877
        %vm4884 = vmor %vm4882, %vm4883
        %v4885 = vsel %vm4884, %v4877, %v4881
        %v4886 = vand.u32 2147483647, %v4589
        %vm4887 = vcmp.eq.f32.partialorder %v4886, 8.507059e+37
        %v4888 = vand.u32 %v4589, 2147483648
        %v4889 = vor.u32 1.1754944e-38, %v4888
        %v4890 = vsel %vm4887, %v4889, %v4885
        %v4891 = vmul.f32 1.0, %v4890
        %v4892 = vrcp.pop %v4590
        %v4893 = vmul.f32 %v4590, %v4892
        %v4894 = vsub.f32 1.0, %v4893
        %v4895 = vmul.f32 %v4892, %v4894
        %v4896 = vadd.f32 %v4892, %v4895
        %vm4897 = vweird.f32 %v4590
        %vm4898 = vweird.f32 %v4892
        %vm4899 = vmor %vm4897, %vm4898
        %v4900 = vsel %vm4899, %v4892, %v4896
        %v4901 = vand.u32 2147483647, %v4590
        %vm4902 = vcmp.eq.f32.partialorder %v4901, 8.507059e+37
        %v4903 = vand.u32 %v4590, 2147483648
        %v4904 = vor.u32 1.1754944e-38, %v4903
        %v4905 = vsel %vm4902, %v4904, %v4900
        %v4906 = vmul.f32 1.0, %v4905
        %v4907 = vrcp.pop %v4591
        %v4908 = vmul.f32 %v4591, %v4907
        %v4909 = vsub.f32 1.0, %v4908
        %v4910 = vmul.f32 %v4907, %v4909
        %v4911 = vadd.f32 %v4907, %v4910
        %vm4912 = vweird.f32 %v4591
        %vm4913 = vweird.f32 %v4907
        %vm4914 = vmor %vm4912, %vm4913
        %v4915 = vsel %vm4914, %v4907, %v4911
        %v4916 = vand.u32 2147483647, %v4591
        %vm4917 = vcmp.eq.f32.partialorder %v4916, 8.507059e+37
        %v4918 = vand.u32 %v4591, 2147483648
        %v4919 = vor.u32 1.1754944e-38, %v4918
        %v4920 = vsel %vm4917, %v4919, %v4915
        %v4921 = vmul.f32 1.0, %v4920
        %v4922 = vrcp.pop %v4592
        %v4923 = vmul.f32 %v4592, %v4922
        %v4924 = vsub.f32 1.0, %v4923
        %v4925 = vmul.f32 %v4922, %v4924
        %v4926 = vadd.f32 %v4922, %v4925
        %vm4927 = vweird.f32 %v4592
        %vm4928 = vweird.f32 %v4922
        %vm4929 = vmor %vm4927, %vm4928
        %v4930 = vsel %vm4929, %v4922, %v4926
        %v4931 = vand.u32 2147483647, %v4592
        %vm4932 = vcmp.eq.f32.partialorder %v4931, 8.507059e+37
        %v4933 = vand.u32 %v4592, 2147483648
        %v4934 = vor.u32 1.1754944e-38, %v4933
        %v4935 = vsel %vm4932, %v4934, %v4930
        %v4936 = vmul.f32 1.0, %v4935
        %v4937 = vrcp.pop %v4593
        %v4938 = vmul.f32 %v4593, %v4937
        %v4939 = vsub.f32 1.0, %v4938
        %v4940 = vmul.f32 %v4937, %v4939
        %v4941 = vadd.f32 %v4937, %v4940
        %vm4942 = vweird.f32 %v4593
        %vm4943 = vweird.f32 %v4937
        %vm4944 = vmor %vm4942, %vm4943
        %v4945 = vsel %vm4944, %v4937, %v4941
        %v4946 = vand.u32 2147483647, %v4593
        %vm4947 = vcmp.eq.f32.partialorder %v4946, 8.507059e+37
        %v4948 = vand.u32 %v4593, 2147483648
        %v4949 = vor.u32 1.1754944e-38, %v4948
        %v4950 = vsel %vm4947, %v4949, %v4945
        %v4951 = vmul.f32 1.0, %v4950
        %v4952 = vrcp.pop %v4594
        %v4953 = vmul.f32 %v4594, %v4952
        %v4954 = vsub.f32 1.0, %v4953
        %v4955 = vmul.f32 %v4952, %v4954
        %v4956 = vadd.f32 %v4952, %v4955
        %vm4957 = vweird.f32 %v4594
        %vm4958 = vweird.f32 %v4952
        %vm4959 = vmor %vm4957, %vm4958
        %v4960 = vsel %vm4959, %v4952, %v4956
        %v4961 = vand.u32 2147483647, %v4594
        %vm4962 = vcmp.eq.f32.partialorder %v4961, 8.507059e+37
        %v4963 = vand.u32 %v4594, 2147483648
        %v4964 = vor.u32 1.1754944e-38, %v4963
        %v4965 = vsel %vm4962, %v4964, %v4960
        %v4966 = vmul.f32 1.0, %v4965
        %v4967 = vrcp.pop %v4595
        %v4968 = vmul.f32 %v4595, %v4967
        %v4969 = vsub.f32 1.0, %v4968
        %v4970 = vmul.f32 %v4967, %v4969
        %v4971 = vadd.f32 %v4967, %v4970
        %vm4972 = vweird.f32 %v4595
        %vm4973 = vweird.f32 %v4967
        %vm4974 = vmor %vm4972, %vm4973
        %v4975 = vsel %vm4974, %v4967, %v4971
        %v4976 = vand.u32 2147483647, %v4595
        %vm4977 = vcmp.eq.f32.partialorder %v4976, 8.507059e+37
        %v4978 = vand.u32 %v4595, 2147483648
        %v4979 = vor.u32 1.1754944e-38, %v4978
        %v4980 = vsel %vm4977, %v4979, %v4975
        %v4981 = vmul.f32 1.0, %v4980
        %v4982 = vrcp.pop %v4596
        %v4983 = vmul.f32 %v4596, %v4982
        %v4984 = vsub.f32 1.0, %v4983
        %v4985 = vmul.f32 %v4982, %v4984
        %v4986 = vadd.f32 %v4982, %v4985
        %vm4987 = vweird.f32 %v4596
        %vm4988 = vweird.f32 %v4982
        %vm4989 = vmor %vm4987, %vm4988
        %v4990 = vsel %vm4989, %v4982, %v4986
        %v4991 = vand.u32 2147483647, %v4596
        %vm4992 = vcmp.eq.f32.partialorder %v4991, 8.507059e+37
        %v4993 = vand.u32 %v4596, 2147483648
        %v4994 = vor.u32 1.1754944e-38, %v4993
        %v4995 = vsel %vm4992, %v4994, %v4990
        %v4996 = vmul.f32 1.0, %v4995
        %v4997 = vrcp.pop %v4597
        %v4998 = vmul.f32 %v4597, %v4997
        %v4999 = vsub.f32 1.0, %v4998
        %v5000 = vmul.f32 %v4997, %v4999
        %v5001 = vadd.f32 %v4997, %v5000
        %vm5002 = vweird.f32 %v4597
        %vm5003 = vweird.f32 %v4997
        %vm5004 = vmor %vm5002, %vm5003
        %v5005 = vsel %vm5004, %v4997, %v5001
        %v5006 = vand.u32 2147483647, %v4597
        %vm5007 = vcmp.eq.f32.partialorder %v5006, 8.507059e+37
        %v5008 = vand.u32 %v4597, 2147483648
        %v5009 = vor.u32 1.1754944e-38, %v5008
        %v5010 = vsel %vm5007, %v5009, %v5005
        %v5011 = vmul.f32 1.0, %v5010
        %v5012 = vrcp.pop %v4598
        %v5013 = vmul.f32 %v4598, %v5012
        %v5014 = vsub.f32 1.0, %v5013
        %v5015 = vmul.f32 %v5012, %v5014
        %v5016 = vadd.f32 %v5012, %v5015
        %vm5017 = vweird.f32 %v4598
        %vm5018 = vweird.f32 %v5012
        %vm5019 = vmor %vm5017, %vm5018
        %v5020 = vsel %vm5019, %v5012, %v5016
        %v5021 = vand.u32 2147483647, %v4598
        %vm5022 = vcmp.eq.f32.partialorder %v5021, 8.507059e+37
        %v5023 = vand.u32 %v4598, 2147483648
        %v5024 = vor.u32 1.1754944e-38, %v5023
        %v5025 = vsel %vm5022, %v5024, %v5020
        %v5026 = vmul.f32 1.0, %v5025
        %v5027 = vrcp.pop %v4599
        %v5028 = vmul.f32 %v4599, %v5027
        %v5029 = vsub.f32 1.0, %v5028
        %v5030 = vmul.f32 %v5027, %v5029
        %v5031 = vadd.f32 %v5027, %v5030
        %vm5032 = vweird.f32 %v4599
        %vm5033 = vweird.f32 %v5027
        %vm5034 = vmor %vm5032, %vm5033
        %v5035 = vsel %vm5034, %v5027, %v5031
        %v5036 = vand.u32 2147483647, %v4599
        %vm5037 = vcmp.eq.f32.partialorder %v5036, 8.507059e+37
        %v5038 = vand.u32 %v4599, 2147483648
        %v5039 = vor.u32 1.1754944e-38, %v5038
        %v5040 = vsel %vm5037, %v5039, %v5035
        %v5041 = vmul.f32 1.0, %v5040
        %v5042 = vrcp.pop %v4600
        %v5043 = vmul.f32 %v4600, %v5042
        %v5044 = vsub.f32 1.0, %v5043
        %v5045 = vmul.f32 %v5042, %v5044
        %v5046 = vadd.f32 %v5042, %v5045
        %vm5047 = vweird.f32 %v4600
        %vm5048 = vweird.f32 %v5042
        %vm5049 = vmor %vm5047, %vm5048
        %v5050 = vsel %vm5049, %v5042, %v5046
        %v5051 = vand.u32 2147483647, %v4600
        %vm5052 = vcmp.eq.f32.partialorder %v5051, 8.507059e+37
        %v5053 = vand.u32 %v4600, 2147483648
        %v5054 = vor.u32 1.1754944e-38, %v5053
        %v5055 = vsel %vm5052, %v5054, %v5050
        %v5056 = vmul.f32 1.0, %v5055
        %v5057 = vrcp.pop %v4601
        %v5058 = vmul.f32 %v4601, %v5057
        %v5059 = vsub.f32 1.0, %v5058
        %v5060 = vmul.f32 %v5057, %v5059
        %v5061 = vadd.f32 %v5057, %v5060
        %vm5062 = vweird.f32 %v4601
        %vm5063 = vweird.f32 %v5057
        %vm5064 = vmor %vm5062, %vm5063
        %v5065 = vsel %vm5064, %v5057, %v5061
        %v5066 = vand.u32 2147483647, %v4601
        %vm5067 = vcmp.eq.f32.partialorder %v5066, 8.507059e+37
        %v5068 = vand.u32 %v4601, 2147483648
        %v5069 = vor.u32 1.1754944e-38, %v5068
        %v5070 = vsel %vm5067, %v5069, %v5065
        %v5071 = vmul.f32 1.0, %v5070
        %v5072 = vrcp.pop %v4602
        %v5073 = vmul.f32 %v4602, %v5072
        %v5074 = vsub.f32 1.0, %v5073
        %v5075 = vmul.f32 %v5072, %v5074
        %v5076 = vadd.f32 %v5072, %v5075
        %vm5077 = vweird.f32 %v4602
        %vm5078 = vweird.f32 %v5072
        %vm5079 = vmor %vm5077, %vm5078
        %v5080 = vsel %vm5079, %v5072, %v5076
        %v5081 = vand.u32 2147483647, %v4602
        %vm5082 = vcmp.eq.f32.partialorder %v5081, 8.507059e+37
        %v5083 = vand.u32 %v4602, 2147483648
        %v5084 = vor.u32 1.1754944e-38, %v5083
        %v5085 = vsel %vm5082, %v5084, %v5080
        %v5086 = vmul.f32 1.0, %v5085
        %v5087 = vrcp.pop %v4603
        %v5088 = vmul.f32 %v4603, %v5087
        %v5089 = vsub.f32 1.0, %v5088
        %v5090 = vmul.f32 %v5087, %v5089
        %v5091 = vadd.f32 %v5087, %v5090
        %vm5092 = vweird.f32 %v4603
        %vm5093 = vweird.f32 %v5087
        %vm5094 = vmor %vm5092, %vm5093
        %v5095 = vsel %vm5094, %v5087, %v5091
        %v5096 = vand.u32 2147483647, %v4603
        %vm5097 = vcmp.eq.f32.partialorder %v5096, 8.507059e+37
        %v5098 = vand.u32 %v4603, 2147483648
        %v5099 = vor.u32 1.1754944e-38, %v5098
        %v5100 = vsel %vm5097, %v5099, %v5095
        %v5101 = vmul.f32 1.0, %v5100
        %v5102 = vrcp.pop %v4604
        %v5103 = vmul.f32 %v4604, %v5102
        %v5104 = vsub.f32 1.0, %v5103
        %v5105 = vmul.f32 %v5102, %v5104
        %v5106 = vadd.f32 %v5102, %v5105
        %vm5107 = vweird.f32 %v4604
        %vm5108 = vweird.f32 %v5102
        %vm5109 = vmor %vm5107, %vm5108
        %v5110 = vsel %vm5109, %v5102, %v5106
        %v5111 = vand.u32 2147483647, %v4604
        %vm5112 = vcmp.eq.f32.partialorder %v5111, 8.507059e+37
        %v5113 = vand.u32 %v4604, 2147483648
        %v5114 = vor.u32 1.1754944e-38, %v5113
        %v5115 = vsel %vm5112, %v5114, %v5110
        %v5116 = vmul.f32 1.0, %v5115
        %v5117 = vrcp.pop %v4605
        %v5118 = vmul.f32 %v4605, %v5117
        %v5119 = vsub.f32 1.0, %v5118
        %v5120 = vmul.f32 %v5117, %v5119
        %v5121 = vadd.f32 %v5117, %v5120
        %vm5122 = vweird.f32 %v4605
        %vm5123 = vweird.f32 %v5117
        %vm5124 = vmor %vm5122, %vm5123
        %v5125 = vsel %vm5124, %v5117, %v5121
        %v5126 = vand.u32 2147483647, %v4605
        %vm5127 = vcmp.eq.f32.partialorder %v5126, 8.507059e+37
        %v5128 = vand.u32 %v4605, 2147483648
        %v5129 = vor.u32 1.1754944e-38, %v5128
        %v5130 = vsel %vm5127, %v5129, %v5125
        %v5131 = vmul.f32 1.0, %v5130
        %v5132 = vrcp.pop %v4606
        %v5133 = vmul.f32 %v4606, %v5132
        %v5134 = vsub.f32 1.0, %v5133
        %v5135 = vmul.f32 %v5132, %v5134
        %v5136 = vadd.f32 %v5132, %v5135
        %vm5137 = vweird.f32 %v4606
        %vm5138 = vweird.f32 %v5132
        %vm5139 = vmor %vm5137, %vm5138
        %v5140 = vsel %vm5139, %v5132, %v5136
        %v5141 = vand.u32 2147483647, %v4606
        %vm5142 = vcmp.eq.f32.partialorder %v5141, 8.507059e+37
        %v5143 = vand.u32 %v4606, 2147483648
        %v5144 = vor.u32 1.1754944e-38, %v5143
        %v5145 = vsel %vm5142, %v5144, %v5140
        %v5146 = vmul.f32 1.0, %v5145
        %v5147 = vrcp.pop %v4607
        %v5148 = vmul.f32 %v4607, %v5147
        %v5149 = vsub.f32 1.0, %v5148
        %v5150 = vmul.f32 %v5147, %v5149
        %v5151 = vadd.f32 %v5147, %v5150
        %vm5152 = vweird.f32 %v4607
        %vm5153 = vweird.f32 %v5147
        %vm5154 = vmor %vm5152, %vm5153
        %v5155 = vsel %vm5154, %v5147, %v5151
        %v5156 = vand.u32 2147483647, %v4607
        %vm5157 = vcmp.eq.f32.partialorder %v5156, 8.507059e+37
        %v5158 = vand.u32 %v4607, 2147483648
        %v5159 = vor.u32 1.1754944e-38, %v5158
        %v5160 = vsel %vm5157, %v5159, %v5155
        %v5161 = vmul.f32 1.0, %v5160
        %v5162 = vrcp.pop %v4608
        %v5163 = vmul.f32 %v4608, %v5162
        %v5164 = vsub.f32 1.0, %v5163
        %v5165 = vmul.f32 %v5162, %v5164
        %v5166 = vadd.f32 %v5162, %v5165
        %vm5167 = vweird.f32 %v4608
        %vm5168 = vweird.f32 %v5162
        %vm5169 = vmor %vm5167, %vm5168
        %v5170 = vsel %vm5169, %v5162, %v5166
        %v5171 = vand.u32 2147483647, %v4608
        %vm5172 = vcmp.eq.f32.partialorder %v5171, 8.507059e+37
        %v5173 = vand.u32 %v4608, 2147483648
        %v5174 = vor.u32 1.1754944e-38, %v5173
        %v5175 = vsel %vm5172, %v5174, %v5170
        %v5176 = vmul.f32 1.0, %v5175
        %v5177 = vrcp.pop %v4609
        %v5178 = vmul.f32 %v4609, %v5177
        %v5179 = vsub.f32 1.0, %v5178
        %v5180 = vmul.f32 %v5177, %v5179
        %v5181 = vadd.f32 %v5177, %v5180
        %vm5182 = vweird.f32 %v4609
        %vm5183 = vweird.f32 %v5177
        %vm5184 = vmor %vm5182, %vm5183
        %v5185 = vsel %vm5184, %v5177, %v5181
        %v5186 = vand.u32 2147483647, %v4609
        %vm5187 = vcmp.eq.f32.partialorder %v5186, 8.507059e+37
        %v5188 = vand.u32 %v4609, 2147483648
        %v5189 = vor.u32 1.1754944e-38, %v5188
        %v5190 = vsel %vm5187, %v5189, %v5185
        %v5191 = vmul.f32 1.0, %v5190
        %v5192 = vrcp.pop %v4610
        %v5193 = vmul.f32 %v4610, %v5192
        %v5194 = vsub.f32 1.0, %v5193
        %v5195 = vmul.f32 %v5192, %v5194
        %v5196 = vadd.f32 %v5192, %v5195
        %vm5197 = vweird.f32 %v4610
        %vm5198 = vweird.f32 %v5192
        %vm5199 = vmor %vm5197, %vm5198
        %v5200 = vsel %vm5199, %v5192, %v5196
        %v5201 = vand.u32 2147483647, %v4610
        %vm5202 = vcmp.eq.f32.partialorder %v5201, 8.507059e+37
        %v5203 = vand.u32 %v4610, 2147483648
        %v5204 = vor.u32 1.1754944e-38, %v5203
        %v5205 = vsel %vm5202, %v5204, %v5200
        %v5206 = vmul.f32 1.0, %v5205
        %v5207 = vrcp.pop %v4611
        %v5208 = vmul.f32 %v4611, %v5207
        %v5209 = vsub.f32 1.0, %v5208
        %v5210 = vmul.f32 %v5207, %v5209
        %v5211 = vadd.f32 %v5207, %v5210
        %vm5212 = vweird.f32 %v4611
        %vm5213 = vweird.f32 %v5207
        %vm5214 = vmor %vm5212, %vm5213
        %v5215 = vsel %vm5214, %v5207, %v5211
        %v5216 = vand.u32 2147483647, %v4611
        %vm5217 = vcmp.eq.f32.partialorder %v5216, 8.507059e+37
        %v5218 = vand.u32 %v4611, 2147483648
        %v5219 = vor.u32 1.1754944e-38, %v5218
        %v5220 = vsel %vm5217, %v5219, %v5215
        %v5221 = vmul.f32 1.0, %v5220
        %v5222 = vrcp.pop %v4612
        %v5223 = vmul.f32 %v4612, %v5222
        %v5224 = vsub.f32 1.0, %v5223
        %v5225 = vmul.f32 %v5222, %v5224
        %v5226 = vadd.f32 %v5222, %v5225
        %vm5227 = vweird.f32 %v4612
        %vm5228 = vweird.f32 %v5222
        %vm5229 = vmor %vm5227, %vm5228
        %v5230 = vsel %vm5229, %v5222, %v5226
        %v5231 = vand.u32 2147483647, %v4612
        %vm5232 = vcmp.eq.f32.partialorder %v5231, 8.507059e+37
        %v5233 = vand.u32 %v4612, 2147483648
        %v5234 = vor.u32 1.1754944e-38, %v5233
        %v5235 = vsel %vm5232, %v5234, %v5230
        %v5236 = vmul.f32 1.0, %v5235
        %v5237 = vrcp.pop %v4613
        %v5238 = vmul.f32 %v4613, %v5237
        %v5239 = vsub.f32 1.0, %v5238
        %v5240 = vmul.f32 %v5237, %v5239
        %v5241 = vadd.f32 %v5237, %v5240
        %vm5242 = vweird.f32 %v4613
        %vm5243 = vweird.f32 %v5237
        %vm5244 = vmor %vm5242, %vm5243
        %v5245 = vsel %vm5244, %v5237, %v5241
        %v5246 = vand.u32 2147483647, %v4613
        %vm5247 = vcmp.eq.f32.partialorder %v5246, 8.507059e+37
        %v5248 = vand.u32 %v4613, 2147483648
        %v5249 = vor.u32 1.1754944e-38, %v5248
        %v5250 = vsel %vm5247, %v5249, %v5245
        %v5251 = vmul.f32 1.0, %v5250
        %v5252 = vrcp.pop %v4614
        %v5253 = vmul.f32 %v4614, %v5252
        %v5254 = vsub.f32 1.0, %v5253
        %v5255 = vmul.f32 %v5252, %v5254
        %v5256 = vadd.f32 %v5252, %v5255
        %vm5257 = vweird.f32 %v4614
        %vm5258 = vweird.f32 %v5252
        %vm5259 = vmor %vm5257, %vm5258
        %v5260 = vsel %vm5259, %v5252, %v5256
        %v5261 = vand.u32 2147483647, %v4614
        %vm5262 = vcmp.eq.f32.partialorder %v5261, 8.507059e+37
        %v5263 = vand.u32 %v4614, 2147483648
        %v5264 = vor.u32 1.1754944e-38, %v5263
        %v5265 = vsel %vm5262, %v5264, %v5260
        %v5266 = vmul.f32 1.0, %v5265
        %v5267 = vrcp.pop %v4615
        %v5268 = vmul.f32 %v4615, %v5267
        %v5269 = vsub.f32 1.0, %v5268
        %v5270 = vmul.f32 %v5267, %v5269
        %v5271 = vadd.f32 %v5267, %v5270
        %vm5272 = vweird.f32 %v4615
        %vm5273 = vweird.f32 %v5267
        %vm5274 = vmor %vm5272, %vm5273
        %v5275 = vsel %vm5274, %v5267, %v5271
        %v5276 = vand.u32 2147483647, %v4615
        %vm5277 = vcmp.eq.f32.partialorder %v5276, 8.507059e+37
        %v5278 = vand.u32 %v4615, 2147483648
        %v5279 = vor.u32 1.1754944e-38, %v5278
        %v5280 = vsel %vm5277, %v5279, %v5275
        %v5281 = vmul.f32 1.0, %v5280
        %v5282 = vrcp.pop %v4616
        %v5283 = vmul.f32 %v4616, %v5282
        %v5284 = vsub.f32 1.0, %v5283
        %v5285 = vmul.f32 %v5282, %v5284
        %v5286 = vadd.f32 %v5282, %v5285
        %vm5287 = vweird.f32 %v4616
        %vm5288 = vweird.f32 %v5282
        %vm5289 = vmor %vm5287, %vm5288
        %v5290 = vsel %vm5289, %v5282, %v5286
        %v5291 = vand.u32 2147483647, %v4616
        %vm5292 = vcmp.eq.f32.partialorder %v5291, 8.507059e+37
        %v5293 = vand.u32 %v4616, 2147483648
        %v5294 = vor.u32 1.1754944e-38, %v5293
        %v5295 = vsel %vm5292, %v5294, %v5290
        %v5296 = vmul.f32 1.0, %v5295
        %v5297 = vrcp.pop %v4617
        %v5298 = vmul.f32 %v4617, %v5297
        %v5299 = vsub.f32 1.0, %v5298
        %v5300 = vmul.f32 %v5297, %v5299
        %v5301 = vadd.f32 %v5297, %v5300
        %vm5302 = vweird.f32 %v4617
        %vm5303 = vweird.f32 %v5297
        %vm5304 = vmor %vm5302, %vm5303
        %v5305 = vsel %vm5304, %v5297, %v5301
        %v5306 = vand.u32 2147483647, %v4617
        %vm5307 = vcmp.eq.f32.partialorder %v5306, 8.507059e+37
        %v5308 = vand.u32 %v4617, 2147483648
        %v5309 = vor.u32 1.1754944e-38, %v5308
        %v5310 = vsel %vm5307, %v5309, %v5305
        %v5311 = vmul.f32 1.0, %v5310
        %v5312 = vrcp.pop %v4618
        %v5313 = vmul.f32 %v4618, %v5312
        %v5314 = vsub.f32 1.0, %v5313
        %v5315 = vmul.f32 %v5312, %v5314
        %v5316 = vadd.f32 %v5312, %v5315
        %vm5317 = vweird.f32 %v4618
        %vm5318 = vweird.f32 %v5312
        %vm5319 = vmor %vm5317, %vm5318
        %v5320 = vsel %vm5319, %v5312, %v5316
        %v5321 = vand.u32 2147483647, %v4618
        %vm5322 = vcmp.eq.f32.partialorder %v5321, 8.507059e+37
        %v5323 = vand.u32 %v4618, 2147483648
        %v5324 = vor.u32 1.1754944e-38, %v5323
        %v5325 = vsel %vm5322, %v5324, %v5320
        %v5326 = vmul.f32 1.0, %v5325
        %v5327 = vrcp.pop %v4619
        %v5328 = vmul.f32 %v4619, %v5327
        %v5329 = vsub.f32 1.0, %v5328
        %v5330 = vmul.f32 %v5327, %v5329
        %v5331 = vadd.f32 %v5327, %v5330
        %vm5332 = vweird.f32 %v4619
        %vm5333 = vweird.f32 %v5327
        %vm5334 = vmor %vm5332, %vm5333
        %v5335 = vsel %vm5334, %v5327, %v5331
        %v5336 = vand.u32 2147483647, %v4619
        %vm5337 = vcmp.eq.f32.partialorder %v5336, 8.507059e+37
        %v5338 = vand.u32 %v4619, 2147483648
        %v5339 = vor.u32 1.1754944e-38, %v5338
        %v5340 = vsel %vm5337, %v5339, %v5335
        %v5341 = vmul.f32 1.0, %v5340
        %v5342 = vrcp.pop %v4620
        %v5343 = vmul.f32 %v4620, %v5342
        %v5344 = vsub.f32 1.0, %v5343
        %v5345 = vmul.f32 %v5342, %v5344
        %v5346 = vadd.f32 %v5342, %v5345
        %vm5347 = vweird.f32 %v4620
        %vm5348 = vweird.f32 %v5342
        %vm5349 = vmor %vm5347, %vm5348
        %v5350 = vsel %vm5349, %v5342, %v5346
        %v5351 = vand.u32 2147483647, %v4620
        %vm5352 = vcmp.eq.f32.partialorder %v5351, 8.507059e+37
        %v5353 = vand.u32 %v4620, 2147483648
        %v5354 = vor.u32 1.1754944e-38, %v5353
        %v5355 = vsel %vm5352, %v5354, %v5350
        %v5356 = vmul.f32 1.0, %v5355
        %v5357 = vrcp.pop %v4621
        %v5358 = vmul.f32 %v4621, %v5357
        %v5359 = vsub.f32 1.0, %v5358
        %v5360 = vmul.f32 %v5357, %v5359
        %v5361 = vadd.f32 %v5357, %v5360
        %vm5362 = vweird.f32 %v4621
        %vm5363 = vweird.f32 %v5357
        %vm5364 = vmor %vm5362, %vm5363
        %v5365 = vsel %vm5364, %v5357, %v5361
        %v5366 = vand.u32 2147483647, %v4621
        %vm5367 = vcmp.eq.f32.partialorder %v5366, 8.507059e+37
        %v5368 = vand.u32 %v4621, 2147483648
        %v5369 = vor.u32 1.1754944e-38, %v5368
        %v5370 = vsel %vm5367, %v5369, %v5365
        %v5371 = vmul.f32 1.0, %v5370
        %v5372 = vrcp.pop %v4622
        %v5373 = vmul.f32 %v4622, %v5372
        %v5374 = vsub.f32 1.0, %v5373
        %v5375 = vmul.f32 %v5372, %v5374
        %v5376 = vadd.f32 %v5372, %v5375
        %vm5377 = vweird.f32 %v4622
        %vm5378 = vweird.f32 %v5372
        %vm5379 = vmor %vm5377, %vm5378
        %v5380 = vsel %vm5379, %v5372, %v5376
        %v5381 = vand.u32 2147483647, %v4622
        %vm5382 = vcmp.eq.f32.partialorder %v5381, 8.507059e+37
        %v5383 = vand.u32 %v4622, 2147483648
        %v5384 = vor.u32 1.1754944e-38, %v5383
        %v5385 = vsel %vm5382, %v5384, %v5380
        %v5386 = vmul.f32 1.0, %v5385
        %v5387 = vrcp.pop %v4623
        %v5388 = vmul.f32 %v4623, %v5387
        %v5389 = vsub.f32 1.0, %v5388
        %v5390 = vmul.f32 %v5387, %v5389
        %v5391 = vadd.f32 %v5387, %v5390
        %vm5392 = vweird.f32 %v4623
        %vm5393 = vweird.f32 %v5387
        %vm5394 = vmor %vm5392, %vm5393
        %v5395 = vsel %vm5394, %v5387, %v5391
        %v5396 = vand.u32 2147483647, %v4623
        %vm5397 = vcmp.eq.f32.partialorder %v5396, 8.507059e+37
        %v5398 = vand.u32 %v4623, 2147483648
        %v5399 = vor.u32 1.1754944e-38, %v5398
        %v5400 = vsel %vm5397, %v5399, %v5395
        %v5401 = vmul.f32 1.0, %v5400
        %v5402 = vrcp.pop %v4624
        %v5403 = vmul.f32 %v4624, %v5402
        %v5404 = vsub.f32 1.0, %v5403
        %v5405 = vmul.f32 %v5402, %v5404
        %v5406 = vadd.f32 %v5402, %v5405
        %vm5407 = vweird.f32 %v4624
        %vm5408 = vweird.f32 %v5402
        %vm5409 = vmor %vm5407, %vm5408
        %v5410 = vsel %vm5409, %v5402, %v5406
        %v5411 = vand.u32 2147483647, %v4624
        %vm5412 = vcmp.eq.f32.partialorder %v5411, 8.507059e+37
        %v5413 = vand.u32 %v4624, 2147483648
        %v5414 = vor.u32 1.1754944e-38, %v5413
        %v5415 = vsel %vm5412, %v5414, %v5410
        %v5416 = vmul.f32 1.0, %v5415
        %v5417 = vrcp.pop %v4625
        %v5418 = vmul.f32 %v4625, %v5417
        %v5419 = vsub.f32 1.0, %v5418
        %v5420 = vmul.f32 %v5417, %v5419
        %v5421 = vadd.f32 %v5417, %v5420
        %vm5422 = vweird.f32 %v4625
        %vm5423 = vweird.f32 %v5417
        %vm5424 = vmor %vm5422, %vm5423
        %v5425 = vsel %vm5424, %v5417, %v5421
        %v5426 = vand.u32 2147483647, %v4625
        %vm5427 = vcmp.eq.f32.partialorder %v5426, 8.507059e+37
        %v5428 = vand.u32 %v4625, 2147483648
        %v5429 = vor.u32 1.1754944e-38, %v5428
        %v5430 = vsel %vm5427, %v5429, %v5425
        %v5431 = vmul.f32 1.0, %v5430
        %v5432 = vrcp.pop %v4626
        %v5433 = vmul.f32 %v4626, %v5432
        %v5434 = vsub.f32 1.0, %v5433
        %v5435 = vmul.f32 %v5432, %v5434
        %v5436 = vadd.f32 %v5432, %v5435
        %vm5437 = vweird.f32 %v4626
        %vm5438 = vweird.f32 %v5432
        %vm5439 = vmor %vm5437, %vm5438
        %v5440 = vsel %vm5439, %v5432, %v5436
        %v5441 = vand.u32 2147483647, %v4626
        %vm5442 = vcmp.eq.f32.partialorder %v5441, 8.507059e+37
        %v5443 = vand.u32 %v4626, 2147483648
        %v5444 = vor.u32 1.1754944e-38, %v5443
        %v5445 = vsel %vm5442, %v5444, %v5440
        %v5446 = vmul.f32 1.0, %v5445
        %v5447 = vrcp.pop %v4627
        %v5448 = vmul.f32 %v4627, %v5447
        %v5449 = vsub.f32 1.0, %v5448
        %v5450 = vmul.f32 %v5447, %v5449
        %v5451 = vadd.f32 %v5447, %v5450
        %vm5452 = vweird.f32 %v4627
        %vm5453 = vweird.f32 %v5447
        %vm5454 = vmor %vm5452, %vm5453
        %v5455 = vsel %vm5454, %v5447, %v5451
        %v5456 = vand.u32 2147483647, %v4627
        %vm5457 = vcmp.eq.f32.partialorder %v5456, 8.507059e+37
        %v5458 = vand.u32 %v4627, 2147483648
        %v5459 = vor.u32 1.1754944e-38, %v5458
        %v5460 = vsel %vm5457, %v5459, %v5455
        %v5461 = vmul.f32 1.0, %v5460
        %v5462 = vrcp.pop %v4628
        %v5463 = vmul.f32 %v4628, %v5462
        %v5464 = vsub.f32 1.0, %v5463
        %v5465 = vmul.f32 %v5462, %v5464
        %v5466 = vadd.f32 %v5462, %v5465
        %vm5467 = vweird.f32 %v4628
        %vm5468 = vweird.f32 %v5462
        %vm5469 = vmor %vm5467, %vm5468
        %v5470 = vsel %vm5469, %v5462, %v5466
        %v5471 = vand.u32 2147483647, %v4628
        %vm5472 = vcmp.eq.f32.partialorder %v5471, 8.507059e+37
        %v5473 = vand.u32 %v4628, 2147483648
        %v5474 = vor.u32 1.1754944e-38, %v5473
        %v5475 = vsel %vm5472, %v5474, %v5470
        %v5476 = vmul.f32 1.0, %v5475
        %v5477 = vrcp.pop %v4629
        %v5478 = vmul.f32 %v4629, %v5477
        %v5479 = vsub.f32 1.0, %v5478
        %v5480 = vmul.f32 %v5477, %v5479
        %v5481 = vadd.f32 %v5477, %v5480
        %vm5482 = vweird.f32 %v4629
        %vm5483 = vweird.f32 %v5477
        %vm5484 = vmor %vm5482, %vm5483
        %v5485 = vsel %vm5484, %v5477, %v5481
        %v5486 = vand.u32 2147483647, %v4629
        %vm5487 = vcmp.eq.f32.partialorder %v5486, 8.507059e+37
        %v5488 = vand.u32 %v4629, 2147483648
        %v5489 = vor.u32 1.1754944e-38, %v5488
        %v5490 = vsel %vm5487, %v5489, %v5485
        %v5491 = vmul.f32 1.0, %v5490
        %v5492 = vrcp.pop %v4630
        %v5493 = vmul.f32 %v4630, %v5492
        %v5494 = vsub.f32 1.0, %v5493
        %v5495 = vmul.f32 %v5492, %v5494
        %v5496 = vadd.f32 %v5492, %v5495
        %vm5497 = vweird.f32 %v4630
        %vm5498 = vweird.f32 %v5492
        %vm5499 = vmor %vm5497, %vm5498
        %v5500 = vsel %vm5499, %v5492, %v5496
        %v5501 = vand.u32 2147483647, %v4630
        %vm5502 = vcmp.eq.f32.partialorder %v5501, 8.507059e+37
        %v5503 = vand.u32 %v4630, 2147483648
        %v5504 = vor.u32 1.1754944e-38, %v5503
        %v5505 = vsel %vm5502, %v5504, %v5500
        %v5506 = vmul.f32 1.0, %v5505
        %v5507 = vrcp.pop %v4631
        %v5508 = vmul.f32 %v4631, %v5507
        %v5509 = vsub.f32 1.0, %v5508
        %v5510 = vmul.f32 %v5507, %v5509
        %v5511 = vadd.f32 %v5507, %v5510
        %vm5512 = vweird.f32 %v4631
        %vm5513 = vweird.f32 %v5507
        %vm5514 = vmor %vm5512, %vm5513
        %v5515 = vsel %vm5514, %v5507, %v5511
        %v5516 = vand.u32 2147483647, %v4631
        %vm5517 = vcmp.eq.f32.partialorder %v5516, 8.507059e+37
        %v5518 = vand.u32 %v4631, 2147483648
        %v5519 = vor.u32 1.1754944e-38, %v5518
        %v5520 = vsel %vm5517, %v5519, %v5515
        %v5521 = vmul.f32 1.0, %v5520
        %v5522 = vrcp.pop %v4632
        %v5523 = vmul.f32 %v4632, %v5522
        %v5524 = vsub.f32 1.0, %v5523
        %v5525 = vmul.f32 %v5522, %v5524
        %v5526 = vadd.f32 %v5522, %v5525
        %vm5527 = vweird.f32 %v4632
        %vm5528 = vweird.f32 %v5522
        %vm5529 = vmor %vm5527, %vm5528
        %v5530 = vsel %vm5529, %v5522, %v5526
        %v5531 = vand.u32 2147483647, %v4632
        %vm5532 = vcmp.eq.f32.partialorder %v5531, 8.507059e+37
        %v5533 = vand.u32 %v4632, 2147483648
        %v5534 = vor.u32 1.1754944e-38, %v5533
        %v5535 = vsel %vm5532, %v5534, %v5530
        %v5536 = vmul.f32 1.0, %v5535
        %v5537 = vrcp.pop %v4633
        %v5538 = vmul.f32 %v4633, %v5537
        %v5539 = vsub.f32 1.0, %v5538
        %v5540 = vmul.f32 %v5537, %v5539
        %v5541 = vadd.f32 %v5537, %v5540
        %vm5542 = vweird.f32 %v4633
        %vm5543 = vweird.f32 %v5537
        %vm5544 = vmor %vm5542, %vm5543
        %v5545 = vsel %vm5544, %v5537, %v5541
        %v5546 = vand.u32 2147483647, %v4633
        %vm5547 = vcmp.eq.f32.partialorder %v5546, 8.507059e+37
        %v5548 = vand.u32 %v4633, 2147483648
        %v5549 = vor.u32 1.1754944e-38, %v5548
        %v5550 = vsel %vm5547, %v5549, %v5545
        %v5551 = vmul.f32 1.0, %v5550
        %v5552 = vrcp.pop %v4634
        %v5553 = vmul.f32 %v4634, %v5552
        %v5554 = vsub.f32 1.0, %v5553
        %v5555 = vmul.f32 %v5552, %v5554
        %v5556 = vadd.f32 %v5552, %v5555
        %vm5557 = vweird.f32 %v4634
        %vm5558 = vweird.f32 %v5552
        %vm5559 = vmor %vm5557, %vm5558
        %v5560 = vsel %vm5559, %v5552, %v5556
        %v5561 = vand.u32 2147483647, %v4634
        %vm5562 = vcmp.eq.f32.partialorder %v5561, 8.507059e+37
        %v5563 = vand.u32 %v4634, 2147483648
        %v5564 = vor.u32 1.1754944e-38, %v5563
        %v5565 = vsel %vm5562, %v5564, %v5560
        %v5566 = vmul.f32 1.0, %v5565
        %v5567 = vrcp.pop %v4635
        %v5568 = vmul.f32 %v4635, %v5567
        %v5569 = vsub.f32 1.0, %v5568
        %v5570 = vmul.f32 %v5567, %v5569
        %v5571 = vadd.f32 %v5567, %v5570
        %vm5572 = vweird.f32 %v4635
        %vm5573 = vweird.f32 %v5567
        %vm5574 = vmor %vm5572, %vm5573
        %v5575 = vsel %vm5574, %v5567, %v5571
        %v5576 = vand.u32 2147483647, %v4635
        %vm5577 = vcmp.eq.f32.partialorder %v5576, 8.507059e+37
        %v5578 = vand.u32 %v4635, 2147483648
        %v5579 = vor.u32 1.1754944e-38, %v5578
        %v5580 = vsel %vm5577, %v5579, %v5575
        %v5581 = vmul.f32 1.0, %v5580
        %v5582 = vrcp.pop %v4636
        %v5583 = vmul.f32 %v4636, %v5582
        %v5584 = vsub.f32 1.0, %v5583
        %v5585 = vmul.f32 %v5582, %v5584
        %v5586 = vadd.f32 %v5582, %v5585
        %vm5587 = vweird.f32 %v4636
        %vm5588 = vweird.f32 %v5582
        %vm5589 = vmor %vm5587, %vm5588
        %v5590 = vsel %vm5589, %v5582, %v5586
        %v5591 = vand.u32 2147483647, %v4636
        %vm5592 = vcmp.eq.f32.partialorder %v5591, 8.507059e+37
        %v5593 = vand.u32 %v4636, 2147483648
        %v5594 = vor.u32 1.1754944e-38, %v5593
        %v5595 = vsel %vm5592, %v5594, %v5590
        %v5596 = vmul.f32 1.0, %v5595
        %v5597 = vmul.f32 %v4317, %v4651
        %v5598 = vmul.f32 %v4318, %v4666
        %v5599 = vmul.f32 %v4319, %v4681
        %v5600 = vmul.f32 %v4320, %v4696
        %v5601 = vmul.f32 %v4321, %v4711
        %v5602 = vmul.f32 %v4322, %v4726
        %v5603 = vmul.f32 %v4323, %v4741
        %v5604 = vmul.f32 %v4324, %v4756
        %v5605 = vmul.f32 %v4325, %v4771
        %v5606 = vmul.f32 %v4326, %v4786
        %v5607 = vmul.f32 %v4327, %v4801
        %v5608 = vmul.f32 %v4328, %v4816
        %v5609 = vmul.f32 %v4329, %v4831
        %v5610 = vmul.f32 %v4330, %v4846
        %v5611 = vmul.f32 %v4331, %v4861
        %v5612 = vmul.f32 %v4332, %v4876
        %v5613 = vmul.f32 %v4333, %v4891
        %v5614 = vmul.f32 %v4334, %v4906
        %v5615 = vmul.f32 %v4335, %v4921
        %v5616 = vmul.f32 %v4336, %v4936
        %v5617 = vmul.f32 %v4337, %v4951
        %v5618 = vmul.f32 %v4338, %v4966
        %v5619 = vmul.f32 %v4339, %v4981
        %v5620 = vmul.f32 %v4340, %v4996
        %v5621 = vmul.f32 %v4341, %v5011
        %v5622 = vmul.f32 %v4342, %v5026
        %v5623 = vmul.f32 %v4343, %v5041
        %v5624 = vmul.f32 %v4344, %v5056
        %v5625 = vmul.f32 %v4345, %v5071
        %v5626 = vmul.f32 %v4346, %v5086
        %v5627 = vmul.f32 %v4347, %v5101
        %v5628 = vmul.f32 %v4348, %v5116
        %v5629 = vmul.f32 %v4349, %v5131
        %v5630 = vmul.f32 %v4350, %v5146
        %v5631 = vmul.f32 %v4351, %v5161
        %v5632 = vmul.f32 %v4352, %v5176
        %v5633 = vmul.f32 %v4353, %v5191
        %v5634 = vmul.f32 %v4354, %v5206
        %v5635 = vmul.f32 %v4355, %v5221
        %v5636 = vmul.f32 %v4356, %v5236
        %v5637 = vmul.f32 %v4357, %v5251
        %v5638 = vmul.f32 %v4358, %v5266
        %v5639 = vmul.f32 %v4359, %v5281
        %v5640 = vmul.f32 %v4360, %v5296
        %v5641 = vmul.f32 %v4361, %v5311
        %v5642 = vmul.f32 %v4362, %v5326
        %v5643 = vmul.f32 %v4363, %v5341
        %v5644 = vmul.f32 %v4364, %v5356
        %v5645 = vmul.f32 %v4365, %v5371
        %v5646 = vmul.f32 %v4366, %v5386
        %v5647 = vmul.f32 %v4367, %v5401
        %v5648 = vmul.f32 %v4368, %v5416
        %v5649 = vmul.f32 %v4369, %v5431
        %v5650 = vmul.f32 %v4370, %v5446
        %v5651 = vmul.f32 %v4371, %v5461
        %v5652 = vmul.f32 %v4372, %v5476
        %v5653 = vmul.f32 %v4373, %v5491
        %v5654 = vmul.f32 %v4374, %v5506
        %v5655 = vmul.f32 %v4375, %v5521
        %v5656 = vmul.f32 %v4376, %v5536
        %v5657 = vmul.f32 %v4377, %v5551
        %v5658 = vmul.f32 %v4378, %v5566
        %v5659 = vmul.f32 %v4379, %v5581
        %v5660 = vmul.f32 %v4380, %v5596
        %v5661 = vld [vmem:[%s11] sm:$0xff]
        %v5662 = vld [vmem:[%s11 + $0x8] sm:$0xff]
        %v5663 = vld [vmem:[%s11 + $0x10] sm:$0xff]
        %v5664 = vld [vmem:[%s11 + $0x18] sm:$0xff]
        %v5665 = vld [vmem:[%s11 + $0x20] sm:$0xff]
        %v5666 = vld [vmem:[%s11 + $0x28] sm:$0xff]
        %v5667 = vld [vmem:[%s11 + $0x30] sm:$0xff]
        %v5668 = vld [vmem:[%s11 + $0x38] sm:$0xff]
        %v5669 = vld [vmem:[%s11 + $0x40] sm:$0xff]
        %v5670 = vld [vmem:[%s11 + $0x48] sm:$0xff]
        %v5671 = vld [vmem:[%s11 + $0x50] sm:$0xff]
        %v5672 = vld [vmem:[%s11 + $0x58] sm:$0xff]
        %v5673 = vld [vmem:[%s11 + $0x60] sm:$0xff]
        %v5674 = vld [vmem:[%s11 + $0x68] sm:$0xff]
        %v5675 = vld [vmem:[%s11 + $0x70] sm:$0xff]
        %v5676 = vld [vmem:[%s11 + $0x78] sm:$0xff]
        %v5677 = vld [vmem:[%s12] sm:$0x1]
        %v5679 = vperm.slane %v5677, 0
        %5681 = vmatpush.msra.mxu0 %v5676
        %5682 = vmatpush.msra.mxu0 %v5675
        %5683 = vmatpush.msra.mxu0 %v5674
        %5684 = vmatpush.msra.mxu0 %v5673
        %5685 = vmatpush.msra.mxu0 %v5672
        %5686 = vmatpush.msra.mxu0 %v5671
        %5687 = vmatpush.msra.mxu0 %v5670
        %5688 = vmatpush.msra.mxu0 %v5669
        %5689 = vmatpush.msra.mxu0 %v5668
        %5690 = vmatpush.msra.mxu0 %v5667
        %5691 = vmatpush.msra.mxu0 %v5666
        %5692 = vmatpush.msra.mxu0 %v5665
        %5693 = vmatpush.msra.mxu0 %v5664
        %5694 = vmatpush.msra.mxu0 %v5663
        %5695 = vmatpush.msra.mxu0 %v5662
        %5696 = vmatpush.msra.mxu0 %v5661
        %5697 = vmatmul.f32.gmra.mxu0 %v5597
        %v5698 = vpop.f32.mrf.mxu0
        %v5699 = vadd.f32 %v5679, %v5698
        %5700 = vmatmul.f32.gmra.mxu0 %v5598
        %v5701 = vpop.f32.mrf.mxu0
        %v5702 = vadd.f32 %v5679, %v5701
        %5703 = vmatmul.f32.gmra.mxu0 %v5599
        %v5704 = vpop.f32.mrf.mxu0
        %v5705 = vadd.f32 %v5679, %v5704
        %5706 = vmatmul.f32.gmra.mxu0 %v5600
        %v5707 = vpop.f32.mrf.mxu0
        %v5708 = vadd.f32 %v5679, %v5707
        %5709 = vmatmul.f32.gmra.mxu0 %v5601
        %v5710 = vpop.f32.mrf.mxu0
        %v5711 = vadd.f32 %v5679, %v5710
        %5712 = vmatmul.f32.gmra.mxu0 %v5602
        %v5713 = vpop.f32.mrf.mxu0
        %v5714 = vadd.f32 %v5679, %v5713
        %5715 = vmatmul.f32.gmra.mxu0 %v5603
        %v5716 = vpop.f32.mrf.mxu0
        %v5717 = vadd.f32 %v5679, %v5716
        %5718 = vmatmul.f32.gmra.mxu0 %v5604
        %v5719 = vpop.f32.mrf.mxu0
        %v5720 = vadd.f32 %v5679, %v5719
        %5721 = vmatmul.f32.gmra.mxu0 %v5605
        %v5722 = vpop.f32.mrf.mxu0
        %v5723 = vadd.f32 %v5679, %v5722
        %5724 = vmatmul.f32.gmra.mxu0 %v5606
        %v5725 = vpop.f32.mrf.mxu0
        %v5726 = vadd.f32 %v5679, %v5725
        %5727 = vmatmul.f32.gmra.mxu0 %v5607
        %v5728 = vpop.f32.mrf.mxu0
        %v5729 = vadd.f32 %v5679, %v5728
        %5730 = vmatmul.f32.gmra.mxu0 %v5608
        %v5731 = vpop.f32.mrf.mxu0
        %v5732 = vadd.f32 %v5679, %v5731
        %5733 = vmatmul.f32.gmra.mxu0 %v5609
        %v5734 = vpop.f32.mrf.mxu0
        %v5735 = vadd.f32 %v5679, %v5734
        %5736 = vmatmul.f32.gmra.mxu0 %v5610
        %v5737 = vpop.f32.mrf.mxu0
        %v5738 = vadd.f32 %v5679, %v5737
        %5739 = vmatmul.f32.gmra.mxu0 %v5611
        %v5740 = vpop.f32.mrf.mxu0
        %v5741 = vadd.f32 %v5679, %v5740
        %5742 = vmatmul.f32.gmra.mxu0 %v5612
        %v5743 = vpop.f32.mrf.mxu0
        %v5744 = vadd.f32 %v5679, %v5743
        %5745 = vmatmul.f32.gmra.mxu0 %v5613
        %v5746 = vpop.f32.mrf.mxu0
        %v5747 = vadd.f32 %v5679, %v5746
        %5748 = vmatmul.f32.gmra.mxu0 %v5614
        %v5749 = vpop.f32.mrf.mxu0
        %v5750 = vadd.f32 %v5679, %v5749
        %5751 = vmatmul.f32.gmra.mxu0 %v5615
        %v5752 = vpop.f32.mrf.mxu0
        %v5753 = vadd.f32 %v5679, %v5752
        %5754 = vmatmul.f32.gmra.mxu0 %v5616
        %v5755 = vpop.f32.mrf.mxu0
        %v5756 = vadd.f32 %v5679, %v5755
        %5757 = vmatmul.f32.gmra.mxu0 %v5617
        %v5758 = vpop.f32.mrf.mxu0
        %v5759 = vadd.f32 %v5679, %v5758
        %5760 = vmatmul.f32.gmra.mxu0 %v5618
        %v5761 = vpop.f32.mrf.mxu0
        %v5762 = vadd.f32 %v5679, %v5761
        %5763 = vmatmul.f32.gmra.mxu0 %v5619
        %v5764 = vpop.f32.mrf.mxu0
        %v5765 = vadd.f32 %v5679, %v5764
        %5766 = vmatmul.f32.gmra.mxu0 %v5620
        %v5767 = vpop.f32.mrf.mxu0
        %v5768 = vadd.f32 %v5679, %v5767
        %5769 = vmatmul.f32.gmra.mxu0 %v5621
        %v5770 = vpop.f32.mrf.mxu0
        %v5771 = vadd.f32 %v5679, %v5770
        %5772 = vmatmul.f32.gmra.mxu0 %v5622
        %v5773 = vpop.f32.mrf.mxu0
        %v5774 = vadd.f32 %v5679, %v5773
        %5775 = vmatmul.f32.gmra.mxu0 %v5623
        %v5776 = vpop.f32.mrf.mxu0
        %v5777 = vadd.f32 %v5679, %v5776
        %5778 = vmatmul.f32.gmra.mxu0 %v5624
        %v5779 = vpop.f32.mrf.mxu0
        %v5780 = vadd.f32 %v5679, %v5779
        %5781 = vmatmul.f32.gmra.mxu0 %v5625
        %v5782 = vpop.f32.mrf.mxu0
        %v5783 = vadd.f32 %v5679, %v5782
        %5784 = vmatmul.f32.gmra.mxu0 %v5626
        %v5785 = vpop.f32.mrf.mxu0
        %v5786 = vadd.f32 %v5679, %v5785
        %5787 = vmatmul.f32.gmra.mxu0 %v5627
        %v5788 = vpop.f32.mrf.mxu0
        %v5789 = vadd.f32 %v5679, %v5788
        %5790 = vmatmul.f32.gmra.mxu0 %v5628
        %v5791 = vpop.f32.mrf.mxu0
        %v5792 = vadd.f32 %v5679, %v5791
        %5793 = vmatmul.f32.gmra.mxu0 %v5629
        %v5794 = vpop.f32.mrf.mxu0
        %v5795 = vadd.f32 %v5679, %v5794
        %5796 = vmatmul.f32.gmra.mxu0 %v5630
        %v5797 = vpop.f32.mrf.mxu0
        %v5798 = vadd.f32 %v5679, %v5797
        %5799 = vmatmul.f32.gmra.mxu0 %v5631
        %v5800 = vpop.f32.mrf.mxu0
        %v5801 = vadd.f32 %v5679, %v5800
        %5802 = vmatmul.f32.gmra.mxu0 %v5632
        %v5803 = vpop.f32.mrf.mxu0
        %v5804 = vadd.f32 %v5679, %v5803
        %5805 = vmatmul.f32.gmra.mxu0 %v5633
        %v5806 = vpop.f32.mrf.mxu0
        %v5807 = vadd.f32 %v5679, %v5806
        %5808 = vmatmul.f32.gmra.mxu0 %v5634
        %v5809 = vpop.f32.mrf.mxu0
        %v5810 = vadd.f32 %v5679, %v5809
        %5811 = vmatmul.f32.gmra.mxu0 %v5635
        %v5812 = vpop.f32.mrf.mxu0
        %v5813 = vadd.f32 %v5679, %v5812
        %5814 = vmatmul.f32.gmra.mxu0 %v5636
        %v5815 = vpop.f32.mrf.mxu0
        %v5816 = vadd.f32 %v5679, %v5815
        %5817 = vmatmul.f32.gmra.mxu0 %v5637
        %v5818 = vpop.f32.mrf.mxu0
        %v5819 = vadd.f32 %v5679, %v5818
        %5820 = vmatmul.f32.gmra.mxu0 %v5638
        %v5821 = vpop.f32.mrf.mxu0
        %v5822 = vadd.f32 %v5679, %v5821
        %5823 = vmatmul.f32.gmra.mxu0 %v5639
        %v5824 = vpop.f32.mrf.mxu0
        %v5825 = vadd.f32 %v5679, %v5824
        %5826 = vmatmul.f32.gmra.mxu0 %v5640
        %v5827 = vpop.f32.mrf.mxu0
        %v5828 = vadd.f32 %v5679, %v5827
        %5829 = vmatmul.f32.gmra.mxu0 %v5641
        %v5830 = vpop.f32.mrf.mxu0
        %v5831 = vadd.f32 %v5679, %v5830
        %5832 = vmatmul.f32.gmra.mxu0 %v5642
        %v5833 = vpop.f32.mrf.mxu0
        %v5834 = vadd.f32 %v5679, %v5833
        %5835 = vmatmul.f32.gmra.mxu0 %v5643
        %v5836 = vpop.f32.mrf.mxu0
        %v5837 = vadd.f32 %v5679, %v5836
        %5838 = vmatmul.f32.gmra.mxu0 %v5644
        %v5839 = vpop.f32.mrf.mxu0
        %v5840 = vadd.f32 %v5679, %v5839
        %5841 = vmatmul.f32.gmra.mxu0 %v5645
        %v5842 = vpop.f32.mrf.mxu0
        %v5843 = vadd.f32 %v5679, %v5842
        %5844 = vmatmul.f32.gmra.mxu0 %v5646
        %v5845 = vpop.f32.mrf.mxu0
        %v5846 = vadd.f32 %v5679, %v5845
        %5847 = vmatmul.f32.gmra.mxu0 %v5647
        %v5848 = vpop.f32.mrf.mxu0
        %v5849 = vadd.f32 %v5679, %v5848
        %5850 = vmatmul.f32.gmra.mxu0 %v5648
        %v5851 = vpop.f32.mrf.mxu0
        %v5852 = vadd.f32 %v5679, %v5851
        %5853 = vmatmul.f32.gmra.mxu0 %v5649
        %v5854 = vpop.f32.mrf.mxu0
        %v5855 = vadd.f32 %v5679, %v5854
        %5856 = vmatmul.f32.gmra.mxu0 %v5650
        %v5857 = vpop.f32.mrf.mxu0
        %v5858 = vadd.f32 %v5679, %v5857
        %5859 = vmatmul.f32.gmra.mxu0 %v5651
        %v5860 = vpop.f32.mrf.mxu0
        %v5861 = vadd.f32 %v5679, %v5860
        %5862 = vmatmul.f32.gmra.mxu0 %v5652
        %v5863 = vpop.f32.mrf.mxu0
        %v5864 = vadd.f32 %v5679, %v5863
        %5865 = vmatmul.f32.gmra.mxu0 %v5653
        %v5866 = vpop.f32.mrf.mxu0
        %v5867 = vadd.f32 %v5679, %v5866
        %5868 = vmatmul.f32.gmra.mxu0 %v5654
        %v5869 = vpop.f32.mrf.mxu0
        %v5870 = vadd.f32 %v5679, %v5869
        %5871 = vmatmul.f32.gmra.mxu0 %v5655
        %v5872 = vpop.f32.mrf.mxu0
        %v5873 = vadd.f32 %v5679, %v5872
        %5874 = vmatmul.f32.gmra.mxu0 %v5656
        %v5875 = vpop.f32.mrf.mxu0
        %v5876 = vadd.f32 %v5679, %v5875
        %5877 = vmatmul.f32.gmra.mxu0 %v5657
        %v5878 = vpop.f32.mrf.mxu0
        %v5879 = vadd.f32 %v5679, %v5878
        %5880 = vmatmul.f32.gmra.mxu0 %v5658
        %v5881 = vpop.f32.mrf.mxu0
        %v5882 = vadd.f32 %v5679, %v5881
        %5883 = vmatmul.f32.gmra.mxu0 %v5659
        %v5884 = vpop.f32.mrf.mxu0
        %v5885 = vadd.f32 %v5679, %v5884
        %5886 = vmatmul.f32.gmra.mxu0 %v5660
        %v5887 = vpop.f32.mrf.mxu0
        %v5888 = vadd.f32 %v5679, %v5887
        %5889 = vdwg.mxu0
        %v5890 = vsub.f32 0.0, %v5699
        %v5891 = vsub.f32 0.0, %v5702
        %v5892 = vsub.f32 0.0, %v5705
        %v5893 = vsub.f32 0.0, %v5708
        %v5894 = vsub.f32 0.0, %v5711
        %v5895 = vsub.f32 0.0, %v5714
        %v5896 = vsub.f32 0.0, %v5717
        %v5897 = vsub.f32 0.0, %v5720
        %v5898 = vsub.f32 0.0, %v5723
        %v5899 = vsub.f32 0.0, %v5726
        %v5900 = vsub.f32 0.0, %v5729
        %v5901 = vsub.f32 0.0, %v5732
        %v5902 = vsub.f32 0.0, %v5735
        %v5903 = vsub.f32 0.0, %v5738
        %v5904 = vsub.f32 0.0, %v5741
        %v5905 = vsub.f32 0.0, %v5744
        %v5906 = vsub.f32 0.0, %v5747
        %v5907 = vsub.f32 0.0, %v5750
        %v5908 = vsub.f32 0.0, %v5753
        %v5909 = vsub.f32 0.0, %v5756
        %v5910 = vsub.f32 0.0, %v5759
        %v5911 = vsub.f32 0.0, %v5762
        %v5912 = vsub.f32 0.0, %v5765
        %v5913 = vsub.f32 0.0, %v5768
        %v5914 = vsub.f32 0.0, %v5771
        %v5915 = vsub.f32 0.0, %v5774
        %v5916 = vsub.f32 0.0, %v5777
        %v5917 = vsub.f32 0.0, %v5780
        %v5918 = vsub.f32 0.0, %v5783
        %v5919 = vsub.f32 0.0, %v5786
        %v5920 = vsub.f32 0.0, %v5789
        %v5921 = vsub.f32 0.0, %v5792
        %v5922 = vsub.f32 0.0, %v5795
        %v5923 = vsub.f32 0.0, %v5798
        %v5924 = vsub.f32 0.0, %v5801
        %v5925 = vsub.f32 0.0, %v5804
        %v5926 = vsub.f32 0.0, %v5807
        %v5927 = vsub.f32 0.0, %v5810
        %v5928 = vsub.f32 0.0, %v5813
        %v5929 = vsub.f32 0.0, %v5816
        %v5930 = vsub.f32 0.0, %v5819
        %v5931 = vsub.f32 0.0, %v5822
        %v5932 = vsub.f32 0.0, %v5825
        %v5933 = vsub.f32 0.0, %v5828
        %v5934 = vsub.f32 0.0, %v5831
        %v5935 = vsub.f32 0.0, %v5834
        %v5936 = vsub.f32 0.0, %v5837
        %v5937 = vsub.f32 0.0, %v5840
        %v5938 = vsub.f32 0.0, %v5843
        %v5939 = vsub.f32 0.0, %v5846
        %v5940 = vsub.f32 0.0, %v5849
        %v5941 = vsub.f32 0.0, %v5852
        %v5942 = vsub.f32 0.0, %v5855
        %v5943 = vsub.f32 0.0, %v5858
        %v5944 = vsub.f32 0.0, %v5861
        %v5945 = vsub.f32 0.0, %v5864
        %v5946 = vsub.f32 0.0, %v5867
        %v5947 = vsub.f32 0.0, %v5870
        %v5948 = vsub.f32 0.0, %v5873
        %v5949 = vsub.f32 0.0, %v5876
        %v5950 = vsub.f32 0.0, %v5879
        %v5951 = vsub.f32 0.0, %v5882
        %v5952 = vsub.f32 0.0, %v5885
        %v5953 = vsub.f32 0.0, %v5888
        %v5954 = vmul.f32 %v5890, 1.442695
        %v5955 = vpow.pop %v5954
        %v5956 = vmul.f32 %v5891, 1.442695
        %v5957 = vpow.pop %v5956
        %v5958 = vmul.f32 %v5892, 1.442695
        %v5959 = vpow.pop %v5958
        %v5960 = vmul.f32 %v5893, 1.442695
        %v5961 = vpow.pop %v5960
        %v5962 = vmul.f32 %v5894, 1.442695
        %v5963 = vpow.pop %v5962
        %v5964 = vmul.f32 %v5895, 1.442695
        %v5965 = vpow.pop %v5964
        %v5966 = vmul.f32 %v5896, 1.442695
        %v5967 = vpow.pop %v5966
        %v5968 = vmul.f32 %v5897, 1.442695
        %v5969 = vpow.pop %v5968
        %v5970 = vmul.f32 %v5898, 1.442695
        %v5971 = vpow.pop %v5970
        %v5972 = vmul.f32 %v5899, 1.442695
        %v5973 = vpow.pop %v5972
        %v5974 = vmul.f32 %v5900, 1.442695
        %v5975 = vpow.pop %v5974
        %v5976 = vmul.f32 %v5901, 1.442695
        %v5977 = vpow.pop %v5976
        %v5978 = vmul.f32 %v5902, 1.442695
        %v5979 = vpow.pop %v5978
        %v5980 = vmul.f32 %v5903, 1.442695
        %v5981 = vpow.pop %v5980
        %v5982 = vmul.f32 %v5904, 1.442695
        %v5983 = vpow.pop %v5982
        %v5984 = vmul.f32 %v5905, 1.442695
        %v5985 = vpow.pop %v5984
        %v5986 = vmul.f32 %v5906, 1.442695
        %v5987 = vpow.pop %v5986
        %v5988 = vmul.f32 %v5907, 1.442695
        %v5989 = vpow.pop %v5988
        %v5990 = vmul.f32 %v5908, 1.442695
        %v5991 = vpow.pop %v5990
        %v5992 = vmul.f32 %v5909, 1.442695
        %v5993 = vpow.pop %v5992
        %v5994 = vmul.f32 %v5910, 1.442695
        %v5995 = vpow.pop %v5994
        %v5996 = vmul.f32 %v5911, 1.442695
        %v5997 = vpow.pop %v5996
        %v5998 = vmul.f32 %v5912, 1.442695
        %v5999 = vpow.pop %v5998
        %v6000 = vmul.f32 %v5913, 1.442695
        %v6001 = vpow.pop %v6000
        %v6002 = vmul.f32 %v5914, 1.442695
        %v6003 = vpow.pop %v6002
        %v6004 = vmul.f32 %v5915, 1.442695
        %v6005 = vpow.pop %v6004
        %v6006 = vmul.f32 %v5916, 1.442695
        %v6007 = vpow.pop %v6006
        %v6008 = vmul.f32 %v5917, 1.442695
        %v6009 = vpow.pop %v6008
        %v6010 = vmul.f32 %v5918, 1.442695
        %v6011 = vpow.pop %v6010
        %v6012 = vmul.f32 %v5919, 1.442695
        %v6013 = vpow.pop %v6012
        %v6014 = vmul.f32 %v5920, 1.442695
        %v6015 = vpow.pop %v6014
        %v6016 = vmul.f32 %v5921, 1.442695
        %v6017 = vpow.pop %v6016
        %v6018 = vmul.f32 %v5922, 1.442695
        %v6019 = vpow.pop %v6018
        %v6020 = vmul.f32 %v5923, 1.442695
        %v6021 = vpow.pop %v6020
        %v6022 = vmul.f32 %v5924, 1.442695
        %v6023 = vpow.pop %v6022
        %v6024 = vmul.f32 %v5925, 1.442695
        %v6025 = vpow.pop %v6024
        %v6026 = vmul.f32 %v5926, 1.442695
        %v6027 = vpow.pop %v6026
        %v6028 = vmul.f32 %v5927, 1.442695
        %v6029 = vpow.pop %v6028
        %v6030 = vmul.f32 %v5928, 1.442695
        %v6031 = vpow.pop %v6030
        %v6032 = vmul.f32 %v5929, 1.442695
        %v6033 = vpow.pop %v6032
        %v6034 = vmul.f32 %v5930, 1.442695
        %v6035 = vpow.pop %v6034
        %v6036 = vmul.f32 %v5931, 1.442695
        %v6037 = vpow.pop %v6036
        %v6038 = vmul.f32 %v5932, 1.442695
        %v6039 = vpow.pop %v6038
        %v6040 = vmul.f32 %v5933, 1.442695
        %v6041 = vpow.pop %v6040
        %v6042 = vmul.f32 %v5934, 1.442695
        %v6043 = vpow.pop %v6042
        %v6044 = vmul.f32 %v5935, 1.442695
        %v6045 = vpow.pop %v6044
        %v6046 = vmul.f32 %v5936, 1.442695
        %v6047 = vpow.pop %v6046
        %v6048 = vmul.f32 %v5937, 1.442695
        %v6049 = vpow.pop %v6048
        %v6050 = vmul.f32 %v5938, 1.442695
        %v6051 = vpow.pop %v6050
        %v6052 = vmul.f32 %v5939, 1.442695
        %v6053 = vpow.pop %v6052
        %v6054 = vmul.f32 %v5940, 1.442695
        %v6055 = vpow.pop %v6054
        %v6056 = vmul.f32 %v5941, 1.442695
        %v6057 = vpow.pop %v6056
        %v6058 = vmul.f32 %v5942, 1.442695
        %v6059 = vpow.pop %v6058
        %v6060 = vmul.f32 %v5943, 1.442695
        %v6061 = vpow.pop %v6060
        %v6062 = vmul.f32 %v5944, 1.442695
        %v6063 = vpow.pop %v6062
        %v6064 = vmul.f32 %v5945, 1.442695
        %v6065 = vpow.pop %v6064
        %v6066 = vmul.f32 %v5946, 1.442695
        %v6067 = vpow.pop %v6066
        %v6068 = vmul.f32 %v5947, 1.442695
        %v6069 = vpow.pop %v6068
        %v6070 = vmul.f32 %v5948, 1.442695
        %v6071 = vpow.pop %v6070
        %v6072 = vmul.f32 %v5949, 1.442695
        %v6073 = vpow.pop %v6072
        %v6074 = vmul.f32 %v5950, 1.442695
        %v6075 = vpow.pop %v6074
        %v6076 = vmul.f32 %v5951, 1.442695
        %v6077 = vpow.pop %v6076
        %v6078 = vmul.f32 %v5952, 1.442695
        %v6079 = vpow.pop %v6078
        %v6080 = vmul.f32 %v5953, 1.442695
        %v6081 = vpow.pop %v6080
        %v6082 = vadd.f32 %v5955, 1.0
        %v6083 = vadd.f32 %v5957, 1.0
        %v6084 = vadd.f32 %v5959, 1.0
        %v6085 = vadd.f32 %v5961, 1.0
        %v6086 = vadd.f32 %v5963, 1.0
        %v6087 = vadd.f32 %v5965, 1.0
        %v6088 = vadd.f32 %v5967, 1.0
        %v6089 = vadd.f32 %v5969, 1.0
        %v6090 = vadd.f32 %v5971, 1.0
        %v6091 = vadd.f32 %v5973, 1.0
        %v6092 = vadd.f32 %v5975, 1.0
        %v6093 = vadd.f32 %v5977, 1.0
        %v6094 = vadd.f32 %v5979, 1.0
        %v6095 = vadd.f32 %v5981, 1.0
        %v6096 = vadd.f32 %v5983, 1.0
        %v6097 = vadd.f32 %v5985, 1.0
        %v6098 = vadd.f32 %v5987, 1.0
        %v6099 = vadd.f32 %v5989, 1.0
        %v6100 = vadd.f32 %v5991, 1.0
        %v6101 = vadd.f32 %v5993, 1.0
        %v6102 = vadd.f32 %v5995, 1.0
        %v6103 = vadd.f32 %v5997, 1.0
        %v6104 = vadd.f32 %v5999, 1.0
        %v6105 = vadd.f32 %v6001, 1.0
        %v6106 = vadd.f32 %v6003, 1.0
        %v6107 = vadd.f32 %v6005, 1.0
        %v6108 = vadd.f32 %v6007, 1.0
        %v6109 = vadd.f32 %v6009, 1.0
        %v6110 = vadd.f32 %v6011, 1.0
        %v6111 = vadd.f32 %v6013, 1.0
        %v6112 = vadd.f32 %v6015, 1.0
        %v6113 = vadd.f32 %v6017, 1.0
        %v6114 = vadd.f32 %v6019, 1.0
        %v6115 = vadd.f32 %v6021, 1.0
        %v6116 = vadd.f32 %v6023, 1.0
        %v6117 = vadd.f32 %v6025, 1.0
        %v6118 = vadd.f32 %v6027, 1.0
        %v6119 = vadd.f32 %v6029, 1.0
        %v6120 = vadd.f32 %v6031, 1.0
        %v6121 = vadd.f32 %v6033, 1.0
        %v6122 = vadd.f32 %v6035, 1.0
        %v6123 = vadd.f32 %v6037, 1.0
        %v6124 = vadd.f32 %v6039, 1.0
        %v6125 = vadd.f32 %v6041, 1.0
        %v6126 = vadd.f32 %v6043, 1.0
        %v6127 = vadd.f32 %v6045, 1.0
        %v6128 = vadd.f32 %v6047, 1.0
        %v6129 = vadd.f32 %v6049, 1.0
        %v6130 = vadd.f32 %v6051, 1.0
        %v6131 = vadd.f32 %v6053, 1.0
        %v6132 = vadd.f32 %v6055, 1.0
        %v6133 = vadd.f32 %v6057, 1.0
        %v6134 = vadd.f32 %v6059, 1.0
        %v6135 = vadd.f32 %v6061, 1.0
        %v6136 = vadd.f32 %v6063, 1.0
        %v6137 = vadd.f32 %v6065, 1.0
        %v6138 = vadd.f32 %v6067, 1.0
        %v6139 = vadd.f32 %v6069, 1.0
        %v6140 = vadd.f32 %v6071, 1.0
        %v6141 = vadd.f32 %v6073, 1.0
        %v6142 = vadd.f32 %v6075, 1.0
        %v6143 = vadd.f32 %v6077, 1.0
        %v6144 = vadd.f32 %v6079, 1.0
        %v6145 = vadd.f32 %v6081, 1.0
        %v6146 = vrcp.pop %v6082
        %v6147 = vmul.f32 %v6082, %v6146
        %v6148 = vsub.f32 1.0, %v6147
        %v6149 = vmul.f32 %v6146, %v6148
        %v6150 = vadd.f32 %v6146, %v6149
        %vm6151 = vweird.f32 %v6082
        %vm6152 = vweird.f32 %v6146
        %vm6153 = vmor %vm6151, %vm6152
        %v6154 = vsel %vm6153, %v6146, %v6150
        %v6155 = vand.u32 2147483647, %v6082
        %vm6156 = vcmp.eq.f32.partialorder %v6155, 8.507059e+37
        %v6157 = vand.u32 %v6082, 2147483648
        %v6158 = vor.u32 1.1754944e-38, %v6157
        %v6159 = vsel %vm6156, %v6158, %v6154
        %v6160 = vmul.f32 1.0, %v6159
        %v6161 = vrcp.pop %v6083
        %v6162 = vmul.f32 %v6083, %v6161
        %v6163 = vsub.f32 1.0, %v6162
        %v6164 = vmul.f32 %v6161, %v6163
        %v6165 = vadd.f32 %v6161, %v6164
        %vm6166 = vweird.f32 %v6083
        %vm6167 = vweird.f32 %v6161
        %vm6168 = vmor %vm6166, %vm6167
        %v6169 = vsel %vm6168, %v6161, %v6165
        %v6170 = vand.u32 2147483647, %v6083
        %vm6171 = vcmp.eq.f32.partialorder %v6170, 8.507059e+37
        %v6172 = vand.u32 %v6083, 2147483648
        %v6173 = vor.u32 1.1754944e-38, %v6172
        %v6174 = vsel %vm6171, %v6173, %v6169
        %v6175 = vmul.f32 1.0, %v6174
        %v6176 = vrcp.pop %v6084
        %v6177 = vmul.f32 %v6084, %v6176
        %v6178 = vsub.f32 1.0, %v6177
        %v6179 = vmul.f32 %v6176, %v6178
        %v6180 = vadd.f32 %v6176, %v6179
        %vm6181 = vweird.f32 %v6084
        %vm6182 = vweird.f32 %v6176
        %vm6183 = vmor %vm6181, %vm6182
        %v6184 = vsel %vm6183, %v6176, %v6180
        %v6185 = vand.u32 2147483647, %v6084
        %vm6186 = vcmp.eq.f32.partialorder %v6185, 8.507059e+37
        %v6187 = vand.u32 %v6084, 2147483648
        %v6188 = vor.u32 1.1754944e-38, %v6187
        %v6189 = vsel %vm6186, %v6188, %v6184
        %v6190 = vmul.f32 1.0, %v6189
        %v6191 = vrcp.pop %v6085
        %v6192 = vmul.f32 %v6085, %v6191
        %v6193 = vsub.f32 1.0, %v6192
        %v6194 = vmul.f32 %v6191, %v6193
        %v6195 = vadd.f32 %v6191, %v6194
        %vm6196 = vweird.f32 %v6085
        %vm6197 = vweird.f32 %v6191
        %vm6198 = vmor %vm6196, %vm6197
        %v6199 = vsel %vm6198, %v6191, %v6195
        %v6200 = vand.u32 2147483647, %v6085
        %vm6201 = vcmp.eq.f32.partialorder %v6200, 8.507059e+37
        %v6202 = vand.u32 %v6085, 2147483648
        %v6203 = vor.u32 1.1754944e-38, %v6202
        %v6204 = vsel %vm6201, %v6203, %v6199
        %v6205 = vmul.f32 1.0, %v6204
        %v6206 = vrcp.pop %v6086
        %v6207 = vmul.f32 %v6086, %v6206
        %v6208 = vsub.f32 1.0, %v6207
        %v6209 = vmul.f32 %v6206, %v6208
        %v6210 = vadd.f32 %v6206, %v6209
        %vm6211 = vweird.f32 %v6086
        %vm6212 = vweird.f32 %v6206
        %vm6213 = vmor %vm6211, %vm6212
        %v6214 = vsel %vm6213, %v6206, %v6210
        %v6215 = vand.u32 2147483647, %v6086
        %vm6216 = vcmp.eq.f32.partialorder %v6215, 8.507059e+37
        %v6217 = vand.u32 %v6086, 2147483648
        %v6218 = vor.u32 1.1754944e-38, %v6217
        %v6219 = vsel %vm6216, %v6218, %v6214
        %v6220 = vmul.f32 1.0, %v6219
        %v6221 = vrcp.pop %v6087
        %v6222 = vmul.f32 %v6087, %v6221
        %v6223 = vsub.f32 1.0, %v6222
        %v6224 = vmul.f32 %v6221, %v6223
        %v6225 = vadd.f32 %v6221, %v6224
        %vm6226 = vweird.f32 %v6087
        %vm6227 = vweird.f32 %v6221
        %vm6228 = vmor %vm6226, %vm6227
        %v6229 = vsel %vm6228, %v6221, %v6225
        %v6230 = vand.u32 2147483647, %v6087
        %vm6231 = vcmp.eq.f32.partialorder %v6230, 8.507059e+37
        %v6232 = vand.u32 %v6087, 2147483648
        %v6233 = vor.u32 1.1754944e-38, %v6232
        %v6234 = vsel %vm6231, %v6233, %v6229
        %v6235 = vmul.f32 1.0, %v6234
        %v6236 = vrcp.pop %v6088
        %v6237 = vmul.f32 %v6088, %v6236
        %v6238 = vsub.f32 1.0, %v6237
        %v6239 = vmul.f32 %v6236, %v6238
        %v6240 = vadd.f32 %v6236, %v6239
        %vm6241 = vweird.f32 %v6088
        %vm6242 = vweird.f32 %v6236
        %vm6243 = vmor %vm6241, %vm6242
        %v6244 = vsel %vm6243, %v6236, %v6240
        %v6245 = vand.u32 2147483647, %v6088
        %vm6246 = vcmp.eq.f32.partialorder %v6245, 8.507059e+37
        %v6247 = vand.u32 %v6088, 2147483648
        %v6248 = vor.u32 1.1754944e-38, %v6247
        %v6249 = vsel %vm6246, %v6248, %v6244
        %v6250 = vmul.f32 1.0, %v6249
        %v6251 = vrcp.pop %v6089
        %v6252 = vmul.f32 %v6089, %v6251
        %v6253 = vsub.f32 1.0, %v6252
        %v6254 = vmul.f32 %v6251, %v6253
        %v6255 = vadd.f32 %v6251, %v6254
        %vm6256 = vweird.f32 %v6089
        %vm6257 = vweird.f32 %v6251
        %vm6258 = vmor %vm6256, %vm6257
        %v6259 = vsel %vm6258, %v6251, %v6255
        %v6260 = vand.u32 2147483647, %v6089
        %vm6261 = vcmp.eq.f32.partialorder %v6260, 8.507059e+37
        %v6262 = vand.u32 %v6089, 2147483648
        %v6263 = vor.u32 1.1754944e-38, %v6262
        %v6264 = vsel %vm6261, %v6263, %v6259
        %v6265 = vmul.f32 1.0, %v6264
        %v6266 = vrcp.pop %v6090
        %v6267 = vmul.f32 %v6090, %v6266
        %v6268 = vsub.f32 1.0, %v6267
        %v6269 = vmul.f32 %v6266, %v6268
        %v6270 = vadd.f32 %v6266, %v6269
        %vm6271 = vweird.f32 %v6090
        %vm6272 = vweird.f32 %v6266
        %vm6273 = vmor %vm6271, %vm6272
        %v6274 = vsel %vm6273, %v6266, %v6270
        %v6275 = vand.u32 2147483647, %v6090
        %vm6276 = vcmp.eq.f32.partialorder %v6275, 8.507059e+37
        %v6277 = vand.u32 %v6090, 2147483648
        %v6278 = vor.u32 1.1754944e-38, %v6277
        %v6279 = vsel %vm6276, %v6278, %v6274
        %v6280 = vmul.f32 1.0, %v6279
        %v6281 = vrcp.pop %v6091
        %v6282 = vmul.f32 %v6091, %v6281
        %v6283 = vsub.f32 1.0, %v6282
        %v6284 = vmul.f32 %v6281, %v6283
        %v6285 = vadd.f32 %v6281, %v6284
        %vm6286 = vweird.f32 %v6091
        %vm6287 = vweird.f32 %v6281
        %vm6288 = vmor %vm6286, %vm6287
        %v6289 = vsel %vm6288, %v6281, %v6285
        %v6290 = vand.u32 2147483647, %v6091
        %vm6291 = vcmp.eq.f32.partialorder %v6290, 8.507059e+37
        %v6292 = vand.u32 %v6091, 2147483648
        %v6293 = vor.u32 1.1754944e-38, %v6292
        %v6294 = vsel %vm6291, %v6293, %v6289
        %v6295 = vmul.f32 1.0, %v6294
        %v6296 = vrcp.pop %v6092
        %v6297 = vmul.f32 %v6092, %v6296
        %v6298 = vsub.f32 1.0, %v6297
        %v6299 = vmul.f32 %v6296, %v6298
        %v6300 = vadd.f32 %v6296, %v6299
        %vm6301 = vweird.f32 %v6092
        %vm6302 = vweird.f32 %v6296
        %vm6303 = vmor %vm6301, %vm6302
        %v6304 = vsel %vm6303, %v6296, %v6300
        %v6305 = vand.u32 2147483647, %v6092
        %vm6306 = vcmp.eq.f32.partialorder %v6305, 8.507059e+37
        %v6307 = vand.u32 %v6092, 2147483648
        %v6308 = vor.u32 1.1754944e-38, %v6307
        %v6309 = vsel %vm6306, %v6308, %v6304
        %v6310 = vmul.f32 1.0, %v6309
        %v6311 = vrcp.pop %v6093
        %v6312 = vmul.f32 %v6093, %v6311
        %v6313 = vsub.f32 1.0, %v6312
        %v6314 = vmul.f32 %v6311, %v6313
        %v6315 = vadd.f32 %v6311, %v6314
        %vm6316 = vweird.f32 %v6093
        %vm6317 = vweird.f32 %v6311
        %vm6318 = vmor %vm6316, %vm6317
        %v6319 = vsel %vm6318, %v6311, %v6315
        %v6320 = vand.u32 2147483647, %v6093
        %vm6321 = vcmp.eq.f32.partialorder %v6320, 8.507059e+37
        %v6322 = vand.u32 %v6093, 2147483648
        %v6323 = vor.u32 1.1754944e-38, %v6322
        %v6324 = vsel %vm6321, %v6323, %v6319
        %v6325 = vmul.f32 1.0, %v6324
        %v6326 = vrcp.pop %v6094
        %v6327 = vmul.f32 %v6094, %v6326
        %v6328 = vsub.f32 1.0, %v6327
        %v6329 = vmul.f32 %v6326, %v6328
        %v6330 = vadd.f32 %v6326, %v6329
        %vm6331 = vweird.f32 %v6094
        %vm6332 = vweird.f32 %v6326
        %vm6333 = vmor %vm6331, %vm6332
        %v6334 = vsel %vm6333, %v6326, %v6330
        %v6335 = vand.u32 2147483647, %v6094
        %vm6336 = vcmp.eq.f32.partialorder %v6335, 8.507059e+37
        %v6337 = vand.u32 %v6094, 2147483648
        %v6338 = vor.u32 1.1754944e-38, %v6337
        %v6339 = vsel %vm6336, %v6338, %v6334
        %v6340 = vmul.f32 1.0, %v6339
        %v6341 = vrcp.pop %v6095
        %v6342 = vmul.f32 %v6095, %v6341
        %v6343 = vsub.f32 1.0, %v6342
        %v6344 = vmul.f32 %v6341, %v6343
        %v6345 = vadd.f32 %v6341, %v6344
        %vm6346 = vweird.f32 %v6095
        %vm6347 = vweird.f32 %v6341
        %vm6348 = vmor %vm6346, %vm6347
        %v6349 = vsel %vm6348, %v6341, %v6345
        %v6350 = vand.u32 2147483647, %v6095
        %vm6351 = vcmp.eq.f32.partialorder %v6350, 8.507059e+37
        %v6352 = vand.u32 %v6095, 2147483648
        %v6353 = vor.u32 1.1754944e-38, %v6352
        %v6354 = vsel %vm6351, %v6353, %v6349
        %v6355 = vmul.f32 1.0, %v6354
        %v6356 = vrcp.pop %v6096
        %v6357 = vmul.f32 %v6096, %v6356
        %v6358 = vsub.f32 1.0, %v6357
        %v6359 = vmul.f32 %v6356, %v6358
        %v6360 = vadd.f32 %v6356, %v6359
        %vm6361 = vweird.f32 %v6096
        %vm6362 = vweird.f32 %v6356
        %vm6363 = vmor %vm6361, %vm6362
        %v6364 = vsel %vm6363, %v6356, %v6360
        %v6365 = vand.u32 2147483647, %v6096
        %vm6366 = vcmp.eq.f32.partialorder %v6365, 8.507059e+37
        %v6367 = vand.u32 %v6096, 2147483648
        %v6368 = vor.u32 1.1754944e-38, %v6367
        %v6369 = vsel %vm6366, %v6368, %v6364
        %v6370 = vmul.f32 1.0, %v6369
        %v6371 = vrcp.pop %v6097
        %v6372 = vmul.f32 %v6097, %v6371
        %v6373 = vsub.f32 1.0, %v6372
        %v6374 = vmul.f32 %v6371, %v6373
        %v6375 = vadd.f32 %v6371, %v6374
        %vm6376 = vweird.f32 %v6097
        %vm6377 = vweird.f32 %v6371
        %vm6378 = vmor %vm6376, %vm6377
        %v6379 = vsel %vm6378, %v6371, %v6375
        %v6380 = vand.u32 2147483647, %v6097
        %vm6381 = vcmp.eq.f32.partialorder %v6380, 8.507059e+37
        %v6382 = vand.u32 %v6097, 2147483648
        %v6383 = vor.u32 1.1754944e-38, %v6382
        %v6384 = vsel %vm6381, %v6383, %v6379
        %v6385 = vmul.f32 1.0, %v6384
        %v6386 = vrcp.pop %v6098
        %v6387 = vmul.f32 %v6098, %v6386
        %v6388 = vsub.f32 1.0, %v6387
        %v6389 = vmul.f32 %v6386, %v6388
        %v6390 = vadd.f32 %v6386, %v6389
        %vm6391 = vweird.f32 %v6098
        %vm6392 = vweird.f32 %v6386
        %vm6393 = vmor %vm6391, %vm6392
        %v6394 = vsel %vm6393, %v6386, %v6390
        %v6395 = vand.u32 2147483647, %v6098
        %vm6396 = vcmp.eq.f32.partialorder %v6395, 8.507059e+37
        %v6397 = vand.u32 %v6098, 2147483648
        %v6398 = vor.u32 1.1754944e-38, %v6397
        %v6399 = vsel %vm6396, %v6398, %v6394
        %v6400 = vmul.f32 1.0, %v6399
        %v6401 = vrcp.pop %v6099
        %v6402 = vmul.f32 %v6099, %v6401
        %v6403 = vsub.f32 1.0, %v6402
        %v6404 = vmul.f32 %v6401, %v6403
        %v6405 = vadd.f32 %v6401, %v6404
        %vm6406 = vweird.f32 %v6099
        %vm6407 = vweird.f32 %v6401
        %vm6408 = vmor %vm6406, %vm6407
        %v6409 = vsel %vm6408, %v6401, %v6405
        %v6410 = vand.u32 2147483647, %v6099
        %vm6411 = vcmp.eq.f32.partialorder %v6410, 8.507059e+37
        %v6412 = vand.u32 %v6099, 2147483648
        %v6413 = vor.u32 1.1754944e-38, %v6412
        %v6414 = vsel %vm6411, %v6413, %v6409
        %v6415 = vmul.f32 1.0, %v6414
        %v6416 = vrcp.pop %v6100
        %v6417 = vmul.f32 %v6100, %v6416
        %v6418 = vsub.f32 1.0, %v6417
        %v6419 = vmul.f32 %v6416, %v6418
        %v6420 = vadd.f32 %v6416, %v6419
        %vm6421 = vweird.f32 %v6100
        %vm6422 = vweird.f32 %v6416
        %vm6423 = vmor %vm6421, %vm6422
        %v6424 = vsel %vm6423, %v6416, %v6420
        %v6425 = vand.u32 2147483647, %v6100
        %vm6426 = vcmp.eq.f32.partialorder %v6425, 8.507059e+37
        %v6427 = vand.u32 %v6100, 2147483648
        %v6428 = vor.u32 1.1754944e-38, %v6427
        %v6429 = vsel %vm6426, %v6428, %v6424
        %v6430 = vmul.f32 1.0, %v6429
        %v6431 = vrcp.pop %v6101
        %v6432 = vmul.f32 %v6101, %v6431
        %v6433 = vsub.f32 1.0, %v6432
        %v6434 = vmul.f32 %v6431, %v6433
        %v6435 = vadd.f32 %v6431, %v6434
        %vm6436 = vweird.f32 %v6101
        %vm6437 = vweird.f32 %v6431
        %vm6438 = vmor %vm6436, %vm6437
        %v6439 = vsel %vm6438, %v6431, %v6435
        %v6440 = vand.u32 2147483647, %v6101
        %vm6441 = vcmp.eq.f32.partialorder %v6440, 8.507059e+37
        %v6442 = vand.u32 %v6101, 2147483648
        %v6443 = vor.u32 1.1754944e-38, %v6442
        %v6444 = vsel %vm6441, %v6443, %v6439
        %v6445 = vmul.f32 1.0, %v6444
        %v6446 = vrcp.pop %v6102
        %v6447 = vmul.f32 %v6102, %v6446
        %v6448 = vsub.f32 1.0, %v6447
        %v6449 = vmul.f32 %v6446, %v6448
        %v6450 = vadd.f32 %v6446, %v6449
        %vm6451 = vweird.f32 %v6102
        %vm6452 = vweird.f32 %v6446
        %vm6453 = vmor %vm6451, %vm6452
        %v6454 = vsel %vm6453, %v6446, %v6450
        %v6455 = vand.u32 2147483647, %v6102
        %vm6456 = vcmp.eq.f32.partialorder %v6455, 8.507059e+37
        %v6457 = vand.u32 %v6102, 2147483648
        %v6458 = vor.u32 1.1754944e-38, %v6457
        %v6459 = vsel %vm6456, %v6458, %v6454
        %v6460 = vmul.f32 1.0, %v6459
        %v6461 = vrcp.pop %v6103
        %v6462 = vmul.f32 %v6103, %v6461
        %v6463 = vsub.f32 1.0, %v6462
        %v6464 = vmul.f32 %v6461, %v6463
        %v6465 = vadd.f32 %v6461, %v6464
        %vm6466 = vweird.f32 %v6103
        %vm6467 = vweird.f32 %v6461
        %vm6468 = vmor %vm6466, %vm6467
        %v6469 = vsel %vm6468, %v6461, %v6465
        %v6470 = vand.u32 2147483647, %v6103
        %vm6471 = vcmp.eq.f32.partialorder %v6470, 8.507059e+37
        %v6472 = vand.u32 %v6103, 2147483648
        %v6473 = vor.u32 1.1754944e-38, %v6472
        %v6474 = vsel %vm6471, %v6473, %v6469
        %v6475 = vmul.f32 1.0, %v6474
        %v6476 = vrcp.pop %v6104
        %v6477 = vmul.f32 %v6104, %v6476
        %v6478 = vsub.f32 1.0, %v6477
        %v6479 = vmul.f32 %v6476, %v6478
        %v6480 = vadd.f32 %v6476, %v6479
        %vm6481 = vweird.f32 %v6104
        %vm6482 = vweird.f32 %v6476
        %vm6483 = vmor %vm6481, %vm6482
        %v6484 = vsel %vm6483, %v6476, %v6480
        %v6485 = vand.u32 2147483647, %v6104
        %vm6486 = vcmp.eq.f32.partialorder %v6485, 8.507059e+37
        %v6487 = vand.u32 %v6104, 2147483648
        %v6488 = vor.u32 1.1754944e-38, %v6487
        %v6489 = vsel %vm6486, %v6488, %v6484
        %v6490 = vmul.f32 1.0, %v6489
        %v6491 = vrcp.pop %v6105
        %v6492 = vmul.f32 %v6105, %v6491
        %v6493 = vsub.f32 1.0, %v6492
        %v6494 = vmul.f32 %v6491, %v6493
        %v6495 = vadd.f32 %v6491, %v6494
        %vm6496 = vweird.f32 %v6105
        %vm6497 = vweird.f32 %v6491
        %vm6498 = vmor %vm6496, %vm6497
        %v6499 = vsel %vm6498, %v6491, %v6495
        %v6500 = vand.u32 2147483647, %v6105
        %vm6501 = vcmp.eq.f32.partialorder %v6500, 8.507059e+37
        %v6502 = vand.u32 %v6105, 2147483648
        %v6503 = vor.u32 1.1754944e-38, %v6502
        %v6504 = vsel %vm6501, %v6503, %v6499
        %v6505 = vmul.f32 1.0, %v6504
        %v6506 = vrcp.pop %v6106
        %v6507 = vmul.f32 %v6106, %v6506
        %v6508 = vsub.f32 1.0, %v6507
        %v6509 = vmul.f32 %v6506, %v6508
        %v6510 = vadd.f32 %v6506, %v6509
        %vm6511 = vweird.f32 %v6106
        %vm6512 = vweird.f32 %v6506
        %vm6513 = vmor %vm6511, %vm6512
        %v6514 = vsel %vm6513, %v6506, %v6510
        %v6515 = vand.u32 2147483647, %v6106
        %vm6516 = vcmp.eq.f32.partialorder %v6515, 8.507059e+37
        %v6517 = vand.u32 %v6106, 2147483648
        %v6518 = vor.u32 1.1754944e-38, %v6517
        %v6519 = vsel %vm6516, %v6518, %v6514
        %v6520 = vmul.f32 1.0, %v6519
        %v6521 = vrcp.pop %v6107
        %v6522 = vmul.f32 %v6107, %v6521
        %v6523 = vsub.f32 1.0, %v6522
        %v6524 = vmul.f32 %v6521, %v6523
        %v6525 = vadd.f32 %v6521, %v6524
        %vm6526 = vweird.f32 %v6107
        %vm6527 = vweird.f32 %v6521
        %vm6528 = vmor %vm6526, %vm6527
        %v6529 = vsel %vm6528, %v6521, %v6525
        %v6530 = vand.u32 2147483647, %v6107
        %vm6531 = vcmp.eq.f32.partialorder %v6530, 8.507059e+37
        %v6532 = vand.u32 %v6107, 2147483648
        %v6533 = vor.u32 1.1754944e-38, %v6532
        %v6534 = vsel %vm6531, %v6533, %v6529
        %v6535 = vmul.f32 1.0, %v6534
        %v6536 = vrcp.pop %v6108
        %v6537 = vmul.f32 %v6108, %v6536
        %v6538 = vsub.f32 1.0, %v6537
        %v6539 = vmul.f32 %v6536, %v6538
        %v6540 = vadd.f32 %v6536, %v6539
        %vm6541 = vweird.f32 %v6108
        %vm6542 = vweird.f32 %v6536
        %vm6543 = vmor %vm6541, %vm6542
        %v6544 = vsel %vm6543, %v6536, %v6540
        %v6545 = vand.u32 2147483647, %v6108
        %vm6546 = vcmp.eq.f32.partialorder %v6545, 8.507059e+37
        %v6547 = vand.u32 %v6108, 2147483648
        %v6548 = vor.u32 1.1754944e-38, %v6547
        %v6549 = vsel %vm6546, %v6548, %v6544
        %v6550 = vmul.f32 1.0, %v6549
        %v6551 = vrcp.pop %v6109
        %v6552 = vmul.f32 %v6109, %v6551
        %v6553 = vsub.f32 1.0, %v6552
        %v6554 = vmul.f32 %v6551, %v6553
        %v6555 = vadd.f32 %v6551, %v6554
        %vm6556 = vweird.f32 %v6109
        %vm6557 = vweird.f32 %v6551
        %vm6558 = vmor %vm6556, %vm6557
        %v6559 = vsel %vm6558, %v6551, %v6555
        %v6560 = vand.u32 2147483647, %v6109
        %vm6561 = vcmp.eq.f32.partialorder %v6560, 8.507059e+37
        %v6562 = vand.u32 %v6109, 2147483648
        %v6563 = vor.u32 1.1754944e-38, %v6562
        %v6564 = vsel %vm6561, %v6563, %v6559
        %v6565 = vmul.f32 1.0, %v6564
        %v6566 = vrcp.pop %v6110
        %v6567 = vmul.f32 %v6110, %v6566
        %v6568 = vsub.f32 1.0, %v6567
        %v6569 = vmul.f32 %v6566, %v6568
        %v6570 = vadd.f32 %v6566, %v6569
        %vm6571 = vweird.f32 %v6110
        %vm6572 = vweird.f32 %v6566
        %vm6573 = vmor %vm6571, %vm6572
        %v6574 = vsel %vm6573, %v6566, %v6570
        %v6575 = vand.u32 2147483647, %v6110
        %vm6576 = vcmp.eq.f32.partialorder %v6575, 8.507059e+37
        %v6577 = vand.u32 %v6110, 2147483648
        %v6578 = vor.u32 1.1754944e-38, %v6577
        %v6579 = vsel %vm6576, %v6578, %v6574
        %v6580 = vmul.f32 1.0, %v6579
        %v6581 = vrcp.pop %v6111
        %v6582 = vmul.f32 %v6111, %v6581
        %v6583 = vsub.f32 1.0, %v6582
        %v6584 = vmul.f32 %v6581, %v6583
        %v6585 = vadd.f32 %v6581, %v6584
        %vm6586 = vweird.f32 %v6111
        %vm6587 = vweird.f32 %v6581
        %vm6588 = vmor %vm6586, %vm6587
        %v6589 = vsel %vm6588, %v6581, %v6585
        %v6590 = vand.u32 2147483647, %v6111
        %vm6591 = vcmp.eq.f32.partialorder %v6590, 8.507059e+37
        %v6592 = vand.u32 %v6111, 2147483648
        %v6593 = vor.u32 1.1754944e-38, %v6592
        %v6594 = vsel %vm6591, %v6593, %v6589
        %v6595 = vmul.f32 1.0, %v6594
        %v6596 = vrcp.pop %v6112
        %v6597 = vmul.f32 %v6112, %v6596
        %v6598 = vsub.f32 1.0, %v6597
        %v6599 = vmul.f32 %v6596, %v6598
        %v6600 = vadd.f32 %v6596, %v6599
        %vm6601 = vweird.f32 %v6112
        %vm6602 = vweird.f32 %v6596
        %vm6603 = vmor %vm6601, %vm6602
        %v6604 = vsel %vm6603, %v6596, %v6600
        %v6605 = vand.u32 2147483647, %v6112
        %vm6606 = vcmp.eq.f32.partialorder %v6605, 8.507059e+37
        %v6607 = vand.u32 %v6112, 2147483648
        %v6608 = vor.u32 1.1754944e-38, %v6607
        %v6609 = vsel %vm6606, %v6608, %v6604
        %v6610 = vmul.f32 1.0, %v6609
        %v6611 = vrcp.pop %v6113
        %v6612 = vmul.f32 %v6113, %v6611
        %v6613 = vsub.f32 1.0, %v6612
        %v6614 = vmul.f32 %v6611, %v6613
        %v6615 = vadd.f32 %v6611, %v6614
        %vm6616 = vweird.f32 %v6113
        %vm6617 = vweird.f32 %v6611
        %vm6618 = vmor %vm6616, %vm6617
        %v6619 = vsel %vm6618, %v6611, %v6615
        %v6620 = vand.u32 2147483647, %v6113
        %vm6621 = vcmp.eq.f32.partialorder %v6620, 8.507059e+37
        %v6622 = vand.u32 %v6113, 2147483648
        %v6623 = vor.u32 1.1754944e-38, %v6622
        %v6624 = vsel %vm6621, %v6623, %v6619
        %v6625 = vmul.f32 1.0, %v6624
        %v6626 = vrcp.pop %v6114
        %v6627 = vmul.f32 %v6114, %v6626
        %v6628 = vsub.f32 1.0, %v6627
        %v6629 = vmul.f32 %v6626, %v6628
        %v6630 = vadd.f32 %v6626, %v6629
        %vm6631 = vweird.f32 %v6114
        %vm6632 = vweird.f32 %v6626
        %vm6633 = vmor %vm6631, %vm6632
        %v6634 = vsel %vm6633, %v6626, %v6630
        %v6635 = vand.u32 2147483647, %v6114
        %vm6636 = vcmp.eq.f32.partialorder %v6635, 8.507059e+37
        %v6637 = vand.u32 %v6114, 2147483648
        %v6638 = vor.u32 1.1754944e-38, %v6637
        %v6639 = vsel %vm6636, %v6638, %v6634
        %v6640 = vmul.f32 1.0, %v6639
        %v6641 = vrcp.pop %v6115
        %v6642 = vmul.f32 %v6115, %v6641
        %v6643 = vsub.f32 1.0, %v6642
        %v6644 = vmul.f32 %v6641, %v6643
        %v6645 = vadd.f32 %v6641, %v6644
        %vm6646 = vweird.f32 %v6115
        %vm6647 = vweird.f32 %v6641
        %vm6648 = vmor %vm6646, %vm6647
        %v6649 = vsel %vm6648, %v6641, %v6645
        %v6650 = vand.u32 2147483647, %v6115
        %vm6651 = vcmp.eq.f32.partialorder %v6650, 8.507059e+37
        %v6652 = vand.u32 %v6115, 2147483648
        %v6653 = vor.u32 1.1754944e-38, %v6652
        %v6654 = vsel %vm6651, %v6653, %v6649
        %v6655 = vmul.f32 1.0, %v6654
        %v6656 = vrcp.pop %v6116
        %v6657 = vmul.f32 %v6116, %v6656
        %v6658 = vsub.f32 1.0, %v6657
        %v6659 = vmul.f32 %v6656, %v6658
        %v6660 = vadd.f32 %v6656, %v6659
        %vm6661 = vweird.f32 %v6116
        %vm6662 = vweird.f32 %v6656
        %vm6663 = vmor %vm6661, %vm6662
        %v6664 = vsel %vm6663, %v6656, %v6660
        %v6665 = vand.u32 2147483647, %v6116
        %vm6666 = vcmp.eq.f32.partialorder %v6665, 8.507059e+37
        %v6667 = vand.u32 %v6116, 2147483648
        %v6668 = vor.u32 1.1754944e-38, %v6667
        %v6669 = vsel %vm6666, %v6668, %v6664
        %v6670 = vmul.f32 1.0, %v6669
        %v6671 = vrcp.pop %v6117
        %v6672 = vmul.f32 %v6117, %v6671
        %v6673 = vsub.f32 1.0, %v6672
        %v6674 = vmul.f32 %v6671, %v6673
        %v6675 = vadd.f32 %v6671, %v6674
        %vm6676 = vweird.f32 %v6117
        %vm6677 = vweird.f32 %v6671
        %vm6678 = vmor %vm6676, %vm6677
        %v6679 = vsel %vm6678, %v6671, %v6675
        %v6680 = vand.u32 2147483647, %v6117
        %vm6681 = vcmp.eq.f32.partialorder %v6680, 8.507059e+37
        %v6682 = vand.u32 %v6117, 2147483648
        %v6683 = vor.u32 1.1754944e-38, %v6682
        %v6684 = vsel %vm6681, %v6683, %v6679
        %v6685 = vmul.f32 1.0, %v6684
        %v6686 = vrcp.pop %v6118
        %v6687 = vmul.f32 %v6118, %v6686
        %v6688 = vsub.f32 1.0, %v6687
        %v6689 = vmul.f32 %v6686, %v6688
        %v6690 = vadd.f32 %v6686, %v6689
        %vm6691 = vweird.f32 %v6118
        %vm6692 = vweird.f32 %v6686
        %vm6693 = vmor %vm6691, %vm6692
        %v6694 = vsel %vm6693, %v6686, %v6690
        %v6695 = vand.u32 2147483647, %v6118
        %vm6696 = vcmp.eq.f32.partialorder %v6695, 8.507059e+37
        %v6697 = vand.u32 %v6118, 2147483648
        %v6698 = vor.u32 1.1754944e-38, %v6697
        %v6699 = vsel %vm6696, %v6698, %v6694
        %v6700 = vmul.f32 1.0, %v6699
        %v6701 = vrcp.pop %v6119
        %v6702 = vmul.f32 %v6119, %v6701
        %v6703 = vsub.f32 1.0, %v6702
        %v6704 = vmul.f32 %v6701, %v6703
        %v6705 = vadd.f32 %v6701, %v6704
        %vm6706 = vweird.f32 %v6119
        %vm6707 = vweird.f32 %v6701
        %vm6708 = vmor %vm6706, %vm6707
        %v6709 = vsel %vm6708, %v6701, %v6705
        %v6710 = vand.u32 2147483647, %v6119
        %vm6711 = vcmp.eq.f32.partialorder %v6710, 8.507059e+37
        %v6712 = vand.u32 %v6119, 2147483648
        %v6713 = vor.u32 1.1754944e-38, %v6712
        %v6714 = vsel %vm6711, %v6713, %v6709
        %v6715 = vmul.f32 1.0, %v6714
        %v6716 = vrcp.pop %v6120
        %v6717 = vmul.f32 %v6120, %v6716
        %v6718 = vsub.f32 1.0, %v6717
        %v6719 = vmul.f32 %v6716, %v6718
        %v6720 = vadd.f32 %v6716, %v6719
        %vm6721 = vweird.f32 %v6120
        %vm6722 = vweird.f32 %v6716
        %vm6723 = vmor %vm6721, %vm6722
        %v6724 = vsel %vm6723, %v6716, %v6720
        %v6725 = vand.u32 2147483647, %v6120
        %vm6726 = vcmp.eq.f32.partialorder %v6725, 8.507059e+37
        %v6727 = vand.u32 %v6120, 2147483648
        %v6728 = vor.u32 1.1754944e-38, %v6727
        %v6729 = vsel %vm6726, %v6728, %v6724
        %v6730 = vmul.f32 1.0, %v6729
        %v6731 = vrcp.pop %v6121
        %v6732 = vmul.f32 %v6121, %v6731
        %v6733 = vsub.f32 1.0, %v6732
        %v6734 = vmul.f32 %v6731, %v6733
        %v6735 = vadd.f32 %v6731, %v6734
        %vm6736 = vweird.f32 %v6121
        %vm6737 = vweird.f32 %v6731
        %vm6738 = vmor %vm6736, %vm6737
        %v6739 = vsel %vm6738, %v6731, %v6735
        %v6740 = vand.u32 2147483647, %v6121
        %vm6741 = vcmp.eq.f32.partialorder %v6740, 8.507059e+37
        %v6742 = vand.u32 %v6121, 2147483648
        %v6743 = vor.u32 1.1754944e-38, %v6742
        %v6744 = vsel %vm6741, %v6743, %v6739
        %v6745 = vmul.f32 1.0, %v6744
        %v6746 = vrcp.pop %v6122
        %v6747 = vmul.f32 %v6122, %v6746
        %v6748 = vsub.f32 1.0, %v6747
        %v6749 = vmul.f32 %v6746, %v6748
        %v6750 = vadd.f32 %v6746, %v6749
        %vm6751 = vweird.f32 %v6122
        %vm6752 = vweird.f32 %v6746
        %vm6753 = vmor %vm6751, %vm6752
        %v6754 = vsel %vm6753, %v6746, %v6750
        %v6755 = vand.u32 2147483647, %v6122
        %vm6756 = vcmp.eq.f32.partialorder %v6755, 8.507059e+37
        %v6757 = vand.u32 %v6122, 2147483648
        %v6758 = vor.u32 1.1754944e-38, %v6757
        %v6759 = vsel %vm6756, %v6758, %v6754
        %v6760 = vmul.f32 1.0, %v6759
        %v6761 = vrcp.pop %v6123
        %v6762 = vmul.f32 %v6123, %v6761
        %v6763 = vsub.f32 1.0, %v6762
        %v6764 = vmul.f32 %v6761, %v6763
        %v6765 = vadd.f32 %v6761, %v6764
        %vm6766 = vweird.f32 %v6123
        %vm6767 = vweird.f32 %v6761
        %vm6768 = vmor %vm6766, %vm6767
        %v6769 = vsel %vm6768, %v6761, %v6765
        %v6770 = vand.u32 2147483647, %v6123
        %vm6771 = vcmp.eq.f32.partialorder %v6770, 8.507059e+37
        %v6772 = vand.u32 %v6123, 2147483648
        %v6773 = vor.u32 1.1754944e-38, %v6772
        %v6774 = vsel %vm6771, %v6773, %v6769
        %v6775 = vmul.f32 1.0, %v6774
        %v6776 = vrcp.pop %v6124
        %v6777 = vmul.f32 %v6124, %v6776
        %v6778 = vsub.f32 1.0, %v6777
        %v6779 = vmul.f32 %v6776, %v6778
        %v6780 = vadd.f32 %v6776, %v6779
        %vm6781 = vweird.f32 %v6124
        %vm6782 = vweird.f32 %v6776
        %vm6783 = vmor %vm6781, %vm6782
        %v6784 = vsel %vm6783, %v6776, %v6780
        %v6785 = vand.u32 2147483647, %v6124
        %vm6786 = vcmp.eq.f32.partialorder %v6785, 8.507059e+37
        %v6787 = vand.u32 %v6124, 2147483648
        %v6788 = vor.u32 1.1754944e-38, %v6787
        %v6789 = vsel %vm6786, %v6788, %v6784
        %v6790 = vmul.f32 1.0, %v6789
        %v6791 = vrcp.pop %v6125
        %v6792 = vmul.f32 %v6125, %v6791
        %v6793 = vsub.f32 1.0, %v6792
        %v6794 = vmul.f32 %v6791, %v6793
        %v6795 = vadd.f32 %v6791, %v6794
        %vm6796 = vweird.f32 %v6125
        %vm6797 = vweird.f32 %v6791
        %vm6798 = vmor %vm6796, %vm6797
        %v6799 = vsel %vm6798, %v6791, %v6795
        %v6800 = vand.u32 2147483647, %v6125
        %vm6801 = vcmp.eq.f32.partialorder %v6800, 8.507059e+37
        %v6802 = vand.u32 %v6125, 2147483648
        %v6803 = vor.u32 1.1754944e-38, %v6802
        %v6804 = vsel %vm6801, %v6803, %v6799
        %v6805 = vmul.f32 1.0, %v6804
        %v6806 = vrcp.pop %v6126
        %v6807 = vmul.f32 %v6126, %v6806
        %v6808 = vsub.f32 1.0, %v6807
        %v6809 = vmul.f32 %v6806, %v6808
        %v6810 = vadd.f32 %v6806, %v6809
        %vm6811 = vweird.f32 %v6126
        %vm6812 = vweird.f32 %v6806
        %vm6813 = vmor %vm6811, %vm6812
        %v6814 = vsel %vm6813, %v6806, %v6810
        %v6815 = vand.u32 2147483647, %v6126
        %vm6816 = vcmp.eq.f32.partialorder %v6815, 8.507059e+37
        %v6817 = vand.u32 %v6126, 2147483648
        %v6818 = vor.u32 1.1754944e-38, %v6817
        %v6819 = vsel %vm6816, %v6818, %v6814
        %v6820 = vmul.f32 1.0, %v6819
        %v6821 = vrcp.pop %v6127
        %v6822 = vmul.f32 %v6127, %v6821
        %v6823 = vsub.f32 1.0, %v6822
        %v6824 = vmul.f32 %v6821, %v6823
        %v6825 = vadd.f32 %v6821, %v6824
        %vm6826 = vweird.f32 %v6127
        %vm6827 = vweird.f32 %v6821
        %vm6828 = vmor %vm6826, %vm6827
        %v6829 = vsel %vm6828, %v6821, %v6825
        %v6830 = vand.u32 2147483647, %v6127
        %vm6831 = vcmp.eq.f32.partialorder %v6830, 8.507059e+37
        %v6832 = vand.u32 %v6127, 2147483648
        %v6833 = vor.u32 1.1754944e-38, %v6832
        %v6834 = vsel %vm6831, %v6833, %v6829
        %v6835 = vmul.f32 1.0, %v6834
        %v6836 = vrcp.pop %v6128
        %v6837 = vmul.f32 %v6128, %v6836
        %v6838 = vsub.f32 1.0, %v6837
        %v6839 = vmul.f32 %v6836, %v6838
        %v6840 = vadd.f32 %v6836, %v6839
        %vm6841 = vweird.f32 %v6128
        %vm6842 = vweird.f32 %v6836
        %vm6843 = vmor %vm6841, %vm6842
        %v6844 = vsel %vm6843, %v6836, %v6840
        %v6845 = vand.u32 2147483647, %v6128
        %vm6846 = vcmp.eq.f32.partialorder %v6845, 8.507059e+37
        %v6847 = vand.u32 %v6128, 2147483648
        %v6848 = vor.u32 1.1754944e-38, %v6847
        %v6849 = vsel %vm6846, %v6848, %v6844
        %v6850 = vmul.f32 1.0, %v6849
        %v6851 = vrcp.pop %v6129
        %v6852 = vmul.f32 %v6129, %v6851
        %v6853 = vsub.f32 1.0, %v6852
        %v6854 = vmul.f32 %v6851, %v6853
        %v6855 = vadd.f32 %v6851, %v6854
        %vm6856 = vweird.f32 %v6129
        %vm6857 = vweird.f32 %v6851
        %vm6858 = vmor %vm6856, %vm6857
        %v6859 = vsel %vm6858, %v6851, %v6855
        %v6860 = vand.u32 2147483647, %v6129
        %vm6861 = vcmp.eq.f32.partialorder %v6860, 8.507059e+37
        %v6862 = vand.u32 %v6129, 2147483648
        %v6863 = vor.u32 1.1754944e-38, %v6862
        %v6864 = vsel %vm6861, %v6863, %v6859
        %v6865 = vmul.f32 1.0, %v6864
        %v6866 = vrcp.pop %v6130
        %v6867 = vmul.f32 %v6130, %v6866
        %v6868 = vsub.f32 1.0, %v6867
        %v6869 = vmul.f32 %v6866, %v6868
        %v6870 = vadd.f32 %v6866, %v6869
        %vm6871 = vweird.f32 %v6130
        %vm6872 = vweird.f32 %v6866
        %vm6873 = vmor %vm6871, %vm6872
        %v6874 = vsel %vm6873, %v6866, %v6870
        %v6875 = vand.u32 2147483647, %v6130
        %vm6876 = vcmp.eq.f32.partialorder %v6875, 8.507059e+37
        %v6877 = vand.u32 %v6130, 2147483648
        %v6878 = vor.u32 1.1754944e-38, %v6877
        %v6879 = vsel %vm6876, %v6878, %v6874
        %v6880 = vmul.f32 1.0, %v6879
        %v6881 = vrcp.pop %v6131
        %v6882 = vmul.f32 %v6131, %v6881
        %v6883 = vsub.f32 1.0, %v6882
        %v6884 = vmul.f32 %v6881, %v6883
        %v6885 = vadd.f32 %v6881, %v6884
        %vm6886 = vweird.f32 %v6131
        %vm6887 = vweird.f32 %v6881
        %vm6888 = vmor %vm6886, %vm6887
        %v6889 = vsel %vm6888, %v6881, %v6885
        %v6890 = vand.u32 2147483647, %v6131
        %vm6891 = vcmp.eq.f32.partialorder %v6890, 8.507059e+37
        %v6892 = vand.u32 %v6131, 2147483648
        %v6893 = vor.u32 1.1754944e-38, %v6892
        %v6894 = vsel %vm6891, %v6893, %v6889
        %v6895 = vmul.f32 1.0, %v6894
        %v6896 = vrcp.pop %v6132
        %v6897 = vmul.f32 %v6132, %v6896
        %v6898 = vsub.f32 1.0, %v6897
        %v6899 = vmul.f32 %v6896, %v6898
        %v6900 = vadd.f32 %v6896, %v6899
        %vm6901 = vweird.f32 %v6132
        %vm6902 = vweird.f32 %v6896
        %vm6903 = vmor %vm6901, %vm6902
        %v6904 = vsel %vm6903, %v6896, %v6900
        %v6905 = vand.u32 2147483647, %v6132
        %vm6906 = vcmp.eq.f32.partialorder %v6905, 8.507059e+37
        %v6907 = vand.u32 %v6132, 2147483648
        %v6908 = vor.u32 1.1754944e-38, %v6907
        %v6909 = vsel %vm6906, %v6908, %v6904
        %v6910 = vmul.f32 1.0, %v6909
        %v6911 = vrcp.pop %v6133
        %v6912 = vmul.f32 %v6133, %v6911
        %v6913 = vsub.f32 1.0, %v6912
        %v6914 = vmul.f32 %v6911, %v6913
        %v6915 = vadd.f32 %v6911, %v6914
        %vm6916 = vweird.f32 %v6133
        %vm6917 = vweird.f32 %v6911
        %vm6918 = vmor %vm6916, %vm6917
        %v6919 = vsel %vm6918, %v6911, %v6915
        %v6920 = vand.u32 2147483647, %v6133
        %vm6921 = vcmp.eq.f32.partialorder %v6920, 8.507059e+37
        %v6922 = vand.u32 %v6133, 2147483648
        %v6923 = vor.u32 1.1754944e-38, %v6922
        %v6924 = vsel %vm6921, %v6923, %v6919
        %v6925 = vmul.f32 1.0, %v6924
        %v6926 = vrcp.pop %v6134
        %v6927 = vmul.f32 %v6134, %v6926
        %v6928 = vsub.f32 1.0, %v6927
        %v6929 = vmul.f32 %v6926, %v6928
        %v6930 = vadd.f32 %v6926, %v6929
        %vm6931 = vweird.f32 %v6134
        %vm6932 = vweird.f32 %v6926
        %vm6933 = vmor %vm6931, %vm6932
        %v6934 = vsel %vm6933, %v6926, %v6930
        %v6935 = vand.u32 2147483647, %v6134
        %vm6936 = vcmp.eq.f32.partialorder %v6935, 8.507059e+37
        %v6937 = vand.u32 %v6134, 2147483648
        %v6938 = vor.u32 1.1754944e-38, %v6937
        %v6939 = vsel %vm6936, %v6938, %v6934
        %v6940 = vmul.f32 1.0, %v6939
        %v6941 = vrcp.pop %v6135
        %v6942 = vmul.f32 %v6135, %v6941
        %v6943 = vsub.f32 1.0, %v6942
        %v6944 = vmul.f32 %v6941, %v6943
        %v6945 = vadd.f32 %v6941, %v6944
        %vm6946 = vweird.f32 %v6135
        %vm6947 = vweird.f32 %v6941
        %vm6948 = vmor %vm6946, %vm6947
        %v6949 = vsel %vm6948, %v6941, %v6945
        %v6950 = vand.u32 2147483647, %v6135
        %vm6951 = vcmp.eq.f32.partialorder %v6950, 8.507059e+37
        %v6952 = vand.u32 %v6135, 2147483648
        %v6953 = vor.u32 1.1754944e-38, %v6952
        %v6954 = vsel %vm6951, %v6953, %v6949
        %v6955 = vmul.f32 1.0, %v6954
        %v6956 = vrcp.pop %v6136
        %v6957 = vmul.f32 %v6136, %v6956
        %v6958 = vsub.f32 1.0, %v6957
        %v6959 = vmul.f32 %v6956, %v6958
        %v6960 = vadd.f32 %v6956, %v6959
        %vm6961 = vweird.f32 %v6136
        %vm6962 = vweird.f32 %v6956
        %vm6963 = vmor %vm6961, %vm6962
        %v6964 = vsel %vm6963, %v6956, %v6960
        %v6965 = vand.u32 2147483647, %v6136
        %vm6966 = vcmp.eq.f32.partialorder %v6965, 8.507059e+37
        %v6967 = vand.u32 %v6136, 2147483648
        %v6968 = vor.u32 1.1754944e-38, %v6967
        %v6969 = vsel %vm6966, %v6968, %v6964
        %v6970 = vmul.f32 1.0, %v6969
        %v6971 = vrcp.pop %v6137
        %v6972 = vmul.f32 %v6137, %v6971
        %v6973 = vsub.f32 1.0, %v6972
        %v6974 = vmul.f32 %v6971, %v6973
        %v6975 = vadd.f32 %v6971, %v6974
        %vm6976 = vweird.f32 %v6137
        %vm6977 = vweird.f32 %v6971
        %vm6978 = vmor %vm6976, %vm6977
        %v6979 = vsel %vm6978, %v6971, %v6975
        %v6980 = vand.u32 2147483647, %v6137
        %vm6981 = vcmp.eq.f32.partialorder %v6980, 8.507059e+37
        %v6982 = vand.u32 %v6137, 2147483648
        %v6983 = vor.u32 1.1754944e-38, %v6982
        %v6984 = vsel %vm6981, %v6983, %v6979
        %v6985 = vmul.f32 1.0, %v6984
        %v6986 = vrcp.pop %v6138
        %v6987 = vmul.f32 %v6138, %v6986
        %v6988 = vsub.f32 1.0, %v6987
        %v6989 = vmul.f32 %v6986, %v6988
        %v6990 = vadd.f32 %v6986, %v6989
        %vm6991 = vweird.f32 %v6138
        %vm6992 = vweird.f32 %v6986
        %vm6993 = vmor %vm6991, %vm6992
        %v6994 = vsel %vm6993, %v6986, %v6990
        %v6995 = vand.u32 2147483647, %v6138
        %vm6996 = vcmp.eq.f32.partialorder %v6995, 8.507059e+37
        %v6997 = vand.u32 %v6138, 2147483648
        %v6998 = vor.u32 1.1754944e-38, %v6997
        %v6999 = vsel %vm6996, %v6998, %v6994
        %v7000 = vmul.f32 1.0, %v6999
        %v7001 = vrcp.pop %v6139
        %v7002 = vmul.f32 %v6139, %v7001
        %v7003 = vsub.f32 1.0, %v7002
        %v7004 = vmul.f32 %v7001, %v7003
        %v7005 = vadd.f32 %v7001, %v7004
        %vm7006 = vweird.f32 %v6139
        %vm7007 = vweird.f32 %v7001
        %vm7008 = vmor %vm7006, %vm7007
        %v7009 = vsel %vm7008, %v7001, %v7005
        %v7010 = vand.u32 2147483647, %v6139
        %vm7011 = vcmp.eq.f32.partialorder %v7010, 8.507059e+37
        %v7012 = vand.u32 %v6139, 2147483648
        %v7013 = vor.u32 1.1754944e-38, %v7012
        %v7014 = vsel %vm7011, %v7013, %v7009
        %v7015 = vmul.f32 1.0, %v7014
        %v7016 = vrcp.pop %v6140
        %v7017 = vmul.f32 %v6140, %v7016
        %v7018 = vsub.f32 1.0, %v7017
        %v7019 = vmul.f32 %v7016, %v7018
        %v7020 = vadd.f32 %v7016, %v7019
        %vm7021 = vweird.f32 %v6140
        %vm7022 = vweird.f32 %v7016
        %vm7023 = vmor %vm7021, %vm7022
        %v7024 = vsel %vm7023, %v7016, %v7020
        %v7025 = vand.u32 2147483647, %v6140
        %vm7026 = vcmp.eq.f32.partialorder %v7025, 8.507059e+37
        %v7027 = vand.u32 %v6140, 2147483648
        %v7028 = vor.u32 1.1754944e-38, %v7027
        %v7029 = vsel %vm7026, %v7028, %v7024
        %v7030 = vmul.f32 1.0, %v7029
        %v7031 = vrcp.pop %v6141
        %v7032 = vmul.f32 %v6141, %v7031
        %v7033 = vsub.f32 1.0, %v7032
        %v7034 = vmul.f32 %v7031, %v7033
        %v7035 = vadd.f32 %v7031, %v7034
        %vm7036 = vweird.f32 %v6141
        %vm7037 = vweird.f32 %v7031
        %vm7038 = vmor %vm7036, %vm7037
        %v7039 = vsel %vm7038, %v7031, %v7035
        %v7040 = vand.u32 2147483647, %v6141
        %vm7041 = vcmp.eq.f32.partialorder %v7040, 8.507059e+37
        %v7042 = vand.u32 %v6141, 2147483648
        %v7043 = vor.u32 1.1754944e-38, %v7042
        %v7044 = vsel %vm7041, %v7043, %v7039
        %v7045 = vmul.f32 1.0, %v7044
        %v7046 = vrcp.pop %v6142
        %v7047 = vmul.f32 %v6142, %v7046
        %v7048 = vsub.f32 1.0, %v7047
        %v7049 = vmul.f32 %v7046, %v7048
        %v7050 = vadd.f32 %v7046, %v7049
        %vm7051 = vweird.f32 %v6142
        %vm7052 = vweird.f32 %v7046
        %vm7053 = vmor %vm7051, %vm7052
        %v7054 = vsel %vm7053, %v7046, %v7050
        %v7055 = vand.u32 2147483647, %v6142
        %vm7056 = vcmp.eq.f32.partialorder %v7055, 8.507059e+37
        %v7057 = vand.u32 %v6142, 2147483648
        %v7058 = vor.u32 1.1754944e-38, %v7057
        %v7059 = vsel %vm7056, %v7058, %v7054
        %v7060 = vmul.f32 1.0, %v7059
        %v7061 = vrcp.pop %v6143
        %v7062 = vmul.f32 %v6143, %v7061
        %v7063 = vsub.f32 1.0, %v7062
        %v7064 = vmul.f32 %v7061, %v7063
        %v7065 = vadd.f32 %v7061, %v7064
        %vm7066 = vweird.f32 %v6143
        %vm7067 = vweird.f32 %v7061
        %vm7068 = vmor %vm7066, %vm7067
        %v7069 = vsel %vm7068, %v7061, %v7065
        %v7070 = vand.u32 2147483647, %v6143
        %vm7071 = vcmp.eq.f32.partialorder %v7070, 8.507059e+37
        %v7072 = vand.u32 %v6143, 2147483648
        %v7073 = vor.u32 1.1754944e-38, %v7072
        %v7074 = vsel %vm7071, %v7073, %v7069
        %v7075 = vmul.f32 1.0, %v7074
        %v7076 = vrcp.pop %v6144
        %v7077 = vmul.f32 %v6144, %v7076
        %v7078 = vsub.f32 1.0, %v7077
        %v7079 = vmul.f32 %v7076, %v7078
        %v7080 = vadd.f32 %v7076, %v7079
        %vm7081 = vweird.f32 %v6144
        %vm7082 = vweird.f32 %v7076
        %vm7083 = vmor %vm7081, %vm7082
        %v7084 = vsel %vm7083, %v7076, %v7080
        %v7085 = vand.u32 2147483647, %v6144
        %vm7086 = vcmp.eq.f32.partialorder %v7085, 8.507059e+37
        %v7087 = vand.u32 %v6144, 2147483648
        %v7088 = vor.u32 1.1754944e-38, %v7087
        %v7089 = vsel %vm7086, %v7088, %v7084
        %v7090 = vmul.f32 1.0, %v7089
        %v7091 = vrcp.pop %v6145
        %v7092 = vmul.f32 %v6145, %v7091
        %v7093 = vsub.f32 1.0, %v7092
        %v7094 = vmul.f32 %v7091, %v7093
        %v7095 = vadd.f32 %v7091, %v7094
        %vm7096 = vweird.f32 %v6145
        %vm7097 = vweird.f32 %v7091
        %vm7098 = vmor %vm7096, %vm7097
        %v7099 = vsel %vm7098, %v7091, %v7095
        %v7100 = vand.u32 2147483647, %v6145
        %vm7101 = vcmp.eq.f32.partialorder %v7100, 8.507059e+37
        %v7102 = vand.u32 %v6145, 2147483648
        %v7103 = vor.u32 1.1754944e-38, %v7102
        %v7104 = vsel %vm7101, %v7103, %v7099
        %v7105 = vmul.f32 1.0, %v7104
        %v7106 = vmul.f32 %v5699, %v6160
        %v7107 = vmul.f32 %v5702, %v6175
        %v7108 = vmul.f32 %v5705, %v6190
        %v7109 = vmul.f32 %v5708, %v6205
        %v7110 = vmul.f32 %v5711, %v6220
        %v7111 = vmul.f32 %v5714, %v6235
        %v7112 = vmul.f32 %v5717, %v6250
        %v7113 = vmul.f32 %v5720, %v6265
        %v7114 = vmul.f32 %v5723, %v6280
        %v7115 = vmul.f32 %v5726, %v6295
        %v7116 = vmul.f32 %v5729, %v6310
        %v7117 = vmul.f32 %v5732, %v6325
        %v7118 = vmul.f32 %v5735, %v6340
        %v7119 = vmul.f32 %v5738, %v6355
        %v7120 = vmul.f32 %v5741, %v6370
        %v7121 = vmul.f32 %v5744, %v6385
        %v7122 = vmul.f32 %v5747, %v6400
        %v7123 = vmul.f32 %v5750, %v6415
        %v7124 = vmul.f32 %v5753, %v6430
        %v7125 = vmul.f32 %v5756, %v6445
        %v7126 = vmul.f32 %v5759, %v6460
        %v7127 = vmul.f32 %v5762, %v6475
        %v7128 = vmul.f32 %v5765, %v6490
        %v7129 = vmul.f32 %v5768, %v6505
        %v7130 = vmul.f32 %v5771, %v6520
        %v7131 = vmul.f32 %v5774, %v6535
        %v7132 = vmul.f32 %v5777, %v6550
        %v7133 = vmul.f32 %v5780, %v6565
        %v7134 = vmul.f32 %v5783, %v6580
        %v7135 = vmul.f32 %v5786, %v6595
        %v7136 = vmul.f32 %v5789, %v6610
        %v7137 = vmul.f32 %v5792, %v6625
        %v7138 = vmul.f32 %v5795, %v6640
        %v7139 = vmul.f32 %v5798, %v6655
        %v7140 = vmul.f32 %v5801, %v6670
        %v7141 = vmul.f32 %v5804, %v6685
        %v7142 = vmul.f32 %v5807, %v6700
        %v7143 = vmul.f32 %v5810, %v6715
        %v7144 = vmul.f32 %v5813, %v6730
        %v7145 = vmul.f32 %v5816, %v6745
        %v7146 = vmul.f32 %v5819, %v6760
        %v7147 = vmul.f32 %v5822, %v6775
        %v7148 = vmul.f32 %v5825, %v6790
        %v7149 = vmul.f32 %v5828, %v6805
        %v7150 = vmul.f32 %v5831, %v6820
        %v7151 = vmul.f32 %v5834, %v6835
        %v7152 = vmul.f32 %v5837, %v6850
        %v7153 = vmul.f32 %v5840, %v6865
        %v7154 = vmul.f32 %v5843, %v6880
        %v7155 = vmul.f32 %v5846, %v6895
        %v7156 = vmul.f32 %v5849, %v6910
        %v7157 = vmul.f32 %v5852, %v6925
        %v7158 = vmul.f32 %v5855, %v6940
        %v7159 = vmul.f32 %v5858, %v6955
        %v7160 = vmul.f32 %v5861, %v6970
        %v7161 = vmul.f32 %v5864, %v6985
        %v7162 = vmul.f32 %v5867, %v7000
        %v7163 = vmul.f32 %v5870, %v7015
        %v7164 = vmul.f32 %v5873, %v7030
        %v7165 = vmul.f32 %v5876, %v7045
        %v7166 = vmul.f32 %v5879, %v7060
        %v7167 = vmul.f32 %v5882, %v7075
        %v7168 = vmul.f32 %v5885, %v7090
        %v7169 = vmul.f32 %v5888, %v7105
        %v7170 = vld [vmem:[%s13] sm:$0xff]
        %v7171 = vld [vmem:[%s13 + $0x8] sm:$0xff]
        %v7172 = vld [vmem:[%s13 + $0x10] sm:$0xff]
        %v7173 = vld [vmem:[%s13 + $0x18] sm:$0xff]
        %v7174 = vld [vmem:[%s13 + $0x20] sm:$0xff]
        %v7175 = vld [vmem:[%s13 + $0x28] sm:$0xff]
        %v7176 = vld [vmem:[%s13 + $0x30] sm:$0xff]
        %v7177 = vld [vmem:[%s13 + $0x38] sm:$0xff]
        %v7178 = vld [vmem:[%s13 + $0x40] sm:$0xff]
        %v7179 = vld [vmem:[%s13 + $0x48] sm:$0xff]
        %v7180 = vld [vmem:[%s13 + $0x50] sm:$0xff]
        %v7181 = vld [vmem:[%s13 + $0x58] sm:$0xff]
        %v7182 = vld [vmem:[%s13 + $0x60] sm:$0xff]
        %v7183 = vld [vmem:[%s13 + $0x68] sm:$0xff]
        %v7184 = vld [vmem:[%s13 + $0x70] sm:$0xff]
        %v7185 = vld [vmem:[%s13 + $0x78] sm:$0xff]
        %v7186 = vld [vmem:[%s14] sm:$0x1]
        %v7188 = vperm.slane %v7186, 0
        %7190 = vmatpush.msra.mxu0 %v7185
        %7191 = vmatpush.msra.mxu0 %v7184
        %7192 = vmatpush.msra.mxu0 %v7183
        %7193 = vmatpush.msra.mxu0 %v7182
        %7194 = vmatpush.msra.mxu0 %v7181
        %7195 = vmatpush.msra.mxu0 %v7180
        %7196 = vmatpush.msra.mxu0 %v7179
        %7197 = vmatpush.msra.mxu0 %v7178
        %7198 = vmatpush.msra.mxu0 %v7177
        %7199 = vmatpush.msra.mxu0 %v7176
        %7200 = vmatpush.msra.mxu0 %v7175
        %7201 = vmatpush.msra.mxu0 %v7174
        %7202 = vmatpush.msra.mxu0 %v7173
        %7203 = vmatpush.msra.mxu0 %v7172
        %7204 = vmatpush.msra.mxu0 %v7171
        %7205 = vmatpush.msra.mxu0 %v7170
        %7206 = vmatmul.f32.gmra.mxu0 %v7106
        %v7207 = vpop.f32.mrf.mxu0
        %v7208 = vadd.f32 %v7188, %v7207
        %7209 = vmatmul.f32.gmra.mxu0 %v7107
        %v7210 = vpop.f32.mrf.mxu0
        %v7211 = vadd.f32 %v7188, %v7210
        %7212 = vmatmul.f32.gmra.mxu0 %v7108
        %v7213 = vpop.f32.mrf.mxu0
        %v7214 = vadd.f32 %v7188, %v7213
        %7215 = vmatmul.f32.gmra.mxu0 %v7109
        %v7216 = vpop.f32.mrf.mxu0
        %v7217 = vadd.f32 %v7188, %v7216
        %7218 = vmatmul.f32.gmra.mxu0 %v7110
        %v7219 = vpop.f32.mrf.mxu0
        %v7220 = vadd.f32 %v7188, %v7219
        %7221 = vmatmul.f32.gmra.mxu0 %v7111
        %v7222 = vpop.f32.mrf.mxu0
        %v7223 = vadd.f32 %v7188, %v7222
        %7224 = vmatmul.f32.gmra.mxu0 %v7112
        %v7225 = vpop.f32.mrf.mxu0
        %v7226 = vadd.f32 %v7188, %v7225
        %7227 = vmatmul.f32.gmra.mxu0 %v7113
        %v7228 = vpop.f32.mrf.mxu0
        %v7229 = vadd.f32 %v7188, %v7228
        %7230 = vmatmul.f32.gmra.mxu0 %v7114
        %v7231 = vpop.f32.mrf.mxu0
        %v7232 = vadd.f32 %v7188, %v7231
        %7233 = vmatmul.f32.gmra.mxu0 %v7115
        %v7234 = vpop.f32.mrf.mxu0
        %v7235 = vadd.f32 %v7188, %v7234
        %7236 = vmatmul.f32.gmra.mxu0 %v7116
        %v7237 = vpop.f32.mrf.mxu0
        %v7238 = vadd.f32 %v7188, %v7237
        %7239 = vmatmul.f32.gmra.mxu0 %v7117
        %v7240 = vpop.f32.mrf.mxu0
        %v7241 = vadd.f32 %v7188, %v7240
        %7242 = vmatmul.f32.gmra.mxu0 %v7118
        %v7243 = vpop.f32.mrf.mxu0
        %v7244 = vadd.f32 %v7188, %v7243
        %7245 = vmatmul.f32.gmra.mxu0 %v7119
        %v7246 = vpop.f32.mrf.mxu0
        %v7247 = vadd.f32 %v7188, %v7246
        %7248 = vmatmul.f32.gmra.mxu0 %v7120
        %v7249 = vpop.f32.mrf.mxu0
        %v7250 = vadd.f32 %v7188, %v7249
        %7251 = vmatmul.f32.gmra.mxu0 %v7121
        %v7252 = vpop.f32.mrf.mxu0
        %v7253 = vadd.f32 %v7188, %v7252
        %7254 = vmatmul.f32.gmra.mxu0 %v7122
        %v7255 = vpop.f32.mrf.mxu0
        %v7256 = vadd.f32 %v7188, %v7255
        %7257 = vmatmul.f32.gmra.mxu0 %v7123
        %v7258 = vpop.f32.mrf.mxu0
        %v7259 = vadd.f32 %v7188, %v7258
        %7260 = vmatmul.f32.gmra.mxu0 %v7124
        %v7261 = vpop.f32.mrf.mxu0
        %v7262 = vadd.f32 %v7188, %v7261
        %7263 = vmatmul.f32.gmra.mxu0 %v7125
        %v7264 = vpop.f32.mrf.mxu0
        %v7265 = vadd.f32 %v7188, %v7264
        %7266 = vmatmul.f32.gmra.mxu0 %v7126
        %v7267 = vpop.f32.mrf.mxu0
        %v7268 = vadd.f32 %v7188, %v7267
        %7269 = vmatmul.f32.gmra.mxu0 %v7127
        %v7270 = vpop.f32.mrf.mxu0
        %v7271 = vadd.f32 %v7188, %v7270
        %7272 = vmatmul.f32.gmra.mxu0 %v7128
        %v7273 = vpop.f32.mrf.mxu0
        %v7274 = vadd.f32 %v7188, %v7273
        %7275 = vmatmul.f32.gmra.mxu0 %v7129
        %v7276 = vpop.f32.mrf.mxu0
        %v7277 = vadd.f32 %v7188, %v7276
        %7278 = vmatmul.f32.gmra.mxu0 %v7130
        %v7279 = vpop.f32.mrf.mxu0
        %v7280 = vadd.f32 %v7188, %v7279
        %7281 = vmatmul.f32.gmra.mxu0 %v7131
        %v7282 = vpop.f32.mrf.mxu0
        %v7283 = vadd.f32 %v7188, %v7282
        %7284 = vmatmul.f32.gmra.mxu0 %v7132
        %v7285 = vpop.f32.mrf.mxu0
        %v7286 = vadd.f32 %v7188, %v7285
        %7287 = vmatmul.f32.gmra.mxu0 %v7133
        %v7288 = vpop.f32.mrf.mxu0
        %v7289 = vadd.f32 %v7188, %v7288
        %7290 = vmatmul.f32.gmra.mxu0 %v7134
        %v7291 = vpop.f32.mrf.mxu0
        %v7292 = vadd.f32 %v7188, %v7291
        %7293 = vmatmul.f32.gmra.mxu0 %v7135
        %v7294 = vpop.f32.mrf.mxu0
        %v7295 = vadd.f32 %v7188, %v7294
        %7296 = vmatmul.f32.gmra.mxu0 %v7136
        %v7297 = vpop.f32.mrf.mxu0
        %v7298 = vadd.f32 %v7188, %v7297
        %7299 = vmatmul.f32.gmra.mxu0 %v7137
        %v7300 = vpop.f32.mrf.mxu0
        %v7301 = vadd.f32 %v7188, %v7300
        %7302 = vmatmul.f32.gmra.mxu0 %v7138
        %v7303 = vpop.f32.mrf.mxu0
        %v7304 = vadd.f32 %v7188, %v7303
        %7305 = vmatmul.f32.gmra.mxu0 %v7139
        %v7306 = vpop.f32.mrf.mxu0
        %v7307 = vadd.f32 %v7188, %v7306
        %7308 = vmatmul.f32.gmra.mxu0 %v7140
        %v7309 = vpop.f32.mrf.mxu0
        %v7310 = vadd.f32 %v7188, %v7309
        %7311 = vmatmul.f32.gmra.mxu0 %v7141
        %v7312 = vpop.f32.mrf.mxu0
        %v7313 = vadd.f32 %v7188, %v7312
        %7314 = vmatmul.f32.gmra.mxu0 %v7142
        %v7315 = vpop.f32.mrf.mxu0
        %v7316 = vadd.f32 %v7188, %v7315
        %7317 = vmatmul.f32.gmra.mxu0 %v7143
        %v7318 = vpop.f32.mrf.mxu0
        %v7319 = vadd.f32 %v7188, %v7318
        %7320 = vmatmul.f32.gmra.mxu0 %v7144
        %v7321 = vpop.f32.mrf.mxu0
        %v7322 = vadd.f32 %v7188, %v7321
        %7323 = vmatmul.f32.gmra.mxu0 %v7145
        %v7324 = vpop.f32.mrf.mxu0
        %v7325 = vadd.f32 %v7188, %v7324
        %7326 = vmatmul.f32.gmra.mxu0 %v7146
        %v7327 = vpop.f32.mrf.mxu0
        %v7328 = vadd.f32 %v7188, %v7327
        %7329 = vmatmul.f32.gmra.mxu0 %v7147
        %v7330 = vpop.f32.mrf.mxu0
        %v7331 = vadd.f32 %v7188, %v7330
        %7332 = vmatmul.f32.gmra.mxu0 %v7148
        %v7333 = vpop.f32.mrf.mxu0
        %v7334 = vadd.f32 %v7188, %v7333
        %7335 = vmatmul.f32.gmra.mxu0 %v7149
        %v7336 = vpop.f32.mrf.mxu0
        %v7337 = vadd.f32 %v7188, %v7336
        %7338 = vmatmul.f32.gmra.mxu0 %v7150
        %v7339 = vpop.f32.mrf.mxu0
        %v7340 = vadd.f32 %v7188, %v7339
        %7341 = vmatmul.f32.gmra.mxu0 %v7151
        %v7342 = vpop.f32.mrf.mxu0
        %v7343 = vadd.f32 %v7188, %v7342
        %7344 = vmatmul.f32.gmra.mxu0 %v7152
        %v7345 = vpop.f32.mrf.mxu0
        %v7346 = vadd.f32 %v7188, %v7345
        %7347 = vmatmul.f32.gmra.mxu0 %v7153
        %v7348 = vpop.f32.mrf.mxu0
        %v7349 = vadd.f32 %v7188, %v7348
        %7350 = vmatmul.f32.gmra.mxu0 %v7154
        %v7351 = vpop.f32.mrf.mxu0
        %v7352 = vadd.f32 %v7188, %v7351
        %7353 = vmatmul.f32.gmra.mxu0 %v7155
        %v7354 = vpop.f32.mrf.mxu0
        %v7355 = vadd.f32 %v7188, %v7354
        %7356 = vmatmul.f32.gmra.mxu0 %v7156
        %v7357 = vpop.f32.mrf.mxu0
        %v7358 = vadd.f32 %v7188, %v7357
        %7359 = vmatmul.f32.gmra.mxu0 %v7157
        %v7360 = vpop.f32.mrf.mxu0
        %v7361 = vadd.f32 %v7188, %v7360
        %7362 = vmatmul.f32.gmra.mxu0 %v7158
        %v7363 = vpop.f32.mrf.mxu0
        %v7364 = vadd.f32 %v7188, %v7363
        %7365 = vmatmul.f32.gmra.mxu0 %v7159
        %v7366 = vpop.f32.mrf.mxu0
        %v7367 = vadd.f32 %v7188, %v7366
        %7368 = vmatmul.f32.gmra.mxu0 %v7160
        %v7369 = vpop.f32.mrf.mxu0
        %v7370 = vadd.f32 %v7188, %v7369
        %7371 = vmatmul.f32.gmra.mxu0 %v7161
        %v7372 = vpop.f32.mrf.mxu0
        %v7373 = vadd.f32 %v7188, %v7372
        %7374 = vmatmul.f32.gmra.mxu0 %v7162
        %v7375 = vpop.f32.mrf.mxu0
        %v7376 = vadd.f32 %v7188, %v7375
        %7377 = vmatmul.f32.gmra.mxu0 %v7163
        %v7378 = vpop.f32.mrf.mxu0
        %v7379 = vadd.f32 %v7188, %v7378
        %7380 = vmatmul.f32.gmra.mxu0 %v7164
        %v7381 = vpop.f32.mrf.mxu0
        %v7382 = vadd.f32 %v7188, %v7381
        %7383 = vmatmul.f32.gmra.mxu0 %v7165
        %v7384 = vpop.f32.mrf.mxu0
        %v7385 = vadd.f32 %v7188, %v7384
        %7386 = vmatmul.f32.gmra.mxu0 %v7166
        %v7387 = vpop.f32.mrf.mxu0
        %v7388 = vadd.f32 %v7188, %v7387
        %7389 = vmatmul.f32.gmra.mxu0 %v7167
        %v7390 = vpop.f32.mrf.mxu0
        %v7391 = vadd.f32 %v7188, %v7390
        %7392 = vmatmul.f32.gmra.mxu0 %v7168
        %v7393 = vpop.f32.mrf.mxu0
        %v7394 = vadd.f32 %v7188, %v7393
        %7395 = vmatmul.f32.gmra.mxu0 %v7169
        %v7396 = vpop.f32.mrf.mxu0
        %v7397 = vadd.f32 %v7188, %v7396
        %7398 = vdwg.mxu0
        %v7399 = vmul.f32 %v1826, %v7208
        %v7400 = vmul.f32 %v1829, %v7211
        %v7401 = vmul.f32 %v1832, %v7214
        %v7402 = vmul.f32 %v1835, %v7217
        %v7403 = vmul.f32 %v1838, %v7220
        %v7404 = vmul.f32 %v1841, %v7223
        %v7405 = vmul.f32 %v1844, %v7226
        %v7406 = vmul.f32 %v1847, %v7229
        %v7407 = vmul.f32 %v1850, %v7232
        %v7408 = vmul.f32 %v1853, %v7235
        %v7409 = vmul.f32 %v1856, %v7238
        %v7410 = vmul.f32 %v1859, %v7241
        %v7411 = vmul.f32 %v1862, %v7244
        %v7412 = vmul.f32 %v1865, %v7247
        %v7413 = vmul.f32 %v1868, %v7250
        %v7414 = vmul.f32 %v1871, %v7253
        %v7415 = vmul.f32 %v1874, %v7256
        %v7416 = vmul.f32 %v1877, %v7259
        %v7417 = vmul.f32 %v1880, %v7262
        %v7418 = vmul.f32 %v1883, %v7265
        %v7419 = vmul.f32 %v1886, %v7268
        %v7420 = vmul.f32 %v1889, %v7271
        %v7421 = vmul.f32 %v1892, %v7274
        %v7422 = vmul.f32 %v1895, %v7277
        %v7423 = vmul.f32 %v1898, %v7280
        %v7424 = vmul.f32 %v1901, %v7283
        %v7425 = vmul.f32 %v1904, %v7286
        %v7426 = vmul.f32 %v1907, %v7289
        %v7427 = vmul.f32 %v1910, %v7292
        %v7428 = vmul.f32 %v1913, %v7295
        %v7429 = vmul.f32 %v1916, %v7298
        %v7430 = vmul.f32 %v1919, %v7301
        %v7431 = vmul.f32 %v1922, %v7304
        %v7432 = vmul.f32 %v1925, %v7307
        %v7433 = vmul.f32 %v1928, %v7310
        %v7434 = vmul.f32 %v1931, %v7313
        %v7435 = vmul.f32 %v1934, %v7316
        %v7436 = vmul.f32 %v1937, %v7319
        %v7437 = vmul.f32 %v1940, %v7322
        %v7438 = vmul.f32 %v1943, %v7325
        %v7439 = vmul.f32 %v1946, %v7328
        %v7440 = vmul.f32 %v1949, %v7331
        %v7441 = vmul.f32 %v1952, %v7334
        %v7442 = vmul.f32 %v1955, %v7337
        %v7443 = vmul.f32 %v1958, %v7340
        %v7444 = vmul.f32 %v1961, %v7343
        %v7445 = vmul.f32 %v1964, %v7346
        %v7446 = vmul.f32 %v1967, %v7349
        %v7447 = vmul.f32 %v1970, %v7352
        %v7448 = vmul.f32 %v1973, %v7355
        %v7449 = vmul.f32 %v1976, %v7358
        %v7450 = vmul.f32 %v1979, %v7361
        %v7451 = vmul.f32 %v1982, %v7364
        %v7452 = vmul.f32 %v1985, %v7367
        %v7453 = vmul.f32 %v1988, %v7370
        %v7454 = vmul.f32 %v1991, %v7373
        %v7455 = vmul.f32 %v1994, %v7376
        %v7456 = vmul.f32 %v1997, %v7379
        %v7457 = vmul.f32 %v2000, %v7382
        %v7458 = vmul.f32 %v2003, %v7385
        %v7459 = vmul.f32 %v2006, %v7388
        %v7460 = vmul.f32 %v2009, %v7391
        %v7461 = vmul.f32 %v2012, %v7394
        %v7462 = vmul.f32 %v2015, %v7397
        %v7463 = vlaneseq
        %v7464 = vshrl.u32 %v7463, 7
        %v7465 = vadd.s32 %v7464, 8
        %v7466 = vadd.s32 %v7464, 16
        %v7467 = vadd.s32 %v7464, 24
        %v7468 = vadd.s32 %v7464, 32
        %v7469 = vadd.s32 %v7464, 40
        %v7470 = vadd.s32 %v7464, 48
        %v7471 = vadd.s32 %v7464, 56
        %v7472 = vadd.s32 %v7464, 64
        %v7473 = vadd.s32 %v7464, 72
        %v7474 = vadd.s32 %v7464, 80
        %v7475 = vadd.s32 %v7464, 88
        %v7476 = vadd.s32 %v7464, 96
        %v7477 = vadd.s32 %v7464, 104
        %v7478 = vadd.s32 %v7464, 112
        %v7479 = vadd.s32 %v7464, 120
        %v7480 = vld [vmem:[%s622] sm:$0xf]
        %v7481 = vperm.slane %v7480, 0
        %v7482 = vperm.slane %v7480, 1
        %v7483 = vperm.slane %v7480, 2
        %v7484 = vperm.slane %v7480, 3
        %vm7485 = vcmp.eq.s32.totalorder %v7464, %v7481
        %vm7486 = vcmp.eq.s32.totalorder %v7464, %v7482
        %vm7487 = vcmp.eq.s32.totalorder %v7464, %v7483
        %vm7488 = vcmp.eq.s32.totalorder %v7464, %v7484
        %vm7489 = vcmp.eq.s32.totalorder %v7465, %v7481
        %vm7490 = vcmp.eq.s32.totalorder %v7465, %v7482
        %vm7491 = vcmp.eq.s32.totalorder %v7465, %v7483
        %vm7492 = vcmp.eq.s32.totalorder %v7465, %v7484
        %vm7493 = vcmp.eq.s32.totalorder %v7466, %v7481
        %vm7494 = vcmp.eq.s32.totalorder %v7466, %v7482
        %vm7495 = vcmp.eq.s32.totalorder %v7466, %v7483
        %vm7496 = vcmp.eq.s32.totalorder %v7466, %v7484
        %vm7497 = vcmp.eq.s32.totalorder %v7467, %v7481
        %vm7498 = vcmp.eq.s32.totalorder %v7467, %v7482
        %vm7499 = vcmp.eq.s32.totalorder %v7467, %v7483
        %vm7500 = vcmp.eq.s32.totalorder %v7467, %v7484
        %vm7501 = vcmp.eq.s32.totalorder %v7468, %v7481
        %vm7502 = vcmp.eq.s32.totalorder %v7468, %v7482
        %vm7503 = vcmp.eq.s32.totalorder %v7468, %v7483
        %vm7504 = vcmp.eq.s32.totalorder %v7468, %v7484
        %vm7505 = vcmp.eq.s32.totalorder %v7469, %v7481
        %vm7506 = vcmp.eq.s32.totalorder %v7469, %v7482
        %vm7507 = vcmp.eq.s32.totalorder %v7469, %v7483
        %vm7508 = vcmp.eq.s32.totalorder %v7469, %v7484
        %vm7509 = vcmp.eq.s32.totalorder %v7470, %v7481
        %vm7510 = vcmp.eq.s32.totalorder %v7470, %v7482
        %vm7511 = vcmp.eq.s32.totalorder %v7470, %v7483
        %vm7512 = vcmp.eq.s32.totalorder %v7470, %v7484
        %vm7513 = vcmp.eq.s32.totalorder %v7471, %v7481
        %vm7514 = vcmp.eq.s32.totalorder %v7471, %v7482
        %vm7515 = vcmp.eq.s32.totalorder %v7471, %v7483
        %vm7516 = vcmp.eq.s32.totalorder %v7471, %v7484
        %vm7517 = vcmp.eq.s32.totalorder %v7472, %v7481
        %vm7518 = vcmp.eq.s32.totalorder %v7472, %v7482
        %vm7519 = vcmp.eq.s32.totalorder %v7472, %v7483
        %vm7520 = vcmp.eq.s32.totalorder %v7472, %v7484
        %vm7521 = vcmp.eq.s32.totalorder %v7473, %v7481
        %vm7522 = vcmp.eq.s32.totalorder %v7473, %v7482
        %vm7523 = vcmp.eq.s32.totalorder %v7473, %v7483
        %vm7524 = vcmp.eq.s32.totalorder %v7473, %v7484
        %vm7525 = vcmp.eq.s32.totalorder %v7474, %v7481
        %vm7526 = vcmp.eq.s32.totalorder %v7474, %v7482
        %vm7527 = vcmp.eq.s32.totalorder %v7474, %v7483
        %vm7528 = vcmp.eq.s32.totalorder %v7474, %v7484
        %vm7529 = vcmp.eq.s32.totalorder %v7475, %v7481
        %vm7530 = vcmp.eq.s32.totalorder %v7475, %v7482
        %vm7531 = vcmp.eq.s32.totalorder %v7475, %v7483
        %vm7532 = vcmp.eq.s32.totalorder %v7475, %v7484
        %vm7533 = vcmp.eq.s32.totalorder %v7476, %v7481
        %vm7534 = vcmp.eq.s32.totalorder %v7476, %v7482
        %vm7535 = vcmp.eq.s32.totalorder %v7476, %v7483
        %vm7536 = vcmp.eq.s32.totalorder %v7476, %v7484
        %vm7537 = vcmp.eq.s32.totalorder %v7477, %v7481
        %vm7538 = vcmp.eq.s32.totalorder %v7477, %v7482
        %vm7539 = vcmp.eq.s32.totalorder %v7477, %v7483
        %vm7540 = vcmp.eq.s32.totalorder %v7477, %v7484
        %vm7541 = vcmp.eq.s32.totalorder %v7478, %v7481
        %vm7542 = vcmp.eq.s32.totalorder %v7478, %v7482
        %vm7543 = vcmp.eq.s32.totalorder %v7478, %v7483
        %vm7544 = vcmp.eq.s32.totalorder %v7478, %v7484
        %vm7545 = vcmp.eq.s32.totalorder %v7479, %v7481
        %vm7546 = vcmp.eq.s32.totalorder %v7479, %v7482
        %vm7547 = vcmp.eq.s32.totalorder %v7479, %v7483
        %vm7548 = vcmp.eq.s32.totalorder %v7479, %v7484
        %v7549 = vsel %vm7485, 1, 0
        %v7550 = vsel %vm7486, 1, 0
        %v7551 = vsel %vm7487, 1, 0
        %v7552 = vsel %vm7488, 1, 0
        %v7553 = vsel %vm7489, 1, 0
        %v7554 = vsel %vm7490, 1, 0
        %v7555 = vsel %vm7491, 1, 0
        %v7556 = vsel %vm7492, 1, 0
        %v7557 = vsel %vm7493, 1, 0
        %v7558 = vsel %vm7494, 1, 0
        %v7559 = vsel %vm7495, 1, 0
        %v7560 = vsel %vm7496, 1, 0
        %v7561 = vsel %vm7497, 1, 0
        %v7562 = vsel %vm7498, 1, 0
        %v7563 = vsel %vm7499, 1, 0
        %v7564 = vsel %vm7500, 1, 0
        %v7565 = vsel %vm7501, 1, 0
        %v7566 = vsel %vm7502, 1, 0
        %v7567 = vsel %vm7503, 1, 0
        %v7568 = vsel %vm7504, 1, 0
        %v7569 = vsel %vm7505, 1, 0
        %v7570 = vsel %vm7506, 1, 0
        %v7571 = vsel %vm7507, 1, 0
        %v7572 = vsel %vm7508, 1, 0
        %v7573 = vsel %vm7509, 1, 0
        %v7574 = vsel %vm7510, 1, 0
        %v7575 = vsel %vm7511, 1, 0
        %v7576 = vsel %vm7512, 1, 0
        %v7577 = vsel %vm7513, 1, 0
        %v7578 = vsel %vm7514, 1, 0
        %v7579 = vsel %vm7515, 1, 0
        %v7580 = vsel %vm7516, 1, 0
        %v7581 = vsel %vm7517, 1, 0
        %v7582 = vsel %vm7518, 1, 0
        %v7583 = vsel %vm7519, 1, 0
        %v7584 = vsel %vm7520, 1, 0
        %v7585 = vsel %vm7521, 1, 0
        %v7586 = vsel %vm7522, 1, 0
        %v7587 = vsel %vm7523, 1, 0
        %v7588 = vsel %vm7524, 1, 0
        %v7589 = vsel %vm7525, 1, 0
        %v7590 = vsel %vm7526, 1, 0
        %v7591 = vsel %vm7527, 1, 0
        %v7592 = vsel %vm7528, 1, 0
        %v7593 = vsel %vm7529, 1, 0
        %v7594 = vsel %vm7530, 1, 0
        %v7595 = vsel %vm7531, 1, 0
        %v7596 = vsel %vm7532, 1, 0
        %v7597 = vsel %vm7533, 1, 0
        %v7598 = vsel %vm7534, 1, 0
        %v7599 = vsel %vm7535, 1, 0
        %v7600 = vsel %vm7536, 1, 0
        %v7601 = vsel %vm7537, 1, 0
        %v7602 = vsel %vm7538, 1, 0
        %v7603 = vsel %vm7539, 1, 0
        %v7604 = vsel %vm7540, 1, 0
        %v7605 = vsel %vm7541, 1, 0
        %v7606 = vsel %vm7542, 1, 0
        %v7607 = vsel %vm7543, 1, 0
        %v7608 = vsel %vm7544, 1, 0
        %v7609 = vsel %vm7545, 1, 0
        %v7610 = vsel %vm7546, 1, 0
        %v7611 = vsel %vm7547, 1, 0
        %v7612 = vsel %vm7548, 1, 0
        %v7613 = vcvt.s32.f32 %v7549
        %v7614 = vcvt.s32.f32 %v7550
        %v7615 = vcvt.s32.f32 %v7551
        %v7616 = vcvt.s32.f32 %v7552
        %v7617 = vcvt.s32.f32 %v7553
        %v7618 = vcvt.s32.f32 %v7554
        %v7619 = vcvt.s32.f32 %v7555
        %v7620 = vcvt.s32.f32 %v7556
        %v7621 = vcvt.s32.f32 %v7557
        %v7622 = vcvt.s32.f32 %v7558
        %v7623 = vcvt.s32.f32 %v7559
        %v7624 = vcvt.s32.f32 %v7560
        %v7625 = vcvt.s32.f32 %v7561
        %v7626 = vcvt.s32.f32 %v7562
        %v7627 = vcvt.s32.f32 %v7563
        %v7628 = vcvt.s32.f32 %v7564
        %v7629 = vcvt.s32.f32 %v7565
        %v7630 = vcvt.s32.f32 %v7566
        %v7631 = vcvt.s32.f32 %v7567
        %v7632 = vcvt.s32.f32 %v7568
        %v7633 = vcvt.s32.f32 %v7569
        %v7634 = vcvt.s32.f32 %v7570
        %v7635 = vcvt.s32.f32 %v7571
        %v7636 = vcvt.s32.f32 %v7572
        %v7637 = vcvt.s32.f32 %v7573
        %v7638 = vcvt.s32.f32 %v7574
        %v7639 = vcvt.s32.f32 %v7575
        %v7640 = vcvt.s32.f32 %v7576
        %v7641 = vcvt.s32.f32 %v7577
        %v7642 = vcvt.s32.f32 %v7578
        %v7643 = vcvt.s32.f32 %v7579
        %v7644 = vcvt.s32.f32 %v7580
        %v7645 = vcvt.s32.f32 %v7581
        %v7646 = vcvt.s32.f32 %v7582
        %v7647 = vcvt.s32.f32 %v7583
        %v7648 = vcvt.s32.f32 %v7584
        %v7649 = vcvt.s32.f32 %v7585
        %v7650 = vcvt.s32.f32 %v7586
        %v7651 = vcvt.s32.f32 %v7587
        %v7652 = vcvt.s32.f32 %v7588
        %v7653 = vcvt.s32.f32 %v7589
        %v7654 = vcvt.s32.f32 %v7590
        %v7655 = vcvt.s32.f32 %v7591
        %v7656 = vcvt.s32.f32 %v7592
        %v7657 = vcvt.s32.f32 %v7593
        %v7658 = vcvt.s32.f32 %v7594
        %v7659 = vcvt.s32.f32 %v7595
        %v7660 = vcvt.s32.f32 %v7596
        %v7661 = vcvt.s32.f32 %v7597
        %v7662 = vcvt.s32.f32 %v7598
        %v7663 = vcvt.s32.f32 %v7599
        %v7664 = vcvt.s32.f32 %v7600
        %v7665 = vcvt.s32.f32 %v7601
        %v7666 = vcvt.s32.f32 %v7602
        %v7667 = vcvt.s32.f32 %v7603
        %v7668 = vcvt.s32.f32 %v7604
        %v7669 = vcvt.s32.f32 %v7605
        %v7670 = vcvt.s32.f32 %v7606
        %v7671 = vcvt.s32.f32 %v7607
        %v7672 = vcvt.s32.f32 %v7608
        %v7673 = vcvt.s32.f32 %v7609
        %v7674 = vcvt.s32.f32 %v7610
        %v7675 = vcvt.s32.f32 %v7611
        %v7676 = vcvt.s32.f32 %v7612
        %v7677 = vld [vmem:[#allocation2] sm:$0xff]
        %v7678 = vld [vmem:[#allocation2 + $0x8] sm:$0xff]
        %v7679 = vld [vmem:[#allocation2 + $0x10] sm:$0xff]
        %v7680 = vld [vmem:[#allocation2 + $0x18] sm:$0xff]
        %v7681 = vld [vmem:[#allocation2 + $0x20] sm:$0xff]
        %v7682 = vld [vmem:[#allocation2 + $0x28] sm:$0xff]
        %v7683 = vld [vmem:[#allocation2 + $0x30] sm:$0xff]
        %v7684 = vld [vmem:[#allocation2 + $0x38] sm:$0xff]
        %v7685 = vld [vmem:[#allocation2 + $0x40] sm:$0xff]
        %v7686 = vld [vmem:[#allocation2 + $0x48] sm:$0xff]
        %v7687 = vld [vmem:[#allocation2 + $0x50] sm:$0xff]
        %v7688 = vld [vmem:[#allocation2 + $0x58] sm:$0xff]
        %v7689 = vld [vmem:[#allocation2 + $0x60] sm:$0xff]
        %v7690 = vld [vmem:[#allocation2 + $0x68] sm:$0xff]
        %v7691 = vld [vmem:[#allocation2 + $0x70] sm:$0xff]
        %v7692 = vld [vmem:[#allocation2 + $0x78] sm:$0xff]
        %7693 = vmatpush.msra.mxu0 %v7414
        %7694 = vmatpush.msra.mxu0 %v7413
        %7695 = vmatpush.msra.mxu0 %v7412
        %7696 = vmatpush.msra.mxu0 %v7411
        %7697 = vmatpush.msra.mxu0 %v7410
        %7698 = vmatpush.msra.mxu0 %v7409
        %7699 = vmatpush.msra.mxu0 %v7408
        %7700 = vmatpush.msra.mxu0 %v7407
        %7701 = vmatpush.msra.mxu0 %v7406
        %7702 = vmatpush.msra.mxu0 %v7405
        %7703 = vmatpush.msra.mxu0 %v7404
        %7704 = vmatpush.msra.mxu0 %v7403
        %7705 = vmatpush.msra.mxu0 %v7402
        %7706 = vmatpush.msra.mxu0 %v7401
        %7707 = vmatpush.msra.mxu0 %v7400
        %7708 = vmatpush.msra.mxu0 %v7399
        %7709 = vmatmul.f32.gmra.mxu0 %v7613
        %v7710 = vpop.f32.mrf.mxu0
        %v7711 = vadd.f32 0.0, %v7710
        %7712 = vmatmul.f32.gmra.mxu0 %v7617
        %v7713 = vpop.f32.mrf.mxu0
        %v7714 = vadd.f32 0.0, %v7713
        %7715 = vmatmul.f32.gmra.mxu0 %v7621
        %v7716 = vpop.f32.mrf.mxu0
        %v7717 = vadd.f32 0.0, %v7716
        %7718 = vmatmul.f32.gmra.mxu0 %v7625
        %v7719 = vpop.f32.mrf.mxu0
        %v7720 = vadd.f32 0.0, %v7719
        %7721 = vmatmul.f32.gmra.mxu0 %v7629
        %v7722 = vpop.f32.mrf.mxu0
        %v7723 = vadd.f32 0.0, %v7722
        %7724 = vmatmul.f32.gmra.mxu0 %v7633
        %v7725 = vpop.f32.mrf.mxu0
        %v7726 = vadd.f32 0.0, %v7725
        %7727 = vmatmul.f32.gmra.mxu0 %v7637
        %v7728 = vpop.f32.mrf.mxu0
        %v7729 = vadd.f32 0.0, %v7728
        %7730 = vmatmul.f32.gmra.mxu0 %v7641
        %v7731 = vpop.f32.mrf.mxu0
        %v7732 = vadd.f32 0.0, %v7731
        %7733 = vmatmul.f32.gmra.mxu0 %v7645
        %v7734 = vpop.f32.mrf.mxu0
        %v7735 = vadd.f32 0.0, %v7734
        %7736 = vmatmul.f32.gmra.mxu0 %v7649
        %v7737 = vpop.f32.mrf.mxu0
        %v7738 = vadd.f32 0.0, %v7737
        %7739 = vmatmul.f32.gmra.mxu0 %v7653
        %v7740 = vpop.f32.mrf.mxu0
        %v7741 = vadd.f32 0.0, %v7740
        %7742 = vmatmul.f32.gmra.mxu0 %v7657
        %v7743 = vpop.f32.mrf.mxu0
        %v7744 = vadd.f32 0.0, %v7743
        %7745 = vmatmul.f32.gmra.mxu0 %v7661
        %v7746 = vpop.f32.mrf.mxu0
        %v7747 = vadd.f32 0.0, %v7746
        %7748 = vmatmul.f32.gmra.mxu0 %v7665
        %v7749 = vpop.f32.mrf.mxu0
        %v7750 = vadd.f32 0.0, %v7749
        %7751 = vmatmul.f32.gmra.mxu0 %v7669
        %v7752 = vpop.f32.mrf.mxu0
        %v7753 = vadd.f32 0.0, %v7752
        %7754 = vmatmul.f32.gmra.mxu0 %v7673
        %v7755 = vpop.f32.mrf.mxu0
        %v7756 = vadd.f32 0.0, %v7755
        %7757 = vdwg.mxu0
        %7758 = vmatpush.msra.mxu0 %v7430
        %7759 = vmatpush.msra.mxu0 %v7429
        %7760 = vmatpush.msra.mxu0 %v7428
        %7761 = vmatpush.msra.mxu0 %v7427
        %7762 = vmatpush.msra.mxu0 %v7426
        %7763 = vmatpush.msra.mxu0 %v7425
        %7764 = vmatpush.msra.mxu0 %v7424
        %7765 = vmatpush.msra.mxu0 %v7423
        %7766 = vmatpush.msra.mxu0 %v7422
        %7767 = vmatpush.msra.mxu0 %v7421
        %7768 = vmatpush.msra.mxu0 %v7420
        %7769 = vmatpush.msra.mxu0 %v7419
        %7770 = vmatpush.msra.mxu0 %v7418
        %7771 = vmatpush.msra.mxu0 %v7417
        %7772 = vmatpush.msra.mxu0 %v7416
        %7773 = vmatpush.msra.mxu0 %v7415
        %7774 = vmatmul.f32.gmra.mxu0 %v7614
        %v7775 = vpop.f32.mrf.mxu0
        %v7776 = vadd.f32 %v7711, %v7775
        %7777 = vmatmul.f32.gmra.mxu0 %v7618
        %v7778 = vpop.f32.mrf.mxu0
        %v7779 = vadd.f32 %v7714, %v7778
        %7780 = vmatmul.f32.gmra.mxu0 %v7622
        %v7781 = vpop.f32.mrf.mxu0
        %v7782 = vadd.f32 %v7717, %v7781
        %7783 = vmatmul.f32.gmra.mxu0 %v7626
        %v7784 = vpop.f32.mrf.mxu0
        %v7785 = vadd.f32 %v7720, %v7784
        %7786 = vmatmul.f32.gmra.mxu0 %v7630
        %v7787 = vpop.f32.mrf.mxu0
        %v7788 = vadd.f32 %v7723, %v7787
        %7789 = vmatmul.f32.gmra.mxu0 %v7634
        %v7790 = vpop.f32.mrf.mxu0
        %v7791 = vadd.f32 %v7726, %v7790
        %7792 = vmatmul.f32.gmra.mxu0 %v7638
        %v7793 = vpop.f32.mrf.mxu0
        %v7794 = vadd.f32 %v7729, %v7793
        %7795 = vmatmul.f32.gmra.mxu0 %v7642
        %v7796 = vpop.f32.mrf.mxu0
        %v7797 = vadd.f32 %v7732, %v7796
        %7798 = vmatmul.f32.gmra.mxu0 %v7646
        %v7799 = vpop.f32.mrf.mxu0
        %v7800 = vadd.f32 %v7735, %v7799
        %7801 = vmatmul.f32.gmra.mxu0 %v7650
        %v7802 = vpop.f32.mrf.mxu0
        %v7803 = vadd.f32 %v7738, %v7802
        %7804 = vmatmul.f32.gmra.mxu0 %v7654
        %v7805 = vpop.f32.mrf.mxu0
        %v7806 = vadd.f32 %v7741, %v7805
        %7807 = vmatmul.f32.gmra.mxu0 %v7658
        %v7808 = vpop.f32.mrf.mxu0
        %v7809 = vadd.f32 %v7744, %v7808
        %7810 = vmatmul.f32.gmra.mxu0 %v7662
        %v7811 = vpop.f32.mrf.mxu0
        %v7812 = vadd.f32 %v7747, %v7811
        %7813 = vmatmul.f32.gmra.mxu0 %v7666
        %v7814 = vpop.f32.mrf.mxu0
        %v7815 = vadd.f32 %v7750, %v7814
        %7816 = vmatmul.f32.gmra.mxu0 %v7670
        %v7817 = vpop.f32.mrf.mxu0
        %v7818 = vadd.f32 %v7753, %v7817
        %7819 = vmatmul.f32.gmra.mxu0 %v7674
        %v7820 = vpop.f32.mrf.mxu0
        %v7821 = vadd.f32 %v7756, %v7820
        %7822 = vdwg.mxu0
        %7823 = vmatpush.msra.mxu0 %v7446
        %7824 = vmatpush.msra.mxu0 %v7445
        %7825 = vmatpush.msra.mxu0 %v7444
        %7826 = vmatpush.msra.mxu0 %v7443
        %7827 = vmatpush.msra.mxu0 %v7442
        %7828 = vmatpush.msra.mxu0 %v7441
        %7829 = vmatpush.msra.mxu0 %v7440
        %7830 = vmatpush.msra.mxu0 %v7439
        %7831 = vmatpush.msra.mxu0 %v7438
        %7832 = vmatpush.msra.mxu0 %v7437
        %7833 = vmatpush.msra.mxu0 %v7436
        %7834 = vmatpush.msra.mxu0 %v7435
        %7835 = vmatpush.msra.mxu0 %v7434
        %7836 = vmatpush.msra.mxu0 %v7433
        %7837 = vmatpush.msra.mxu0 %v7432
        %7838 = vmatpush.msra.mxu0 %v7431
        %7839 = vmatmul.f32.gmra.mxu0 %v7615
        %v7840 = vpop.f32.mrf.mxu0
        %v7841 = vadd.f32 %v7776, %v7840
        %7842 = vmatmul.f32.gmra.mxu0 %v7619
        %v7843 = vpop.f32.mrf.mxu0
        %v7844 = vadd.f32 %v7779, %v7843
        %7845 = vmatmul.f32.gmra.mxu0 %v7623
        %v7846 = vpop.f32.mrf.mxu0
        %v7847 = vadd.f32 %v7782, %v7846
        %7848 = vmatmul.f32.gmra.mxu0 %v7627
        %v7849 = vpop.f32.mrf.mxu0
        %v7850 = vadd.f32 %v7785, %v7849
        %7851 = vmatmul.f32.gmra.mxu0 %v7631
        %v7852 = vpop.f32.mrf.mxu0
        %v7853 = vadd.f32 %v7788, %v7852
        %7854 = vmatmul.f32.gmra.mxu0 %v7635
        %v7855 = vpop.f32.mrf.mxu0
        %v7856 = vadd.f32 %v7791, %v7855
        %7857 = vmatmul.f32.gmra.mxu0 %v7639
        %v7858 = vpop.f32.mrf.mxu0
        %v7859 = vadd.f32 %v7794, %v7858
        %7860 = vmatmul.f32.gmra.mxu0 %v7643
        %v7861 = vpop.f32.mrf.mxu0
        %v7862 = vadd.f32 %v7797, %v7861
        %7863 = vmatmul.f32.gmra.mxu0 %v7647
        %v7864 = vpop.f32.mrf.mxu0
        %v7865 = vadd.f32 %v7800, %v7864
        %7866 = vmatmul.f32.gmra.mxu0 %v7651
        %v7867 = vpop.f32.mrf.mxu0
        %v7868 = vadd.f32 %v7803, %v7867
        %7869 = vmatmul.f32.gmra.mxu0 %v7655
        %v7870 = vpop.f32.mrf.mxu0
        %v7871 = vadd.f32 %v7806, %v7870
        %7872 = vmatmul.f32.gmra.mxu0 %v7659
        %v7873 = vpop.f32.mrf.mxu0
        %v7874 = vadd.f32 %v7809, %v7873
        %7875 = vmatmul.f32.gmra.mxu0 %v7663
        %v7876 = vpop.f32.mrf.mxu0
        %v7877 = vadd.f32 %v7812, %v7876
        %7878 = vmatmul.f32.gmra.mxu0 %v7667
        %v7879 = vpop.f32.mrf.mxu0
        %v7880 = vadd.f32 %v7815, %v7879
        %7881 = vmatmul.f32.gmra.mxu0 %v7671
        %v7882 = vpop.f32.mrf.mxu0
        %v7883 = vadd.f32 %v7818, %v7882
        %7884 = vmatmul.f32.gmra.mxu0 %v7675
        %v7885 = vpop.f32.mrf.mxu0
        %v7886 = vadd.f32 %v7821, %v7885
        %7887 = vdwg.mxu0
        %7888 = vmatpush.msra.mxu0 %v7462
        %7889 = vmatpush.msra.mxu0 %v7461
        %7890 = vmatpush.msra.mxu0 %v7460
        %7891 = vmatpush.msra.mxu0 %v7459
        %7892 = vmatpush.msra.mxu0 %v7458
        %7893 = vmatpush.msra.mxu0 %v7457
        %7894 = vmatpush.msra.mxu0 %v7456
        %7895 = vmatpush.msra.mxu0 %v7455
        %7896 = vmatpush.msra.mxu0 %v7454
        %7897 = vmatpush.msra.mxu0 %v7453
        %7898 = vmatpush.msra.mxu0 %v7452
        %7899 = vmatpush.msra.mxu0 %v7451
        %7900 = vmatpush.msra.mxu0 %v7450
        %7901 = vmatpush.msra.mxu0 %v7449
        %7902 = vmatpush.msra.mxu0 %v7448
        %7903 = vmatpush.msra.mxu0 %v7447
        %7904 = vmatmul.f32.gmra.mxu0 %v7616
        %v7905 = vpop.f32.mrf.mxu0
        %v7906 = vadd.f32 %v7841, %v7905
        %7907 = vmatmul.f32.gmra.mxu0 %v7620
        %v7908 = vpop.f32.mrf.mxu0
        %v7909 = vadd.f32 %v7844, %v7908
        %7910 = vmatmul.f32.gmra.mxu0 %v7624
        %v7911 = vpop.f32.mrf.mxu0
        %v7912 = vadd.f32 %v7847, %v7911
        %7913 = vmatmul.f32.gmra.mxu0 %v7628
        %v7914 = vpop.f32.mrf.mxu0
        %v7915 = vadd.f32 %v7850, %v7914
        %7916 = vmatmul.f32.gmra.mxu0 %v7632
        %v7917 = vpop.f32.mrf.mxu0
        %v7918 = vadd.f32 %v7853, %v7917
        %7919 = vmatmul.f32.gmra.mxu0 %v7636
        %v7920 = vpop.f32.mrf.mxu0
        %v7921 = vadd.f32 %v7856, %v7920
        %7922 = vmatmul.f32.gmra.mxu0 %v7640
        %v7923 = vpop.f32.mrf.mxu0
        %v7924 = vadd.f32 %v7859, %v7923
        %7925 = vmatmul.f32.gmra.mxu0 %v7644
        %v7926 = vpop.f32.mrf.mxu0
        %v7927 = vadd.f32 %v7862, %v7926
        %7928 = vmatmul.f32.gmra.mxu0 %v7648
        %v7929 = vpop.f32.mrf.mxu0
        %v7930 = vadd.f32 %v7865, %v7929
        %7931 = vmatmul.f32.gmra.mxu0 %v7652
        %v7932 = vpop.f32.mrf.mxu0
        %v7933 = vadd.f32 %v7868, %v7932
        %7934 = vmatmul.f32.gmra.mxu0 %v7656
        %v7935 = vpop.f32.mrf.mxu0
        %v7936 = vadd.f32 %v7871, %v7935
        %7937 = vmatmul.f32.gmra.mxu0 %v7660
        %v7938 = vpop.f32.mrf.mxu0
        %v7939 = vadd.f32 %v7874, %v7938
        %7940 = vmatmul.f32.gmra.mxu0 %v7664
        %v7941 = vpop.f32.mrf.mxu0
        %v7942 = vadd.f32 %v7877, %v7941
        %7943 = vmatmul.f32.gmra.mxu0 %v7668
        %v7944 = vpop.f32.mrf.mxu0
        %v7945 = vadd.f32 %v7880, %v7944
        %7946 = vmatmul.f32.gmra.mxu0 %v7672
        %v7947 = vpop.f32.mrf.mxu0
        %v7948 = vadd.f32 %v7883, %v7947
        %7949 = vmatmul.f32.gmra.mxu0 %v7676
        %v7950 = vpop.f32.mrf.mxu0
        %v7951 = vadd.f32 %v7886, %v7950
        %7952 = vdwg.mxu0
        %v7953 = vadd.f32 %v7677, %v7906
        %v7954 = vadd.f32 %v7678, %v7909
        %v7955 = vadd.f32 %v7679, %v7912
        %v7956 = vadd.f32 %v7680, %v7915
        %v7957 = vadd.f32 %v7681, %v7918
        %v7958 = vadd.f32 %v7682, %v7921
        %v7959 = vadd.f32 %v7683, %v7924
        %v7960 = vadd.f32 %v7684, %v7927
        %v7961 = vadd.f32 %v7685, %v7930
        %v7962 = vadd.f32 %v7686, %v7933
        %v7963 = vadd.f32 %v7687, %v7936
        %v7964 = vadd.f32 %v7688, %v7939
        %v7965 = vadd.f32 %v7689, %v7942
        %v7966 = vadd.f32 %v7690, %v7945
        %v7967 = vadd.f32 %v7691, %v7948
        %v7968 = vadd.f32 %v7692, %v7951
        %7969 = vst [vmem:[#allocation2] sm:$0xff] %v7953
        %7970 = vst [vmem:[#allocation2 + $0x8] sm:$0xff] %v7954
        %7971 = vst [vmem:[#allocation2 + $0x10] sm:$0xff] %v7955
        %7972 = vst [vmem:[#allocation2 + $0x18] sm:$0xff] %v7956
        %7973 = vst [vmem:[#allocation2 + $0x20] sm:$0xff] %v7957
        %7974 = vst [vmem:[#allocation2 + $0x28] sm:$0xff] %v7958
        %7975 = vst [vmem:[#allocation2 + $0x30] sm:$0xff] %v7959
        %7976 = vst [vmem:[#allocation2 + $0x38] sm:$0xff] %v7960
        %7977 = vst [vmem:[#allocation2 + $0x40] sm:$0xff] %v7961
        %7978 = vst [vmem:[#allocation2 + $0x48] sm:$0xff] %v7962
        %7979 = vst [vmem:[#allocation2 + $0x50] sm:$0xff] %v7963
        %7980 = vst [vmem:[#allocation2 + $0x58] sm:$0xff] %v7964
        %7981 = vst [vmem:[#allocation2 + $0x60] sm:$0xff] %v7965
        %7982 = vst [vmem:[#allocation2 + $0x68] sm:$0xff] %v7966
        %7983 = vst [vmem:[#allocation2 + $0x70] sm:$0xff] %v7967
        %7984 = vst [vmem:[#allocation2 + $0x78] sm:$0xff] %v7968
        %p7985 = scmp.eq.s32.totalorder %s34, 1
        // Predicated region
        $region85: #{tpu_custom_call.1} parent=79 // pred_check
          %p7986 = pneg %p7985
        $region86: #{tpu_custom_call.1} parent=79 // pred_check_branch
          %7988 = sbr.rel (%p7986) target = $region88
        $region87: #{tpu_custom_call.1} parent=79 // pred_region
          %v7989 = vld [vmem:[#allocation2] sm:$0xff]
          %v7990 = vld [vmem:[#allocation2 + $0x8] sm:$0xff]
          %v7991 = vld [vmem:[#allocation2 + $0x10] sm:$0xff]
          %v7992 = vld [vmem:[#allocation2 + $0x18] sm:$0xff]
          %v7993 = vld [vmem:[#allocation2 + $0x20] sm:$0xff]
          %v7994 = vld [vmem:[#allocation2 + $0x28] sm:$0xff]
          %v7995 = vld [vmem:[#allocation2 + $0x30] sm:$0xff]
          %v7996 = vld [vmem:[#allocation2 + $0x38] sm:$0xff]
          %v7997 = vld [vmem:[#allocation2 + $0x40] sm:$0xff]
          %v7998 = vld [vmem:[#allocation2 + $0x48] sm:$0xff]
          %v7999 = vld [vmem:[#allocation2 + $0x50] sm:$0xff]
          %v8000 = vld [vmem:[#allocation2 + $0x58] sm:$0xff]
          %v8001 = vld [vmem:[#allocation2 + $0x60] sm:$0xff]
          %v8002 = vld [vmem:[#allocation2 + $0x68] sm:$0xff]
          %v8003 = vld [vmem:[#allocation2 + $0x70] sm:$0xff]
          %v8004 = vld [vmem:[#allocation2 + $0x78] sm:$0xff]
          %8005 = vst [vmem:[%s586] sm:$0xff] %v7989
          %8006 = vst [vmem:[%s586 + $0x8] sm:$0xff] %v7990
          %8007 = vst [vmem:[%s586 + $0x10] sm:$0xff] %v7991
          %8008 = vst [vmem:[%s586 + $0x18] sm:$0xff] %v7992
          %8009 = vst [vmem:[%s586 + $0x20] sm:$0xff] %v7993
          %8010 = vst [vmem:[%s586 + $0x28] sm:$0xff] %v7994
          %8011 = vst [vmem:[%s586 + $0x30] sm:$0xff] %v7995
          %8012 = vst [vmem:[%s586 + $0x38] sm:$0xff] %v7996
          %8013 = vst [vmem:[%s586 + $0x40] sm:$0xff] %v7997
          %8014 = vst [vmem:[%s586 + $0x48] sm:$0xff] %v7998
          %8015 = vst [vmem:[%s586 + $0x50] sm:$0xff] %v7999
          %8016 = vst [vmem:[%s586 + $0x58] sm:$0xff] %v8000
          %8017 = vst [vmem:[%s586 + $0x60] sm:$0xff] %v8001
          %8018 = vst [vmem:[%s586 + $0x68] sm:$0xff] %v8002
          %8019 = vst [vmem:[%s586 + $0x70] sm:$0xff] %v8003
          %8020 = vst [vmem:[%s586 + $0x78] sm:$0xff] %v8004
        $region88: #{tpu_custom_call.1} parent=79 // pred_fallthru
          _
        %s8021 = sand.u32 %s400, 1
        %s8022 = scalar_lea.sflag [#allocation5], %s8021
        %s8023 = sand.u32 %s400, 1
        %s8024 = smul.addr %s8023, 128
        %s8025 = scalar_lea.vmem [#allocation4], %s8024
        // Predicated region
        $region89: #{tpu_custom_call.1} parent=79 // pred_check
          %p8026 = pneg %p410
        $region90: #{tpu_custom_call.1} parent=79 // pred_check_branch
          %8028 = sbr.rel (%p8026) target = $region92
        $region91: #{tpu_custom_call.1} parent=79 // pred_region
          %8030 = vsyncadd %s8022, 0
          %s8031 = smul.addr %s33, 16
          %s8032 = smul.addr %s8031, 8
          %s8033 = scalar_lea.hbm %s15, %s8032
          %s8034 = sshll.u32 %s8025, 4
          %s8035 = int_to_ptr.vmem [resolvable:$true] %s8034
          %s8036 = sshll.u32 %s8033, 4
          %s8037 = int_to_ptr.hbm [resolvable:$true] %s8036
          %8042 = dma.vmem_to_hbm [thread:$0]  %s8035, 2048, %s8037, %s8022, 128, 128, 8
        $region92: #{tpu_custom_call.1} parent=79 // pred_fallthru
          _
      $region80: #{tpu_custom_call.1} parent=5 // pred_fallthru
        _
      %p8043 = scmp.le.s32.totalorder 2, %s24
      // Predicated region
      $region93: #{tpu_custom_call.1} parent=5 // pred_check
        %p8044 = pneg %p8043
      $region94: #{tpu_custom_call.1} parent=5 // pred_check_branch
        %8046 = sbr.rel (%p8044) target = $region96
      $region95: #{tpu_custom_call.1} parent=5 // pred_region
        %s8047 = ssub.s32 %s24, 2
        // Predicated region
        $region97: #{tpu_custom_call.1} parent=95 // pred_check
          %p8048 = pneg %p416
        $region98: #{tpu_custom_call.1} parent=95 // pred_check_branch
          %8050 = sbr.rel (%p8048) target = $region100
        $region99: #{tpu_custom_call.1} parent=95 // pred_region
          %s8051 = sand.u32 %s401, 1
          %s8052 = scalar_lea.sflag [#allocation5], %s8051
          %s8053 = sand.u32 %s401, 1
          %s8054 = smul.addr %s8053, 128
          %s8055 = scalar_lea.vmem [#allocation4], %s8054
          %8057 = dma.done %s8052, 2048
        $region100: #{tpu_custom_call.1} parent=95 // pred_fallthru
          _
      $region96: #{tpu_custom_call.1} parent=5 // pred_fallthru
        _
    $region6: #{tpu_custom_call.1} parent=1 // loop_footer
      %s28 = sadd.s32 1, %s24
    $region7: #{tpu_custom_call.1} parent=1 // loop_footer_branch
      %23 = sbr.rel target = $region3
    $region8: #{tpu_custom_call.1} parent=1 // loop_exit
      _
    %8058 = vsyncpa [#allocation5], 1
    %s8059 = scalar_lea.sflag [#allocation5], 1
    %8060 = vsyncpa %s8059, 1

</llo_original>
